<compile_context>
chip_gen: v7x
topology: tpu7x:2x2x1
jax: 0.10.0
libtpu: 0.0.40
codegen_flags: <defaults>
</compile_context>

<pallas_src>
import math

import numpy as np
import jax
import jax.numpy as jnp
from jax import lax
from jax.experimental import pallas as pl
from jax.experimental.pallas import tpu as pltpu

# ------------------------- small DCCRN configuration -------------------------
FFT_LENGTH = 64
WIN_LENGTH = 64
HOP_SIZE = 32
NUM_CONVS = 3
ENC_CHANNELS = [4, 8, 16]
DEC_CHANNELS = [32, 16, 8]        # reversed & doubled (skip concat), per paper
FREQ_K = 5
TIME_K = 2
STRIDE_F = 2                      # stride (2, 1)
DILATION = 1
NUM_RNN_LAYERS = 2
MASK_TYPE = "E"
BN_EPS = 1e-5                     # nn.BatchNorm2d default eps
PRELU_A = 0.25                    # default nn.PReLU() slope (1-D, not xavier'd)

F_NO_DC = FFT_LENGTH // 2                         # 32 freq bins w/o DC
F_DIL = F_NO_DC // (2 ** NUM_CONVS)               # 4
RNN_HIDDEN = ENC_CHANNELS[-1] * 2                 # 32
RNN_INPUT = RNN_HIDDEN * F_DIL                    # 128


# ========================= fused whole-network kernel =========================
def _dccrn_kernel(
        x0_ref,                                               # [T, 64]  f32
        e1a_ref, e1b_ref, e2a_ref, e2b_ref, e3a_ref, e3b_ref,  # encoder taps bf16
        wih1_ref, whh1_ref, b1_ref, wih2_ref, whh2_ref, b2_ref,
        wd_ref, bd_ref,                                       # separator
        d1ca_ref, d1cb_ref, d1sa_ref, d1sb_ref,               # decoder taps bf16
        d2ca_ref, d2cb_ref, d2sa_ref, d2sb_ref,
        d3ca_ref, d3cb_ref, d3sa_ref, d3sb_ref,
        out_ref,                                              # [T, 64]  f32
        h1_buf, h2_buf):                                      # [T, H]   scratch
    T = x0_ref.shape[0]
    H = RNN_HIDDEN

    # ---- tiny [T, T] time-shift matrices built from iota (no rolls/slices) ----
    def shift_mat(offset):
        # S[i, j] = 1 iff j == i + offset   =>  (S @ x)[t] = x[t + offset]
        ii = lax.broadcasted_iota(jnp.int32, (T, T), 0)
        jj = lax.broadcasted_iota(jnp.int32, (T, T), 1)
        return jnp.where(jj == ii + offset, 1.0, 0.0).astype(jnp.float32)

    s_prev = shift_mat(-1)   # x[t-1], zero at t = 0      (causal encoder tap)
    s_next = shift_mat(1)    # x[t+1], zero at t = T-1    (semi-causal decoder tap)

    def tshift(x, s):
        return jnp.dot(s, x, preferred_element_type=jnp.float32)

    # ---- train-mode BatchNorm (gamma=1, beta=0) + PReLU, one pass ------------
    def bn_prelu(y, f_out):
        # y: [T, L] with lane layout (part, channel)-major, freq minor;
        # each BN channel owns a contiguous group of f_out lanes.
        L = y.shape[1]
        cnt = float(y.shape[0] * f_out)              # B=1: count = T * F
        r = lax.broadcasted_iota(jnp.int32, (L, L), 0).astype(jnp.float32)
        c = lax.broadcasted_iota(jnp.int32, (L, L), 1).astype(jnp.float32)
        inv_f = 1.0 / float(f_out)
        same = jnp.floor(r * inv_f) == jnp.floor(c * inv_f)
        m = jnp.where(same, 1.0 / cnt, 0.0)          # group-averaging matrix
        s1 = jnp.sum(y, axis=0, keepdims=True)                       # [1, L]
        s2 = jnp.sum(y * y, axis=0, keepdims=True)
        mean = jnp.dot(s1, m, preferred_element_type=jnp.float32)    # per-ch mean
        ex2 = jnp.dot(s2, m, preferred_element_type=jnp.float32)
        var = ex2 - mean * mean
        yn = (y - mean) * lax.rsqrt(var + BN_EPS)
        return jnp.where(yn > 0, yn, PRELU_A * yn)

    # ---- complex conv block: sum of lane-dense bf16 matmuls + BN + PReLU -----
    def conv_block(pairs, f_out):
        acc = None
        for xv, bref in pairs:
            part = jnp.dot(xv.astype(jnp.bfloat16), bref[...],
                           preferred_element_type=jnp.float32)
            acc = part if acc is None else acc + part
        return bn_prelu(acc, f_out)

    # ------------------------------- Encoder ---------------------------------
    x0 = x0_ref[...]
    e1 = conv_block([(tshift(x0, s_prev), e1a_ref), (x0, e1b_ref)], F_NO_DC // 2)
    e2 = conv_block([(tshift(e1, s_prev), e2a_ref), (e1, e2b_ref)], F_NO_DC // 4)
    e3 = conv_block([(tshift(e2, s_prev), e3a_ref), (e2, e3b_ref)], F_NO_DC // 8)

    # ------------------------------ Separator --------------------------------
    def lstm_layer(gates_x, whh_ref, out_buf):
        # gates_x: [T, 4H] precomputed x @ W_ih + b (PyTorch gate order i,f,g,o)
        h = jnp.zeros((1, H), jnp.float32)
        c = jnp.zeros((1, H), jnp.float32)
        for t in range(T):                                    # fully unrolled
            g = gates_x[t:t + 1, :] + jnp.dot(
                h.astype(jnp.bfloat16), whh_ref[...],
                preferred_element_type=jnp.float32)
            sg = jax.nn.sigmoid(g)                            # full-vreg EUP
            tg = jnp.tanh(g)
            i_g = sg[:, 0:H]
            f_g = sg[:, H:2 * H]
            g_g = tg[:, 2 * H:3 * H]
            o_g = sg[:, 3 * H:4 * H]
            c = f_g * c + i_g * g_g
            h = o_g * jnp.tanh(c)
            out_buf[pl.ds(t, 1), :] = h
        return out_buf[...]

    gx1 = jnp.dot(e3.astype(jnp.bfloat16), wih1_ref[...],
                  preferred_element_type=jnp.float32) + b1_ref[...]
    h1 = lstm_layer(gx1, whh1_ref, h1_buf)                    # [T, H]
    gx2 = jnp.dot(h1.astype(jnp.bfloat16), wih2_ref[...],
                  preferred_element_type=jnp.float32) + b2_ref[...]
    h2 = lstm_layer(gx2, whh2_ref, h2_buf)                    # [T, H]
    sep = jnp.dot(h2.astype(jnp.bfloat16), wd_ref[...],
                  preferred_element_type=jnp.float32) + bd_ref[...]   # [T, 128]

    # ------------------------------- Decoder ---------------------------------
    # skip list is reversed: e3, e2, e1.  Current & skip paths use separate
    # pre-packed tap matrices (so no in-kernel lane concatenation is needed).
    d1 = conv_block([(tshift(sep, s_next), d1ca_ref), (sep, d1cb_ref),
                     (tshift(e3, s_next), d1sa_ref), (e3, d1sb_ref)], F_DIL * 2)
    d2 = conv_block([(tshift(d1, s_next), d2ca_ref), (d1, d2cb_ref),
                     (tshift(e2, s_next), d2sa_ref), (e2, d2sb_ref)], F_DIL * 4)
    d3 = conv_block([(tshift(d2, s_next), d3ca_ref), (d2, d3cb_ref),
                     (tshift(e1, s_next), d3sa_ref), (e1, d3sb_ref)], F_DIL * 8)

    out_ref[...] = d3                                         # [T, 2*F_NO_DC]


# =================== wrapper-side packed-weight construction ==================
def _freq_map_conv(f_in, f_out, kf, pad, stride):
    """fmap[k, fi, fo] = 1 iff fi = fo*stride + k - pad (forward conv)."""
    m = np.zeros((kf, f_in, f_out), np.float32)
    for fo in range(f_out):
        for k in range(kf):
            fi = fo * stride + k - pad
            if 0 <= fi < f_in:
                m[k, fi, fo] = 1.0
    return m


def _freq_map_deconv(f_in, f_out, kf, pad, stride):
    """fmap[k, fi, fo] = 1 iff fo = fi*stride + k - pad (ConvTranspose scatter,
       output_padding handled implicitly by f_out = 2*f_in)."""
    m = np.zeros((kf, f_in, f_out), np.float32)
    for fi in range(f_in):
        for k in range(kf):
            fo = fi * stride + k - pad
            if 0 <= fo < f_out:
                m[k, fi, fo] = 1.0
    return m


def _pack_complex_tap(wr, wi, fmap):
    """wr/wi: [Cin, Cout, kf] (one time tap); fmap: [kf, Fin, Fout].
       Returns B [2*Cin*Fin, 2*Cout*Fout] (bf16) so that, with lane layout
       l = (part*C + ch)*F + f (real part first), X @ B performs one time tap
       of the complex conv:  yr = Wr xr - Wi xi ;  yi = Wi xr + Wr xi."""
    k = jnp.stack([jnp.stack([wr, wi], axis=0),
                   jnp.stack([-wi, wr], axis=0)], axis=0)     # [2,2,ci,co,kf]
    b6 = jnp.einsum("pqcok,kfg->pcfqog", k,
                    jnp.asarray(fmap, dtype=jnp.float32))
    c_in, c_out = wr.shape[0], wr.shape[1]
    f_in, f_out = fmap.shape[1], fmap.shape[2]
    return b6.reshape(2 * c_in * f_in, 2 * c_out * f_out).astype(jnp.bfloat16)


def _encoder_tap_mats(p, f_in):
    """[B_dt0 (pairs with x[t-1]), B_dt1 (pairs with x[t])] — causal conv,
       freq stride 2, left time pad + end chomp.  Conv bias omitted: cancelled
       exactly by train-mode BatchNorm."""
    f_out = f_in // STRIDE_F
    fmap = _freq_map_conv(f_in, f_out, FREQ_K,
                          (FREQ_K - 1) * DILATION // 2, STRIDE_F)
    mats = []
    for dt in range(TIME_K):
        wr = jnp.transpose(p["wr"][:, :, :, dt], (1, 0, 2))   # [ci, co, kf]
        wi = jnp.transpose(p["wi"][:, :, :, dt], (1, 0, 2))
        mats.append(_pack_complex_tap(wr, wi, fmap))
    return mats


def _decoder_tap_mats(p, f_in):
    """[cur_dt0 (pairs with x[t+1]), cur_dt1 (x[t]), skip_dt0, skip_dt1] —
       semi-causal transposed conv (one-frame look-ahead: deconv chomps the
       beginning), freq upsample x2 with output_padding 1."""
    f_out = f_in * STRIDE_F
    fmap = _freq_map_deconv(f_in, f_out, FREQ_K,
                            (FREQ_K - 1) * DILATION // 2, STRIDE_F)
    c_half = p["wr"].shape[0] // 2        # PyTorch concat order: [current, skip]
    mats = []
    for sl in (slice(0, c_half), slice(c_half, None)):
        for dt in range(TIME_K):
            wr = p["wr"][sl, :, :, dt]                         # [ci, co, kf]
            wi = p["wi"][sl, :, :, dt]
            mats.append(_pack_complex_tap(wr, wi, fmap))
    return mats


# ============================== STFT (plain JAX) ==============================
# TODO(synk): STFT class is not part of the provided module source; a standard
# Hann-window rFFT STFT / overlap-add iSTFT is implemented here in plain JAX.
def stft_transform(wav, window):
    pad = FFT_LENGTH // 2
    wav_p = jnp.pad(wav, (pad, pad), mode="reflect")
    n_frames = (wav_p.shape[0] - WIN_LENGTH) // HOP_SIZE + 1
    idx = jnp.arange(n_frames)[:, None] * HOP_SIZE + jnp.arange(WIN_LENGTH)[None, :]
    frames = wav_p[idx] * window[None, :]
    spec = jnp.fft.rfft(frames, n=FFT_LENGTH, axis=-1)        # [T, F_full]
    mag = jnp.abs(spec).T[None]                               # [1, F_full, T]
    phase = jnp.angle(spec).T[None]
    return mag, phase


def stft_inverse(mag, phase, window, out_len):
    spec = (mag[0] * jnp.exp(1j * phase[0])).T                # [T, F_full]
    frames = jnp.fft.irfft(spec, n=FFT_LENGTH, axis=-1) * window[None, :]
    T = frames.shape[0]
    total = (T - 1) * HOP_SIZE + FFT_LENGTH
    idx = (jnp.arange(T)[:, None] * HOP_SIZE
           + jnp.arange(FFT_LENGTH)[None, :]).reshape(-1)
    out = jnp.zeros(total, jnp.float32).at[idx].add(frames.reshape(-1))
    wsum = jnp.zeros(total, jnp.float32).at[idx].add(jnp.tile(window * window, T))
    out = out / jnp.maximum(wsum, 1e-8)
    pad = FFT_LENGTH // 2
    return out[pad:pad + out_len]


# =============================== DCCRN forward ================================
def dccrn_forward(waveform, params):
    window = params["window"]
    stft_mag, stft_phase = stft_transform(waveform, window)
    mag_dc, phase_dc = stft_mag[:, 0:1, :], stft_phase[:, 0:1, :]
    mag_ndc, phase_ndc = stft_mag[:, 1:, :], stft_phase[:, 1:, :]
    x_r = mag_ndc * jnp.cos(phase_ndc)                        # [1, F, T]
    x_i = mag_ndc * jnp.sin(phase_ndc)

    # Network input slab: [T, 2*F] = [real f0..F-1 | imag f0..F-1]
    x0 = jnp.concatenate([x_r[0].T, x_i[0].T], axis=1).astype(jnp.float32)

    # Pre-packed lane-dense tap matrices (bf16) for all conv / deconv blocks.
    enc_mats = []
    f = F_NO_DC
    for p in params["encoder"]:
        enc_mats += _encoder_tap_mats(p, f)
        f //= STRIDE_F
    dec_mats = []
    f = F_DIL
    for p in params["decoder"]:
        dec_mats += _decoder_tap_mats(p, f)
        f *= STRIDE_F

    sp = params["separator"]
    lstm_args = []
    for lp in sp["lstm"]:
        lstm_args += [lp["wih"].astype(jnp.bfloat16),
                      lp["whh"].astype(jnp.bfloat16),
                      lp["b"].astype(jnp.float32)]
    lstm_args += [sp["dense_w"].astype(jnp.bfloat16),
                  sp["dense_b"][None, :].astype(jnp.float32)]

    t_frames = x0.shape[0]
    kernel_args = [x0] + enc_mats + lstm_args + dec_mats
    mask = pl.pallas_call(
        _dccrn_kernel,
        out_shape=jax.ShapeDtypeStruct((t_frames, 2 * F_NO_DC), jnp.float32),
        scratch_shapes=[pltpu.VMEM((t_frames, RNN_HIDDEN), jnp.float32),
                        pltpu.VMEM((t_frames, RNN_HIDDEN), jnp.float32)],
    )(*kernel_args)                                           # [T, 2*F]

    mask_r = mask[:, :F_NO_DC].T[None, None]                  # [1, 1, F, T]
    mask_i = mask[:, F_NO_DC:].T[None, None]
    x_r4, x_i4 = x_r[:, None], x_i[:, None]

    # --------------------------- Mask (type 'E') ---------------------------
    mask_mag = jnp.tanh(jnp.sqrt(mask_r * mask_r + mask_i * mask_i))
    mask_phase = jnp.arctan2(mask_i, mask_r)
    in_mag = jnp.sqrt(x_r4 * x_r4 + x_i4 * x_i4)
    in_phase = jnp.arctan2(x_i4, x_r4)
    out_mag = (in_mag * mask_mag)[:, 0]                       # [1, F, T]
    out_phase = (in_phase + mask_phase)[:, 0]

    dec_mag = jnp.concatenate([mag_dc, out_mag], axis=1)      # [1, F_full, T]
    dec_phase = jnp.concatenate([phase_dc, out_phase], axis=1)
    return stft_inverse(dec_mag, dec_phase, window, waveform.shape[0])


# ============================ deterministic init ==============================
def init_params(key):
    keys = list(jax.random.split(key, 64))

    def nxt():
        return keys.pop()

    def xavier(shape, fan_in, fan_out):
        std = math.sqrt(2.0 / (fan_in + fan_out))
        return std * jax.random.normal(nxt(), shape, dtype=jnp.float32)

    params = {"window": jnp.hanning(WIN_LENGTH).astype(jnp.float32)}

    # Encoder: Conv2d weights [Cout, Cin, kf, kt].  (Conv bias omitted: it is
    # exactly cancelled by train-mode BatchNorm's mean subtraction.)
    enc = []
    cins = [1] + ENC_CHANNELS[:-1]
    for cin, cout in zip(cins, ENC_CHANNELS):
        fi, fo = cin * FREQ_K * TIME_K, cout * FREQ_K * TIME_K
        enc.append(dict(wr=xavier((cout, cin, FREQ_K, TIME_K), fi, fo),
                        wi=xavier((cout, cin, FREQ_K, TIME_K), fi, fo)))
    params["encoder"] = enc

    # Decoder: ConvTranspose2d weights [Cin, Cout, kf, kt].
    dec = []
    couts = [c // 2 for c in DEC_CHANNELS[1:]] + [1]
    for cin, cout in zip(DEC_CHANNELS, couts):
        fi, fo = cin * FREQ_K * TIME_K, cout * FREQ_K * TIME_K
        dec.append(dict(wr=xavier((cin, cout, FREQ_K, TIME_K), fi, fo),
                        wi=xavier((cin, cout, FREQ_K, TIME_K), fi, fo)))
    params["decoder"] = dec

    # Separator: LSTM layers (weights stored pre-transposed for x @ W) + dense.
    lstm = []
    in_sizes = [RNN_INPUT] + [RNN_HIDDEN] * (NUM_RNN_LAYERS - 1)
    for insz in in_sizes:
        wih = xavier((4 * RNN_HIDDEN, insz), insz, 4 * RNN_HIDDEN).T       # [In,4H]
        whh = xavier((4 * RNN_HIDDEN, RNN_HIDDEN), RNN_HIDDEN, 4 * RNN_HIDDEN).T
        b = 0.01 * jax.random.normal(nxt(), (4 * RNN_HIDDEN,), dtype=jnp.float32)
        lstm.append(dict(wih=wih, whh=whh, b=b[None, :]))                  # b = b_ih+b_hh
    dense_w = xavier((RNN_INPUT, RNN_HIDDEN), RNN_HIDDEN, RNN_INPUT).T     # [H,In]
    dense_b = 0.01 * jax.random.normal(nxt(), (RNN_INPUT,), dtype=jnp.float32)
    params["separator"] = dict(lstm=lstm, dense_w=dense_w, dense_b=dense_b)
    return params


if __name__ == "__main__":
    key = jax.random.PRNGKey(0)
    k_param, k_wav = jax.random.split(key)
    params = init_params(k_param)
    waveform = jax.random.normal(k_wav, (256,), dtype=jnp.float32)

    forward = jax.jit(dccrn_forward)
    clean = forward(waveform, params)
    jax.block_until_ready(clean)
    assert clean.shape == waveform.shape, clean.shape
    assert bool(jnp.all(jnp.isfinite(clean)))
    print("KERNEL_OK")
</pallas_src>

<mosaic_0001>
module attributes {stable_mosaic.version = 11 : i64} {
  func.func private @main(%arg0: i32) attributes {dimension_semantics = [#tpu.dimension_semantics<core_parallel>], iteration_bounds = array<i64: 2>, tpu.core_type = #tpu.core_type<sc_scalar_subcore>, window_params = []} {
    return
  }
}

module attributes {stable_mosaic.version = 11 : i64} {
  func.func private @main(%arg0: i32) attributes {dimension_semantics = [#tpu.dimension_semantics<core_parallel>], iteration_bounds = array<i64: 2>, tpu.core_type = #tpu.core_type<sc_scalar_subcore>, window_params = []} {
    return
  }
}

module attributes {stable_mosaic.version = 11 : i64} {
  func.func @_dccrn_kernel(%arg0: memref<9x64xf32, #tpu.memory_space<vmem>>, %arg1: memref<64x128xbf16, #tpu.memory_space<vmem>>, %arg2: memref<64x128xbf16, #tpu.memory_space<vmem>>, %arg3: memref<128x128xbf16, #tpu.memory_space<vmem>>, %arg4: memref<128x128xbf16, #tpu.memory_space<vmem>>, %arg5: memref<128x128xbf16, #tpu.memory_space<vmem>>, %arg6: memref<128x128xbf16, #tpu.memory_space<vmem>>, %arg7: memref<128x128xbf16, #tpu.memory_space<vmem>>, %arg8: memref<32x128xbf16, #tpu.memory_space<vmem>>, %arg9: memref<1x128xf32, #tpu.memory_space<vmem>>, %arg10: memref<32x128xbf16, #tpu.memory_space<vmem>>, %arg11: memref<32x128xbf16, #tpu.memory_space<vmem>>, %arg12: memref<1x128xf32, #tpu.memory_space<vmem>>, %arg13: memref<32x128xbf16, #tpu.memory_space<vmem>>, %arg14: memref<1x128xf32, #tpu.memory_space<vmem>>, %arg15: memref<128x128xbf16, #tpu.memory_space<vmem>>, %arg16: memref<128x128xbf16, #tpu.memory_space<vmem>>, %arg17: memref<128x128xbf16, #tpu.memory_space<vmem>>, %arg18: memref<128x128xbf16, #tpu.memory_space<vmem>>, %arg19: memref<128x128xbf16, #tpu.memory_space<vmem>>, %arg20: memref<128x128xbf16, #tpu.memory_space<vmem>>, %arg21: memref<128x128xbf16, #tpu.memory_space<vmem>>, %arg22: memref<128x128xbf16, #tpu.memory_space<vmem>>, %arg23: memref<128x64xbf16, #tpu.memory_space<vmem>>, %arg24: memref<128x64xbf16, #tpu.memory_space<vmem>>, %arg25: memref<128x64xbf16, #tpu.memory_space<vmem>>, %arg26: memref<128x64xbf16, #tpu.memory_space<vmem>>, %arg27: memref<9x64xf32, #tpu.memory_space<vmem>>, %arg28: memref<9x32xf32, #tpu.memory_space<vmem>>, %arg29: memref<9x32xf32, #tpu.memory_space<vmem>>) attributes {dimension_semantics = [], scalar_prefetch = 0 : i64, scratch_operands = 2 : i64, tpu.core_type = #tpu.core_type<tc>} {
    %0 = tpu.iota {dimensions = array<i32: 0>} : vector<9x9xi32>
    %1 = tpu.iota {dimensions = array<i32: 1>} : vector<9x9xi32>
    %c-1_i32 = arith.constant -1 : i32
    %2 = vector.broadcast %c-1_i32 : i32 to vector<9x9xi32>
    %3 = arith.addi %0, %2 : vector<9x9xi32>
    %4 = arith.cmpi eq, %1, %3 : vector<9x9xi32>
    %cst = arith.constant 1.000000e+00 : f32
    %cst_0 = arith.constant 0.000000e+00 : f32
    %5 = vector.broadcast %cst : f32 to vector<9x9xf32>
    %6 = vector.broadcast %cst_0 : f32 to vector<9x9xf32>
    %7 = arith.select %4, %5, %6 : vector<9x9xi1>, vector<9x9xf32>
    %8 = tpu.iota {dimensions = array<i32: 0>} : vector<9x9xi32>
    %9 = tpu.iota {dimensions = array<i32: 1>} : vector<9x9xi32>
    %c1_i32 = arith.constant 1 : i32
    %10 = vector.broadcast %c1_i32 : i32 to vector<9x9xi32>
    %11 = arith.addi %8, %10 : vector<9x9xi32>
    %12 = arith.cmpi eq, %9, %11 : vector<9x9xi32>
    %cst_1 = arith.constant 1.000000e+00 : f32
    %cst_2 = arith.constant 0.000000e+00 : f32
    %13 = vector.broadcast %cst_1 : f32 to vector<9x9xf32>
    %14 = vector.broadcast %cst_2 : f32 to vector<9x9xf32>
    %15 = arith.select %12, %13, %14 : vector<9x9xi1>, vector<9x9xf32>
    %c0 = arith.constant 0 : index
    %c0_3 = arith.constant 0 : index
    %16 = vector.load %arg0[%c0, %c0_3] : memref<9x64xf32, #tpu.memory_space<vmem>>, vector<9x64xf32>
    %cst_4 = arith.constant dense<0.000000e+00> : vector<9x64xf32>
    %17 = tpu.matmul %7, %16, %cst_4 {dimension_numbers = #tpu.dot_dimension_numbers<[1], [0], [0], [1], [0, 0, 1, 1], [], []>} : vector<9x9xf32>, vector<9x64xf32>, vector<9x64xf32> -> vector<9x64xf32>
    %18 = arith.truncf %17 : vector<9x64xf32> to vector<9x64xbf16>
    %c0_5 = arith.constant 0 : index
    %c0_6 = arith.constant 0 : index
    %19 = vector.load %arg1[%c0_5, %c0_6] : memref<64x128xbf16, #tpu.memory_space<vmem>>, vector<64x128xbf16>
    %cst_7 = arith.constant dense<0.000000e+00> : vector<9x128xf32>
    %20 = tpu.matmul %18, %19, %cst_7 {dimension_numbers = #tpu.dot_dimension_numbers<[1], [0], [0], [1], [0, 0, 1, 1], [], []>} : vector<9x64xbf16>, vector<64x128xbf16>, vector<9x128xf32> -> vector<9x128xf32>
    %21 = arith.truncf %16 : vector<9x64xf32> to vector<9x64xbf16>
    %c0_8 = arith.constant 0 : index
    %c0_9 = arith.constant 0 : index
    %22 = vector.load %arg2[%c0_8, %c0_9] : memref<64x128xbf16, #tpu.memory_space<vmem>>, vector<64x128xbf16>
    %cst_10 = arith.constant dense<0.000000e+00> : vector<9x128xf32>
    %23 = tpu.matmul %21, %22, %cst_10 {dimension_numbers = #tpu.dot_dimension_numbers<[1], [0], [0], [1], [0, 0, 1, 1], [], []>} : vector<9x64xbf16>, vector<64x128xbf16>, vector<9x128xf32> -> vector<9x128xf32>
    %24 = arith.addf %20, %23 : vector<9x128xf32>
    %25 = tpu.iota {dimensions = array<i32: 0>} : vector<128x128xi32>
    %26 = arith.sitofp %25 : vector<128x128xi32> to vector<128x128xf32>
    %27 = tpu.iota {dimensions = array<i32: 1>} : vector<128x128xi32>
    %28 = arith.sitofp %27 : vector<128x128xi32> to vector<128x128xf32>
    %cst_11 = arith.constant 6.250000e-02 : f32
    %29 = vector.broadcast %cst_11 : f32 to vector<128x128xf32>
    %30 = arith.mulf %26, %29 : vector<128x128xf32>
    %31 = math.floor %30 : vector<128x128xf32>
    %cst_12 = arith.constant 6.250000e-02 : f32
    %32 = vector.broadcast %cst_12 : f32 to vector<128x128xf32>
    %33 = arith.mulf %28, %32 : vector<128x128xf32>
    %34 = math.floor %33 : vector<128x128xf32>
    %35 = arith.cmpf oeq, %31, %34 : vector<128x128xf32>
    %cst_13 = arith.constant 0.0069444445 : f32
    %cst_14 = arith.constant 0.000000e+00 : f32
    %36 = vector.broadcast %cst_13 : f32 to vector<128x128xf32>
    %37 = vector.broadcast %cst_14 : f32 to vector<128x128xf32>
    %38 = arith.select %35, %36, %37 : vector<128x128xi1>, vector<128x128xf32>
    %cst_15 = arith.constant dense<0.000000e+00> : vector<128xf32>
    %39 = vector.multi_reduction <add>, %24, %cst_15 [0] : vector<9x128xf32> to vector<128xf32>
    %40 = vector.shape_cast %39 : vector<128xf32> to vector<1x128xf32>
    %41 = arith.mulf %24, %24 : vector<9x128xf32>
    %cst_16 = arith.constant dense<0.000000e+00> : vector<128xf32>
    %42 = vector.multi_reduction <add>, %41, %cst_16 [0] : vector<9x128xf32> to vector<128xf32>
    %43 = vector.shape_cast %42 : vector<128xf32> to vector<1x128xf32>
    %cst_17 = arith.constant dense<0.000000e+00> : vector<1x128xf32>
    %44 = tpu.matmul %40, %38, %cst_17 {dimension_numbers = #tpu.dot_dimension_numbers<[1], [0], [0], [1], [0, 0, 1, 1], [], []>} : vector<1x128xf32>, vector<128x128xf32>, vector<1x128xf32> -> vector<1x128xf32>
    %cst_18 = arith.constant dense<0.000000e+00> : vector<1x128xf32>
    %45 = tpu.matmul %43, %38, %cst_18 {dimension_numbers = #tpu.dot_dimension_numbers<[1], [0], [0], [1], [0, 0, 1, 1], [], []>} : vector<1x128xf32>, vector<128x128xf32>, vector<1x128xf32> -> vector<1x128xf32>
    %46 = arith.mulf %44, %44 : vector<1x128xf32>
    %47 = arith.subf %45, %46 : vector<1x128xf32>
    %48 = vector.broadcast %44 : vector<1x128xf32> to vector<9x128xf32>
    %49 = arith.subf %24, %48 : vector<9x128xf32>
    %cst_19 = arith.constant 9.99999974E-6 : f32
    %50 = vector.broadcast %cst_19 : f32 to vector<1x128xf32>
    %51 = arith.addf %47, %50 : vector<1x128xf32>
    %52 = math.rsqrt %51 : vector<1x128xf32>
    %53 = vector.broadcast %52 : vector<1x128xf32> to vector<9x128xf32>
    %54 = arith.mulf %49, %53 : vector<9x128xf32>
    %cst_20 = arith.constant 0.000000e+00 : f32
    %55 = vector.broadcast %cst_20 : f32 to vector<9x128xf32>
    %56 = arith.cmpf ogt, %54, %55 : vector<9x128xf32>
    %cst_21 = arith.constant 2.500000e-01 : f32
    %57 = vector.broadcast %cst_21 : f32 to vector<9x128xf32>
    %58 = arith.mulf %57, %54 : vector<9x128xf32>
    %59 = arith.select %56, %54, %58 : vector<9x128xi1>, vector<9x128xf32>
    %cst_22 = arith.constant dense<0.000000e+00> : vector<9x128xf32>
    %60 = tpu.matmul %7, %59, %cst_22 {dimension_numbers = #tpu.dot_dimension_numbers<[1], [0], [0], [1], [0, 0, 1, 1], [], []>} : vector<9x9xf32>, vector<9x128xf32>, vector<9x128xf32> -> vector<9x128xf32>
    %61 = arith.truncf %60 : vector<9x128xf32> to vector<9x128xbf16>
    %c0_23 = arith.constant 0 : index
    %c0_24 = arith.constant 0 : index
    %62 = vector.load %arg3[%c0_23, %c0_24] : memref<128x128xbf16, #tpu.memory_space<vmem>>, vector<128x128xbf16>
    %cst_25 = arith.constant dense<0.000000e+00> : vector<9x128xf32>
    %63 = tpu.matmul %61, %62, %cst_25 {dimension_numbers = #tpu.dot_dimension_numbers<[1], [0], [0], [1], [0, 0, 1, 1], [], []>} : vector<9x128xbf16>, vector<128x128xbf16>, vector<9x128xf32> -> vector<9x128xf32>
    %64 = arith.truncf %59 : vector<9x128xf32> to vector<9x128xbf16>
    %c0_26 = arith.constant 0 : index
    %c0_27 = arith.constant 0 : index
    %65 = vector.load %arg4[%c0_26, %c0_27] : memref<128x128xbf16, #tpu.memory_space<vmem>>, vector<128x128xbf16>
    %cst_28 = arith.constant dense<0.000000e+00> : vector<9x128xf32>
    %66 = tpu.matmul %64, %65, %cst_28 {dimension_numbers = #tpu.dot_dimension_numbers<[1], [0], [0], [1], [0, 0, 1, 1], [], []>} : vector<9x128xbf16>, vector<128x128xbf16>, vector<9x128xf32> -> vector<9x128xf32>
    %67 = arith.addf %63, %66 : vector<9x128xf32>
    %68 = tpu.iota {dimensions = array<i32: 0>} : vector<128x128xi32>
    %69 = arith.sitofp %68 : vector<128x128xi32> to vector<128x128xf32>
    %70 = tpu.iota {dimensions = array<i32: 1>} : vector<128x128xi32>
    %71 = arith.sitofp %70 : vector<128x128xi32> to vector<128x128xf32>
    %cst_29 = arith.constant 1.250000e-01 : f32
    %72 = vector.broadcast %cst_29 : f32 to vector<128x128xf32>
    %73 = arith.mulf %69, %72 : vector<128x128xf32>
    %74 = math.floor %73 : vector<128x128xf32>
    %cst_30 = arith.constant 1.250000e-01 : f32
    %75 = vector.broadcast %cst_30 : f32 to vector<128x128xf32>
    %76 = arith.mulf %71, %75 : vector<128x128xf32>
    %77 = math.floor %76 : vector<128x128xf32>
    %78 = arith.cmpf oeq, %74, %77 : vector<128x128xf32>
    %cst_31 = arith.constant 0.013888889 : f32
    %cst_32 = arith.constant 0.000000e+00 : f32
    %79 = vector.broadcast %cst_31 : f32 to vector<128x128xf32>
    %80 = vector.broadcast %cst_32 : f32 to vector<128x128xf32>
    %81 = arith.select %78, %79, %80 : vector<128x128xi1>, vector<128x128xf32>
    %cst_33 = arith.constant dense<0.000000e+00> : vector<128xf32>
    %82 = vector.multi_reduction <add>, %67, %cst_33 [0] : vector<9x128xf32> to vector<128xf32>
    %83 = vector.shape_cast %82 : vector<128xf32> to vector<1x128xf32>
    %84 = arith.mulf %67, %67 : vector<9x128xf32>
    %cst_34 = arith.constant dense<0.000000e+00> : vector<128xf32>
    %85 = vector.multi_reduction <add>, %84, %cst_34 [0] : vector<9x128xf32> to vector<128xf32>
    %86 = vector.shape_cast %85 : vector<128xf32> to vector<1x128xf32>
    %cst_35 = arith.constant dense<0.000000e+00> : vector<1x128xf32>
    %87 = tpu.matmul %83, %81, %cst_35 {dimension_numbers = #tpu.dot_dimension_numbers<[1], [0], [0], [1], [0, 0, 1, 1], [], []>} : vector<1x128xf32>, vector<128x128xf32>, vector<1x128xf32> -> vector<1x128xf32>
    %cst_36 = arith.constant dense<0.000000e+00> : vector<1x128xf32>
    %88 = tpu.matmul %86, %81, %cst_36 {dimension_numbers = #tpu.dot_dimension_numbers<[1], [0], [0], [1], [0, 0, 1, 1], [], []>} : vector<1x128xf32>, vector<128x128xf32>, vector<1x128xf32> -> vector<1x128xf32>
    %89 = arith.mulf %87, %87 : vector<1x128xf32>
    %90 = arith.subf %88, %89 : vector<1x128xf32>
    %91 = vector.broadcast %87 : vector<1x128xf32> to vector<9x128xf32>
    %92 = arith.subf %67, %91 : vector<9x128xf32>
    %cst_37 = arith.constant 9.99999974E-6 : f32
    %93 = vector.broadcast %cst_37 : f32 to vector<1x128xf32>
    %94 = arith.addf %90, %93 : vector<1x128xf32>
    %95 = math.rsqrt %94 : vector<1x128xf32>
    %96 = vector.broadcast %95 : vector<1x128xf32> to vector<9x128xf32>
    %97 = arith.mulf %92, %96 : vector<9x128xf32>
    %cst_38 = arith.constant 0.000000e+00 : f32
    %98 = vector.broadcast %cst_38 : f32 to vector<9x128xf32>
    %99 = arith.cmpf ogt, %97, %98 : vector<9x128xf32>
    %cst_39 = arith.constant 2.500000e-01 : f32
    %100 = vector.broadcast %cst_39 : f32 to vector<9x128xf32>
    %101 = arith.mulf %100, %97 : vector<9x128xf32>
    %102 = arith.select %99, %97, %101 : vector<9x128xi1>, vector<9x128xf32>
    %cst_40 = arith.constant dense<0.000000e+00> : vector<9x128xf32>
    %103 = tpu.matmul %7, %102, %cst_40 {dimension_numbers = #tpu.dot_dimension_numbers<[1], [0], [0], [1], [0, 0, 1, 1], [], []>} : vector<9x9xf32>, vector<9x128xf32>, vector<9x128xf32> -> vector<9x128xf32>
    %104 = arith.truncf %103 : vector<9x128xf32> to vector<9x128xbf16>
    %c0_41 = arith.constant 0 : index
    %c0_42 = arith.constant 0 : index
    %105 = vector.load %arg5[%c0_41, %c0_42] : memref<128x128xbf16, #tpu.memory_space<vmem>>, vector<128x128xbf16>
    %cst_43 = arith.constant dense<0.000000e+00> : vector<9x128xf32>
    %106 = tpu.matmul %104, %105, %cst_43 {dimension_numbers = #tpu.dot_dimension_numbers<[1], [0], [0], [1], [0, 0, 1, 1], [], []>} : vector<9x128xbf16>, vector<128x128xbf16>, vector<9x128xf32> -> vector<9x128xf32>
    %107 = arith.truncf %102 : vector<9x128xf32> to vector<9x128xbf16>
    %c0_44 = arith.constant 0 : index
    %c0_45 = arith.constant 0 : index
    %108 = vector.load %arg6[%c0_44, %c0_45] : memref<128x128xbf16, #tpu.memory_space<vmem>>, vector<128x128xbf16>
    %cst_46 = arith.constant dense<0.000000e+00> : vector<9x128xf32>
    %109 = tpu.matmul %107, %108, %cst_46 {dimension_numbers = #tpu.dot_dimension_numbers<[1], [0], [0], [1], [0, 0, 1, 1], [], []>} : vector<9x128xbf16>, vector<128x128xbf16>, vector<9x128xf32> -> vector<9x128xf32>
    %110 = arith.addf %106, %109 : vector<9x128xf32>
    %111 = tpu.iota {dimensions = array<i32: 0>} : vector<128x128xi32>
    %112 = arith.sitofp %111 : vector<128x128xi32> to vector<128x128xf32>
    %113 = tpu.iota {dimensions = array<i32: 1>} : vector<128x128xi32>
    %114 = arith.sitofp %113 : vector<128x128xi32> to vector<128x128xf32>
    %cst_47 = arith.constant 2.500000e-01 : f32
    %115 = vector.broadcast %cst_47 : f32 to vector<128x128xf32>
    %116 = arith.mulf %112, %115 : vector<128x128xf32>
    %117 = math.floor %116 : vector<128x128xf32>
    %cst_48 = arith.constant 2.500000e-01 : f32
    %118 = vector.broadcast %cst_48 : f32 to vector<128x128xf32>
    %119 = arith.mulf %114, %118 : vector<128x128xf32>
    %120 = math.floor %119 : vector<128x128xf32>
    %121 = arith.cmpf oeq, %117, %120 : vector<128x128xf32>
    %cst_49 = arith.constant 0.027777778 : f32
    %cst_50 = arith.constant 0.000000e+00 : f32
    %122 = vector.broadcast %cst_49 : f32 to vector<128x128xf32>
    %123 = vector.broadcast %cst_50 : f32 to vector<128x128xf32>
    %124 = arith.select %121, %122, %123 : vector<128x128xi1>, vector<128x128xf32>
    %cst_51 = arith.constant dense<0.000000e+00> : vector<128xf32>
    %125 = vector.multi_reduction <add>, %110, %cst_51 [0] : vector<9x128xf32> to vector<128xf32>
    %126 = vector.shape_cast %125 : vector<128xf32> to vector<1x128xf32>
    %127 = arith.mulf %110, %110 : vector<9x128xf32>
    %cst_52 = arith.constant dense<0.000000e+00> : vector<128xf32>
    %128 = vector.multi_reduction <add>, %127, %cst_52 [0] : vector<9x128xf32> to vector<128xf32>
    %129 = vector.shape_cast %128 : vector<128xf32> to vector<1x128xf32>
    %cst_53 = arith.constant dense<0.000000e+00> : vector<1x128xf32>
    %130 = tpu.matmul %126, %124, %cst_53 {dimension_numbers = #tpu.dot_dimension_numbers<[1], [0], [0], [1], [0, 0, 1, 1], [], []>} : vector<1x128xf32>, vector<128x128xf32>, vector<1x128xf32> -> vector<1x128xf32>
    %cst_54 = arith.constant dense<0.000000e+00> : vector<1x128xf32>
    %131 = tpu.matmul %129, %124, %cst_54 {dimension_numbers = #tpu.dot_dimension_numbers<[1], [0], [0], [1], [0, 0, 1, 1], [], []>} : vector<1x128xf32>, vector<128x128xf32>, vector<1x128xf32> -> vector<1x128xf32>
    %132 = arith.mulf %130, %130 : vector<1x128xf32>
    %133 = arith.subf %131, %132 : vector<1x128xf32>
    %134 = vector.broadcast %130 : vector<1x128xf32> to vector<9x128xf32>
    %135 = arith.subf %110, %134 : vector<9x128xf32>
    %cst_55 = arith.constant 9.99999974E-6 : f32
    %136 = vector.broadcast %cst_55 : f32 to vector<1x128xf32>
    %137 = arith.addf %133, %136 : vector<1x128xf32>
    %138 = math.rsqrt %137 : vector<1x128xf32>
    %139 = vector.broadcast %138 : vector<1x128xf32> to vector<9x128xf32>
    %140 = arith.mulf %135, %139 : vector<9x128xf32>
    %cst_56 = arith.constant 0.000000e+00 : f32
    %141 = vector.broadcast %cst_56 : f32 to vector<9x128xf32>
    %142 = arith.cmpf ogt, %140, %141 : vector<9x128xf32>
    %cst_57 = arith.constant 2.500000e-01 : f32
    %143 = vector.broadcast %cst_57 : f32 to vector<9x128xf32>
    %144 = arith.mulf %143, %140 : vector<9x128xf32>
    %145 = arith.select %142, %140, %144 : vector<9x128xi1>, vector<9x128xf32>
    %146 = arith.truncf %145 : vector<9x128xf32> to vector<9x128xbf16>
    %c0_58 = arith.constant 0 : index
    %c0_59 = arith.constant 0 : index
    %147 = vector.load %arg7[%c0_58, %c0_59] : memref<128x128xbf16, #tpu.memory_space<vmem>>, vector<128x128xbf16>
    %cst_60 = arith.constant dense<0.000000e+00> : vector<9x128xf32>
    %148 = tpu.matmul %146, %147, %cst_60 {dimension_numbers = #tpu.dot_dimension_numbers<[1], [0], [0], [1], [0, 0, 1, 1], [], []>} : vector<9x128xbf16>, vector<128x128xbf16>, vector<9x128xf32> -> vector<9x128xf32>
    %c0_61 = arith.constant 0 : index
    %c0_62 = arith.constant 0 : index
    %149 = vector.load %arg9[%c0_61, %c0_62] : memref<1x128xf32, #tpu.memory_space<vmem>>, vector<1x128xf32>
    %150 = vector.broadcast %149 : vector<1x128xf32> to vector<9x128xf32>
    %151 = arith.addf %148, %150 : vector<9x128xf32>
    %cst_63 = arith.constant 0.000000e+00 : f32
    %152 = vector.broadcast %cst_63 : f32 to vector<1x32xf32>
    %cst_64 = arith.constant 0.000000e+00 : f32
    %153 = vector.broadcast %cst_64 : f32 to vector<1x32xf32>
    %154 = vector.extract_strided_slice %151 {offsets = [0, 0], sizes = [1, 128], strides = [1, 1]} : vector<9x128xf32> to vector<1x128xf32>
    %155 = arith.truncf %152 : vector<1x32xf32> to vector<1x32xbf16>
    %c0_65 = arith.constant 0 : index
    %c0_66 = arith.constant 0 : index
    %156 = vector.load %arg8[%c0_65, %c0_66] : memref<32x128xbf16, #tpu.memory_space<vmem>>, vector<32x128xbf16>
    %cst_67 = arith.constant dense<0.000000e+00> : vector<1x128xf32>
    %157 = tpu.matmul %155, %156, %cst_67 {dimension_numbers = #tpu.dot_dimension_numbers<[1], [0], [0], [1], [0, 0, 1, 1], [], []>} : vector<1x32xbf16>, vector<32x128xbf16>, vector<1x128xf32> -> vector<1x128xf32>
    %158 = arith.addf %154, %157 : vector<1x128xf32>
    %159 = arith.negf %158 : vector<1x128xf32>
    %160 = math.exp %159 : vector<1x128xf32>
    %cst_68 = arith.constant 1.000000e+00 : f32
    %161 = vector.broadcast %cst_68 : f32 to vector<1x128xf32>
    %162 = arith.addf %161, %160 : vector<1x128xf32>
    %163 = arith.divf %161, %162 : vector<1x128xf32>
    %164 = math.tanh %158 : vector<1x128xf32>
    %165 = vector.extract_strided_slice %163 {offsets = [0, 0], sizes = [1, 32], strides = [1, 1]} : vector<1x128xf32> to vector<1x32xf32>
    %166 = vector.extract_strided_slice %163 {offsets = [0, 32], sizes = [1, 32], strides = [1, 1]} : vector<1x128xf32> to vector<1x32xf32>
    %167 = vector.extract_strided_slice %164 {offsets = [0, 64], sizes = [1, 32], strides = [1, 1]} : vector<1x128xf32> to vector<1x32xf32>
    %168 = vector.extract_strided_slice %163 {offsets = [0, 96], sizes = [1, 32], strides = [1, 1]} : vector<1x128xf32> to vector<1x32xf32>
    %169 = arith.mulf %166, %153 : vector<1x32xf32>
    %170 = arith.mulf %165, %167 : vector<1x32xf32>
    %171 = arith.addf %169, %170 : vector<1x32xf32>
    %172 = math.tanh %171 : vector<1x32xf32>
    %173 = arith.mulf %168, %172 : vector<1x32xf32>
    %c0_69 = arith.constant 0 : index
    %c0_70 = arith.constant 0 : index
    %174 = vector.load %arg28[%c0_69, %c0_70] : memref<9x32xf32, #tpu.memory_space<vmem>>, vector<1x32xf32>
    tpu.vector_store %arg28[%c0_69, %c0_70], %173 {strides = array<i32>} : memref<9x32xf32, #tpu.memory_space<vmem>>, vector<1x32xf32>,
    %175 = vector.extract_strided_slice %151 {offsets = [1, 0], sizes = [1, 128], strides = [1, 1]} : vector<9x128xf32> to vector<1x128xf32>
    %176 = arith.truncf %173 : vector<1x32xf32> to vector<1x32xbf16>
    %c0_71 = arith.constant 0 : index
    %c0_72 = arith.constant 0 : index
    %177 = vector.load %arg8[%c0_71, %c0_72] : memref<32x128xbf16, #tpu.memory_space<vmem>>, vector<32x128xbf16>
    %cst_73 = arith.constant dense<0.000000e+00> : vector<1x128xf32>
    %178 = tpu.matmul %176, %177, %cst_73 {dimension_numbers = #tpu.dot_dimension_numbers<[1], [0], [0], [1], [0, 0, 1, 1], [], []>} : vector<1x32xbf16>, vector<32x128xbf16>, vector<1x128xf32> -> vector<1x128xf32>
    %179 = arith.addf %175, %178 : vector<1x128xf32>
    %180 = arith.negf %179 : vector<1x128xf32>
    %181 = math.exp %180 : vector<1x128xf32>
    %cst_74 = arith.constant 1.000000e+00 : f32
    %182 = vector.broadcast %cst_74 : f32 to vector<1x128xf32>
    %183 = arith.addf %182, %181 : vector<1x128xf32>
    %184 = arith.divf %182, %183 : vector<1x128xf32>
    %185 = math.tanh %179 : vector<1x128xf32>
    %186 = vector.extract_strided_slice %184 {offsets = [0, 0], sizes = [1, 32], strides = [1, 1]} : vector<1x128xf32> to vector<1x32xf32>
    %187 = vector.extract_strided_slice %184 {offsets = [0, 32], sizes = [1, 32], strides = [1, 1]} : vector<1x128xf32> to vector<1x32xf32>
    %188 = vector.extract_strided_slice %185 {offsets = [0, 64], sizes = [1, 32], strides = [1, 1]} : vector<1x128xf32> to vector<1x32xf32>
    %189 = vector.extract_strided_slice %184 {offsets = [0, 96], sizes = [1, 32], strides = [1, 1]} : vector<1x128xf32> to vector<1x32xf32>
    %190 = arith.mulf %187, %171 : vector<1x32xf32>
    %191 = arith.mulf %186, %188 : vector<1x32xf32>
    %192 = arith.addf %190, %191 : vector<1x32xf32>
    %193 = math.tanh %192 : vector<1x32xf32>
    %194 = arith.mulf %189, %193 : vector<1x32xf32>
    %c1 = arith.constant 1 : index
    %c0_75 = arith.constant 0 : index
    %195 = vector.load %arg28[%c1, %c0_75] : memref<9x32xf32, #tpu.memory_space<vmem>>, vector<1x32xf32>
    tpu.vector_store %arg28[%c1, %c0_75], %194 {strides = array<i32>} : memref<9x32xf32, #tpu.memory_space<vmem>>, vector<1x32xf32>,
    %196 = vector.extract_strided_slice %151 {offsets = [2, 0], sizes = [1, 128], strides = [1, 1]} : vector<9x128xf32> to vector<1x128xf32>
    %197 = arith.truncf %194 : vector<1x32xf32> to vector<1x32xbf16>
    %c0_76 = arith.constant 0 : index
    %c0_77 = arith.constant 0 : index
    %198 = vector.load %arg8[%c0_76, %c0_77] : memref<32x128xbf16, #tpu.memory_space<vmem>>, vector<32x128xbf16>
    %cst_78 = arith.constant dense<0.000000e+00> : vector<1x128xf32>
    %199 = tpu.matmul %197, %198, %cst_78 {dimension_numbers = #tpu.dot_dimension_numbers<[1], [0], [0], [1], [0, 0, 1, 1], [], []>} : vector<1x32xbf16>, vector<32x128xbf16>, vector<1x128xf32> -> vector<1x128xf32>
    %200 = arith.addf %196, %199 : vector<1x128xf32>
    %201 = arith.negf %200 : vector<1x128xf32>
    %202 = math.exp %201 : vector<1x128xf32>
    %cst_79 = arith.constant 1.000000e+00 : f32
    %203 = vector.broadcast %cst_79 : f32 to vector<1x128xf32>
    %204 = arith.addf %203, %202 : vector<1x128xf32>
    %205 = arith.divf %203, %204 : vector<1x128xf32>
    %206 = math.tanh %200 : vector<1x128xf32>
    %207 = vector.extract_strided_slice %205 {offsets = [0, 0], sizes = [1, 32], strides = [1, 1]} : vector<1x128xf32> to vector<1x32xf32>
    %208 = vector.extract_strided_slice %205 {offsets = [0, 32], sizes = [1, 32], strides = [1, 1]} : vector<1x128xf32> to vector<1x32xf32>
    %209 = vector.extract_strided_slice %206 {offsets = [0, 64], sizes = [1, 32], strides = [1, 1]} : vector<1x128xf32> to vector<1x32xf32>
    %210 = vector.extract_strided_slice %205 {offsets = [0, 96], sizes = [1, 32], strides = [1, 1]} : vector<1x128xf32> to vector<1x32xf32>
    %211 = arith.mulf %208, %192 : vector<1x32xf32>
    %212 = arith.mulf %207, %209 : vector<1x32xf32>
    %213 = arith.addf %211, %212 : vector<1x32xf32>
    %214 = math.tanh %213 : vector<1x32xf32>
    %215 = arith.mulf %210, %214 : vector<1x32xf32>
    %c2 = arith.constant 2 : index
    %c0_80 = arith.constant 0 : index
    %216 = vector.load %arg28[%c2, %c0_80] : memref<9x32xf32, #tpu.memory_space<vmem>>, vector<1x32xf32>
    tpu.vector_store %arg28[%c2, %c0_80], %215 {strides = array<i32>} : memref<9x32xf32, #tpu.memory_space<vmem>>, vector<1x32xf32>,
    %217 = vector.extract_strided_slice %151 {offsets = [3, 0], sizes = [1, 128], strides = [1, 1]} : vector<9x128xf32> to vector<1x128xf32>
    %218 = arith.truncf %215 : vector<1x32xf32> to vector<1x32xbf16>
    %c0_81 = arith.constant 0 : index
    %c0_82 = arith.constant 0 : index
    %219 = vector.load %arg8[%c0_81, %c0_82] : memref<32x128xbf16, #tpu.memory_space<vmem>>, vector<32x128xbf16>
    %cst_83 = arith.constant dense<0.000000e+00> : vector<1x128xf32>
    %220 = tpu.matmul %218, %219, %cst_83 {dimension_numbers = #tpu.dot_dimension_numbers<[1], [0], [0], [1], [0, 0, 1, 1], [], []>} : vector<1x32xbf16>, vector<32x128xbf16>, vector<1x128xf32> -> vector<1x128xf32>
    %221 = arith.addf %217, %220 : vector<1x128xf32>
    %222 = arith.negf %221 : vector<1x128xf32>
    %223 = math.exp %222 : vector<1x128xf32>
    %cst_84 = arith.constant 1.000000e+00 : f32
    %224 = vector.broadcast %cst_84 : f32 to vector<1x128xf32>
    %225 = arith.addf %224, %223 : vector<1x128xf32>
    %226 = arith.divf %224, %225 : vector<1x128xf32>
    %227 = math.tanh %221 : vector<1x128xf32>
    %228 = vector.extract_strided_slice %226 {offsets = [0, 0], sizes = [1, 32], strides = [1, 1]} : vector<1x128xf32> to vector<1x32xf32>
    %229 = vector.extract_strided_slice %226 {offsets = [0, 32], sizes = [1, 32], strides = [1, 1]} : vector<1x128xf32> to vector<1x32xf32>
    %230 = vector.extract_strided_slice %227 {offsets = [0, 64], sizes = [1, 32], strides = [1, 1]} : vector<1x128xf32> to vector<1x32xf32>
    %231 = vector.extract_strided_slice %226 {offsets = [0, 96], sizes = [1, 32], strides = [1, 1]} : vector<1x128xf32> to vector<1x32xf32>
    %232 = arith.mulf %229, %213 : vector<1x32xf32>
    %233 = arith.mulf %228, %230 : vector<1x32xf32>
    %234 = arith.addf %232, %233 : vector<1x32xf32>
    %235 = math.tanh %234 : vector<1x32xf32>
    %236 = arith.mulf %231, %235 : vector<1x32xf32>
    %c3 = arith.constant 3 : index
    %c0_85 = arith.constant 0 : index
    %237 = vector.load %arg28[%c3, %c0_85] : memref<9x32xf32, #tpu.memory_space<vmem>>, vector<1x32xf32>
    tpu.vector_store %arg28[%c3, %c0_85], %236 {strides = array<i32>} : memref<9x32xf32, #tpu.memory_space<vmem>>, vector<1x32xf32>,
    %238 = vector.extract_strided_slice %151 {offsets = [4, 0], sizes = [1, 128], strides = [1, 1]} : vector<9x128xf32> to vector<1x128xf32>
    %239 = arith.truncf %236 : vector<1x32xf32> to vector<1x32xbf16>
    %c0_86 = arith.constant 0 : index
    %c0_87 = arith.constant 0 : index
    %240 = vector.load %arg8[%c0_86, %c0_87] : memref<32x128xbf16, #tpu.memory_space<vmem>>, vector<32x128xbf16>
    %cst_88 = arith.constant dense<0.000000e+00> : vector<1x128xf32>
    %241 = tpu.matmul %239, %240, %cst_88 {dimension_numbers = #tpu.dot_dimension_numbers<[1], [0], [0], [1], [0, 0, 1, 1], [], []>} : vector<1x32xbf16>, vector<32x128xbf16>, vector<1x128xf32> -> vector<1x128xf32>
    %242 = arith.addf %238, %241 : vector<1x128xf32>
    %243 = arith.negf %242 : vector<1x128xf32>
    %244 = math.exp %243 : vector<1x128xf32>
    %cst_89 = arith.constant 1.000000e+00 : f32
    %245 = vector.broadcast %cst_89 : f32 to vector<1x128xf32>
    %246 = arith.addf %245, %244 : vector<1x128xf32>
    %247 = arith.divf %245, %246 : vector<1x128xf32>
    %248 = math.tanh %242 : vector<1x128xf32>
    %249 = vector.extract_strided_slice %247 {offsets = [0, 0], sizes = [1, 32], strides = [1, 1]} : vector<1x128xf32> to vector<1x32xf32>
    %250 = vector.extract_strided_slice %247 {offsets = [0, 32], sizes = [1, 32], strides = [1, 1]} : vector<1x128xf32> to vector<1x32xf32>
    %251 = vector.extract_strided_slice %248 {offsets = [0, 64], sizes = [1, 32], strides = [1, 1]} : vector<1x128xf32> to vector<1x32xf32>
    %252 = vector.extract_strided_slice %247 {offsets = [0, 96], sizes = [1, 32], strides = [1, 1]} : vector<1x128xf32> to vector<1x32xf32>
    %253 = arith.mulf %250, %234 : vector<1x32xf32>
    %254 = arith.mulf %249, %251 : vector<1x32xf32>
    %255 = arith.addf %253, %254 : vector<1x32xf32>
    %256 = math.tanh %255 : vector<1x32xf32>
    %257 = arith.mulf %252, %256 : vector<1x32xf32>
    %c4 = arith.constant 4 : index
    %c0_90 = arith.constant 0 : index
    %258 = vector.load %arg28[%c4, %c0_90] : memref<9x32xf32, #tpu.memory_space<vmem>>, vector<1x32xf32>
    tpu.vector_store %arg28[%c4, %c0_90], %257 {strides = array<i32>} : memref<9x32xf32, #tpu.memory_space<vmem>>, vector<1x32xf32>,
    %259 = vector.extract_strided_slice %151 {offsets = [5, 0], sizes = [1, 128], strides = [1, 1]} : vector<9x128xf32> to vector<1x128xf32>
    %260 = arith.truncf %257 : vector<1x32xf32> to vector<1x32xbf16>
    %c0_91 = arith.constant 0 : index
    %c0_92 = arith.constant 0 : index
    %261 = vector.load %arg8[%c0_91, %c0_92] : memref<32x128xbf16, #tpu.memory_space<vmem>>, vector<32x128xbf16>
    %cst_93 = arith.constant dense<0.000000e+00> : vector<1x128xf32>
    %262 = tpu.matmul %260, %261, %cst_93 {dimension_numbers = #tpu.dot_dimension_numbers<[1], [0], [0], [1], [0, 0, 1, 1], [], []>} : vector<1x32xbf16>, vector<32x128xbf16>, vector<1x128xf32> -> vector<1x128xf32>
    %263 = arith.addf %259, %262 : vector<1x128xf32>
    %264 = arith.negf %263 : vector<1x128xf32>
    %265 = math.exp %264 : vector<1x128xf32>
    %cst_94 = arith.constant 1.000000e+00 : f32
    %266 = vector.broadcast %cst_94 : f32 to vector<1x128xf32>
    %267 = arith.addf %266, %265 : vector<1x128xf32>
    %268 = arith.divf %266, %267 : vector<1x128xf32>
    %269 = math.tanh %263 : vector<1x128xf32>
    %270 = vector.extract_strided_slice %268 {offsets = [0, 0], sizes = [1, 32], strides = [1, 1]} : vector<1x128xf32> to vector<1x32xf32>
    %271 = vector.extract_strided_slice %268 {offsets = [0, 32], sizes = [1, 32], strides = [1, 1]} : vector<1x128xf32> to vector<1x32xf32>
    %272 = vector.extract_strided_slice %269 {offsets = [0, 64], sizes = [1, 32], strides = [1, 1]} : vector<1x128xf32> to vector<1x32xf32>
    %273 = vector.extract_strided_slice %268 {offsets = [0, 96], sizes = [1, 32], strides = [1, 1]} : vector<1x128xf32> to vector<1x32xf32>
    %274 = arith.mulf %271, %255 : vector<1x32xf32>
    %275 = arith.mulf %270, %272 : vector<1x32xf32>
    %276 = arith.addf %274, %275 : vector<1x32xf32>
    %277 = math.tanh %276 : vector<1x32xf32>
    %278 = arith.mulf %273, %277 : vector<1x32xf32>
    %c5 = arith.constant 5 : index
    %c0_95 = arith.constant 0 : index
    %279 = vector.load %arg28[%c5, %c0_95] : memref<9x32xf32, #tpu.memory_space<vmem>>, vector<1x32xf32>
    tpu.vector_store %arg28[%c5, %c0_95], %278 {strides = array<i32>} : memref<9x32xf32, #tpu.memory_space<vmem>>, vector<1x32xf32>,
    %280 = vector.extract_strided_slice %151 {offsets = [6, 0], sizes = [1, 128], strides = [1, 1]} : vector<9x128xf32> to vector<1x128xf32>
    %281 = arith.truncf %278 : vector<1x32xf32> to vector<1x32xbf16>
    %c0_96 = arith.constant 0 : index
    %c0_97 = arith.constant 0 : index
    %282 = vector.load %arg8[%c0_96, %c0_97] : memref<32x128xbf16, #tpu.memory_space<vmem>>, vector<32x128xbf16>
    %cst_98 = arith.constant dense<0.000000e+00> : vector<1x128xf32>
    %283 = tpu.matmul %281, %282, %cst_98 {dimension_numbers = #tpu.dot_dimension_numbers<[1], [0], [0], [1], [0, 0, 1, 1], [], []>} : vector<1x32xbf16>, vector<32x128xbf16>, vector<1x128xf32> -> vector<1x128xf32>
    %284 = arith.addf %280, %283 : vector<1x128xf32>
    %285 = arith.negf %284 : vector<1x128xf32>
    %286 = math.exp %285 : vector<1x128xf32>
    %cst_99 = arith.constant 1.000000e+00 : f32
    %287 = vector.broadcast %cst_99 : f32 to vector<1x128xf32>
    %288 = arith.addf %287, %286 : vector<1x128xf32>
    %289 = arith.divf %287, %288 : vector<1x128xf32>
    %290 = math.tanh %284 : vector<1x128xf32>
    %291 = vector.extract_strided_slice %289 {offsets = [0, 0], sizes = [1, 32], strides = [1, 1]} : vector<1x128xf32> to vector<1x32xf32>
    %292 = vector.extract_strided_slice %289 {offsets = [0, 32], sizes = [1, 32], strides = [1, 1]} : vector<1x128xf32> to vector<1x32xf32>
    %293 = vector.extract_strided_slice %290 {offsets = [0, 64], sizes = [1, 32], strides = [1, 1]} : vector<1x128xf32> to vector<1x32xf32>
    %294 = vector.extract_strided_slice %289 {offsets = [0, 96], sizes = [1, 32], strides = [1, 1]} : vector<1x128xf32> to vector<1x32xf32>
    %295 = arith.mulf %292, %276 : vector<1x32xf32>
    %296 = arith.mulf %291, %293 : vector<1x32xf32>
    %297 = arith.addf %295, %296 : vector<1x32xf32>
    %298 = math.tanh %297 : vector<1x32xf32>
    %299 = arith.mulf %294, %298 : vector<1x32xf32>
    %c6 = arith.constant 6 : index
    %c0_100 = arith.constant 0 : index
    %300 = vector.load %arg28[%c6, %c0_100] : memref<9x32xf32, #tpu.memory_space<vmem>>, vector<1x32xf32>
    tpu.vector_store %arg28[%c6, %c0_100], %299 {strides = array<i32>} : memref<9x32xf32, #tpu.memory_space<vmem>>, vector<1x32xf32>,
    %301 = vector.extract_strided_slice %151 {offsets = [7, 0], sizes = [1, 128], strides = [1, 1]} : vector<9x128xf32> to vector<1x128xf32>
    %302 = arith.truncf %299 : vector<1x32xf32> to vector<1x32xbf16>
    %c0_101 = arith.constant 0 : index
    %c0_102 = arith.constant 0 : index
    %303 = vector.load %arg8[%c0_101, %c0_102] : memref<32x128xbf16, #tpu.memory_space<vmem>>, vector<32x128xbf16>
    %cst_103 = arith.constant dense<0.000000e+00> : vector<1x128xf32>
    %304 = tpu.matmul %302, %303, %cst_103 {dimension_numbers = #tpu.dot_dimension_numbers<[1], [0], [0], [1], [0, 0, 1, 1], [], []>} : vector<1x32xbf16>, vector<32x128xbf16>, vector<1x128xf32> -> vector<1x128xf32>
    %305 = arith.addf %301, %304 : vector<1x128xf32>
    %306 = arith.negf %305 : vector<1x128xf32>
    %307 = math.exp %306 : vector<1x128xf32>
    %cst_104 = arith.constant 1.000000e+00 : f32
    %308 = vector.broadcast %cst_104 : f32 to vector<1x128xf32>
    %309 = arith.addf %308, %307 : vector<1x128xf32>
    %310 = arith.divf %308, %309 : vector<1x128xf32>
    %311 = math.tanh %305 : vector<1x128xf32>
    %312 = vector.extract_strided_slice %310 {offsets = [0, 0], sizes = [1, 32], strides = [1, 1]} : vector<1x128xf32> to vector<1x32xf32>
    %313 = vector.extract_strided_slice %310 {offsets = [0, 32], sizes = [1, 32], strides = [1, 1]} : vector<1x128xf32> to vector<1x32xf32>
    %314 = vector.extract_strided_slice %311 {offsets = [0, 64], sizes = [1, 32], strides = [1, 1]} : vector<1x128xf32> to vector<1x32xf32>
    %315 = vector.extract_strided_slice %310 {offsets = [0, 96], sizes = [1, 32], strides = [1, 1]} : vector<1x128xf32> to vector<1x32xf32>
    %316 = arith.mulf %313, %297 : vector<1x32xf32>
    %317 = arith.mulf %312, %314 : vector<1x32xf32>
    %318 = arith.addf %316, %317 : vector<1x32xf32>
    %319 = math.tanh %318 : vector<1x32xf32>
    %320 = arith.mulf %315, %319 : vector<1x32xf32>
    %c7 = arith.constant 7 : index
    %c0_105 = arith.constant 0 : index
    %321 = vector.load %arg28[%c7, %c0_105] : memref<9x32xf32, #tpu.memory_space<vmem>>, vector<1x32xf32>
    tpu.vector_store %arg28[%c7, %c0_105], %320 {strides = array<i32>} : memref<9x32xf32, #tpu.memory_space<vmem>>, vector<1x32xf32>,
    %322 = vector.extract_strided_slice %151 {offsets = [8, 0], sizes = [1, 128], strides = [1, 1]} : vector<9x128xf32> to vector<1x128xf32>
    %323 = arith.truncf %320 : vector<1x32xf32> to vector<1x32xbf16>
    %c0_106 = arith.constant 0 : index
    %c0_107 = arith.constant 0 : index
    %324 = vector.load %arg8[%c0_106, %c0_107] : memref<32x128xbf16, #tpu.memory_space<vmem>>, vector<32x128xbf16>
    %cst_108 = arith.constant dense<0.000000e+00> : vector<1x128xf32>
    %325 = tpu.matmul %323, %324, %cst_108 {dimension_numbers = #tpu.dot_dimension_numbers<[1], [0], [0], [1], [0, 0, 1, 1], [], []>} : vector<1x32xbf16>, vector<32x128xbf16>, vector<1x128xf32> -> vector<1x128xf32>
    %326 = arith.addf %322, %325 : vector<1x128xf32>
    %327 = arith.negf %326 : vector<1x128xf32>
    %328 = math.exp %327 : vector<1x128xf32>
    %cst_109 = arith.constant 1.000000e+00 : f32
    %329 = vector.broadcast %cst_109 : f32 to vector<1x128xf32>
    %330 = arith.addf %329, %328 : vector<1x128xf32>
    %331 = arith.divf %329, %330 : vector<1x128xf32>
    %332 = math.tanh %326 : vector<1x128xf32>
    %333 = vector.extract_strided_slice %331 {offsets = [0, 0], sizes = [1, 32], strides = [1, 1]} : vector<1x128xf32> to vector<1x32xf32>
    %334 = vector.extract_strided_slice %331 {offsets = [0, 32], sizes = [1, 32], strides = [1, 1]} : vector<1x128xf32> to vector<1x32xf32>
    %335 = vector.extract_strided_slice %332 {offsets = [0, 64], sizes = [1, 32], strides = [1, 1]} : vector<1x128xf32> to vector<1x32xf32>
    %336 = vector.extract_strided_slice %331 {offsets = [0, 96], sizes = [1, 32], strides = [1, 1]} : vector<1x128xf32> to vector<1x32xf32>
    %337 = arith.mulf %334, %318 : vector<1x32xf32>
    %338 = arith.mulf %333, %335 : vector<1x32xf32>
    %339 = arith.addf %337, %338 : vector<1x32xf32>
    %340 = math.tanh %339 : vector<1x32xf32>
    %341 = arith.mulf %336, %340 : vector<1x32xf32>
    %c8 = arith.constant 8 : index
    %c0_110 = arith.constant 0 : index
    %342 = vector.load %arg28[%c8, %c0_110] : memref<9x32xf32, #tpu.memory_space<vmem>>, vector<1x32xf32>
    tpu.vector_store %arg28[%c8, %c0_110], %341 {strides = array<i32>} : memref<9x32xf32, #tpu.memory_space<vmem>>, vector<1x32xf32>,
    %c0_111 = arith.constant 0 : index
    %c0_112 = arith.constant 0 : index
    %343 = vector.load %arg28[%c0_111, %c0_112] : memref<9x32xf32, #tpu.memory_space<vmem>>, vector<9x32xf32>
    %344 = arith.truncf %343 : vector<9x32xf32> to vector<9x32xbf16>
    %c0_113 = arith.constant 0 : index
    %c0_114 = arith.constant 0 : index
    %345 = vector.load %arg10[%c0_113, %c0_114] : memref<32x128xbf16, #tpu.memory_space<vmem>>, vector<32x128xbf16>
    %cst_115 = arith.constant dense<0.000000e+00> : vector<9x128xf32>
    %346 = tpu.matmul %344, %345, %cst_115 {dimension_numbers = #tpu.dot_dimension_numbers<[1], [0], [0], [1], [0, 0, 1, 1], [], []>} : vector<9x32xbf16>, vector<32x128xbf16>, vector<9x128xf32> -> vector<9x128xf32>
    %c0_116 = arith.constant 0 : index
    %c0_117 = arith.constant 0 : index
    %347 = vector.load %arg12[%c0_116, %c0_117] : memref<1x128xf32, #tpu.memory_space<vmem>>, vector<1x128xf32>
    %348 = vector.broadcast %347 : vector<1x128xf32> to vector<9x128xf32>
    %349 = arith.addf %346, %348 : vector<9x128xf32>
    %cst_118 = arith.constant 0.000000e+00 : f32
    %350 = vector.broadcast %cst_118 : f32 to vector<1x32xf32>
    %cst_119 = arith.constant 0.000000e+00 : f32
    %351 = vector.broadcast %cst_119 : f32 to vector<1x32xf32>
    %352 = vector.extract_strided_slice %349 {offsets = [0, 0], sizes = [1, 128], strides = [1, 1]} : vector<9x128xf32> to vector<1x128xf32>
    %353 = arith.truncf %350 : vector<1x32xf32> to vector<1x32xbf16>
    %c0_120 = arith.constant 0 : index
    %c0_121 = arith.constant 0 : index
    %354 = vector.load %arg11[%c0_120, %c0_121] : memref<32x128xbf16, #tpu.memory_space<vmem>>, vector<32x128xbf16>
    %cst_122 = arith.constant dense<0.000000e+00> : vector<1x128xf32>
    %355 = tpu.matmul %353, %354, %cst_122 {dimension_numbers = #tpu.dot_dimension_numbers<[1], [0], [0], [1], [0, 0, 1, 1], [], []>} : vector<1x32xbf16>, vector<32x128xbf16>, vector<1x128xf32> -> vector<1x128xf32>
    %356 = arith.addf %352, %355 : vector<1x128xf32>
    %357 = arith.negf %356 : vector<1x128xf32>
    %358 = math.exp %357 : vector<1x128xf32>
    %cst_123 = arith.constant 1.000000e+00 : f32
    %359 = vector.broadcast %cst_123 : f32 to vector<1x128xf32>
    %360 = arith.addf %359, %358 : vector<1x128xf32>
    %361 = arith.divf %359, %360 : vector<1x128xf32>
    %362 = math.tanh %356 : vector<1x128xf32>
    %363 = vector.extract_strided_slice %361 {offsets = [0, 0], sizes = [1, 32], strides = [1, 1]} : vector<1x128xf32> to vector<1x32xf32>
    %364 = vector.extract_strided_slice %361 {offsets = [0, 32], sizes = [1, 32], strides = [1, 1]} : vector<1x128xf32> to vector<1x32xf32>
    %365 = vector.extract_strided_slice %362 {offsets = [0, 64], sizes = [1, 32], strides = [1, 1]} : vector<1x128xf32> to vector<1x32xf32>
    %366 = vector.extract_strided_slice %361 {offsets = [0, 96], sizes = [1, 32], strides = [1, 1]} : vector<1x128xf32> to vector<1x32xf32>
    %367 = arith.mulf %364, %351 : vector<1x32xf32>
    %368 = arith.mulf %363, %365 : vector<1x32xf32>
    %369 = arith.addf %367, %368 : vector<1x32xf32>
    %370 = math.tanh %369 : vector<1x32xf32>
    %371 = arith.mulf %366, %370 : vector<1x32xf32>
    %c0_124 = arith.constant 0 : index
    %c0_125 = arith.constant 0 : index
    %372 = vector.load %arg29[%c0_124, %c0_125] : memref<9x32xf32, #tpu.memory_space<vmem>>, vector<1x32xf32>
    tpu.vector_store %arg29[%c0_124, %c0_125], %371 {strides = array<i32>} : memref<9x32xf32, #tpu.memory_space<vmem>>, vector<1x32xf32>,
    %373 = vector.extract_strided_slice %349 {offsets = [1, 0], sizes = [1, 128], strides = [1, 1]} : vector<9x128xf32> to vector<1x128xf32>
    %374 = arith.truncf %371 : vector<1x32xf32> to vector<1x32xbf16>
    %c0_126 = arith.constant 0 : index
    %c0_127 = arith.constant 0 : index
    %375 = vector.load %arg11[%c0_126, %c0_127] : memref<32x128xbf16, #tpu.memory_space<vmem>>, vector<32x128xbf16>
    %cst_128 = arith.constant dense<0.000000e+00> : vector<1x128xf32>
    %376 = tpu.matmul %374, %375, %cst_128 {dimension_numbers = #tpu.dot_dimension_numbers<[1], [0], [0], [1], [0, 0, 1, 1], [], []>} : vector<1x32xbf16>, vector<32x128xbf16>, vector<1x128xf32> -> vector<1x128xf32>
    %377 = arith.addf %373, %376 : vector<1x128xf32>
    %378 = arith.negf %377 : vector<1x128xf32>
    %379 = math.exp %378 : vector<1x128xf32>
    %cst_129 = arith.constant 1.000000e+00 : f32
    %380 = vector.broadcast %cst_129 : f32 to vector<1x128xf32>
    %381 = arith.addf %380, %379 : vector<1x128xf32>
    %382 = arith.divf %380, %381 : vector<1x128xf32>
    %383 = math.tanh %377 : vector<1x128xf32>
    %384 = vector.extract_strided_slice %382 {offsets = [0, 0], sizes = [1, 32], strides = [1, 1]} : vector<1x128xf32> to vector<1x32xf32>
    %385 = vector.extract_strided_slice %382 {offsets = [0, 32], sizes = [1, 32], strides = [1, 1]} : vector<1x128xf32> to vector<1x32xf32>
    %386 = vector.extract_strided_slice %383 {offsets = [0, 64], sizes = [1, 32], strides = [1, 1]} : vector<1x128xf32> to vector<1x32xf32>
    %387 = vector.extract_strided_slice %382 {offsets = [0, 96], sizes = [1, 32], strides = [1, 1]} : vector<1x128xf32> to vector<1x32xf32>
    %388 = arith.mulf %385, %369 : vector<1x32xf32>
    %389 = arith.mulf %384, %386 : vector<1x32xf32>
    %390 = arith.addf %388, %389 : vector<1x32xf32>
    %391 = math.tanh %390 : vector<1x32xf32>
    %392 = arith.mulf %387, %391 : vector<1x32xf32>
    %c1_130 = arith.constant 1 : index
    %c0_131 = arith.constant 0 : index
    %393 = vector.load %arg29[%c1_130, %c0_131] : memref<9x32xf32, #tpu.memory_space<vmem>>, vector<1x32xf32>
    tpu.vector_store %arg29[%c1_130, %c0_131], %392 {strides = array<i32>} : memref<9x32xf32, #tpu.memory_space<vmem>>, vector<1x32xf32>,
    %394 = vector.extract_strided_slice %349 {offsets = [2, 0], sizes = [1, 128], strides = [1, 1]} : vector<9x128xf32> to vector<1x128xf32>
    %395 = arith.truncf %392 : vector<1x32xf32> to vector<1x32xbf16>
    %c0_132 = arith.constant 0 : index
    %c0_133 = arith.constant 0 : index
    %396 = vector.load %arg11[%c0_132, %c0_133] : memref<32x128xbf16, #tpu.memory_space<vmem>>, vector<32x128xbf16>
    %cst_134 = arith.constant dense<0.000000e+00> : vector<1x128xf32>
    %397 = tpu.matmul %395, %396, %cst_134 {dimension_numbers = #tpu.dot_dimension_numbers<[1], [0], [0], [1], [0, 0, 1, 1], [], []>} : vector<1x32xbf16>, vector<32x128xbf16>, vector<1x128xf32> -> vector<1x128xf32>
    %398 = arith.addf %394, %397 : vector<1x128xf32>
    %399 = arith.negf %398 : vector<1x128xf32>
    %400 = math.exp %399 : vector<1x128xf32>
    %cst_135 = arith.constant 1.000000e+00 : f32
    %401 = vector.broadcast %cst_135 : f32 to vector<1x128xf32>
    %402 = arith.addf %401, %400 : vector<1x128xf32>
    %403 = arith.divf %401, %402 : vector<1x128xf32>
    %404 = math.tanh %398 : vector<1x128xf32>
    %405 = vector.extract_strided_slice %403 {offsets = [0, 0], sizes = [1, 32], strides = [1, 1]} : vector<1x128xf32> to vector<1x32xf32>
    %406 = vector.extract_strided_slice %403 {offsets = [0, 32], sizes = [1, 32], strides = [1, 1]} : vector<1x128xf32> to vector<1x32xf32>
    %407 = vector.extract_strided_slice %404 {offsets = [0, 64], sizes = [1, 32], strides = [1, 1]} : vector<1x128xf32> to vector<1x32xf32>
    %408 = vector.extract_strided_slice %403 {offsets = [0, 96], sizes = [1, 32], strides = [1, 1]} : vector<1x128xf32> to vector<1x32xf32>
    %409 = arith.mulf %406, %390 : vector<1x32xf32>
    %410 = arith.mulf %405, %407 : vector<1x32xf32>
    %411 = arith.addf %409, %410 : vector<1x32xf32>
    %412 = math.tanh %411 : vector<1x32xf32>
    %413 = arith.mulf %408, %412 : vector<1x32xf32>
    %c2_136 = arith.constant 2 : index
    %c0_137 = arith.constant 0 : index
    %414 = vector.load %arg29[%c2_136, %c0_137] : memref<9x32xf32, #tpu.memory_space<vmem>>, vector<1x32xf32>
    tpu.vector_store %arg29[%c2_136, %c0_137], %413 {strides = array<i32>} : memref<9x32xf32, #tpu.memory_space<vmem>>, vector<1x32xf32>,
    %415 = vector.extract_strided_slice %349 {offsets = [3, 0], sizes = [1, 128], strides = [1, 1]} : vector<9x128xf32> to vector<1x128xf32>
    %416 = arith.truncf %413 : vector<1x32xf32> to vector<1x32xbf16>
    %c0_138 = arith.constant 0 : index
    %c0_139 = arith.constant 0 : index
    %417 = vector.load %arg11[%c0_138, %c0_139] : memref<32x128xbf16, #tpu.memory_space<vmem>>, vector<32x128xbf16>
    %cst_140 = arith.constant dense<0.000000e+00> : vector<1x128xf32>
    %418 = tpu.matmul %416, %417, %cst_140 {dimension_numbers = #tpu.dot_dimension_numbers<[1], [0], [0], [1], [0, 0, 1, 1], [], []>} : vector<1x32xbf16>, vector<32x128xbf16>, vector<1x128xf32> -> vector<1x128xf32>
    %419 = arith.addf %415, %418 : vector<1x128xf32>
    %420 = arith.negf %419 : vector<1x128xf32>
    %421 = math.exp %420 : vector<1x128xf32>
    %cst_141 = arith.constant 1.000000e+00 : f32
    %422 = vector.broadcast %cst_141 : f32 to vector<1x128xf32>
    %423 = arith.addf %422, %421 : vector<1x128xf32>
    %424 = arith.divf %422, %423 : vector<1x128xf32>
    %425 = math.tanh %419 : vector<1x128xf32>
    %426 = vector.extract_strided_slice %424 {offsets = [0, 0], sizes = [1, 32], strides = [1, 1]} : vector<1x128xf32> to vector<1x32xf32>
    %427 = vector.extract_strided_slice %424 {offsets = [0, 32], sizes = [1, 32], strides = [1, 1]} : vector<1x128xf32> to vector<1x32xf32>
    %428 = vector.extract_strided_slice %425 {offsets = [0, 64], sizes = [1, 32], strides = [1, 1]} : vector<1x128xf32> to vector<1x32xf32>
    %429 = vector.extract_strided_slice %424 {offsets = [0, 96], sizes = [1, 32], strides = [1, 1]} : vector<1x128xf32> to vector<1x32xf32>
    %430 = arith.mulf %427, %411 : vector<1x32xf32>
    %431 = arith.mulf %426, %428 : vector<1x32xf32>
    %432 = arith.addf %430, %431 : vector<1x32xf32>
    %433 = math.tanh %432 : vector<1x32xf32>
    %434 = arith.mulf %429, %433 : vector<1x32xf32>
    %c3_142 = arith.constant 3 : index
    %c0_143 = arith.constant 0 : index
    %435 = vector.load %arg29[%c3_142, %c0_143] : memref<9x32xf32, #tpu.memory_space<vmem>>, vector<1x32xf32>
    tpu.vector_store %arg29[%c3_142, %c0_143], %434 {strides = array<i32>} : memref<9x32xf32, #tpu.memory_space<vmem>>, vector<1x32xf32>,
    %436 = vector.extract_strided_slice %349 {offsets = [4, 0], sizes = [1, 128], strides = [1, 1]} : vector<9x128xf32> to vector<1x128xf32>
    %437 = arith.truncf %434 : vector<1x32xf32> to vector<1x32xbf16>
    %c0_144 = arith.constant 0 : index
    %c0_145 = arith.constant 0 : index
    %438 = vector.load %arg11[%c0_144, %c0_145] : memref<32x128xbf16, #tpu.memory_space<vmem>>, vector<32x128xbf16>
    %cst_146 = arith.constant dense<0.000000e+00> : vector<1x128xf32>
    %439 = tpu.matmul %437, %438, %cst_146 {dimension_numbers = #tpu.dot_dimension_numbers<[1], [0], [0], [1], [0, 0, 1, 1], [], []>} : vector<1x32xbf16>, vector<32x128xbf16>, vector<1x128xf32> -> vector<1x128xf32>
    %440 = arith.addf %436, %439 : vector<1x128xf32>
    %441 = arith.negf %440 : vector<1x128xf32>
    %442 = math.exp %441 : vector<1x128xf32>
    %cst_147 = arith.constant 1.000000e+00 : f32
    %443 = vector.broadcast %cst_147 : f32 to vector<1x128xf32>
    %444 = arith.addf %443, %442 : vector<1x128xf32>
    %445 = arith.divf %443, %444 : vector<1x128xf32>
    %446 = math.tanh %440 : vector<1x128xf32>
    %447 = vector.extract_strided_slice %445 {offsets = [0, 0], sizes = [1, 32], strides = [1, 1]} : vector<1x128xf32> to vector<1x32xf32>
    %448 = vector.extract_strided_slice %445 {offsets = [0, 32], sizes = [1, 32], strides = [1, 1]} : vector<1x128xf32> to vector<1x32xf32>
    %449 = vector.extract_strided_slice %446 {offsets = [0, 64], sizes = [1, 32], strides = [1, 1]} : vector<1x128xf32> to vector<1x32xf32>
    %450 = vector.extract_strided_slice %445 {offsets = [0, 96], sizes = [1, 32], strides = [1, 1]} : vector<1x128xf32> to vector<1x32xf32>
    %451 = arith.mulf %448, %432 : vector<1x32xf32>
    %452 = arith.mulf %447, %449 : vector<1x32xf32>
    %453 = arith.addf %451, %452 : vector<1x32xf32>
    %454 = math.tanh %453 : vector<1x32xf32>
    %455 = arith.mulf %450, %454 : vector<1x32xf32>
    %c4_148 = arith.constant 4 : index
    %c0_149 = arith.constant 0 : index
    %456 = vector.load %arg29[%c4_148, %c0_149] : memref<9x32xf32, #tpu.memory_space<vmem>>, vector<1x32xf32>
    tpu.vector_store %arg29[%c4_148, %c0_149], %455 {strides = array<i32>} : memref<9x32xf32, #tpu.memory_space<vmem>>, vector<1x32xf32>,
    %457 = vector.extract_strided_slice %349 {offsets = [5, 0], sizes = [1, 128], strides = [1, 1]} : vector<9x128xf32> to vector<1x128xf32>
    %458 = arith.truncf %455 : vector<1x32xf32> to vector<1x32xbf16>
    %c0_150 = arith.constant 0 : index
    %c0_151 = arith.constant 0 : index
    %459 = vector.load %arg11[%c0_150, %c0_151] : memref<32x128xbf16, #tpu.memory_space<vmem>>, vector<32x128xbf16>
    %cst_152 = arith.constant dense<0.000000e+00> : vector<1x128xf32>
    %460 = tpu.matmul %458, %459, %cst_152 {dimension_numbers = #tpu.dot_dimension_numbers<[1], [0], [0], [1], [0, 0, 1, 1], [], []>} : vector<1x32xbf16>, vector<32x128xbf16>, vector<1x128xf32> -> vector<1x128xf32>
    %461 = arith.addf %457, %460 : vector<1x128xf32>
    %462 = arith.negf %461 : vector<1x128xf32>
    %463 = math.exp %462 : vector<1x128xf32>
    %cst_153 = arith.constant 1.000000e+00 : f32
    %464 = vector.broadcast %cst_153 : f32 to vector<1x128xf32>
    %465 = arith.addf %464, %463 : vector<1x128xf32>
    %466 = arith.divf %464, %465 : vector<1x128xf32>
    %467 = math.tanh %461 : vector<1x128xf32>
    %468 = vector.extract_strided_slice %466 {offsets = [0, 0], sizes = [1, 32], strides = [1, 1]} : vector<1x128xf32> to vector<1x32xf32>
    %469 = vector.extract_strided_slice %466 {offsets = [0, 32], sizes = [1, 32], strides = [1, 1]} : vector<1x128xf32> to vector<1x32xf32>
    %470 = vector.extract_strided_slice %467 {offsets = [0, 64], sizes = [1, 32], strides = [1, 1]} : vector<1x128xf32> to vector<1x32xf32>
    %471 = vector.extract_strided_slice %466 {offsets = [0, 96], sizes = [1, 32], strides = [1, 1]} : vector<1x128xf32> to vector<1x32xf32>
    %472 = arith.mulf %469, %453 : vector<1x32xf32>
    %473 = arith.mulf %468, %470 : vector<1x32xf32>
    %474 = arith.addf %472, %473 : vector<1x32xf32>
    %475 = math.tanh %474 : vector<1x32xf32>
    %476 = arith.mulf %471, %475 : vector<1x32xf32>
    %c5_154 = arith.constant 5 : index
    %c0_155 = arith.constant 0 : index
    %477 = vector.load %arg29[%c5_154, %c0_155] : memref<9x32xf32, #tpu.memory_space<vmem>>, vector<1x32xf32>
    tpu.vector_store %arg29[%c5_154, %c0_155], %476 {strides = array<i32>} : memref<9x32xf32, #tpu.memory_space<vmem>>, vector<1x32xf32>,
    %478 = vector.extract_strided_slice %349 {offsets = [6, 0], sizes = [1, 128], strides = [1, 1]} : vector<9x128xf32> to vector<1x128xf32>
    %479 = arith.truncf %476 : vector<1x32xf32> to vector<1x32xbf16>
    %c0_156 = arith.constant 0 : index
    %c0_157 = arith.constant 0 : index
    %480 = vector.load %arg11[%c0_156, %c0_157] : memref<32x128xbf16, #tpu.memory_space<vmem>>, vector<32x128xbf16>
    %cst_158 = arith.constant dense<0.000000e+00> : vector<1x128xf32>
    %481 = tpu.matmul %479, %480, %cst_158 {dimension_numbers = #tpu.dot_dimension_numbers<[1], [0], [0], [1], [0, 0, 1, 1], [], []>} : vector<1x32xbf16>, vector<32x128xbf16>, vector<1x128xf32> -> vector<1x128xf32>
    %482 = arith.addf %478, %481 : vector<1x128xf32>
    %483 = arith.negf %482 : vector<1x128xf32>
    %484 = math.exp %483 : vector<1x128xf32>
    %cst_159 = arith.constant 1.000000e+00 : f32
    %485 = vector.broadcast %cst_159 : f32 to vector<1x128xf32>
    %486 = arith.addf %485, %484 : vector<1x128xf32>
    %487 = arith.divf %485, %486 : vector<1x128xf32>
    %488 = math.tanh %482 : vector<1x128xf32>
    %489 = vector.extract_strided_slice %487 {offsets = [0, 0], sizes = [1, 32], strides = [1, 1]} : vector<1x128xf32> to vector<1x32xf32>
    %490 = vector.extract_strided_slice %487 {offsets = [0, 32], sizes = [1, 32], strides = [1, 1]} : vector<1x128xf32> to vector<1x32xf32>
    %491 = vector.extract_strided_slice %488 {offsets = [0, 64], sizes = [1, 32], strides = [1, 1]} : vector<1x128xf32> to vector<1x32xf32>
    %492 = vector.extract_strided_slice %487 {offsets = [0, 96], sizes = [1, 32], strides = [1, 1]} : vector<1x128xf32> to vector<1x32xf32>
    %493 = arith.mulf %490, %474 : vector<1x32xf32>
    %494 = arith.mulf %489, %491 : vector<1x32xf32>
    %495 = arith.addf %493, %494 : vector<1x32xf32>
    %496 = math.tanh %495 : vector<1x32xf32>
    %497 = arith.mulf %492, %496 : vector<1x32xf32>
    %c6_160 = arith.constant 6 : index
    %c0_161 = arith.constant 0 : index
    %498 = vector.load %arg29[%c6_160, %c0_161] : memref<9x32xf32, #tpu.memory_space<vmem>>, vector<1x32xf32>
    tpu.vector_store %arg29[%c6_160, %c0_161], %497 {strides = array<i32>} : memref<9x32xf32, #tpu.memory_space<vmem>>, vector<1x32xf32>,
    %499 = vector.extract_strided_slice %349 {offsets = [7, 0], sizes = [1, 128], strides = [1, 1]} : vector<9x128xf32> to vector<1x128xf32>
    %500 = arith.truncf %497 : vector<1x32xf32> to vector<1x32xbf16>
    %c0_162 = arith.constant 0 : index
    %c0_163 = arith.constant 0 : index
    %501 = vector.load %arg11[%c0_162, %c0_163] : memref<32x128xbf16, #tpu.memory_space<vmem>>, vector<32x128xbf16>
    %cst_164 = arith.constant dense<0.000000e+00> : vector<1x128xf32>
    %502 = tpu.matmul %500, %501, %cst_164 {dimension_numbers = #tpu.dot_dimension_numbers<[1], [0], [0], [1], [0, 0, 1, 1], [], []>} : vector<1x32xbf16>, vector<32x128xbf16>, vector<1x128xf32> -> vector<1x128xf32>
    %503 = arith.addf %499, %502 : vector<1x128xf32>
    %504 = arith.negf %503 : vector<1x128xf32>
    %505 = math.exp %504 : vector<1x128xf32>
    %cst_165 = arith.constant 1.000000e+00 : f32
    %506 = vector.broadcast %cst_165 : f32 to vector<1x128xf32>
    %507 = arith.addf %506, %505 : vector<1x128xf32>
    %508 = arith.divf %506, %507 : vector<1x128xf32>
    %509 = math.tanh %503 : vector<1x128xf32>
    %510 = vector.extract_strided_slice %508 {offsets = [0, 0], sizes = [1, 32], strides = [1, 1]} : vector<1x128xf32> to vector<1x32xf32>
    %511 = vector.extract_strided_slice %508 {offsets = [0, 32], sizes = [1, 32], strides = [1, 1]} : vector<1x128xf32> to vector<1x32xf32>
    %512 = vector.extract_strided_slice %509 {offsets = [0, 64], sizes = [1, 32], strides = [1, 1]} : vector<1x128xf32> to vector<1x32xf32>
    %513 = vector.extract_strided_slice %508 {offsets = [0, 96], sizes = [1, 32], strides = [1, 1]} : vector<1x128xf32> to vector<1x32xf32>
    %514 = arith.mulf %511, %495 : vector<1x32xf32>
    %515 = arith.mulf %510, %512 : vector<1x32xf32>
    %516 = arith.addf %514, %515 : vector<1x32xf32>
    %517 = math.tanh %516 : vector<1x32xf32>
    %518 = arith.mulf %513, %517 : vector<1x32xf32>
    %c7_166 = arith.constant 7 : index
    %c0_167 = arith.constant 0 : index
    %519 = vector.load %arg29[%c7_166, %c0_167] : memref<9x32xf32, #tpu.memory_space<vmem>>, vector<1x32xf32>
    tpu.vector_store %arg29[%c7_166, %c0_167], %518 {strides = array<i32>} : memref<9x32xf32, #tpu.memory_space<vmem>>, vector<1x32xf32>,
    %520 = vector.extract_strided_slice %349 {offsets = [8, 0], sizes = [1, 128], strides = [1, 1]} : vector<9x128xf32> to vector<1x128xf32>
    %521 = arith.truncf %518 : vector<1x32xf32> to vector<1x32xbf16>
    %c0_168 = arith.constant 0 : index
    %c0_169 = arith.constant 0 : index
    %522 = vector.load %arg11[%c0_168, %c0_169] : memref<32x128xbf16, #tpu.memory_space<vmem>>, vector<32x128xbf16>
    %cst_170 = arith.constant dense<0.000000e+00> : vector<1x128xf32>
    %523 = tpu.matmul %521, %522, %cst_170 {dimension_numbers = #tpu.dot_dimension_numbers<[1], [0], [0], [1], [0, 0, 1, 1], [], []>} : vector<1x32xbf16>, vector<32x128xbf16>, vector<1x128xf32> -> vector<1x128xf32>
    %524 = arith.addf %520, %523 : vector<1x128xf32>
    %525 = arith.negf %524 : vector<1x128xf32>
    %526 = math.exp %525 : vector<1x128xf32>
    %cst_171 = arith.constant 1.000000e+00 : f32
    %527 = vector.broadcast %cst_171 : f32 to vector<1x128xf32>
    %528 = arith.addf %527, %526 : vector<1x128xf32>
    %529 = arith.divf %527, %528 : vector<1x128xf32>
    %530 = math.tanh %524 : vector<1x128xf32>
    %531 = vector.extract_strided_slice %529 {offsets = [0, 0], sizes = [1, 32], strides = [1, 1]} : vector<1x128xf32> to vector<1x32xf32>
    %532 = vector.extract_strided_slice %529 {offsets = [0, 32], sizes = [1, 32], strides = [1, 1]} : vector<1x128xf32> to vector<1x32xf32>
    %533 = vector.extract_strided_slice %530 {offsets = [0, 64], sizes = [1, 32], strides = [1, 1]} : vector<1x128xf32> to vector<1x32xf32>
    %534 = vector.extract_strided_slice %529 {offsets = [0, 96], sizes = [1, 32], strides = [1, 1]} : vector<1x128xf32> to vector<1x32xf32>
    %535 = arith.mulf %532, %516 : vector<1x32xf32>
    %536 = arith.mulf %531, %533 : vector<1x32xf32>
    %537 = arith.addf %535, %536 : vector<1x32xf32>
    %538 = math.tanh %537 : vector<1x32xf32>
    %539 = arith.mulf %534, %538 : vector<1x32xf32>
    %c8_172 = arith.constant 8 : index
    %c0_173 = arith.constant 0 : index
    %540 = vector.load %arg29[%c8_172, %c0_173] : memref<9x32xf32, #tpu.memory_space<vmem>>, vector<1x32xf32>
    tpu.vector_store %arg29[%c8_172, %c0_173], %539 {strides = array<i32>} : memref<9x32xf32, #tpu.memory_space<vmem>>, vector<1x32xf32>,
    %c0_174 = arith.constant 0 : index
    %c0_175 = arith.constant 0 : index
    %541 = vector.load %arg29[%c0_174, %c0_175] : memref<9x32xf32, #tpu.memory_space<vmem>>, vector<9x32xf32>
    %542 = arith.truncf %541 : vector<9x32xf32> to vector<9x32xbf16>
    %c0_176 = arith.constant 0 : index
    %c0_177 = arith.constant 0 : index
    %543 = vector.load %arg13[%c0_176, %c0_177] : memref<32x128xbf16, #tpu.memory_space<vmem>>, vector<32x128xbf16>
    %cst_178 = arith.constant dense<0.000000e+00> : vector<9x128xf32>
    %544 = tpu.matmul %542, %543, %cst_178 {dimension_numbers = #tpu.dot_dimension_numbers<[1], [0], [0], [1], [0, 0, 1, 1], [], []>} : vector<9x32xbf16>, vector<32x128xbf16>, vector<9x128xf32> -> vector<9x128xf32>
    %c0_179 = arith.constant 0 : index
    %c0_180 = arith.constant 0 : index
    %545 = vector.load %arg14[%c0_179, %c0_180] : memref<1x128xf32, #tpu.memory_space<vmem>>, vector<1x128xf32>
    %546 = vector.broadcast %545 : vector<1x128xf32> to vector<9x128xf32>
    %547 = arith.addf %544, %546 : vector<9x128xf32>
    %cst_181 = arith.constant dense<0.000000e+00> : vector<9x128xf32>
    %548 = tpu.matmul %15, %547, %cst_181 {dimension_numbers = #tpu.dot_dimension_numbers<[1], [0], [0], [1], [0, 0, 1, 1], [], []>} : vector<9x9xf32>, vector<9x128xf32>, vector<9x128xf32> -> vector<9x128xf32>
    %cst_182 = arith.constant dense<0.000000e+00> : vector<9x128xf32>
    %549 = tpu.matmul %15, %145, %cst_182 {dimension_numbers = #tpu.dot_dimension_numbers<[1], [0], [0], [1], [0, 0, 1, 1], [], []>} : vector<9x9xf32>, vector<9x128xf32>, vector<9x128xf32> -> vector<9x128xf32>
    %550 = arith.truncf %548 : vector<9x128xf32> to vector<9x128xbf16>
    %c0_183 = arith.constant 0 : index
    %c0_184 = arith.constant 0 : index
    %551 = vector.load %arg15[%c0_183, %c0_184] : memref<128x128xbf16, #tpu.memory_space<vmem>>, vector<128x128xbf16>
    %cst_185 = arith.constant dense<0.000000e+00> : vector<9x128xf32>
    %552 = tpu.matmul %550, %551, %cst_185 {dimension_numbers = #tpu.dot_dimension_numbers<[1], [0], [0], [1], [0, 0, 1, 1], [], []>} : vector<9x128xbf16>, vector<128x128xbf16>, vector<9x128xf32> -> vector<9x128xf32>
    %553 = arith.truncf %547 : vector<9x128xf32> to vector<9x128xbf16>
    %c0_186 = arith.constant 0 : index
    %c0_187 = arith.constant 0 : index
    %554 = vector.load %arg16[%c0_186, %c0_187] : memref<128x128xbf16, #tpu.memory_space<vmem>>, vector<128x128xbf16>
    %cst_188 = arith.constant dense<0.000000e+00> : vector<9x128xf32>
    %555 = tpu.matmul %553, %554, %cst_188 {dimension_numbers = #tpu.dot_dimension_numbers<[1], [0], [0], [1], [0, 0, 1, 1], [], []>} : vector<9x128xbf16>, vector<128x128xbf16>, vector<9x128xf32> -> vector<9x128xf32>
    %556 = arith.addf %552, %555 : vector<9x128xf32>
    %557 = arith.truncf %549 : vector<9x128xf32> to vector<9x128xbf16>
    %c0_189 = arith.constant 0 : index
    %c0_190 = arith.constant 0 : index
    %558 = vector.load %arg17[%c0_189, %c0_190] : memref<128x128xbf16, #tpu.memory_space<vmem>>, vector<128x128xbf16>
    %cst_191 = arith.constant dense<0.000000e+00> : vector<9x128xf32>
    %559 = tpu.matmul %557, %558, %cst_191 {dimension_numbers = #tpu.dot_dimension_numbers<[1], [0], [0], [1], [0, 0, 1, 1], [], []>} : vector<9x128xbf16>, vector<128x128xbf16>, vector<9x128xf32> -> vector<9x128xf32>
    %560 = arith.addf %556, %559 : vector<9x128xf32>
    %561 = arith.truncf %145 : vector<9x128xf32> to vector<9x128xbf16>
    %c0_192 = arith.constant 0 : index
    %c0_193 = arith.constant 0 : index
    %562 = vector.load %arg18[%c0_192, %c0_193] : memref<128x128xbf16, #tpu.memory_space<vmem>>, vector<128x128xbf16>
    %cst_194 = arith.constant dense<0.000000e+00> : vector<9x128xf32>
    %563 = tpu.matmul %561, %562, %cst_194 {dimension_numbers = #tpu.dot_dimension_numbers<[1], [0], [0], [1], [0, 0, 1, 1], [], []>} : vector<9x128xbf16>, vector<128x128xbf16>, vector<9x128xf32> -> vector<9x128xf32>
    %564 = arith.addf %560, %563 : vector<9x128xf32>
    %565 = tpu.iota {dimensions = array<i32: 0>} : vector<128x128xi32>
    %566 = arith.sitofp %565 : vector<128x128xi32> to vector<128x128xf32>
    %567 = tpu.iota {dimensions = array<i32: 1>} : vector<128x128xi32>
    %568 = arith.sitofp %567 : vector<128x128xi32> to vector<128x128xf32>
    %cst_195 = arith.constant 1.250000e-01 : f32
    %569 = vector.broadcast %cst_195 : f32 to vector<128x128xf32>
    %570 = arith.mulf %566, %569 : vector<128x128xf32>
    %571 = math.floor %570 : vector<128x128xf32>
    %cst_196 = arith.constant 1.250000e-01 : f32
    %572 = vector.broadcast %cst_196 : f32 to vector<128x128xf32>
    %573 = arith.mulf %568, %572 : vector<128x128xf32>
    %574 = math.floor %573 : vector<128x128xf32>
    %575 = arith.cmpf oeq, %571, %574 : vector<128x128xf32>
    %cst_197 = arith.constant 0.013888889 : f32
    %cst_198 = arith.constant 0.000000e+00 : f32
    %576 = vector.broadcast %cst_197 : f32 to vector<128x128xf32>
    %577 = vector.broadcast %cst_198 : f32 to vector<128x128xf32>
    %578 = arith.select %575, %576, %577 : vector<128x128xi1>, vector<128x128xf32>
    %cst_199 = arith.constant dense<0.000000e+00> : vector<128xf32>
    %579 = vector.multi_reduction <add>, %564, %cst_199 [0] : vector<9x128xf32> to vector<128xf32>
    %580 = vector.shape_cast %579 : vector<128xf32> to vector<1x128xf32>
    %581 = arith.mulf %564, %564 : vector<9x128xf32>
    %cst_200 = arith.constant dense<0.000000e+00> : vector<128xf32>
    %582 = vector.multi_reduction <add>, %581, %cst_200 [0] : vector<9x128xf32> to vector<128xf32>
    %583 = vector.shape_cast %582 : vector<128xf32> to vector<1x128xf32>
    %cst_201 = arith.constant dense<0.000000e+00> : vector<1x128xf32>
    %584 = tpu.matmul %580, %578, %cst_201 {dimension_numbers = #tpu.dot_dimension_numbers<[1], [0], [0], [1], [0, 0, 1, 1], [], []>} : vector<1x128xf32>, vector<128x128xf32>, vector<1x128xf32> -> vector<1x128xf32>
    %cst_202 = arith.constant dense<0.000000e+00> : vector<1x128xf32>
    %585 = tpu.matmul %583, %578, %cst_202 {dimension_numbers = #tpu.dot_dimension_numbers<[1], [0], [0], [1], [0, 0, 1, 1], [], []>} : vector<1x128xf32>, vector<128x128xf32>, vector<1x128xf32> -> vector<1x128xf32>
    %586 = arith.mulf %584, %584 : vector<1x128xf32>
    %587 = arith.subf %585, %586 : vector<1x128xf32>
    %588 = vector.broadcast %584 : vector<1x128xf32> to vector<9x128xf32>
    %589 = arith.subf %564, %588 : vector<9x128xf32>
    %cst_203 = arith.constant 9.99999974E-6 : f32
    %590 = vector.broadcast %cst_203 : f32 to vector<1x128xf32>
    %591 = arith.addf %587, %590 : vector<1x128xf32>
    %592 = math.rsqrt %591 : vector<1x128xf32>
    %593 = vector.broadcast %592 : vector<1x128xf32> to vector<9x128xf32>
    %594 = arith.mulf %589, %593 : vector<9x128xf32>
    %cst_204 = arith.constant 0.000000e+00 : f32
    %595 = vector.broadcast %cst_204 : f32 to vector<9x128xf32>
    %596 = arith.cmpf ogt, %594, %595 : vector<9x128xf32>
    %cst_205 = arith.constant 2.500000e-01 : f32
    %597 = vector.broadcast %cst_205 : f32 to vector<9x128xf32>
    %598 = arith.mulf %597, %594 : vector<9x128xf32>
    %599 = arith.select %596, %594, %598 : vector<9x128xi1>, vector<9x128xf32>
    %cst_206 = arith.constant dense<0.000000e+00> : vector<9x128xf32>
    %600 = tpu.matmul %15, %599, %cst_206 {dimension_numbers = #tpu.dot_dimension_numbers<[1], [0], [0], [1], [0, 0, 1, 1], [], []>} : vector<9x9xf32>, vector<9x128xf32>, vector<9x128xf32> -> vector<9x128xf32>
    %cst_207 = arith.constant dense<0.000000e+00> : vector<9x128xf32>
    %601 = tpu.matmul %15, %102, %cst_207 {dimension_numbers = #tpu.dot_dimension_numbers<[1], [0], [0], [1], [0, 0, 1, 1], [], []>} : vector<9x9xf32>, vector<9x128xf32>, vector<9x128xf32> -> vector<9x128xf32>
    %602 = arith.truncf %600 : vector<9x128xf32> to vector<9x128xbf16>
    %c0_208 = arith.constant 0 : index
    %c0_209 = arith.constant 0 : index
    %603 = vector.load %arg19[%c0_208, %c0_209] : memref<128x128xbf16, #tpu.memory_space<vmem>>, vector<128x128xbf16>
    %cst_210 = arith.constant dense<0.000000e+00> : vector<9x128xf32>
    %604 = tpu.matmul %602, %603, %cst_210 {dimension_numbers = #tpu.dot_dimension_numbers<[1], [0], [0], [1], [0, 0, 1, 1], [], []>} : vector<9x128xbf16>, vector<128x128xbf16>, vector<9x128xf32> -> vector<9x128xf32>
    %605 = arith.truncf %599 : vector<9x128xf32> to vector<9x128xbf16>
    %c0_211 = arith.constant 0 : index
    %c0_212 = arith.constant 0 : index
    %606 = vector.load %arg20[%c0_211, %c0_212] : memref<128x128xbf16, #tpu.memory_space<vmem>>, vector<128x128xbf16>
    %cst_213 = arith.constant dense<0.000000e+00> : vector<9x128xf32>
    %607 = tpu.matmul %605, %606, %cst_213 {dimension_numbers = #tpu.dot_dimension_numbers<[1], [0], [0], [1], [0, 0, 1, 1], [], []>} : vector<9x128xbf16>, vector<128x128xbf16>, vector<9x128xf32> -> vector<9x128xf32>
    %608 = arith.addf %604, %607 : vector<9x128xf32>
    %609 = arith.truncf %601 : vector<9x128xf32> to vector<9x128xbf16>
    %c0_214 = arith.constant 0 : index
    %c0_215 = arith.constant 0 : index
    %610 = vector.load %arg21[%c0_214, %c0_215] : memref<128x128xbf16, #tpu.memory_space<vmem>>, vector<128x128xbf16>
    %cst_216 = arith.constant dense<0.000000e+00> : vector<9x128xf32>
    %611 = tpu.matmul %609, %610, %cst_216 {dimension_numbers = #tpu.dot_dimension_numbers<[1], [0], [0], [1], [0, 0, 1, 1], [], []>} : vector<9x128xbf16>, vector<128x128xbf16>, vector<9x128xf32> -> vector<9x128xf32>
    %612 = arith.addf %608, %611 : vector<9x128xf32>
    %613 = arith.truncf %102 : vector<9x128xf32> to vector<9x128xbf16>
    %c0_217 = arith.constant 0 : index
    %c0_218 = arith.constant 0 : index
    %614 = vector.load %arg22[%c0_217, %c0_218] : memref<128x128xbf16, #tpu.memory_space<vmem>>, vector<128x128xbf16>
    %cst_219 = arith.constant dense<0.000000e+00> : vector<9x128xf32>
    %615 = tpu.matmul %613, %614, %cst_219 {dimension_numbers = #tpu.dot_dimension_numbers<[1], [0], [0], [1], [0, 0, 1, 1], [], []>} : vector<9x128xbf16>, vector<128x128xbf16>, vector<9x128xf32> -> vector<9x128xf32>
    %616 = arith.addf %612, %615 : vector<9x128xf32>
    %617 = tpu.iota {dimensions = array<i32: 0>} : vector<128x128xi32>
    %618 = arith.sitofp %617 : vector<128x128xi32> to vector<128x128xf32>
    %619 = tpu.iota {dimensions = array<i32: 1>} : vector<128x128xi32>
    %620 = arith.sitofp %619 : vector<128x128xi32> to vector<128x128xf32>
    %cst_220 = arith.constant 6.250000e-02 : f32
    %621 = vector.broadcast %cst_220 : f32 to vector<128x128xf32>
    %622 = arith.mulf %618, %621 : vector<128x128xf32>
    %623 = math.floor %622 : vector<128x128xf32>
    %cst_221 = arith.constant 6.250000e-02 : f32
    %624 = vector.broadcast %cst_221 : f32 to vector<128x128xf32>
    %625 = arith.mulf %620, %624 : vector<128x128xf32>
    %626 = math.floor %625 : vector<128x128xf32>
    %627 = arith.cmpf oeq, %623, %626 : vector<128x128xf32>
    %cst_222 = arith.constant 0.0069444445 : f32
    %cst_223 = arith.constant 0.000000e+00 : f32
    %628 = vector.broadcast %cst_222 : f32 to vector<128x128xf32>
    %629 = vector.broadcast %cst_223 : f32 to vector<128x128xf32>
    %630 = arith.select %627, %628, %629 : vector<128x128xi1>, vector<128x128xf32>
    %cst_224 = arith.constant dense<0.000000e+00> : vector<128xf32>
    %631 = vector.multi_reduction <add>, %616, %cst_224 [0] : vector<9x128xf32> to vector<128xf32>
    %632 = vector.shape_cast %631 : vector<128xf32> to vector<1x128xf32>
    %633 = arith.mulf %616, %616 : vector<9x128xf32>
    %cst_225 = arith.constant dense<0.000000e+00> : vector<128xf32>
    %634 = vector.multi_reduction <add>, %633, %cst_225 [0] : vector<9x128xf32> to vector<128xf32>
    %635 = vector.shape_cast %634 : vector<128xf32> to vector<1x128xf32>
    %cst_226 = arith.constant dense<0.000000e+00> : vector<1x128xf32>
    %636 = tpu.matmul %632, %630, %cst_226 {dimension_numbers = #tpu.dot_dimension_numbers<[1], [0], [0], [1], [0, 0, 1, 1], [], []>} : vector<1x128xf32>, vector<128x128xf32>, vector<1x128xf32> -> vector<1x128xf32>
    %cst_227 = arith.constant dense<0.000000e+00> : vector<1x128xf32>
    %637 = tpu.matmul %635, %630, %cst_227 {dimension_numbers = #tpu.dot_dimension_numbers<[1], [0], [0], [1], [0, 0, 1, 1], [], []>} : vector<1x128xf32>, vector<128x128xf32>, vector<1x128xf32> -> vector<1x128xf32>
    %638 = arith.mulf %636, %636 : vector<1x128xf32>
    %639 = arith.subf %637, %638 : vector<1x128xf32>
    %640 = vector.broadcast %636 : vector<1x128xf32> to vector<9x128xf32>
    %641 = arith.subf %616, %640 : vector<9x128xf32>
    %cst_228 = arith.constant 9.99999974E-6 : f32
    %642 = vector.broadcast %cst_228 : f32 to vector<1x128xf32>
    %643 = arith.addf %639, %642 : vector<1x128xf32>
    %644 = math.rsqrt %643 : vector<1x128xf32>
    %645 = vector.broadcast %644 : vector<1x128xf32> to vector<9x128xf32>
    %646 = arith.mulf %641, %645 : vector<9x128xf32>
    %cst_229 = arith.constant 0.000000e+00 : f32
    %647 = vector.broadcast %cst_229 : f32 to vector<9x128xf32>
    %648 = arith.cmpf ogt, %646, %647 : vector<9x128xf32>
    %cst_230 = arith.constant 2.500000e-01 : f32
    %649 = vector.broadcast %cst_230 : f32 to vector<9x128xf32>
    %650 = arith.mulf %649, %646 : vector<9x128xf32>
    %651 = arith.select %648, %646, %650 : vector<9x128xi1>, vector<9x128xf32>
    %cst_231 = arith.constant dense<0.000000e+00> : vector<9x128xf32>
    %652 = tpu.matmul %15, %651, %cst_231 {dimension_numbers = #tpu.dot_dimension_numbers<[1], [0], [0], [1], [0, 0, 1, 1], [], []>} : vector<9x9xf32>, vector<9x128xf32>, vector<9x128xf32> -> vector<9x128xf32>
    %cst_232 = arith.constant dense<0.000000e+00> : vector<9x128xf32>
    %653 = tpu.matmul %15, %59, %cst_232 {dimension_numbers = #tpu.dot_dimension_numbers<[1], [0], [0], [1], [0, 0, 1, 1], [], []>} : vector<9x9xf32>, vector<9x128xf32>, vector<9x128xf32> -> vector<9x128xf32>
    %654 = arith.truncf %652 : vector<9x128xf32> to vector<9x128xbf16>
    %c0_233 = arith.constant 0 : index
    %c0_234 = arith.constant 0 : index
    %655 = vector.load %arg23[%c0_233, %c0_234] : memref<128x64xbf16, #tpu.memory_space<vmem>>, vector<128x64xbf16>
    %cst_235 = arith.constant dense<0.000000e+00> : vector<9x64xf32>
    %656 = tpu.matmul %654, %655, %cst_235 {dimension_numbers = #tpu.dot_dimension_numbers<[1], [0], [0], [1], [0, 0, 1, 1], [], []>} : vector<9x128xbf16>, vector<128x64xbf16>, vector<9x64xf32> -> vector<9x64xf32>
    %657 = arith.truncf %651 : vector<9x128xf32> to vector<9x128xbf16>
    %c0_236 = arith.constant 0 : index
    %c0_237 = arith.constant 0 : index
    %658 = vector.load %arg24[%c0_236, %c0_237] : memref<128x64xbf16, #tpu.memory_space<vmem>>, vector<128x64xbf16>
    %cst_238 = arith.constant dense<0.000000e+00> : vector<9x64xf32>
    %659 = tpu.matmul %657, %658, %cst_238 {dimension_numbers = #tpu.dot_dimension_numbers<[1], [0], [0], [1], [0, 0, 1, 1], [], []>} : vector<9x128xbf16>, vector<128x64xbf16>, vector<9x64xf32> -> vector<9x64xf32>
    %660 = arith.addf %656, %659 : vector<9x64xf32>
    %661 = arith.truncf %653 : vector<9x128xf32> to vector<9x128xbf16>
    %c0_239 = arith.constant 0 : index
    %c0_240 = arith.constant 0 : index
    %662 = vector.load %arg25[%c0_239, %c0_240] : memref<128x64xbf16, #tpu.memory_space<vmem>>, vector<128x64xbf16>
    %cst_241 = arith.constant dense<0.000000e+00> : vector<9x64xf32>
    %663 = tpu.matmul %661, %662, %cst_241 {dimension_numbers = #tpu.dot_dimension_numbers<[1], [0], [0], [1], [0, 0, 1, 1], [], []>} : vector<9x128xbf16>, vector<128x64xbf16>, vector<9x64xf32> -> vector<9x64xf32>
    %664 = arith.addf %660, %663 : vector<9x64xf32>
    %665 = arith.truncf %59 : vector<9x128xf32> to vector<9x128xbf16>
    %c0_242 = arith.constant 0 : index
    %c0_243 = arith.constant 0 : index
    %666 = vector.load %arg26[%c0_242, %c0_243] : memref<128x64xbf16, #tpu.memory_space<vmem>>, vector<128x64xbf16>
    %cst_244 = arith.constant dense<0.000000e+00> : vector<9x64xf32>
    %667 = tpu.matmul %665, %666, %cst_244 {dimension_numbers = #tpu.dot_dimension_numbers<[1], [0], [0], [1], [0, 0, 1, 1], [], []>} : vector<9x128xbf16>, vector<128x64xbf16>, vector<9x64xf32> -> vector<9x64xf32>
    %668 = arith.addf %664, %667 : vector<9x64xf32>
    %669 = tpu.iota {dimensions = array<i32: 0>} : vector<64x64xi32>
    %670 = arith.sitofp %669 : vector<64x64xi32> to vector<64x64xf32>
    %671 = tpu.iota {dimensions = array<i32: 1>} : vector<64x64xi32>
    %672 = arith.sitofp %671 : vector<64x64xi32> to vector<64x64xf32>
    %cst_245 = arith.constant 3.125000e-02 : f32
    %673 = vector.broadcast %cst_245 : f32 to vector<64x64xf32>
    %674 = arith.mulf %670, %673 : vector<64x64xf32>
    %675 = math.floor %674 : vector<64x64xf32>
    %cst_246 = arith.constant 3.125000e-02 : f32
    %676 = vector.broadcast %cst_246 : f32 to vector<64x64xf32>
    %677 = arith.mulf %672, %676 : vector<64x64xf32>
    %678 = math.floor %677 : vector<64x64xf32>
    %679 = arith.cmpf oeq, %675, %678 : vector<64x64xf32>
    %cst_247 = arith.constant 0.00347222225 : f32
    %cst_248 = arith.constant 0.000000e+00 : f32
    %680 = vector.broadcast %cst_247 : f32 to vector<64x64xf32>
    %681 = vector.broadcast %cst_248 : f32 to vector<64x64xf32>
    %682 = arith.select %679, %680, %681 : vector<64x64xi1>, vector<64x64xf32>
    %cst_249 = arith.constant dense<0.000000e+00> : vector<64xf32>
    %683 = vector.multi_reduction <add>, %668, %cst_249 [0] : vector<9x64xf32> to vector<64xf32>
    %684 = vector.shape_cast %683 : vector<64xf32> to vector<1x64xf32>
    %685 = arith.mulf %668, %668 : vector<9x64xf32>
    %cst_250 = arith.constant dense<0.000000e+00> : vector<64xf32>
    %686 = vector.multi_reduction <add>, %685, %cst_250 [0] : vector<9x64xf32> to vector<64xf32>
    %687 = vector.shape_cast %686 : vector<64xf32> to vector<1x64xf32>
    %cst_251 = arith.constant dense<0.000000e+00> : vector<1x64xf32>
    %688 = tpu.matmul %684, %682, %cst_251 {dimension_numbers = #tpu.dot_dimension_numbers<[1], [0], [0], [1], [0, 0, 1, 1], [], []>} : vector<1x64xf32>, vector<64x64xf32>, vector<1x64xf32> -> vector<1x64xf32>
    %cst_252 = arith.constant dense<0.000000e+00> : vector<1x64xf32>
    %689 = tpu.matmul %687, %682, %cst_252 {dimension_numbers = #tpu.dot_dimension_numbers<[1], [0], [0], [1], [0, 0, 1, 1], [], []>} : vector<1x64xf32>, vector<64x64xf32>, vector<1x64xf32> -> vector<1x64xf32>
    %690 = arith.mulf %688, %688 : vector<1x64xf32>
    %691 = arith.subf %689, %690 : vector<1x64xf32>
    %692 = vector.broadcast %688 : vector<1x64xf32> to vector<9x64xf32>
    %693 = arith.subf %668, %692 : vector<9x64xf32>
    %cst_253 = arith.constant 9.99999974E-6 : f32
    %694 = vector.broadcast %cst_253 : f32 to vector<1x64xf32>
    %695 = arith.addf %691, %694 : vector<1x64xf32>
    %696 = math.rsqrt %695 : vector<1x64xf32>
    %697 = vector.broadcast %696 : vector<1x64xf32> to vector<9x64xf32>
    %698 = arith.mulf %693, %697 : vector<9x64xf32>
    %cst_254 = arith.constant 0.000000e+00 : f32
    %699 = vector.broadcast %cst_254 : f32 to vector<9x64xf32>
    %700 = arith.cmpf ogt, %698, %699 : vector<9x64xf32>
    %cst_255 = arith.constant 2.500000e-01 : f32
    %701 = vector.broadcast %cst_255 : f32 to vector<9x64xf32>
    %702 = arith.mulf %701, %698 : vector<9x64xf32>
    %703 = arith.select %700, %698, %702 : vector<9x64xi1>, vector<9x64xf32>
    %c0_256 = arith.constant 0 : index
    %c0_257 = arith.constant 0 : index
    %704 = vector.load %arg27[%c0_256, %c0_257] : memref<9x64xf32, #tpu.memory_space<vmem>>, vector<9x64xf32>
    tpu.vector_store %arg27[%c0_256, %c0_257], %703 {strides = array<i32>} : memref<9x64xf32, #tpu.memory_space<vmem>>, vector<9x64xf32>,
    return
  }
}

</mosaic_0001>

<llo_original>
// kernel: neg.114
$region0: #{neg.114}
  #allocation0 [shape = 's32[1]{0}', space=sflag, size = 0x4, scoped, tag = 'scoped memory for neg.114']
  %s0 = inlined_call_operand.vmem [shape: f32[1,1,4,5], index: 0, kind: input, shape index: {}]
  %s1 = inlined_call_operand.vmem [shape: bf16[1,1,4,5], index: 1, kind: output, shape index: {}]
  %v2 = vld [vmem:[%s0] sm:$0xf]
  %3 = xla_tuple %v2
  %4 = xla_tuple %3
  %v5 = vxor.u32 %v2, 2147483648
  %6 = xla_tuple %v5
  %v7 = vpack.c.bf16 0.0, %v5
  %8 = vst [vmem:[%s1] sm:$0x3] %v7

// kernel: reverse.0
$region0: #{reverse.0}
  %s0 = inlined_call_operand.vmem [shape: f32[9,31], index: 0, kind: input, shape index: {}]
  %s1 = inlined_call_operand.vmem [shape: f32[9,31], index: 1, kind: output, shape index: {}]
  %v2 = vlaneseq
  %v3 = vsub.s32 30, %v2
  %4 = vset.pattern.permute.xlu0 %v3
  $region1: #{reverse.0} parent=0
    #allocation0 [shape = 'u8[8192]{0}', space=vmem, size = 0x2000, scoped, tag = 'operand span for operand 0']
    #allocation1 [shape = 'u8[8192]{0}', space=vmem, size = 0x2000, scoped, tag = 'operand span for operand 1']
    // Predicated region
    $region2: #{reverse.0} parent=1 // pred_check
      _
    $region3: #{reverse.0} parent=1 // pred_check_branch
      %6 = sbr.rel (0) target = $region5
    $region4: #{reverse.0} parent=1 // pred_region
      // Predicated region
      $region6: #{reverse.0} parent=4 // pred_check
        _
      $region7: #{reverse.0} parent=4 // pred_check_branch
        %8 = sbr.rel (0) target = $region9
      $region8: #{reverse.0} parent=4 // pred_region
        // Predicated region
        $region21: #{reverse.0} parent=8 // pred_check
          _
        $region22: #{reverse.0} parent=8 // pred_check_branch
          %25 = sbr.rel (0) target = $region24
        $region23: #{reverse.0} parent=8 // pred_region
          loop: start=0, step=1, limit=1
          $region25: #{reverse.0} parent=23 // loop_pre_header
            _
          $region26: #{reverse.0} parent=23 // loop_header
            %s27 = sphi 0, %s31
            %p28 = scmp.ge.s32.totalorder %s27, 1
            %s32 = sphi %s0, %s0
            %s33 = sphi [#allocation0], [#allocation0]
          $region27: #{reverse.0} parent=23 // loop_header_branch
            %30 = sbr.rel (%p28) target = $region31
          $region28: #{reverse.0} parent=23 // loop_body
            %v34 = vld [vmem:[%s32] sm:$0xff]
            %35 = vst [vmem:[%s33] sm:$0xff] %v34
            %v36 = vld [vmem:[%s32 + $0x8] sm:$0xff]
            %37 = vst [vmem:[%s33 + $0x8] sm:$0xff] %v36
          $region29: #{reverse.0} parent=23 // loop_footer
            %s31 = sadd.s32 1, %s27
          $region30: #{reverse.0} parent=23 // loop_footer_branch
            %26 = sbr.rel target = $region26
          $region31: #{reverse.0} parent=23 // loop_exit
            _
        $region24: #{reverse.0} parent=8 // pred_fallthru
          _
        // Predicated region
        $region32: #{reverse.0} parent=8 // pred_check
          _
        $region33: #{reverse.0} parent=8 // pred_check_branch
          %39 = sbr.rel target = $region35
        $region34: #{reverse.0} parent=8 // pred_region
          _
        $region35: #{reverse.0} parent=8 // pred_fallthru
          _
      $region9: #{reverse.0} parent=4 // pred_fallthru
        _
      // Predicated region
      $region10: #{reverse.0} parent=4 // pred_check
        _
      $region11: #{reverse.0} parent=4 // pred_check_branch
        %10 = sbr.rel target = $region13
      $region12: #{reverse.0} parent=4 // pred_region
        loop: start=0, step=1, limit=1
        $region14: #{reverse.0} parent=12 // loop_pre_header
          _
        $region15: #{reverse.0} parent=12 // loop_header
          %s13 = sphi 0, %s17
          %p14 = scmp.ge.s32.totalorder %s13, 1
          %s18 = sphi %s0, %s0
          %s19 = sphi [#allocation0], [#allocation0]
        $region16: #{reverse.0} parent=12 // loop_header_branch
          %16 = sbr.rel (%p14) target = $region20
        $region17: #{reverse.0} parent=12 // loop_body
          %v20 = vld [vmem:[%s18] sm:$0xff]
          %21 = vst [vmem:[%s19] sm:$0xff] %v20
          %v22 = vld [vmem:[%s18 + $0x8] sm:$0xff]
          %23 = vst [vmem:[%s19 + $0x8] sm:$0xff] %v22
        $region18: #{reverse.0} parent=12 // loop_footer
          %s17 = sadd.s32 1, %s13
        $region19: #{reverse.0} parent=12 // loop_footer_branch
          %12 = sbr.rel target = $region15
        $region20: #{reverse.0} parent=12 // loop_exit
          _
      $region13: #{reverse.0} parent=4 // pred_fallthru
        _
    $region5: #{reverse.0} parent=1 // pred_fallthru
      _
    %40 = vnop
    %v41 = vld [vmem:[#allocation0] sm:$0xff]
    %42 = vperm.xlu0 %4, %v41
    %v43 = vpop.permute.xlu0 %42
    %44 = vst [vmem:[#allocation1] sm:$0xff] %v43
    %s45 = scalar_lea.vmem [#allocation1], 8
    %s46 = scalar_lea.vmem [#allocation0], 8
    %v47 = vld [vmem:[%s46] sm:$0xff]
    %48 = vperm.xlu0 %4, %v47
    %v49 = vpop.permute.xlu0 %48
    %50 = vst [vmem:[%s45] sm:$0xff] %v49
    // Predicated region
    $region36: #{reverse.0} parent=1 // pred_check
      _
    $region37: #{reverse.0} parent=1 // pred_check_branch
      %52 = sbr.rel (0) target = $region39
    $region38: #{reverse.0} parent=1 // pred_region
      // Predicated region
      $region40: #{reverse.0} parent=38 // pred_check
        _
      $region41: #{reverse.0} parent=38 // pred_check_branch
        %54 = sbr.rel (0) target = $region43
      $region42: #{reverse.0} parent=38 // pred_region
        // Predicated region
        $region55: #{reverse.0} parent=42 // pred_check
          _
        $region56: #{reverse.0} parent=42 // pred_check_branch
          %71 = sbr.rel (0) target = $region58
        $region57: #{reverse.0} parent=42 // pred_region
          loop: start=0, step=1, limit=1
          $region59: #{reverse.0} parent=57 // loop_pre_header
            _
          $region60: #{reverse.0} parent=57 // loop_header
            %s73 = sphi 0, %s77
            %p74 = scmp.ge.s32.totalorder %s73, 1
            %s78 = sphi [#allocation1], [#allocation1]
            %s79 = sphi %s1, %s1
          $region61: #{reverse.0} parent=57 // loop_header_branch
            %76 = sbr.rel (%p74) target = $region65
          $region62: #{reverse.0} parent=57 // loop_body
            %v80 = vld [vmem:[%s78] sm:$0xff]
            %81 = vst [vmem:[%s79] sm:$0xff] %v80
            %v82 = vld [vmem:[%s78 + $0x8] sm:$0xff]
            %83 = vst [vmem:[%s79 + $0x8] sm:$0xff] %v82
          $region63: #{reverse.0} parent=57 // loop_footer
            %s77 = sadd.s32 1, %s73
          $region64: #{reverse.0} parent=57 // loop_footer_branch
            %72 = sbr.rel target = $region60
          $region65: #{reverse.0} parent=57 // loop_exit
            _
        $region58: #{reverse.0} parent=42 // pred_fallthru
          _
        // Predicated region
        $region66: #{reverse.0} parent=42 // pred_check
          _
        $region67: #{reverse.0} parent=42 // pred_check_branch
          %85 = sbr.rel target = $region69
        $region68: #{reverse.0} parent=42 // pred_region
          _
        $region69: #{reverse.0} parent=42 // pred_fallthru
          _
      $region43: #{reverse.0} parent=38 // pred_fallthru
        _
      // Predicated region
      $region44: #{reverse.0} parent=38 // pred_check
        _
      $region45: #{reverse.0} parent=38 // pred_check_branch
        %56 = sbr.rel target = $region47
      $region46: #{reverse.0} parent=38 // pred_region
        loop: start=0, step=1, limit=1
        $region48: #{reverse.0} parent=46 // loop_pre_header
          _
        $region49: #{reverse.0} parent=46 // loop_header
          %s59 = sphi 0, %s63
          %p60 = scmp.ge.s32.totalorder %s59, 1
          %s64 = sphi [#allocation1], [#allocation1]
          %s65 = sphi %s1, %s1
        $region50: #{reverse.0} parent=46 // loop_header_branch
          %62 = sbr.rel (%p60) target = $region54
        $region51: #{reverse.0} parent=46 // loop_body
          %v66 = vld [vmem:[%s64] sm:$0xff]
          %67 = vst [vmem:[%s65] sm:$0xff] %v66
          %v68 = vld [vmem:[%s64 + $0x8] sm:$0xff]
          %69 = vst [vmem:[%s65 + $0x8] sm:$0xff] %v68
        $region52: #{reverse.0} parent=46 // loop_footer
          %s63 = sadd.s32 1, %s59
        $region53: #{reverse.0} parent=46 // loop_footer_branch
          %58 = sbr.rel target = $region49
        $region54: #{reverse.0} parent=46 // loop_exit
          _
      $region47: #{reverse.0} parent=38 // pred_fallthru
        _
    $region39: #{reverse.0} parent=1 // pred_fallthru
      _
    %86 = vnop

// kernel: tile.8
$region0: #{tile.8}
  #allocation0 [shape = 's32[1]{0}', space=sflag, size = 0x4, scoped, tag = 'scoped memory for tile.8']
  %s0 = inlined_call_operand.vmem [shape: f32[64], index: 0, kind: input, shape index: {}]
  %s1 = inlined_call_operand.vmem [shape: f32[9,64], index: 1, kind: output, shape index: {}]
  // Predicated region
  $region2: #{tile.8} parent=0 // pred_check
    _
  $region3: #{tile.8} parent=0 // pred_check_branch
    %3 = sbr.rel (0) target = $region5
  $region4: #{tile.8} parent=0 // pred_region
    _
  $region5: #{tile.8} parent=0 // pred_fallthru
    _
  %v4 = vld [vmem:[%s0] ss:$0 sm:$0xff]
  %5 = vst [vmem:[%s1] sm:$0xff] %v4
  %s6 = scalar_lea.vmem %s1, 8
  %7 = vst [vmem:[%s6] sm:$0xff] %v4

// kernel: dccrn_forward.1
$region0: #{dccrn_forward.1}
  #allocation0 [shape = 'u32[]', space=smem, size = 0x4, offset = 0x4, fixed_abs, tag = 'smem constant byte address 0x4 - core index']
  #allocation1 [shape = 'u32[144,128]{1,0:T(1,128)}', space=vmem, size = 0x12000, scoped, tag = 'internal scratch']
  #allocation2 [shape = 'f32[9,32]{1,0:T(8,128)}', space=vmem, size = 0x2000, scoped, tag = 'scratch operand']
  #allocation3 [shape = 'f32[9,32]{1,0:T(8,128)}', space=vmem, size = 0x2000, scoped, tag = 'scratch operand']
  %s0 = inlined_call_operand.vmem [shape: f32[9,64], index: 0, kind: input, shape index: {}]
  %s1 = inlined_call_operand.vmem [shape: bf16[64,128], index: 1, kind: input, shape index: {}]
  %s2 = inlined_call_operand.vmem [shape: bf16[64,128], index: 2, kind: input, shape index: {}]
  %s3 = inlined_call_operand.vmem [shape: bf16[128,128], index: 3, kind: input, shape index: {}]
  %s4 = inlined_call_operand.vmem [shape: bf16[128,128], index: 4, kind: input, shape index: {}]
  %s5 = inlined_call_operand.vmem [shape: bf16[128,128], index: 5, kind: input, shape index: {}]
  %s6 = inlined_call_operand.vmem [shape: bf16[128,128], index: 6, kind: input, shape index: {}]
  %s7 = inlined_call_operand.vmem [shape: bf16[128,128], index: 7, kind: input, shape index: {}]
  %s8 = inlined_call_operand.vmem [shape: bf16[32,128], index: 8, kind: input, shape index: {}]
  %s9 = inlined_call_operand.vmem [shape: f32[1,128], index: 9, kind: input, shape index: {}]
  %s10 = inlined_call_operand.vmem [shape: bf16[32,128], index: 10, kind: input, shape index: {}]
  %s11 = inlined_call_operand.vmem [shape: bf16[32,128], index: 11, kind: input, shape index: {}]
  %s12 = inlined_call_operand.vmem [shape: f32[1,128], index: 12, kind: input, shape index: {}]
  %s13 = inlined_call_operand.vmem [shape: bf16[32,128], index: 13, kind: input, shape index: {}]
  %s14 = inlined_call_operand.vmem [shape: f32[1,128], index: 14, kind: input, shape index: {}]
  %s15 = inlined_call_operand.vmem [shape: bf16[128,128], index: 15, kind: input, shape index: {}]
  %s16 = inlined_call_operand.vmem [shape: bf16[128,128], index: 16, kind: input, shape index: {}]
  %s17 = inlined_call_operand.vmem [shape: bf16[128,128], index: 17, kind: input, shape index: {}]
  %s18 = inlined_call_operand.vmem [shape: bf16[128,128], index: 18, kind: input, shape index: {}]
  %s19 = inlined_call_operand.vmem [shape: bf16[128,128], index: 19, kind: input, shape index: {}]
  %s20 = inlined_call_operand.vmem [shape: bf16[128,128], index: 20, kind: input, shape index: {}]
  %s21 = inlined_call_operand.vmem [shape: bf16[128,128], index: 21, kind: input, shape index: {}]
  %s22 = inlined_call_operand.vmem [shape: bf16[128,128], index: 22, kind: input, shape index: {}]
  %s23 = inlined_call_operand.vmem [shape: bf16[128,64], index: 23, kind: input, shape index: {}]
  %s24 = inlined_call_operand.vmem [shape: bf16[128,64], index: 24, kind: input, shape index: {}]
  %s25 = inlined_call_operand.vmem [shape: bf16[128,64], index: 25, kind: input, shape index: {}]
  %s26 = inlined_call_operand.vmem [shape: bf16[128,64], index: 26, kind: input, shape index: {}]
  %s27 = inlined_call_operand.vmem [shape: f32[9,64], index: 27, kind: output, shape index: {}]
  %s28 = sld [smem:[#allocation0]]
  $region118: #{dccrn_forward.1} parent=0
    _
  %s30 = ssub.s32 1, %s28
  %s31 = scalar_select 0, %s30, %s28
  // Predicated region
  $region2: #{dccrn_forward.1} parent=0 // pred_check
    _
  $region3: #{dccrn_forward.1} parent=0 // pred_check_branch
    %33 = sbr.rel (0) target = $region5
  $region4: #{dccrn_forward.1} parent=0 // pred_region
    _
  $region5: #{dccrn_forward.1} parent=0 // pred_fallthru
    _
  // Predicated region
  $region6: #{dccrn_forward.1} parent=0 // pred_check
    _
  $region7: #{dccrn_forward.1} parent=0 // pred_check_branch
    %35 = sbr.rel (0) target = $region9
  $region8: #{dccrn_forward.1} parent=0 // pred_region
    _
  $region9: #{dccrn_forward.1} parent=0 // pred_fallthru
    _
  // Predicated region
  $region10: #{dccrn_forward.1} parent=0 // pred_check
    _
  $region11: #{dccrn_forward.1} parent=0 // pred_check_branch
    %37 = sbr.rel (0) target = $region13
  $region12: #{dccrn_forward.1} parent=0 // pred_region
    _
  $region13: #{dccrn_forward.1} parent=0 // pred_fallthru
    _
  // Predicated region
  $region14: #{dccrn_forward.1} parent=0 // pred_check
    _
  $region15: #{dccrn_forward.1} parent=0 // pred_check_branch
    %39 = sbr.rel (0) target = $region17
  $region16: #{dccrn_forward.1} parent=0 // pred_region
    _
  $region17: #{dccrn_forward.1} parent=0 // pred_fallthru
    _
  // Predicated region
  $region18: #{dccrn_forward.1} parent=0 // pred_check
    _
  $region19: #{dccrn_forward.1} parent=0 // pred_check_branch
    %41 = sbr.rel (0) target = $region21
  $region20: #{dccrn_forward.1} parent=0 // pred_region
    _
  $region21: #{dccrn_forward.1} parent=0 // pred_fallthru
    _
  // Predicated region
  $region22: #{dccrn_forward.1} parent=0 // pred_check
    _
  $region23: #{dccrn_forward.1} parent=0 // pred_check_branch
    %43 = sbr.rel (0) target = $region25
  $region24: #{dccrn_forward.1} parent=0 // pred_region
    _
  $region25: #{dccrn_forward.1} parent=0 // pred_fallthru
    _
  // Predicated region
  $region26: #{dccrn_forward.1} parent=0 // pred_check
    _
  $region27: #{dccrn_forward.1} parent=0 // pred_check_branch
    %45 = sbr.rel (0) target = $region29
  $region28: #{dccrn_forward.1} parent=0 // pred_region
    _
  $region29: #{dccrn_forward.1} parent=0 // pred_fallthru
    _
  // Predicated region
  $region30: #{dccrn_forward.1} parent=0 // pred_check
    _
  $region31: #{dccrn_forward.1} parent=0 // pred_check_branch
    %47 = sbr.rel (0) target = $region33
  $region32: #{dccrn_forward.1} parent=0 // pred_region
    _
  $region33: #{dccrn_forward.1} parent=0 // pred_fallthru
    _
  // Predicated region
  $region34: #{dccrn_forward.1} parent=0 // pred_check
    _
  $region35: #{dccrn_forward.1} parent=0 // pred_check_branch
    %49 = sbr.rel (0) target = $region37
  $region36: #{dccrn_forward.1} parent=0 // pred_region
    _
  $region37: #{dccrn_forward.1} parent=0 // pred_fallthru
    _
  // Predicated region
  $region38: #{dccrn_forward.1} parent=0 // pred_check
    _
  $region39: #{dccrn_forward.1} parent=0 // pred_check_branch
    %51 = sbr.rel (0) target = $region41
  $region40: #{dccrn_forward.1} parent=0 // pred_region
    _
  $region41: #{dccrn_forward.1} parent=0 // pred_fallthru
    _
  // Predicated region
  $region42: #{dccrn_forward.1} parent=0 // pred_check
    _
  $region43: #{dccrn_forward.1} parent=0 // pred_check_branch
    %53 = sbr.rel (0) target = $region45
  $region44: #{dccrn_forward.1} parent=0 // pred_region
    _
  $region45: #{dccrn_forward.1} parent=0 // pred_fallthru
    _
  // Predicated region
  $region46: #{dccrn_forward.1} parent=0 // pred_check
    _
  $region47: #{dccrn_forward.1} parent=0 // pred_check_branch
    %55 = sbr.rel (0) target = $region49
  $region48: #{dccrn_forward.1} parent=0 // pred_region
    _
  $region49: #{dccrn_forward.1} parent=0 // pred_fallthru
    _
  // Predicated region
  $region50: #{dccrn_forward.1} parent=0 // pred_check
    _
  $region51: #{dccrn_forward.1} parent=0 // pred_check_branch
    %57 = sbr.rel (0) target = $region53
  $region52: #{dccrn_forward.1} parent=0 // pred_region
    _
  $region53: #{dccrn_forward.1} parent=0 // pred_fallthru
    _
  // Predicated region
  $region54: #{dccrn_forward.1} parent=0 // pred_check
    _
  $region55: #{dccrn_forward.1} parent=0 // pred_check_branch
    %59 = sbr.rel (0) target = $region57
  $region56: #{dccrn_forward.1} parent=0 // pred_region
    _
  $region57: #{dccrn_forward.1} parent=0 // pred_fallthru
    _
  // Predicated region
  $region58: #{dccrn_forward.1} parent=0 // pred_check
    _
  $region59: #{dccrn_forward.1} parent=0 // pred_check_branch
    %61 = sbr.rel (0) target = $region61
  $region60: #{dccrn_forward.1} parent=0 // pred_region
    _
  $region61: #{dccrn_forward.1} parent=0 // pred_fallthru
    _
  // Predicated region
  $region62: #{dccrn_forward.1} parent=0 // pred_check
    _
  $region63: #{dccrn_forward.1} parent=0 // pred_check_branch
    %63 = sbr.rel (0) target = $region65
  $region64: #{dccrn_forward.1} parent=0 // pred_region
    _
  $region65: #{dccrn_forward.1} parent=0 // pred_fallthru
    _
  // Predicated region
  $region66: #{dccrn_forward.1} parent=0 // pred_check
    _
  $region67: #{dccrn_forward.1} parent=0 // pred_check_branch
    %65 = sbr.rel (0) target = $region69
  $region68: #{dccrn_forward.1} parent=0 // pred_region
    _
  $region69: #{dccrn_forward.1} parent=0 // pred_fallthru
    _
  // Predicated region
  $region70: #{dccrn_forward.1} parent=0 // pred_check
    _
  $region71: #{dccrn_forward.1} parent=0 // pred_check_branch
    %67 = sbr.rel (0) target = $region73
  $region72: #{dccrn_forward.1} parent=0 // pred_region
    _
  $region73: #{dccrn_forward.1} parent=0 // pred_fallthru
    _
  // Predicated region
  $region74: #{dccrn_forward.1} parent=0 // pred_check
    _
  $region75: #{dccrn_forward.1} parent=0 // pred_check_branch
    %69 = sbr.rel (0) target = $region77
  $region76: #{dccrn_forward.1} parent=0 // pred_region
    _
  $region77: #{dccrn_forward.1} parent=0 // pred_fallthru
    _
  // Predicated region
  $region78: #{dccrn_forward.1} parent=0 // pred_check
    _
  $region79: #{dccrn_forward.1} parent=0 // pred_check_branch
    %71 = sbr.rel (0) target = $region81
  $region80: #{dccrn_forward.1} parent=0 // pred_region
    _
  $region81: #{dccrn_forward.1} parent=0 // pred_fallthru
    _
  // Predicated region
  $region82: #{dccrn_forward.1} parent=0 // pred_check
    _
  $region83: #{dccrn_forward.1} parent=0 // pred_check_branch
    %73 = sbr.rel (0) target = $region85
  $region84: #{dccrn_forward.1} parent=0 // pred_region
    _
  $region85: #{dccrn_forward.1} parent=0 // pred_fallthru
    _
  // Predicated region
  $region86: #{dccrn_forward.1} parent=0 // pred_check
    _
  $region87: #{dccrn_forward.1} parent=0 // pred_check_branch
    %75 = sbr.rel (0) target = $region89
  $region88: #{dccrn_forward.1} parent=0 // pred_region
    _
  $region89: #{dccrn_forward.1} parent=0 // pred_fallthru
    _
  // Predicated region
  $region90: #{dccrn_forward.1} parent=0 // pred_check
    _
  $region91: #{dccrn_forward.1} parent=0 // pred_check_branch
    %77 = sbr.rel (0) target = $region93
  $region92: #{dccrn_forward.1} parent=0 // pred_region
    _
  $region93: #{dccrn_forward.1} parent=0 // pred_fallthru
    _
  // Predicated region
  $region94: #{dccrn_forward.1} parent=0 // pred_check
    _
  $region95: #{dccrn_forward.1} parent=0 // pred_check_branch
    %79 = sbr.rel (0) target = $region97
  $region96: #{dccrn_forward.1} parent=0 // pred_region
    _
  $region97: #{dccrn_forward.1} parent=0 // pred_fallthru
    _
  // Predicated region
  $region98: #{dccrn_forward.1} parent=0 // pred_check
    _
  $region99: #{dccrn_forward.1} parent=0 // pred_check_branch
    %81 = sbr.rel (0) target = $region101
  $region100: #{dccrn_forward.1} parent=0 // pred_region
    _
  $region101: #{dccrn_forward.1} parent=0 // pred_fallthru
    _
  // Predicated region
  $region102: #{dccrn_forward.1} parent=0 // pred_check
    _
  $region103: #{dccrn_forward.1} parent=0 // pred_check_branch
    %83 = sbr.rel (0) target = $region105
  $region104: #{dccrn_forward.1} parent=0 // pred_region
    _
  $region105: #{dccrn_forward.1} parent=0 // pred_fallthru
    _
  // Predicated region
  $region106: #{dccrn_forward.1} parent=0 // pred_check
    _
  $region107: #{dccrn_forward.1} parent=0 // pred_check_branch
    %85 = sbr.rel (0) target = $region109
  $region108: #{dccrn_forward.1} parent=0 // pred_region
    _
  $region109: #{dccrn_forward.1} parent=0 // pred_fallthru
    _
  %v87 = vlaneseq
  %v88 = vshrl.u32 %v87, 7
  %v89 = vadd.s32 %v88, 8
  %v90 = vlaneseq
  %v91 = vand.u32 %v90, 127
  %v92 = vadd.s32 %v88, 4294967295
  %v93 = vadd.s32 %v89, 4294967295
  %vm94 = vcmp.eq.s32.totalorder %v91, %v92
  %vm95 = vcmp.eq.s32.totalorder %v91, %v93
  %v96 = vsel %vm94, 1.0, 0.0
  %v97 = vsel %vm95, 1.0, 0.0
  %v98 = vadd.s32 %v88, 1
  %v99 = vadd.s32 %v89, 1
  %vm100 = vcmp.eq.s32.totalorder %v91, %v98
  %vm101 = vcmp.eq.s32.totalorder %v91, %v99
  %v102 = vsel %vm100, 1.0, 0.0
  %v103 = vsel %vm101, 1.0, 0.0
  %v104 = vld [vmem:[%s0] sm:$0xff]
  %v105 = vld [vmem:[%s0 + $0x8] sm:$0x1]
  %vm106 = vcmask 72704
  %v108 = vsel %vm106, %v96, 0
  %v111 = vsel %vm106, %v97, 0
  %vm113 = vcmask 1040384
  %v115 = vsel %vm113, %v105, 0
  %117 = vmatprep.subr.mxu0 0.0
  %118 = vmatpush1.msra.mxu0 %v104
  %119 = vmatprep.subr.mxu0 0.0
  %120 = vmatpush1.msra.mxu0 %v115
  %121 = vmatprep.subr.mxu0 0.0
  %122 = vmatpush1.msra.mxu0 0.0
  %123 = vmatprep.subr.mxu0 0.0
  %124 = vmatpush1.msra.mxu0 0.0
  %125 = vmatprep.subr.mxu0 0.0
  %126 = vmatpush1.msra.mxu0 0.0
  %127 = vmatprep.subr.mxu0 0.0
  %128 = vmatpush1.msra.mxu0 0.0
  %129 = vmatprep.subr.mxu0 0.0
  %130 = vmatpush1.msra.mxu0 0.0
  %131 = vmatprep.subr.mxu0 0.0
  %132 = vmatpush1.msra.mxu0 0.0
  %133 = vmatprep.subr.mxu0 0.0
  %134 = vmatpush1.msra.mxu0 0.0
  %135 = vmatprep.subr.mxu0 0.0
  %136 = vmatpush1.msra.mxu0 0.0
  %137 = vmatprep.subr.mxu0 0.0
  %138 = vmatpush1.msra.mxu0 0.0
  %139 = vmatprep.subr.mxu0 0.0
  %140 = vmatpush1.msra.mxu0 0.0
  %141 = vmatprep.subr.mxu0 0.0
  %142 = vmatpush1.msra.mxu0 0.0
  %143 = vmatprep.subr.mxu0 0.0
  %144 = vmatpush1.msra.mxu0 0.0
  %145 = vmatprep.subr.mxu0 0.0
  %146 = vmatpush1.msra.mxu0 0.0
  %147 = vmatprep.subr.mxu0 0.0
  %148 = vmatpush1.msra.mxu0 0.0
  %149 = vmatprep.subr.mxu0 0.0
  %150 = vmatpush1.msra.mxu0 0.0
  %151 = vmatprep.subr.mxu0 0.0
  %152 = vmatpush1.msra.mxu0 0.0
  %153 = vmatprep.subr.mxu0 0.0
  %154 = vmatpush1.msra.mxu0 0.0
  %155 = vmatprep.subr.mxu0 0.0
  %156 = vmatpush1.msra.mxu0 0.0
  %157 = vmatprep.subr.mxu0 0.0
  %158 = vmatpush1.msra.mxu0 0.0
  %159 = vmatprep.subr.mxu0 0.0
  %160 = vmatpush1.msra.mxu0 0.0
  %161 = vmatprep.subr.mxu0 0.0
  %162 = vmatpush1.msra.mxu0 0.0
  %163 = vmatprep.subr.mxu0 0.0
  %164 = vmatpush1.msra.mxu0 0.0
  %165 = vmatprep.subr.mxu0 0.0
  %166 = vmatpush1.msra.mxu0 0.0
  %167 = vmatprep.subr.mxu0 0.0
  %168 = vmatpush1.msra.mxu0 0.0
  %169 = vmatprep.subr.mxu0 0.0
  %170 = vmatpush1.msra.mxu0 0.0
  %171 = vmatprep.subr.mxu0 0.0
  %172 = vmatpush1.msra.mxu0 0.0
  %173 = vmatprep.subr.mxu0 0.0
  %174 = vmatpush1.msra.mxu0 0.0
  %175 = vmatprep.subr.mxu0 0.0
  %176 = vmatpush1.msra.mxu0 0.0
  %177 = vmatprep.subr.mxu0 0.0
  %178 = vmatpush1.msra.mxu0 0.0
  %179 = vmatprep.subr.mxu0 0.0
  %180 = vmatpush1.msra.mxu0 0.0
  %181 = vmatprep.mubr.f32.mxu0 0.0
  %182 = vmatmul.mubr.f32.gmra.mrb[0].mxu0 %v108
  %v183 = vpop.f32.mrb[0].mxu0
  %v184 = vadd.f32 0.0, %v183
  %v185 = vpop.f32.mrb[0].mxu0
  %186 = vmatprep.mubr.f32.mxu0 0.0
  %187 = vmatmul.mubr.f32.gmra.mrb[0].mxu0 %v111
  %v188 = vpop.f32.mrb[0].mxu0
  %v189 = vadd.f32 0.0, %v188
  %v190 = vpop.f32.mrb[0].mxu0
  %191 = vdwg.mxu0
  %v192 = vpack.c.bf16 %v189, %v184
  %v193 = vld [vmem:[%s1] sm:$0xf]
  %v194 = vld [vmem:[%s1 + $0x4] sm:$0xf]
  %v195 = vld [vmem:[%s1 + $0x8] sm:$0xf]
  %v196 = vld [vmem:[%s1 + $0xc] sm:$0xf]
  %v197 = vld [vmem:[%s1 + $0x10] sm:$0xf]
  %v198 = vld [vmem:[%s1 + $0x14] sm:$0xf]
  %v199 = vld [vmem:[%s1 + $0x18] sm:$0xf]
  %v200 = vld [vmem:[%s1 + $0x1c] sm:$0xf]
  %v201 = vpack.c.bf16 %v105, %v104
  %v202 = vld [vmem:[%s2] sm:$0xf]
  %v203 = vld [vmem:[%s2 + $0x4] sm:$0xf]
  %v204 = vld [vmem:[%s2 + $0x8] sm:$0xf]
  %v205 = vld [vmem:[%s2 + $0xc] sm:$0xf]
  %v206 = vld [vmem:[%s2 + $0x10] sm:$0xf]
  %v207 = vld [vmem:[%s2 + $0x14] sm:$0xf]
  %v208 = vld [vmem:[%s2 + $0x18] sm:$0xf]
  %v209 = vld [vmem:[%s2 + $0x1c] sm:$0xf]
  %v218 = vunpack.c.l.b16 %v202
  %v219 = vunpack.c.l.b16 %v203
  %v220 = vunpack.c.l.b16 %v204
  %v221 = vunpack.c.l.b16 %v205
  %v222 = vunpack.c.l.b16 %v206
  %v223 = vunpack.c.l.b16 %v207
  %v224 = vunpack.c.l.b16 %v208
  %v225 = vunpack.c.l.b16 %v209
  %v226 = vpack.c.b16 %v219, %v218
  %v227 = vpack.c.b16 %v221, %v220
  %v228 = vpack.c.b16 %v223, %v222
  %v229 = vpack.c.b16 %v225, %v224
  %vm234 = vcmask 523264
  %v236 = vsel %vm234, %v201, 0
  %238 = vmatprep.subr.bf16.mxu0 0
  %239 = vmatpush1.bf16.msra.mxu0 %v226
  %240 = vmatprep.subr.bf16.mxu0 0
  %241 = vmatpush1.bf16.msra.mxu0 %v227
  %242 = vmatprep.subr.bf16.mxu0 0
  %243 = vmatpush1.bf16.msra.mxu0 %v228
  %244 = vmatprep.subr.bf16.mxu0 0
  %245 = vmatpush1.bf16.msra.mxu0 %v229
  %246 = vmatprep.subr.bf16.mxu0 0
  %247 = vmatpush1.bf16.msra.mxu0 0
  %248 = vmatprep.subr.bf16.mxu0 0
  %249 = vmatpush1.bf16.msra.mxu0 0
  %250 = vmatprep.subr.bf16.mxu0 0
  %251 = vmatpush1.bf16.msra.mxu0 0
  %252 = vmatprep.subr.bf16.mxu0 0
  %253 = vmatpush1.bf16.msra.mxu0 0
  %254 = vmatprep.subr.bf16.mxu0 0
  %255 = vmatpush1.bf16.msra.mxu0 0
  %256 = vmatprep.subr.bf16.mxu0 0
  %257 = vmatpush1.bf16.msra.mxu0 0
  %258 = vmatprep.subr.bf16.mxu0 0
  %259 = vmatpush1.bf16.msra.mxu0 0
  %260 = vmatprep.subr.bf16.mxu0 0
  %261 = vmatpush1.bf16.msra.mxu0 0
  %262 = vmatprep.subr.bf16.mxu0 0
  %263 = vmatpush1.bf16.msra.mxu0 0
  %264 = vmatprep.subr.bf16.mxu0 0
  %265 = vmatpush1.bf16.msra.mxu0 0
  %266 = vmatprep.subr.bf16.mxu0 0
  %267 = vmatpush1.bf16.msra.mxu0 0
  %268 = vmatprep.subr.bf16.mxu0 0
  %269 = vmatpush1.bf16.msra.mxu0 0
  %270 = vmatprep.mubr.bf16.mxu0 0
  %271 = vmatmul.mubr.bf16.gmra.mrb[0].mxu0 %v236
  %v272 = vpop.f32.mrb[0].mxu0
  %v273 = vadd.f32 0.0, %v272
  %v274 = vpop.f32.mrb[0].mxu0
  %v275 = vpop.f32.mrb[0].mxu0
  %v276 = vadd.f32 0.0, %v275
  %v277 = vpop.f32.mrb[0].mxu0
  %278 = vdwg.mxu0
  %v287 = vunpack.c.l.b16 %v193
  %v288 = vunpack.c.l.b16 %v194
  %v289 = vunpack.c.l.b16 %v195
  %v290 = vunpack.c.l.b16 %v196
  %v291 = vunpack.c.l.b16 %v197
  %v292 = vunpack.c.l.b16 %v198
  %v293 = vunpack.c.l.b16 %v199
  %v294 = vunpack.c.l.b16 %v200
  %v295 = vpack.c.b16 %v288, %v287
  %v296 = vpack.c.b16 %v290, %v289
  %v297 = vpack.c.b16 %v292, %v291
  %v298 = vpack.c.b16 %v294, %v293
  %v304 = vsel %vm234, %v192, 0
  %306 = vmatprep.subr.bf16.mxu0 0
  %307 = vmatpush1.bf16.msra.mxu0 %v295
  %308 = vmatprep.subr.bf16.mxu0 0
  %309 = vmatpush1.bf16.msra.mxu0 %v296
  %310 = vmatprep.subr.bf16.mxu0 0
  %311 = vmatpush1.bf16.msra.mxu0 %v297
  %312 = vmatprep.subr.bf16.mxu0 0
  %313 = vmatpush1.bf16.msra.mxu0 %v298
  %314 = vmatprep.subr.bf16.mxu0 0
  %315 = vmatpush1.bf16.msra.mxu0 0
  %316 = vmatprep.subr.bf16.mxu0 0
  %317 = vmatpush1.bf16.msra.mxu0 0
  %318 = vmatprep.subr.bf16.mxu0 0
  %319 = vmatpush1.bf16.msra.mxu0 0
  %320 = vmatprep.subr.bf16.mxu0 0
  %321 = vmatpush1.bf16.msra.mxu0 0
  %322 = vmatprep.subr.bf16.mxu0 0
  %323 = vmatpush1.bf16.msra.mxu0 0
  %324 = vmatprep.subr.bf16.mxu0 0
  %325 = vmatpush1.bf16.msra.mxu0 0
  %326 = vmatprep.subr.bf16.mxu0 0
  %327 = vmatpush1.bf16.msra.mxu0 0
  %328 = vmatprep.subr.bf16.mxu0 0
  %329 = vmatpush1.bf16.msra.mxu0 0
  %330 = vmatprep.subr.bf16.mxu0 0
  %331 = vmatpush1.bf16.msra.mxu0 0
  %332 = vmatprep.subr.bf16.mxu0 0
  %333 = vmatpush1.bf16.msra.mxu0 0
  %334 = vmatprep.subr.bf16.mxu0 0
  %335 = vmatpush1.bf16.msra.mxu0 0
  %336 = vmatprep.subr.bf16.mxu0 0
  %337 = vmatpush1.bf16.msra.mxu0 0
  %338 = vmatprep.mubr.bf16.mxu0 0
  %339 = vmatmul.mubr.bf16.gmra.mrb[0].mxu0 %v304
  %v340 = vpop.f32.mrb[0].mxu0
  %v341 = vadd.f32 %v273, %v340
  %v342 = vpop.f32.mrb[0].mxu0
  %v343 = vpop.f32.mrb[0].mxu0
  %v344 = vadd.f32 %v276, %v343
  %v345 = vpop.f32.mrb[0].mxu0
  %346 = vdwg.mxu0
  %v347 = vadd.s32 %v88, 16
  %v348 = vadd.s32 %v88, 24
  %v349 = vadd.s32 %v88, 32
  %v350 = vadd.s32 %v88, 40
  %v351 = vadd.s32 %v88, 48
  %v352 = vadd.s32 %v88, 56
  %v353 = vadd.s32 %v88, 64
  %v354 = vadd.s32 %v88, 72
  %v355 = vadd.s32 %v88, 80
  %v356 = vadd.s32 %v88, 88
  %v357 = vadd.s32 %v88, 96
  %v358 = vadd.s32 %v88, 104
  %v359 = vadd.s32 %v88, 112
  %v360 = vadd.s32 %v88, 120
  %v361 = vcvt.s32.f32 %v88
  %v362 = vcvt.s32.f32 %v89
  %v363 = vcvt.s32.f32 %v347
  %v364 = vcvt.s32.f32 %v348
  %v365 = vcvt.s32.f32 %v349
  %v366 = vcvt.s32.f32 %v350
  %v367 = vcvt.s32.f32 %v351
  %v368 = vcvt.s32.f32 %v352
  %v369 = vcvt.s32.f32 %v353
  %v370 = vcvt.s32.f32 %v354
  %v371 = vcvt.s32.f32 %v355
  %v372 = vcvt.s32.f32 %v356
  %v373 = vcvt.s32.f32 %v357
  %v374 = vcvt.s32.f32 %v358
  %v375 = vcvt.s32.f32 %v359
  %v376 = vcvt.s32.f32 %v360
  %v377 = vcvt.s32.f32 %v91
  %v378 = vmul.f32 %v361, 0.0625
  %v379 = vmul.f32 %v362, 0.0625
  %v380 = vmul.f32 %v363, 0.0625
  %v381 = vmul.f32 %v364, 0.0625
  %v382 = vmul.f32 %v365, 0.0625
  %v383 = vmul.f32 %v366, 0.0625
  %v384 = vmul.f32 %v367, 0.0625
  %v385 = vmul.f32 %v368, 0.0625
  %v386 = vmul.f32 %v369, 0.0625
  %v387 = vmul.f32 %v370, 0.0625
  %v388 = vmul.f32 %v371, 0.0625
  %v389 = vmul.f32 %v372, 0.0625
  %v390 = vmul.f32 %v373, 0.0625
  %v391 = vmul.f32 %v374, 0.0625
  %v392 = vmul.f32 %v375, 0.0625
  %v393 = vmul.f32 %v376, 0.0625
  %v394 = vfloor.f32 %v378
  %v395 = vfloor.f32 %v379
  %v396 = vfloor.f32 %v380
  %v397 = vfloor.f32 %v381
  %v398 = vfloor.f32 %v382
  %v399 = vfloor.f32 %v383
  %v400 = vfloor.f32 %v384
  %v401 = vfloor.f32 %v385
  %v402 = vfloor.f32 %v386
  %v403 = vfloor.f32 %v387
  %v404 = vfloor.f32 %v388
  %v405 = vfloor.f32 %v389
  %v406 = vfloor.f32 %v390
  %v407 = vfloor.f32 %v391
  %v408 = vfloor.f32 %v392
  %v409 = vfloor.f32 %v393
  %v410 = vmul.f32 %v377, 0.0625
  %v411 = vfloor.f32 %v410
  %vm412 = vcmp.eq.f32.partialorder %v394, %v411
  %vm413 = vcmp.eq.f32.partialorder %v395, %v411
  %vm414 = vcmp.eq.f32.partialorder %v396, %v411
  %vm415 = vcmp.eq.f32.partialorder %v397, %v411
  %vm416 = vcmp.eq.f32.partialorder %v398, %v411
  %vm417 = vcmp.eq.f32.partialorder %v399, %v411
  %vm418 = vcmp.eq.f32.partialorder %v400, %v411
  %vm419 = vcmp.eq.f32.partialorder %v401, %v411
  %vm420 = vcmp.eq.f32.partialorder %v402, %v411
  %vm421 = vcmp.eq.f32.partialorder %v403, %v411
  %vm422 = vcmp.eq.f32.partialorder %v404, %v411
  %vm423 = vcmp.eq.f32.partialorder %v405, %v411
  %vm424 = vcmp.eq.f32.partialorder %v406, %v411
  %vm425 = vcmp.eq.f32.partialorder %v407, %v411
  %vm426 = vcmp.eq.f32.partialorder %v408, %v411
  %vm427 = vcmp.eq.f32.partialorder %v409, %v411
  %v428 = vsel %vm412, 0.0069444445, 0.0
  %v429 = vsel %vm413, 0.0069444445, 0.0
  %v430 = vsel %vm414, 0.0069444445, 0.0
  %v431 = vsel %vm415, 0.0069444445, 0.0
  %v432 = vsel %vm416, 0.0069444445, 0.0
  %v433 = vsel %vm417, 0.0069444445, 0.0
  %v434 = vsel %vm418, 0.0069444445, 0.0
  %v435 = vsel %vm419, 0.0069444445, 0.0
  %v436 = vsel %vm420, 0.0069444445, 0.0
  %v437 = vsel %vm421, 0.0069444445, 0.0
  %v438 = vsel %vm422, 0.0069444445, 0.0
  %v439 = vsel %vm423, 0.0069444445, 0.0
  %v440 = vsel %vm424, 0.0069444445, 0.0
  %v441 = vsel %vm425, 0.0069444445, 0.0
  %v442 = vsel %vm426, 0.0069444445, 0.0
  %v443 = vsel %vm427, 0.0069444445, 0.0
  %v444 = vsel %vm113, %v344, 0.0
  %v445 = vadd.f32 %v341, %v444
  %v446 = vrot.slane %v445, 4
  %v447 = vadd.f32 %v445, %v446
  %v448 = vrot.slane %v447, 2
  %v449 = vadd.f32 %v447, %v448
  %v450 = vrot.slane %v449, 1
  %v451 = vadd.f32 %v449, %v450
  %v452 = vmul.f32 %v341, %v341
  %v453 = vmul.f32 %v344, %v344
  %v454 = vsel %vm113, %v453, 0.0
  %v455 = vadd.f32 %v452, %v454
  %v456 = vrot.slane %v455, 4
  %v457 = vadd.f32 %v455, %v456
  %v458 = vrot.slane %v457, 2
  %v459 = vadd.f32 %v457, %v458
  %v460 = vrot.slane %v459, 1
  %v461 = vadd.f32 %v459, %v460
  %462 = vmatprep.subr.mxu0 0.0
  %463 = vmatpush1.msra.mxu0 %v428
  %464 = vmatprep.subr.mxu0 0.0
  %465 = vmatpush1.msra.mxu0 %v429
  %466 = vmatprep.subr.mxu0 0.0
  %467 = vmatpush1.msra.mxu0 %v430
  %468 = vmatprep.subr.mxu0 0.0
  %469 = vmatpush1.msra.mxu0 %v431
  %470 = vmatprep.subr.mxu0 0.0
  %471 = vmatpush1.msra.mxu0 %v432
  %472 = vmatprep.subr.mxu0 0.0
  %473 = vmatpush1.msra.mxu0 %v433
  %474 = vmatprep.subr.mxu0 0.0
  %475 = vmatpush1.msra.mxu0 %v434
  %476 = vmatprep.subr.mxu0 0.0
  %477 = vmatpush1.msra.mxu0 %v435
  %478 = vmatprep.subr.mxu0 0.0
  %479 = vmatpush1.msra.mxu0 %v436
  %480 = vmatprep.subr.mxu0 0.0
  %481 = vmatpush1.msra.mxu0 %v437
  %482 = vmatprep.subr.mxu0 0.0
  %483 = vmatpush1.msra.mxu0 %v438
  %484 = vmatprep.subr.mxu0 0.0
  %485 = vmatpush1.msra.mxu0 %v439
  %486 = vmatprep.subr.mxu0 0.0
  %487 = vmatpush1.msra.mxu0 %v440
  %488 = vmatprep.subr.mxu0 0.0
  %489 = vmatpush1.msra.mxu0 %v441
  %490 = vmatprep.subr.mxu0 0.0
  %491 = vmatpush1.msra.mxu0 %v442
  %492 = vmatprep.subr.mxu0 0.0
  %493 = vmatpush1.msra.mxu0 %v443
  %494 = vmatprep.subr.mxu0 0.0
  %495 = vmatpush1.msra.mxu0 0.0
  %496 = vmatprep.subr.mxu0 0.0
  %497 = vmatpush1.msra.mxu0 0.0
  %498 = vmatprep.subr.mxu0 0.0
  %499 = vmatpush1.msra.mxu0 0.0
  %500 = vmatprep.subr.mxu0 0.0
  %501 = vmatpush1.msra.mxu0 0.0
  %502 = vmatprep.subr.mxu0 0.0
  %503 = vmatpush1.msra.mxu0 0.0
  %504 = vmatprep.subr.mxu0 0.0
  %505 = vmatpush1.msra.mxu0 0.0
  %506 = vmatprep.subr.mxu0 0.0
  %507 = vmatpush1.msra.mxu0 0.0
  %508 = vmatprep.subr.mxu0 0.0
  %509 = vmatpush1.msra.mxu0 0.0
  %510 = vmatprep.subr.mxu0 0.0
  %511 = vmatpush1.msra.mxu0 0.0
  %512 = vmatprep.subr.mxu0 0.0
  %513 = vmatpush1.msra.mxu0 0.0
  %514 = vmatprep.subr.mxu0 0.0
  %515 = vmatpush1.msra.mxu0 0.0
  %516 = vmatprep.subr.mxu0 0.0
  %517 = vmatpush1.msra.mxu0 0.0
  %518 = vmatprep.subr.mxu0 0.0
  %519 = vmatpush1.msra.mxu0 0.0
  %520 = vmatprep.subr.mxu0 0.0
  %521 = vmatpush1.msra.mxu0 0.0
  %522 = vmatprep.subr.mxu0 0.0
  %523 = vmatpush1.msra.mxu0 0.0
  %524 = vmatprep.subr.mxu0 0.0
  %525 = vmatpush1.msra.mxu0 0.0
  %526 = vmatprep.mubr.f32.mxu0 0.0
  %527 = vmatmul.mubr.f32.gmra.mrb[0].mxu0 %v451
  %v528 = vpop.f32.mrb[0].mxu0
  %v529 = vadd.f32 0.0, %v528
  %v530 = vpop.f32.mrb[0].mxu0
  %531 = vdwg.mxu0
  %532 = vmatprep.subr.mxu0 0.0
  %533 = vmatpush1.msra.mxu0 %v428
  %534 = vmatprep.subr.mxu0 0.0
  %535 = vmatpush1.msra.mxu0 %v429
  %536 = vmatprep.subr.mxu0 0.0
  %537 = vmatpush1.msra.mxu0 %v430
  %538 = vmatprep.subr.mxu0 0.0
  %539 = vmatpush1.msra.mxu0 %v431
  %540 = vmatprep.subr.mxu0 0.0
  %541 = vmatpush1.msra.mxu0 %v432
  %542 = vmatprep.subr.mxu0 0.0
  %543 = vmatpush1.msra.mxu0 %v433
  %544 = vmatprep.subr.mxu0 0.0
  %545 = vmatpush1.msra.mxu0 %v434
  %546 = vmatprep.subr.mxu0 0.0
  %547 = vmatpush1.msra.mxu0 %v435
  %548 = vmatprep.subr.mxu0 0.0
  %549 = vmatpush1.msra.mxu0 %v436
  %550 = vmatprep.subr.mxu0 0.0
  %551 = vmatpush1.msra.mxu0 %v437
  %552 = vmatprep.subr.mxu0 0.0
  %553 = vmatpush1.msra.mxu0 %v438
  %554 = vmatprep.subr.mxu0 0.0
  %555 = vmatpush1.msra.mxu0 %v439
  %556 = vmatprep.subr.mxu0 0.0
  %557 = vmatpush1.msra.mxu0 %v440
  %558 = vmatprep.subr.mxu0 0.0
  %559 = vmatpush1.msra.mxu0 %v441
  %560 = vmatprep.subr.mxu0 0.0
  %561 = vmatpush1.msra.mxu0 %v442
  %562 = vmatprep.subr.mxu0 0.0
  %563 = vmatpush1.msra.mxu0 %v443
  %564 = vmatprep.subr.mxu0 0.0
  %565 = vmatpush1.msra.mxu0 0.0
  %566 = vmatprep.subr.mxu0 0.0
  %567 = vmatpush1.msra.mxu0 0.0
  %568 = vmatprep.subr.mxu0 0.0
  %569 = vmatpush1.msra.mxu0 0.0
  %570 = vmatprep.subr.mxu0 0.0
  %571 = vmatpush1.msra.mxu0 0.0
  %572 = vmatprep.subr.mxu0 0.0
  %573 = vmatpush1.msra.mxu0 0.0
  %574 = vmatprep.subr.mxu0 0.0
  %575 = vmatpush1.msra.mxu0 0.0
  %576 = vmatprep.subr.mxu0 0.0
  %577 = vmatpush1.msra.mxu0 0.0
  %578 = vmatprep.subr.mxu0 0.0
  %579 = vmatpush1.msra.mxu0 0.0
  %580 = vmatprep.subr.mxu0 0.0
  %581 = vmatpush1.msra.mxu0 0.0
  %582 = vmatprep.subr.mxu0 0.0
  %583 = vmatpush1.msra.mxu0 0.0
  %584 = vmatprep.subr.mxu0 0.0
  %585 = vmatpush1.msra.mxu0 0.0
  %586 = vmatprep.subr.mxu0 0.0
  %587 = vmatpush1.msra.mxu0 0.0
  %588 = vmatprep.subr.mxu0 0.0
  %589 = vmatpush1.msra.mxu0 0.0
  %590 = vmatprep.subr.mxu0 0.0
  %591 = vmatpush1.msra.mxu0 0.0
  %592 = vmatprep.subr.mxu0 0.0
  %593 = vmatpush1.msra.mxu0 0.0
  %594 = vmatprep.subr.mxu0 0.0
  %595 = vmatpush1.msra.mxu0 0.0
  %596 = vmatprep.mubr.f32.mxu0 0.0
  %597 = vmatmul.mubr.f32.gmra.mrb[0].mxu0 %v461
  %v598 = vpop.f32.mrb[0].mxu0
  %v599 = vadd.f32 0.0, %v598
  %v600 = vpop.f32.mrb[0].mxu0
  %601 = vdwg.mxu0
  %v602 = vmul.f32 %v529, %v529
  %v603 = vsub.f32 %v599, %v602
  %v604 = vlaneseq
  %v605 = vshrl.u32 %v604, 7
  %v606 = vsub.s32 0, %v605
  %v607 = vrot.slane %v529, %v606
  %v608 = vsub.f32 %v341, %v607
  %v609 = vsub.f32 %v344, %v607
  %v610 = vadd.f32 %v603, 1e-05
  %v611 = vrsqrt.pop %v610
  %v612 = vlaneseq
  %v613 = vshrl.u32 %v612, 7
  %v614 = vsub.s32 0, %v613
  %v615 = vrot.slane %v611, %v614
  %v616 = vmul.f32 %v608, %v615
  %v617 = vmul.f32 %v609, %v615
  %vm618 = vcmp.gt.f32.partialorder %v616, 0.0
  %vm619 = vcmp.gt.f32.partialorder %v617, 0.0
  %v620 = vmul.f32 %v616, 0.25
  %v621 = vmul.f32 %v617, 0.25
  %v622 = vsel %vm618, %v616, %v620
  %v623 = vsel %vm619, %v617, %v621
  %v625 = vsel %vm113, %v623, 0
  %627 = vmatprep.subr.mxu0 0.0
  %628 = vmatpush1.msra.mxu0 %v622
  %629 = vmatprep.subr.mxu0 0.0
  %630 = vmatpush1.msra.mxu0 %v625
  %631 = vmatprep.subr.mxu0 0.0
  %632 = vmatpush1.msra.mxu0 0.0
  %633 = vmatprep.subr.mxu0 0.0
  %634 = vmatpush1.msra.mxu0 0.0
  %635 = vmatprep.subr.mxu0 0.0
  %636 = vmatpush1.msra.mxu0 0.0
  %637 = vmatprep.subr.mxu0 0.0
  %638 = vmatpush1.msra.mxu0 0.0
  %639 = vmatprep.subr.mxu0 0.0
  %640 = vmatpush1.msra.mxu0 0.0
  %641 = vmatprep.subr.mxu0 0.0
  %642 = vmatpush1.msra.mxu0 0.0
  %643 = vmatprep.subr.mxu0 0.0
  %644 = vmatpush1.msra.mxu0 0.0
  %645 = vmatprep.subr.mxu0 0.0
  %646 = vmatpush1.msra.mxu0 0.0
  %647 = vmatprep.subr.mxu0 0.0
  %648 = vmatpush1.msra.mxu0 0.0
  %649 = vmatprep.subr.mxu0 0.0
  %650 = vmatpush1.msra.mxu0 0.0
  %651 = vmatprep.subr.mxu0 0.0
  %652 = vmatpush1.msra.mxu0 0.0
  %653 = vmatprep.subr.mxu0 0.0
  %654 = vmatpush1.msra.mxu0 0.0
  %655 = vmatprep.subr.mxu0 0.0
  %656 = vmatpush1.msra.mxu0 0.0
  %657 = vmatprep.subr.mxu0 0.0
  %658 = vmatpush1.msra.mxu0 0.0
  %659 = vmatprep.subr.mxu0 0.0
  %660 = vmatpush1.msra.mxu0 0.0
  %661 = vmatprep.subr.mxu0 0.0
  %662 = vmatpush1.msra.mxu0 0.0
  %663 = vmatprep.subr.mxu0 0.0
  %664 = vmatpush1.msra.mxu0 0.0
  %665 = vmatprep.subr.mxu0 0.0
  %666 = vmatpush1.msra.mxu0 0.0
  %667 = vmatprep.subr.mxu0 0.0
  %668 = vmatpush1.msra.mxu0 0.0
  %669 = vmatprep.subr.mxu0 0.0
  %670 = vmatpush1.msra.mxu0 0.0
  %671 = vmatprep.subr.mxu0 0.0
  %672 = vmatpush1.msra.mxu0 0.0
  %673 = vmatprep.subr.mxu0 0.0
  %674 = vmatpush1.msra.mxu0 0.0
  %675 = vmatprep.subr.mxu0 0.0
  %676 = vmatpush1.msra.mxu0 0.0
  %677 = vmatprep.subr.mxu0 0.0
  %678 = vmatpush1.msra.mxu0 0.0
  %679 = vmatprep.subr.mxu0 0.0
  %680 = vmatpush1.msra.mxu0 0.0
  %681 = vmatprep.subr.mxu0 0.0
  %682 = vmatpush1.msra.mxu0 0.0
  %683 = vmatprep.subr.mxu0 0.0
  %684 = vmatpush1.msra.mxu0 0.0
  %685 = vmatprep.subr.mxu0 0.0
  %686 = vmatpush1.msra.mxu0 0.0
  %687 = vmatprep.subr.mxu0 0.0
  %688 = vmatpush1.msra.mxu0 0.0
  %689 = vmatprep.subr.mxu0 0.0
  %690 = vmatpush1.msra.mxu0 0.0
  %691 = vmatprep.mubr.f32.mxu0 0.0
  %692 = vmatmul.mubr.f32.gmra.mrb[0].mxu0 %v108
  %v693 = vpop.f32.mrb[0].mxu0
  %v694 = vadd.f32 0.0, %v693
  %v695 = vpop.f32.mrb[0].mxu0
  %696 = vmatprep.mubr.f32.mxu0 0.0
  %697 = vmatmul.mubr.f32.gmra.mrb[0].mxu0 %v111
  %v698 = vpop.f32.mrb[0].mxu0
  %v699 = vadd.f32 0.0, %v698
  %v700 = vpop.f32.mrb[0].mxu0
  %701 = vdwg.mxu0
  %v702 = vpack.c.bf16 %v699, %v694
  %v703 = vld [vmem:[%s3] sm:$0xf]
  %v704 = vld [vmem:[%s3 + $0x4] sm:$0xf]
  %v705 = vld [vmem:[%s3 + $0x8] sm:$0xf]
  %v706 = vld [vmem:[%s3 + $0xc] sm:$0xf]
  %v707 = vld [vmem:[%s3 + $0x10] sm:$0xf]
  %v708 = vld [vmem:[%s3 + $0x14] sm:$0xf]
  %v709 = vld [vmem:[%s3 + $0x18] sm:$0xf]
  %v710 = vld [vmem:[%s3 + $0x1c] sm:$0xf]
  %v711 = vld [vmem:[%s3 + $0x20] sm:$0xf]
  %v712 = vld [vmem:[%s3 + $0x24] sm:$0xf]
  %v713 = vld [vmem:[%s3 + $0x28] sm:$0xf]
  %v714 = vld [vmem:[%s3 + $0x2c] sm:$0xf]
  %v715 = vld [vmem:[%s3 + $0x30] sm:$0xf]
  %v716 = vld [vmem:[%s3 + $0x34] sm:$0xf]
  %v717 = vld [vmem:[%s3 + $0x38] sm:$0xf]
  %v718 = vld [vmem:[%s3 + $0x3c] sm:$0xf]
  %v719 = vpack.c.bf16 %v623, %v622
  %v720 = vld [vmem:[%s4] sm:$0xf]
  %v721 = vld [vmem:[%s4 + $0x4] sm:$0xf]
  %v722 = vld [vmem:[%s4 + $0x8] sm:$0xf]
  %v723 = vld [vmem:[%s4 + $0xc] sm:$0xf]
  %v724 = vld [vmem:[%s4 + $0x10] sm:$0xf]
  %v725 = vld [vmem:[%s4 + $0x14] sm:$0xf]
  %v726 = vld [vmem:[%s4 + $0x18] sm:$0xf]
  %v727 = vld [vmem:[%s4 + $0x1c] sm:$0xf]
  %v728 = vld [vmem:[%s4 + $0x20] sm:$0xf]
  %v729 = vld [vmem:[%s4 + $0x24] sm:$0xf]
  %v730 = vld [vmem:[%s4 + $0x28] sm:$0xf]
  %v731 = vld [vmem:[%s4 + $0x2c] sm:$0xf]
  %v732 = vld [vmem:[%s4 + $0x30] sm:$0xf]
  %v733 = vld [vmem:[%s4 + $0x34] sm:$0xf]
  %v734 = vld [vmem:[%s4 + $0x38] sm:$0xf]
  %v735 = vld [vmem:[%s4 + $0x3c] sm:$0xf]
  %v752 = vunpack.c.l.b16 %v720
  %v753 = vunpack.c.l.b16 %v721
  %v754 = vunpack.c.l.b16 %v722
  %v755 = vunpack.c.l.b16 %v723
  %v756 = vunpack.c.l.b16 %v724
  %v757 = vunpack.c.l.b16 %v725
  %v758 = vunpack.c.l.b16 %v726
  %v759 = vunpack.c.l.b16 %v727
  %v760 = vunpack.c.l.b16 %v728
  %v761 = vunpack.c.l.b16 %v729
  %v762 = vunpack.c.l.b16 %v730
  %v763 = vunpack.c.l.b16 %v731
  %v764 = vunpack.c.l.b16 %v732
  %v765 = vunpack.c.l.b16 %v733
  %v766 = vunpack.c.l.b16 %v734
  %v767 = vunpack.c.l.b16 %v735
  %v768 = vpack.c.b16 %v753, %v752
  %v769 = vpack.c.b16 %v755, %v754
  %v770 = vpack.c.b16 %v757, %v756
  %v771 = vpack.c.b16 %v759, %v758
  %v772 = vpack.c.b16 %v761, %v760
  %v773 = vpack.c.b16 %v763, %v762
  %v774 = vpack.c.b16 %v765, %v764
  %v775 = vpack.c.b16 %v767, %v766
  %784 = vmatprep.subr.bf16.mxu0 0
  %785 = vmatpush1.bf16.msra.mxu0 %v768
  %786 = vmatprep.subr.bf16.mxu0 0
  %787 = vmatpush1.bf16.msra.mxu0 %v769
  %788 = vmatprep.subr.bf16.mxu0 0
  %789 = vmatpush1.bf16.msra.mxu0 %v770
  %790 = vmatprep.subr.bf16.mxu0 0
  %791 = vmatpush1.bf16.msra.mxu0 %v771
  %792 = vmatprep.subr.bf16.mxu0 0
  %793 = vmatpush1.bf16.msra.mxu0 %v772
  %794 = vmatprep.subr.bf16.mxu0 0
  %795 = vmatpush1.bf16.msra.mxu0 %v773
  %796 = vmatprep.subr.bf16.mxu0 0
  %797 = vmatpush1.bf16.msra.mxu0 %v774
  %798 = vmatprep.subr.bf16.mxu0 0
  %799 = vmatpush1.bf16.msra.mxu0 %v775
  %800 = vmatprep.subr.bf16.mxu0 0
  %801 = vmatpush1.bf16.msra.mxu0 0
  %802 = vmatprep.subr.bf16.mxu0 0
  %803 = vmatpush1.bf16.msra.mxu0 0
  %804 = vmatprep.subr.bf16.mxu0 0
  %805 = vmatpush1.bf16.msra.mxu0 0
  %806 = vmatprep.subr.bf16.mxu0 0
  %807 = vmatpush1.bf16.msra.mxu0 0
  %808 = vmatprep.subr.bf16.mxu0 0
  %809 = vmatpush1.bf16.msra.mxu0 0
  %810 = vmatprep.subr.bf16.mxu0 0
  %811 = vmatpush1.bf16.msra.mxu0 0
  %812 = vmatprep.subr.bf16.mxu0 0
  %813 = vmatpush1.bf16.msra.mxu0 0
  %814 = vmatprep.subr.bf16.mxu0 0
  %815 = vmatpush1.bf16.msra.mxu0 0
  %816 = vmatprep.mubr.bf16.mxu0 0
  %817 = vmatmul.mubr.bf16.gmra.mrb[0].mxu0 %v719
  %v818 = vpop.f32.mrb[0].mxu0
  %v819 = vadd.f32 0.0, %v818
  %v820 = vpop.f32.mrb[0].mxu0
  %v821 = vpop.f32.mrb[0].mxu0
  %v822 = vadd.f32 0.0, %v821
  %v823 = vpop.f32.mrb[0].mxu0
  %824 = vdwg.mxu0
  %v841 = vunpack.c.l.b16 %v703
  %v842 = vunpack.c.l.b16 %v704
  %v843 = vunpack.c.l.b16 %v705
  %v844 = vunpack.c.l.b16 %v706
  %v845 = vunpack.c.l.b16 %v707
  %v846 = vunpack.c.l.b16 %v708
  %v847 = vunpack.c.l.b16 %v709
  %v848 = vunpack.c.l.b16 %v710
  %v849 = vunpack.c.l.b16 %v711
  %v850 = vunpack.c.l.b16 %v712
  %v851 = vunpack.c.l.b16 %v713
  %v852 = vunpack.c.l.b16 %v714
  %v853 = vunpack.c.l.b16 %v715
  %v854 = vunpack.c.l.b16 %v716
  %v855 = vunpack.c.l.b16 %v717
  %v856 = vunpack.c.l.b16 %v718
  %v857 = vpack.c.b16 %v842, %v841
  %v858 = vpack.c.b16 %v844, %v843
  %v859 = vpack.c.b16 %v846, %v845
  %v860 = vpack.c.b16 %v848, %v847
  %v861 = vpack.c.b16 %v850, %v849
  %v862 = vpack.c.b16 %v852, %v851
  %v863 = vpack.c.b16 %v854, %v853
  %v864 = vpack.c.b16 %v856, %v855
  %873 = vmatprep.subr.bf16.mxu0 0
  %874 = vmatpush1.bf16.msra.mxu0 %v857
  %875 = vmatprep.subr.bf16.mxu0 0
  %876 = vmatpush1.bf16.msra.mxu0 %v858
  %877 = vmatprep.subr.bf16.mxu0 0
  %878 = vmatpush1.bf16.msra.mxu0 %v859
  %879 = vmatprep.subr.bf16.mxu0 0
  %880 = vmatpush1.bf16.msra.mxu0 %v860
  %881 = vmatprep.subr.bf16.mxu0 0
  %882 = vmatpush1.bf16.msra.mxu0 %v861
  %883 = vmatprep.subr.bf16.mxu0 0
  %884 = vmatpush1.bf16.msra.mxu0 %v862
  %885 = vmatprep.subr.bf16.mxu0 0
  %886 = vmatpush1.bf16.msra.mxu0 %v863
  %887 = vmatprep.subr.bf16.mxu0 0
  %888 = vmatpush1.bf16.msra.mxu0 %v864
  %889 = vmatprep.subr.bf16.mxu0 0
  %890 = vmatpush1.bf16.msra.mxu0 0
  %891 = vmatprep.subr.bf16.mxu0 0
  %892 = vmatpush1.bf16.msra.mxu0 0
  %893 = vmatprep.subr.bf16.mxu0 0
  %894 = vmatpush1.bf16.msra.mxu0 0
  %895 = vmatprep.subr.bf16.mxu0 0
  %896 = vmatpush1.bf16.msra.mxu0 0
  %897 = vmatprep.subr.bf16.mxu0 0
  %898 = vmatpush1.bf16.msra.mxu0 0
  %899 = vmatprep.subr.bf16.mxu0 0
  %900 = vmatpush1.bf16.msra.mxu0 0
  %901 = vmatprep.subr.bf16.mxu0 0
  %902 = vmatpush1.bf16.msra.mxu0 0
  %903 = vmatprep.subr.bf16.mxu0 0
  %904 = vmatpush1.bf16.msra.mxu0 0
  %905 = vmatprep.mubr.bf16.mxu0 0
  %906 = vmatmul.mubr.bf16.gmra.mrb[0].mxu0 %v702
  %v907 = vpop.f32.mrb[0].mxu0
  %v908 = vadd.f32 %v819, %v907
  %v909 = vpop.f32.mrb[0].mxu0
  %v910 = vpop.f32.mrb[0].mxu0
  %v911 = vadd.f32 %v822, %v910
  %v912 = vpop.f32.mrb[0].mxu0
  %913 = vdwg.mxu0
  %v914 = vmul.f32 %v361, 0.125
  %v915 = vmul.f32 %v362, 0.125
  %v916 = vmul.f32 %v363, 0.125
  %v917 = vmul.f32 %v364, 0.125
  %v918 = vmul.f32 %v365, 0.125
  %v919 = vmul.f32 %v366, 0.125
  %v920 = vmul.f32 %v367, 0.125
  %v921 = vmul.f32 %v368, 0.125
  %v922 = vmul.f32 %v369, 0.125
  %v923 = vmul.f32 %v370, 0.125
  %v924 = vmul.f32 %v371, 0.125
  %v925 = vmul.f32 %v372, 0.125
  %v926 = vmul.f32 %v373, 0.125
  %v927 = vmul.f32 %v374, 0.125
  %v928 = vmul.f32 %v375, 0.125
  %v929 = vmul.f32 %v376, 0.125
  %v930 = vfloor.f32 %v914
  %v931 = vfloor.f32 %v915
  %v932 = vfloor.f32 %v916
  %v933 = vfloor.f32 %v917
  %v934 = vfloor.f32 %v918
  %v935 = vfloor.f32 %v919
  %v936 = vfloor.f32 %v920
  %v937 = vfloor.f32 %v921
  %v938 = vfloor.f32 %v922
  %v939 = vfloor.f32 %v923
  %v940 = vfloor.f32 %v924
  %v941 = vfloor.f32 %v925
  %v942 = vfloor.f32 %v926
  %v943 = vfloor.f32 %v927
  %v944 = vfloor.f32 %v928
  %v945 = vfloor.f32 %v929
  %v946 = vmul.f32 %v377, 0.125
  %v947 = vfloor.f32 %v946
  %vm948 = vcmp.eq.f32.partialorder %v930, %v947
  %vm949 = vcmp.eq.f32.partialorder %v931, %v947
  %vm950 = vcmp.eq.f32.partialorder %v932, %v947
  %vm951 = vcmp.eq.f32.partialorder %v933, %v947
  %vm952 = vcmp.eq.f32.partialorder %v934, %v947
  %vm953 = vcmp.eq.f32.partialorder %v935, %v947
  %vm954 = vcmp.eq.f32.partialorder %v936, %v947
  %vm955 = vcmp.eq.f32.partialorder %v937, %v947
  %vm956 = vcmp.eq.f32.partialorder %v938, %v947
  %vm957 = vcmp.eq.f32.partialorder %v939, %v947
  %vm958 = vcmp.eq.f32.partialorder %v940, %v947
  %vm959 = vcmp.eq.f32.partialorder %v941, %v947
  %vm960 = vcmp.eq.f32.partialorder %v942, %v947
  %vm961 = vcmp.eq.f32.partialorder %v943, %v947
  %vm962 = vcmp.eq.f32.partialorder %v944, %v947
  %vm963 = vcmp.eq.f32.partialorder %v945, %v947
  %v964 = vsel %vm948, 0.013888889, 0.0
  %v965 = vsel %vm949, 0.013888889, 0.0
  %v966 = vsel %vm950, 0.013888889, 0.0
  %v967 = vsel %vm951, 0.013888889, 0.0
  %v968 = vsel %vm952, 0.013888889, 0.0
  %v969 = vsel %vm953, 0.013888889, 0.0
  %v970 = vsel %vm954, 0.013888889, 0.0
  %v971 = vsel %vm955, 0.013888889, 0.0
  %v972 = vsel %vm956, 0.013888889, 0.0
  %v973 = vsel %vm957, 0.013888889, 0.0
  %v974 = vsel %vm958, 0.013888889, 0.0
  %v975 = vsel %vm959, 0.013888889, 0.0
  %v976 = vsel %vm960, 0.013888889, 0.0
  %v977 = vsel %vm961, 0.013888889, 0.0
  %v978 = vsel %vm962, 0.013888889, 0.0
  %v979 = vsel %vm963, 0.013888889, 0.0
  %v980 = vsel %vm113, %v911, 0.0
  %v981 = vadd.f32 %v908, %v980
  %v982 = vrot.slane %v981, 4
  %v983 = vadd.f32 %v981, %v982
  %v984 = vrot.slane %v983, 2
  %v985 = vadd.f32 %v983, %v984
  %v986 = vrot.slane %v985, 1
  %v987 = vadd.f32 %v985, %v986
  %v988 = vmul.f32 %v908, %v908
  %v989 = vmul.f32 %v911, %v911
  %v990 = vsel %vm113, %v989, 0.0
  %v991 = vadd.f32 %v988, %v990
  %v992 = vrot.slane %v991, 4
  %v993 = vadd.f32 %v991, %v992
  %v994 = vrot.slane %v993, 2
  %v995 = vadd.f32 %v993, %v994
  %v996 = vrot.slane %v995, 1
  %v997 = vadd.f32 %v995, %v996
  %998 = vmatprep.subr.mxu0 0.0
  %999 = vmatpush1.msra.mxu0 %v964
  %1000 = vmatprep.subr.mxu0 0.0
  %1001 = vmatpush1.msra.mxu0 %v965
  %1002 = vmatprep.subr.mxu0 0.0
  %1003 = vmatpush1.msra.mxu0 %v966
  %1004 = vmatprep.subr.mxu0 0.0
  %1005 = vmatpush1.msra.mxu0 %v967
  %1006 = vmatprep.subr.mxu0 0.0
  %1007 = vmatpush1.msra.mxu0 %v968
  %1008 = vmatprep.subr.mxu0 0.0
  %1009 = vmatpush1.msra.mxu0 %v969
  %1010 = vmatprep.subr.mxu0 0.0
  %1011 = vmatpush1.msra.mxu0 %v970
  %1012 = vmatprep.subr.mxu0 0.0
  %1013 = vmatpush1.msra.mxu0 %v971
  %1014 = vmatprep.subr.mxu0 0.0
  %1015 = vmatpush1.msra.mxu0 %v972
  %1016 = vmatprep.subr.mxu0 0.0
  %1017 = vmatpush1.msra.mxu0 %v973
  %1018 = vmatprep.subr.mxu0 0.0
  %1019 = vmatpush1.msra.mxu0 %v974
  %1020 = vmatprep.subr.mxu0 0.0
  %1021 = vmatpush1.msra.mxu0 %v975
  %1022 = vmatprep.subr.mxu0 0.0
  %1023 = vmatpush1.msra.mxu0 %v976
  %1024 = vmatprep.subr.mxu0 0.0
  %1025 = vmatpush1.msra.mxu0 %v977
  %1026 = vmatprep.subr.mxu0 0.0
  %1027 = vmatpush1.msra.mxu0 %v978
  %1028 = vmatprep.subr.mxu0 0.0
  %1029 = vmatpush1.msra.mxu0 %v979
  %1030 = vmatprep.subr.mxu0 0.0
  %1031 = vmatpush1.msra.mxu0 0.0
  %1032 = vmatprep.subr.mxu0 0.0
  %1033 = vmatpush1.msra.mxu0 0.0
  %1034 = vmatprep.subr.mxu0 0.0
  %1035 = vmatpush1.msra.mxu0 0.0
  %1036 = vmatprep.subr.mxu0 0.0
  %1037 = vmatpush1.msra.mxu0 0.0
  %1038 = vmatprep.subr.mxu0 0.0
  %1039 = vmatpush1.msra.mxu0 0.0
  %1040 = vmatprep.subr.mxu0 0.0
  %1041 = vmatpush1.msra.mxu0 0.0
  %1042 = vmatprep.subr.mxu0 0.0
  %1043 = vmatpush1.msra.mxu0 0.0
  %1044 = vmatprep.subr.mxu0 0.0
  %1045 = vmatpush1.msra.mxu0 0.0
  %1046 = vmatprep.subr.mxu0 0.0
  %1047 = vmatpush1.msra.mxu0 0.0
  %1048 = vmatprep.subr.mxu0 0.0
  %1049 = vmatpush1.msra.mxu0 0.0
  %1050 = vmatprep.subr.mxu0 0.0
  %1051 = vmatpush1.msra.mxu0 0.0
  %1052 = vmatprep.subr.mxu0 0.0
  %1053 = vmatpush1.msra.mxu0 0.0
  %1054 = vmatprep.subr.mxu0 0.0
  %1055 = vmatpush1.msra.mxu0 0.0
  %1056 = vmatprep.subr.mxu0 0.0
  %1057 = vmatpush1.msra.mxu0 0.0
  %1058 = vmatprep.subr.mxu0 0.0
  %1059 = vmatpush1.msra.mxu0 0.0
  %1060 = vmatprep.subr.mxu0 0.0
  %1061 = vmatpush1.msra.mxu0 0.0
  %1062 = vmatprep.mubr.f32.mxu0 0.0
  %1063 = vmatmul.mubr.f32.gmra.mrb[0].mxu0 %v987
  %v1064 = vpop.f32.mrb[0].mxu0
  %v1065 = vadd.f32 0.0, %v1064
  %v1066 = vpop.f32.mrb[0].mxu0
  %1067 = vdwg.mxu0
  %1068 = vmatprep.subr.mxu0 0.0
  %1069 = vmatpush1.msra.mxu0 %v964
  %1070 = vmatprep.subr.mxu0 0.0
  %1071 = vmatpush1.msra.mxu0 %v965
  %1072 = vmatprep.subr.mxu0 0.0
  %1073 = vmatpush1.msra.mxu0 %v966
  %1074 = vmatprep.subr.mxu0 0.0
  %1075 = vmatpush1.msra.mxu0 %v967
  %1076 = vmatprep.subr.mxu0 0.0
  %1077 = vmatpush1.msra.mxu0 %v968
  %1078 = vmatprep.subr.mxu0 0.0
  %1079 = vmatpush1.msra.mxu0 %v969
  %1080 = vmatprep.subr.mxu0 0.0
  %1081 = vmatpush1.msra.mxu0 %v970
  %1082 = vmatprep.subr.mxu0 0.0
  %1083 = vmatpush1.msra.mxu0 %v971
  %1084 = vmatprep.subr.mxu0 0.0
  %1085 = vmatpush1.msra.mxu0 %v972
  %1086 = vmatprep.subr.mxu0 0.0
  %1087 = vmatpush1.msra.mxu0 %v973
  %1088 = vmatprep.subr.mxu0 0.0
  %1089 = vmatpush1.msra.mxu0 %v974
  %1090 = vmatprep.subr.mxu0 0.0
  %1091 = vmatpush1.msra.mxu0 %v975
  %1092 = vmatprep.subr.mxu0 0.0
  %1093 = vmatpush1.msra.mxu0 %v976
  %1094 = vmatprep.subr.mxu0 0.0
  %1095 = vmatpush1.msra.mxu0 %v977
  %1096 = vmatprep.subr.mxu0 0.0
  %1097 = vmatpush1.msra.mxu0 %v978
  %1098 = vmatprep.subr.mxu0 0.0
  %1099 = vmatpush1.msra.mxu0 %v979
  %1100 = vmatprep.subr.mxu0 0.0
  %1101 = vmatpush1.msra.mxu0 0.0
  %1102 = vmatprep.subr.mxu0 0.0
  %1103 = vmatpush1.msra.mxu0 0.0
  %1104 = vmatprep.subr.mxu0 0.0
  %1105 = vmatpush1.msra.mxu0 0.0
  %1106 = vmatprep.subr.mxu0 0.0
  %1107 = vmatpush1.msra.mxu0 0.0
  %1108 = vmatprep.subr.mxu0 0.0
  %1109 = vmatpush1.msra.mxu0 0.0
  %1110 = vmatprep.subr.mxu0 0.0
  %1111 = vmatpush1.msra.mxu0 0.0
  %1112 = vmatprep.subr.mxu0 0.0
  %1113 = vmatpush1.msra.mxu0 0.0
  %1114 = vmatprep.subr.mxu0 0.0
  %1115 = vmatpush1.msra.mxu0 0.0
  %1116 = vmatprep.subr.mxu0 0.0
  %1117 = vmatpush1.msra.mxu0 0.0
  %1118 = vmatprep.subr.mxu0 0.0
  %1119 = vmatpush1.msra.mxu0 0.0
  %1120 = vmatprep.subr.mxu0 0.0
  %1121 = vmatpush1.msra.mxu0 0.0
  %1122 = vmatprep.subr.mxu0 0.0
  %1123 = vmatpush1.msra.mxu0 0.0
  %1124 = vmatprep.subr.mxu0 0.0
  %1125 = vmatpush1.msra.mxu0 0.0
  %1126 = vmatprep.subr.mxu0 0.0
  %1127 = vmatpush1.msra.mxu0 0.0
  %1128 = vmatprep.subr.mxu0 0.0
  %1129 = vmatpush1.msra.mxu0 0.0
  %1130 = vmatprep.subr.mxu0 0.0
  %1131 = vmatpush1.msra.mxu0 0.0
  %1132 = vmatprep.mubr.f32.mxu0 0.0
  %1133 = vmatmul.mubr.f32.gmra.mrb[0].mxu0 %v997
  %v1134 = vpop.f32.mrb[0].mxu0
  %v1135 = vadd.f32 0.0, %v1134
  %v1136 = vpop.f32.mrb[0].mxu0
  %1137 = vdwg.mxu0
  %v1138 = vmul.f32 %v1065, %v1065
  %v1139 = vsub.f32 %v1135, %v1138
  %v1140 = vlaneseq
  %v1141 = vshrl.u32 %v1140, 7
  %v1142 = vsub.s32 0, %v1141
  %v1143 = vrot.slane %v1065, %v1142
  %v1144 = vsub.f32 %v908, %v1143
  %v1145 = vsub.f32 %v911, %v1143
  %v1146 = vadd.f32 %v1139, 1e-05
  %v1147 = vrsqrt.pop %v1146
  %v1148 = vlaneseq
  %v1149 = vshrl.u32 %v1148, 7
  %v1150 = vsub.s32 0, %v1149
  %v1151 = vrot.slane %v1147, %v1150
  %v1152 = vmul.f32 %v1144, %v1151
  %v1153 = vmul.f32 %v1145, %v1151
  %vm1154 = vcmp.gt.f32.partialorder %v1152, 0.0
  %vm1155 = vcmp.gt.f32.partialorder %v1153, 0.0
  %v1156 = vmul.f32 %v1152, 0.25
  %v1157 = vmul.f32 %v1153, 0.25
  %v1158 = vsel %vm1154, %v1152, %v1156
  %v1159 = vsel %vm1155, %v1153, %v1157
  %v1161 = vsel %vm113, %v1159, 0
  %1163 = vmatprep.subr.mxu0 0.0
  %1164 = vmatpush1.msra.mxu0 %v1158
  %1165 = vmatprep.subr.mxu0 0.0
  %1166 = vmatpush1.msra.mxu0 %v1161
  %1167 = vmatprep.subr.mxu0 0.0
  %1168 = vmatpush1.msra.mxu0 0.0
  %1169 = vmatprep.subr.mxu0 0.0
  %1170 = vmatpush1.msra.mxu0 0.0
  %1171 = vmatprep.subr.mxu0 0.0
  %1172 = vmatpush1.msra.mxu0 0.0
  %1173 = vmatprep.subr.mxu0 0.0
  %1174 = vmatpush1.msra.mxu0 0.0
  %1175 = vmatprep.subr.mxu0 0.0
  %1176 = vmatpush1.msra.mxu0 0.0
  %1177 = vmatprep.subr.mxu0 0.0
  %1178 = vmatpush1.msra.mxu0 0.0
  %1179 = vmatprep.subr.mxu0 0.0
  %1180 = vmatpush1.msra.mxu0 0.0
  %1181 = vmatprep.subr.mxu0 0.0
  %1182 = vmatpush1.msra.mxu0 0.0
  %1183 = vmatprep.subr.mxu0 0.0
  %1184 = vmatpush1.msra.mxu0 0.0
  %1185 = vmatprep.subr.mxu0 0.0
  %1186 = vmatpush1.msra.mxu0 0.0
  %1187 = vmatprep.subr.mxu0 0.0
  %1188 = vmatpush1.msra.mxu0 0.0
  %1189 = vmatprep.subr.mxu0 0.0
  %1190 = vmatpush1.msra.mxu0 0.0
  %1191 = vmatprep.subr.mxu0 0.0
  %1192 = vmatpush1.msra.mxu0 0.0
  %1193 = vmatprep.subr.mxu0 0.0
  %1194 = vmatpush1.msra.mxu0 0.0
  %1195 = vmatprep.subr.mxu0 0.0
  %1196 = vmatpush1.msra.mxu0 0.0
  %1197 = vmatprep.subr.mxu0 0.0
  %1198 = vmatpush1.msra.mxu0 0.0
  %1199 = vmatprep.subr.mxu0 0.0
  %1200 = vmatpush1.msra.mxu0 0.0
  %1201 = vmatprep.subr.mxu0 0.0
  %1202 = vmatpush1.msra.mxu0 0.0
  %1203 = vmatprep.subr.mxu0 0.0
  %1204 = vmatpush1.msra.mxu0 0.0
  %1205 = vmatprep.subr.mxu0 0.0
  %1206 = vmatpush1.msra.mxu0 0.0
  %1207 = vmatprep.subr.mxu0 0.0
  %1208 = vmatpush1.msra.mxu0 0.0
  %1209 = vmatprep.subr.mxu0 0.0
  %1210 = vmatpush1.msra.mxu0 0.0
  %1211 = vmatprep.subr.mxu0 0.0
  %1212 = vmatpush1.msra.mxu0 0.0
  %1213 = vmatprep.subr.mxu0 0.0
  %1214 = vmatpush1.msra.mxu0 0.0
  %1215 = vmatprep.subr.mxu0 0.0
  %1216 = vmatpush1.msra.mxu0 0.0
  %1217 = vmatprep.subr.mxu0 0.0
  %1218 = vmatpush1.msra.mxu0 0.0
  %1219 = vmatprep.subr.mxu0 0.0
  %1220 = vmatpush1.msra.mxu0 0.0
  %1221 = vmatprep.subr.mxu0 0.0
  %1222 = vmatpush1.msra.mxu0 0.0
  %1223 = vmatprep.subr.mxu0 0.0
  %1224 = vmatpush1.msra.mxu0 0.0
  %1225 = vmatprep.subr.mxu0 0.0
  %1226 = vmatpush1.msra.mxu0 0.0
  %1227 = vmatprep.mubr.f32.mxu0 0.0
  %1228 = vmatmul.mubr.f32.gmra.mrb[0].mxu0 %v108
  %v1229 = vpop.f32.mrb[0].mxu0
  %v1230 = vadd.f32 0.0, %v1229
  %v1231 = vpop.f32.mrb[0].mxu0
  %1232 = vmatprep.mubr.f32.mxu0 0.0
  %1233 = vmatmul.mubr.f32.gmra.mrb[0].mxu0 %v111
  %v1234 = vpop.f32.mrb[0].mxu0
  %v1235 = vadd.f32 0.0, %v1234
  %v1236 = vpop.f32.mrb[0].mxu0
  %1237 = vdwg.mxu0
  %v1238 = vpack.c.bf16 %v1235, %v1230
  %v1239 = vld [vmem:[%s5] sm:$0xf]
  %v1240 = vld [vmem:[%s5 + $0x4] sm:$0xf]
  %v1241 = vld [vmem:[%s5 + $0x8] sm:$0xf]
  %v1242 = vld [vmem:[%s5 + $0xc] sm:$0xf]
  %v1243 = vld [vmem:[%s5 + $0x10] sm:$0xf]
  %v1244 = vld [vmem:[%s5 + $0x14] sm:$0xf]
  %v1245 = vld [vmem:[%s5 + $0x18] sm:$0xf]
  %v1246 = vld [vmem:[%s5 + $0x1c] sm:$0xf]
  %v1247 = vld [vmem:[%s5 + $0x20] sm:$0xf]
  %v1248 = vld [vmem:[%s5 + $0x24] sm:$0xf]
  %v1249 = vld [vmem:[%s5 + $0x28] sm:$0xf]
  %v1250 = vld [vmem:[%s5 + $0x2c] sm:$0xf]
  %v1251 = vld [vmem:[%s5 + $0x30] sm:$0xf]
  %v1252 = vld [vmem:[%s5 + $0x34] sm:$0xf]
  %v1253 = vld [vmem:[%s5 + $0x38] sm:$0xf]
  %v1254 = vld [vmem:[%s5 + $0x3c] sm:$0xf]
  %v1255 = vpack.c.bf16 %v1159, %v1158
  %v1256 = vld [vmem:[%s6] sm:$0xf]
  %v1257 = vld [vmem:[%s6 + $0x4] sm:$0xf]
  %v1258 = vld [vmem:[%s6 + $0x8] sm:$0xf]
  %v1259 = vld [vmem:[%s6 + $0xc] sm:$0xf]
  %v1260 = vld [vmem:[%s6 + $0x10] sm:$0xf]
  %v1261 = vld [vmem:[%s6 + $0x14] sm:$0xf]
  %v1262 = vld [vmem:[%s6 + $0x18] sm:$0xf]
  %v1263 = vld [vmem:[%s6 + $0x1c] sm:$0xf]
  %v1264 = vld [vmem:[%s6 + $0x20] sm:$0xf]
  %v1265 = vld [vmem:[%s6 + $0x24] sm:$0xf]
  %v1266 = vld [vmem:[%s6 + $0x28] sm:$0xf]
  %v1267 = vld [vmem:[%s6 + $0x2c] sm:$0xf]
  %v1268 = vld [vmem:[%s6 + $0x30] sm:$0xf]
  %v1269 = vld [vmem:[%s6 + $0x34] sm:$0xf]
  %v1270 = vld [vmem:[%s6 + $0x38] sm:$0xf]
  %v1271 = vld [vmem:[%s6 + $0x3c] sm:$0xf]
  %v1288 = vunpack.c.l.b16 %v1256
  %v1289 = vunpack.c.l.b16 %v1257
  %v1290 = vunpack.c.l.b16 %v1258
  %v1291 = vunpack.c.l.b16 %v1259
  %v1292 = vunpack.c.l.b16 %v1260
  %v1293 = vunpack.c.l.b16 %v1261
  %v1294 = vunpack.c.l.b16 %v1262
  %v1295 = vunpack.c.l.b16 %v1263
  %v1296 = vunpack.c.l.b16 %v1264
  %v1297 = vunpack.c.l.b16 %v1265
  %v1298 = vunpack.c.l.b16 %v1266
  %v1299 = vunpack.c.l.b16 %v1267
  %v1300 = vunpack.c.l.b16 %v1268
  %v1301 = vunpack.c.l.b16 %v1269
  %v1302 = vunpack.c.l.b16 %v1270
  %v1303 = vunpack.c.l.b16 %v1271
  %v1304 = vpack.c.b16 %v1289, %v1288
  %v1305 = vpack.c.b16 %v1291, %v1290
  %v1306 = vpack.c.b16 %v1293, %v1292
  %v1307 = vpack.c.b16 %v1295, %v1294
  %v1308 = vpack.c.b16 %v1297, %v1296
  %v1309 = vpack.c.b16 %v1299, %v1298
  %v1310 = vpack.c.b16 %v1301, %v1300
  %v1311 = vpack.c.b16 %v1303, %v1302
  %1320 = vmatprep.subr.bf16.mxu0 0
  %1321 = vmatpush1.bf16.msra.mxu0 %v1304
  %1322 = vmatprep.subr.bf16.mxu0 0
  %1323 = vmatpush1.bf16.msra.mxu0 %v1305
  %1324 = vmatprep.subr.bf16.mxu0 0
  %1325 = vmatpush1.bf16.msra.mxu0 %v1306
  %1326 = vmatprep.subr.bf16.mxu0 0
  %1327 = vmatpush1.bf16.msra.mxu0 %v1307
  %1328 = vmatprep.subr.bf16.mxu0 0
  %1329 = vmatpush1.bf16.msra.mxu0 %v1308
  %1330 = vmatprep.subr.bf16.mxu0 0
  %1331 = vmatpush1.bf16.msra.mxu0 %v1309
  %1332 = vmatprep.subr.bf16.mxu0 0
  %1333 = vmatpush1.bf16.msra.mxu0 %v1310
  %1334 = vmatprep.subr.bf16.mxu0 0
  %1335 = vmatpush1.bf16.msra.mxu0 %v1311
  %1336 = vmatprep.subr.bf16.mxu0 0
  %1337 = vmatpush1.bf16.msra.mxu0 0
  %1338 = vmatprep.subr.bf16.mxu0 0
  %1339 = vmatpush1.bf16.msra.mxu0 0
  %1340 = vmatprep.subr.bf16.mxu0 0
  %1341 = vmatpush1.bf16.msra.mxu0 0
  %1342 = vmatprep.subr.bf16.mxu0 0
  %1343 = vmatpush1.bf16.msra.mxu0 0
  %1344 = vmatprep.subr.bf16.mxu0 0
  %1345 = vmatpush1.bf16.msra.mxu0 0
  %1346 = vmatprep.subr.bf16.mxu0 0
  %1347 = vmatpush1.bf16.msra.mxu0 0
  %1348 = vmatprep.subr.bf16.mxu0 0
  %1349 = vmatpush1.bf16.msra.mxu0 0
  %1350 = vmatprep.subr.bf16.mxu0 0
  %1351 = vmatpush1.bf16.msra.mxu0 0
  %1352 = vmatprep.mubr.bf16.mxu0 0
  %1353 = vmatmul.mubr.bf16.gmra.mrb[0].mxu0 %v1255
  %v1354 = vpop.f32.mrb[0].mxu0
  %v1355 = vadd.f32 0.0, %v1354
  %v1356 = vpop.f32.mrb[0].mxu0
  %v1357 = vpop.f32.mrb[0].mxu0
  %v1358 = vadd.f32 0.0, %v1357
  %v1359 = vpop.f32.mrb[0].mxu0
  %1360 = vdwg.mxu0
  %v1377 = vunpack.c.l.b16 %v1239
  %v1378 = vunpack.c.l.b16 %v1240
  %v1379 = vunpack.c.l.b16 %v1241
  %v1380 = vunpack.c.l.b16 %v1242
  %v1381 = vunpack.c.l.b16 %v1243
  %v1382 = vunpack.c.l.b16 %v1244
  %v1383 = vunpack.c.l.b16 %v1245
  %v1384 = vunpack.c.l.b16 %v1246
  %v1385 = vunpack.c.l.b16 %v1247
  %v1386 = vunpack.c.l.b16 %v1248
  %v1387 = vunpack.c.l.b16 %v1249
  %v1388 = vunpack.c.l.b16 %v1250
  %v1389 = vunpack.c.l.b16 %v1251
  %v1390 = vunpack.c.l.b16 %v1252
  %v1391 = vunpack.c.l.b16 %v1253
  %v1392 = vunpack.c.l.b16 %v1254
  %v1393 = vpack.c.b16 %v1378, %v1377
  %v1394 = vpack.c.b16 %v1380, %v1379
  %v1395 = vpack.c.b16 %v1382, %v1381
  %v1396 = vpack.c.b16 %v1384, %v1383
  %v1397 = vpack.c.b16 %v1386, %v1385
  %v1398 = vpack.c.b16 %v1388, %v1387
  %v1399 = vpack.c.b16 %v1390, %v1389
  %v1400 = vpack.c.b16 %v1392, %v1391
  %1409 = vmatprep.subr.bf16.mxu0 0
  %1410 = vmatpush1.bf16.msra.mxu0 %v1393
  %1411 = vmatprep.subr.bf16.mxu0 0
  %1412 = vmatpush1.bf16.msra.mxu0 %v1394
  %1413 = vmatprep.subr.bf16.mxu0 0
  %1414 = vmatpush1.bf16.msra.mxu0 %v1395
  %1415 = vmatprep.subr.bf16.mxu0 0
  %1416 = vmatpush1.bf16.msra.mxu0 %v1396
  %1417 = vmatprep.subr.bf16.mxu0 0
  %1418 = vmatpush1.bf16.msra.mxu0 %v1397
  %1419 = vmatprep.subr.bf16.mxu0 0
  %1420 = vmatpush1.bf16.msra.mxu0 %v1398
  %1421 = vmatprep.subr.bf16.mxu0 0
  %1422 = vmatpush1.bf16.msra.mxu0 %v1399
  %1423 = vmatprep.subr.bf16.mxu0 0
  %1424 = vmatpush1.bf16.msra.mxu0 %v1400
  %1425 = vmatprep.subr.bf16.mxu0 0
  %1426 = vmatpush1.bf16.msra.mxu0 0
  %1427 = vmatprep.subr.bf16.mxu0 0
  %1428 = vmatpush1.bf16.msra.mxu0 0
  %1429 = vmatprep.subr.bf16.mxu0 0
  %1430 = vmatpush1.bf16.msra.mxu0 0
  %1431 = vmatprep.subr.bf16.mxu0 0
  %1432 = vmatpush1.bf16.msra.mxu0 0
  %1433 = vmatprep.subr.bf16.mxu0 0
  %1434 = vmatpush1.bf16.msra.mxu0 0
  %1435 = vmatprep.subr.bf16.mxu0 0
  %1436 = vmatpush1.bf16.msra.mxu0 0
  %1437 = vmatprep.subr.bf16.mxu0 0
  %1438 = vmatpush1.bf16.msra.mxu0 0
  %1439 = vmatprep.subr.bf16.mxu0 0
  %1440 = vmatpush1.bf16.msra.mxu0 0
  %1441 = vmatprep.mubr.bf16.mxu0 0
  %1442 = vmatmul.mubr.bf16.gmra.mrb[0].mxu0 %v1238
  %v1443 = vpop.f32.mrb[0].mxu0
  %v1444 = vadd.f32 %v1355, %v1443
  %v1445 = vpop.f32.mrb[0].mxu0
  %v1446 = vpop.f32.mrb[0].mxu0
  %v1447 = vadd.f32 %v1358, %v1446
  %v1448 = vpop.f32.mrb[0].mxu0
  %1449 = vdwg.mxu0
  %v1450 = vmul.f32 %v361, 0.25
  %v1451 = vmul.f32 %v362, 0.25
  %v1452 = vmul.f32 %v363, 0.25
  %v1453 = vmul.f32 %v364, 0.25
  %v1454 = vmul.f32 %v365, 0.25
  %v1455 = vmul.f32 %v366, 0.25
  %v1456 = vmul.f32 %v367, 0.25
  %v1457 = vmul.f32 %v368, 0.25
  %v1458 = vmul.f32 %v369, 0.25
  %v1459 = vmul.f32 %v370, 0.25
  %v1460 = vmul.f32 %v371, 0.25
  %v1461 = vmul.f32 %v372, 0.25
  %v1462 = vmul.f32 %v373, 0.25
  %v1463 = vmul.f32 %v374, 0.25
  %v1464 = vmul.f32 %v375, 0.25
  %v1465 = vmul.f32 %v376, 0.25
  %v1466 = vfloor.f32 %v1450
  %v1467 = vfloor.f32 %v1451
  %v1468 = vfloor.f32 %v1452
  %v1469 = vfloor.f32 %v1453
  %v1470 = vfloor.f32 %v1454
  %v1471 = vfloor.f32 %v1455
  %v1472 = vfloor.f32 %v1456
  %v1473 = vfloor.f32 %v1457
  %v1474 = vfloor.f32 %v1458
  %v1475 = vfloor.f32 %v1459
  %v1476 = vfloor.f32 %v1460
  %v1477 = vfloor.f32 %v1461
  %v1478 = vfloor.f32 %v1462
  %v1479 = vfloor.f32 %v1463
  %v1480 = vfloor.f32 %v1464
  %v1481 = vfloor.f32 %v1465
  %v1482 = vmul.f32 %v377, 0.25
  %v1483 = vfloor.f32 %v1482
  %vm1484 = vcmp.eq.f32.partialorder %v1466, %v1483
  %vm1485 = vcmp.eq.f32.partialorder %v1467, %v1483
  %vm1486 = vcmp.eq.f32.partialorder %v1468, %v1483
  %vm1487 = vcmp.eq.f32.partialorder %v1469, %v1483
  %vm1488 = vcmp.eq.f32.partialorder %v1470, %v1483
  %vm1489 = vcmp.eq.f32.partialorder %v1471, %v1483
  %vm1490 = vcmp.eq.f32.partialorder %v1472, %v1483
  %vm1491 = vcmp.eq.f32.partialorder %v1473, %v1483
  %vm1492 = vcmp.eq.f32.partialorder %v1474, %v1483
  %vm1493 = vcmp.eq.f32.partialorder %v1475, %v1483
  %vm1494 = vcmp.eq.f32.partialorder %v1476, %v1483
  %vm1495 = vcmp.eq.f32.partialorder %v1477, %v1483
  %vm1496 = vcmp.eq.f32.partialorder %v1478, %v1483
  %vm1497 = vcmp.eq.f32.partialorder %v1479, %v1483
  %vm1498 = vcmp.eq.f32.partialorder %v1480, %v1483
  %vm1499 = vcmp.eq.f32.partialorder %v1481, %v1483
  %v1500 = vsel %vm1484, 0.027777778, 0.0
  %v1501 = vsel %vm1485, 0.027777778, 0.0
  %v1502 = vsel %vm1486, 0.027777778, 0.0
  %v1503 = vsel %vm1487, 0.027777778, 0.0
  %v1504 = vsel %vm1488, 0.027777778, 0.0
  %v1505 = vsel %vm1489, 0.027777778, 0.0
  %v1506 = vsel %vm1490, 0.027777778, 0.0
  %v1507 = vsel %vm1491, 0.027777778, 0.0
  %v1508 = vsel %vm1492, 0.027777778, 0.0
  %v1509 = vsel %vm1493, 0.027777778, 0.0
  %v1510 = vsel %vm1494, 0.027777778, 0.0
  %v1511 = vsel %vm1495, 0.027777778, 0.0
  %v1512 = vsel %vm1496, 0.027777778, 0.0
  %v1513 = vsel %vm1497, 0.027777778, 0.0
  %v1514 = vsel %vm1498, 0.027777778, 0.0
  %v1515 = vsel %vm1499, 0.027777778, 0.0
  %v1516 = vsel %vm113, %v1447, 0.0
  %v1517 = vadd.f32 %v1444, %v1516
  %v1518 = vrot.slane %v1517, 4
  %v1519 = vadd.f32 %v1517, %v1518
  %v1520 = vrot.slane %v1519, 2
  %v1521 = vadd.f32 %v1519, %v1520
  %v1522 = vrot.slane %v1521, 1
  %v1523 = vadd.f32 %v1521, %v1522
  %v1524 = vmul.f32 %v1444, %v1444
  %v1525 = vmul.f32 %v1447, %v1447
  %v1526 = vsel %vm113, %v1525, 0.0
  %v1527 = vadd.f32 %v1524, %v1526
  %v1528 = vrot.slane %v1527, 4
  %v1529 = vadd.f32 %v1527, %v1528
  %v1530 = vrot.slane %v1529, 2
  %v1531 = vadd.f32 %v1529, %v1530
  %v1532 = vrot.slane %v1531, 1
  %v1533 = vadd.f32 %v1531, %v1532
  %1534 = vmatprep.subr.mxu0 0.0
  %1535 = vmatpush1.msra.mxu0 %v1500
  %1536 = vmatprep.subr.mxu0 0.0
  %1537 = vmatpush1.msra.mxu0 %v1501
  %1538 = vmatprep.subr.mxu0 0.0
  %1539 = vmatpush1.msra.mxu0 %v1502
  %1540 = vmatprep.subr.mxu0 0.0
  %1541 = vmatpush1.msra.mxu0 %v1503
  %1542 = vmatprep.subr.mxu0 0.0
  %1543 = vmatpush1.msra.mxu0 %v1504
  %1544 = vmatprep.subr.mxu0 0.0
  %1545 = vmatpush1.msra.mxu0 %v1505
  %1546 = vmatprep.subr.mxu0 0.0
  %1547 = vmatpush1.msra.mxu0 %v1506
  %1548 = vmatprep.subr.mxu0 0.0
  %1549 = vmatpush1.msra.mxu0 %v1507
  %1550 = vmatprep.subr.mxu0 0.0
  %1551 = vmatpush1.msra.mxu0 %v1508
  %1552 = vmatprep.subr.mxu0 0.0
  %1553 = vmatpush1.msra.mxu0 %v1509
  %1554 = vmatprep.subr.mxu0 0.0
  %1555 = vmatpush1.msra.mxu0 %v1510
  %1556 = vmatprep.subr.mxu0 0.0
  %1557 = vmatpush1.msra.mxu0 %v1511
  %1558 = vmatprep.subr.mxu0 0.0
  %1559 = vmatpush1.msra.mxu0 %v1512
  %1560 = vmatprep.subr.mxu0 0.0
  %1561 = vmatpush1.msra.mxu0 %v1513
  %1562 = vmatprep.subr.mxu0 0.0
  %1563 = vmatpush1.msra.mxu0 %v1514
  %1564 = vmatprep.subr.mxu0 0.0
  %1565 = vmatpush1.msra.mxu0 %v1515
  %1566 = vmatprep.subr.mxu0 0.0
  %1567 = vmatpush1.msra.mxu0 0.0
  %1568 = vmatprep.subr.mxu0 0.0
  %1569 = vmatpush1.msra.mxu0 0.0
  %1570 = vmatprep.subr.mxu0 0.0
  %1571 = vmatpush1.msra.mxu0 0.0
  %1572 = vmatprep.subr.mxu0 0.0
  %1573 = vmatpush1.msra.mxu0 0.0
  %1574 = vmatprep.subr.mxu0 0.0
  %1575 = vmatpush1.msra.mxu0 0.0
  %1576 = vmatprep.subr.mxu0 0.0
  %1577 = vmatpush1.msra.mxu0 0.0
  %1578 = vmatprep.subr.mxu0 0.0
  %1579 = vmatpush1.msra.mxu0 0.0
  %1580 = vmatprep.subr.mxu0 0.0
  %1581 = vmatpush1.msra.mxu0 0.0
  %1582 = vmatprep.subr.mxu0 0.0
  %1583 = vmatpush1.msra.mxu0 0.0
  %1584 = vmatprep.subr.mxu0 0.0
  %1585 = vmatpush1.msra.mxu0 0.0
  %1586 = vmatprep.subr.mxu0 0.0
  %1587 = vmatpush1.msra.mxu0 0.0
  %1588 = vmatprep.subr.mxu0 0.0
  %1589 = vmatpush1.msra.mxu0 0.0
  %1590 = vmatprep.subr.mxu0 0.0
  %1591 = vmatpush1.msra.mxu0 0.0
  %1592 = vmatprep.subr.mxu0 0.0
  %1593 = vmatpush1.msra.mxu0 0.0
  %1594 = vmatprep.subr.mxu0 0.0
  %1595 = vmatpush1.msra.mxu0 0.0
  %1596 = vmatprep.subr.mxu0 0.0
  %1597 = vmatpush1.msra.mxu0 0.0
  %1598 = vmatprep.mubr.f32.mxu0 0.0
  %1599 = vmatmul.mubr.f32.gmra.mrb[0].mxu0 %v1523
  %v1600 = vpop.f32.mrb[0].mxu0
  %v1601 = vadd.f32 0.0, %v1600
  %v1602 = vpop.f32.mrb[0].mxu0
  %1603 = vdwg.mxu0
  %1604 = vmatprep.subr.mxu0 0.0
  %1605 = vmatpush1.msra.mxu0 %v1500
  %1606 = vmatprep.subr.mxu0 0.0
  %1607 = vmatpush1.msra.mxu0 %v1501
  %1608 = vmatprep.subr.mxu0 0.0
  %1609 = vmatpush1.msra.mxu0 %v1502
  %1610 = vmatprep.subr.mxu0 0.0
  %1611 = vmatpush1.msra.mxu0 %v1503
  %1612 = vmatprep.subr.mxu0 0.0
  %1613 = vmatpush1.msra.mxu0 %v1504
  %1614 = vmatprep.subr.mxu0 0.0
  %1615 = vmatpush1.msra.mxu0 %v1505
  %1616 = vmatprep.subr.mxu0 0.0
  %1617 = vmatpush1.msra.mxu0 %v1506
  %1618 = vmatprep.subr.mxu0 0.0
  %1619 = vmatpush1.msra.mxu0 %v1507
  %1620 = vmatprep.subr.mxu0 0.0
  %1621 = vmatpush1.msra.mxu0 %v1508
  %1622 = vmatprep.subr.mxu0 0.0
  %1623 = vmatpush1.msra.mxu0 %v1509
  %1624 = vmatprep.subr.mxu0 0.0
  %1625 = vmatpush1.msra.mxu0 %v1510
  %1626 = vmatprep.subr.mxu0 0.0
  %1627 = vmatpush1.msra.mxu0 %v1511
  %1628 = vmatprep.subr.mxu0 0.0
  %1629 = vmatpush1.msra.mxu0 %v1512
  %1630 = vmatprep.subr.mxu0 0.0
  %1631 = vmatpush1.msra.mxu0 %v1513
  %1632 = vmatprep.subr.mxu0 0.0
  %1633 = vmatpush1.msra.mxu0 %v1514
  %1634 = vmatprep.subr.mxu0 0.0
  %1635 = vmatpush1.msra.mxu0 %v1515
  %1636 = vmatprep.subr.mxu0 0.0
  %1637 = vmatpush1.msra.mxu0 0.0
  %1638 = vmatprep.subr.mxu0 0.0
  %1639 = vmatpush1.msra.mxu0 0.0
  %1640 = vmatprep.subr.mxu0 0.0
  %1641 = vmatpush1.msra.mxu0 0.0
  %1642 = vmatprep.subr.mxu0 0.0
  %1643 = vmatpush1.msra.mxu0 0.0
  %1644 = vmatprep.subr.mxu0 0.0
  %1645 = vmatpush1.msra.mxu0 0.0
  %1646 = vmatprep.subr.mxu0 0.0
  %1647 = vmatpush1.msra.mxu0 0.0
  %1648 = vmatprep.subr.mxu0 0.0
  %1649 = vmatpush1.msra.mxu0 0.0
  %1650 = vmatprep.subr.mxu0 0.0
  %1651 = vmatpush1.msra.mxu0 0.0
  %1652 = vmatprep.subr.mxu0 0.0
  %1653 = vmatpush1.msra.mxu0 0.0
  %1654 = vmatprep.subr.mxu0 0.0
  %1655 = vmatpush1.msra.mxu0 0.0
  %1656 = vmatprep.subr.mxu0 0.0
  %1657 = vmatpush1.msra.mxu0 0.0
  %1658 = vmatprep.subr.mxu0 0.0
  %1659 = vmatpush1.msra.mxu0 0.0
  %1660 = vmatprep.subr.mxu0 0.0
  %1661 = vmatpush1.msra.mxu0 0.0
  %1662 = vmatprep.subr.mxu0 0.0
  %1663 = vmatpush1.msra.mxu0 0.0
  %1664 = vmatprep.subr.mxu0 0.0
  %1665 = vmatpush1.msra.mxu0 0.0
  %1666 = vmatprep.subr.mxu0 0.0
  %1667 = vmatpush1.msra.mxu0 0.0
  %1668 = vmatprep.mubr.f32.mxu0 0.0
  %1669 = vmatmul.mubr.f32.gmra.mrb[0].mxu0 %v1533
  %v1670 = vpop.f32.mrb[0].mxu0
  %v1671 = vadd.f32 0.0, %v1670
  %v1672 = vpop.f32.mrb[0].mxu0
  %1673 = vdwg.mxu0
  %v1674 = vmul.f32 %v1601, %v1601
  %v1675 = vsub.f32 %v1671, %v1674
  %v1676 = vlaneseq
  %v1677 = vshrl.u32 %v1676, 7
  %v1678 = vsub.s32 0, %v1677
  %v1679 = vrot.slane %v1601, %v1678
  %v1680 = vsub.f32 %v1444, %v1679
  %v1681 = vsub.f32 %v1447, %v1679
  %v1682 = vadd.f32 %v1675, 1e-05
  %v1683 = vrsqrt.pop %v1682
  %v1684 = vlaneseq
  %v1685 = vshrl.u32 %v1684, 7
  %v1686 = vsub.s32 0, %v1685
  %v1687 = vrot.slane %v1683, %v1686
  %v1688 = vmul.f32 %v1680, %v1687
  %v1689 = vmul.f32 %v1681, %v1687
  %vm1690 = vcmp.gt.f32.partialorder %v1688, 0.0
  %vm1691 = vcmp.gt.f32.partialorder %v1689, 0.0
  %v1692 = vmul.f32 %v1688, 0.25
  %v1693 = vmul.f32 %v1689, 0.25
  %v1694 = vsel %vm1690, %v1688, %v1692
  %v1695 = vsel %vm1691, %v1689, %v1693
  %v1696 = vpack.c.bf16 %v1695, %v1694
  %v1697 = vld [vmem:[%s7] sm:$0xf]
  %v1698 = vld [vmem:[%s7 + $0x4] sm:$0xf]
  %v1699 = vld [vmem:[%s7 + $0x8] sm:$0xf]
  %v1700 = vld [vmem:[%s7 + $0xc] sm:$0xf]
  %v1701 = vld [vmem:[%s7 + $0x10] sm:$0xf]
  %v1702 = vld [vmem:[%s7 + $0x14] sm:$0xf]
  %v1703 = vld [vmem:[%s7 + $0x18] sm:$0xf]
  %v1704 = vld [vmem:[%s7 + $0x1c] sm:$0xf]
  %v1705 = vld [vmem:[%s7 + $0x20] sm:$0xf]
  %v1706 = vld [vmem:[%s7 + $0x24] sm:$0xf]
  %v1707 = vld [vmem:[%s7 + $0x28] sm:$0xf]
  %v1708 = vld [vmem:[%s7 + $0x2c] sm:$0xf]
  %v1709 = vld [vmem:[%s7 + $0x30] sm:$0xf]
  %v1710 = vld [vmem:[%s7 + $0x34] sm:$0xf]
  %v1711 = vld [vmem:[%s7 + $0x38] sm:$0xf]
  %v1712 = vld [vmem:[%s7 + $0x3c] sm:$0xf]
  %v1713 = vld [vmem:[%s9] sm:$0x1]
  %v1715 = vlaneseq
  %v1716 = vshrl.u32 %v1715, 7
  %v1717 = vsub.s32 0, %v1716
  %v1718 = vrot.slane %v1713, %v1717
  %v1736 = vunpack.c.l.b16 %v1697
  %v1737 = vunpack.c.l.b16 %v1698
  %v1738 = vunpack.c.l.b16 %v1699
  %v1739 = vunpack.c.l.b16 %v1700
  %v1740 = vunpack.c.l.b16 %v1701
  %v1741 = vunpack.c.l.b16 %v1702
  %v1742 = vunpack.c.l.b16 %v1703
  %v1743 = vunpack.c.l.b16 %v1704
  %v1744 = vunpack.c.l.b16 %v1705
  %v1745 = vunpack.c.l.b16 %v1706
  %v1746 = vunpack.c.l.b16 %v1707
  %v1747 = vunpack.c.l.b16 %v1708
  %v1748 = vunpack.c.l.b16 %v1709
  %v1749 = vunpack.c.l.b16 %v1710
  %v1750 = vunpack.c.l.b16 %v1711
  %v1751 = vunpack.c.l.b16 %v1712
  %v1752 = vpack.c.b16 %v1737, %v1736
  %v1753 = vpack.c.b16 %v1739, %v1738
  %v1754 = vpack.c.b16 %v1741, %v1740
  %v1755 = vpack.c.b16 %v1743, %v1742
  %v1756 = vpack.c.b16 %v1745, %v1744
  %v1757 = vpack.c.b16 %v1747, %v1746
  %v1758 = vpack.c.b16 %v1749, %v1748
  %v1759 = vpack.c.b16 %v1751, %v1750
  %1768 = vmatprep.subr.bf16.mxu0 0
  %1769 = vmatpush1.bf16.msra.mxu0 %v1752
  %1770 = vmatprep.subr.bf16.mxu0 0
  %1771 = vmatpush1.bf16.msra.mxu0 %v1753
  %1772 = vmatprep.subr.bf16.mxu0 0
  %1773 = vmatpush1.bf16.msra.mxu0 %v1754
  %1774 = vmatprep.subr.bf16.mxu0 0
  %1775 = vmatpush1.bf16.msra.mxu0 %v1755
  %1776 = vmatprep.subr.bf16.mxu0 0
  %1777 = vmatpush1.bf16.msra.mxu0 %v1756
  %1778 = vmatprep.subr.bf16.mxu0 0
  %1779 = vmatpush1.bf16.msra.mxu0 %v1757
  %1780 = vmatprep.subr.bf16.mxu0 0
  %1781 = vmatpush1.bf16.msra.mxu0 %v1758
  %1782 = vmatprep.subr.bf16.mxu0 0
  %1783 = vmatpush1.bf16.msra.mxu0 %v1759
  %1784 = vmatprep.subr.bf16.mxu0 0
  %1785 = vmatpush1.bf16.msra.mxu0 0
  %1786 = vmatprep.subr.bf16.mxu0 0
  %1787 = vmatpush1.bf16.msra.mxu0 0
  %1788 = vmatprep.subr.bf16.mxu0 0
  %1789 = vmatpush1.bf16.msra.mxu0 0
  %1790 = vmatprep.subr.bf16.mxu0 0
  %1791 = vmatpush1.bf16.msra.mxu0 0
  %1792 = vmatprep.subr.bf16.mxu0 0
  %1793 = vmatpush1.bf16.msra.mxu0 0
  %1794 = vmatprep.subr.bf16.mxu0 0
  %1795 = vmatpush1.bf16.msra.mxu0 0
  %1796 = vmatprep.subr.bf16.mxu0 0
  %1797 = vmatpush1.bf16.msra.mxu0 0
  %1798 = vmatprep.subr.bf16.mxu0 0
  %1799 = vmatpush1.bf16.msra.mxu0 0
  %1800 = vmatprep.mubr.bf16.mxu0 0
  %1801 = vmatmul.mubr.bf16.gmra.mrb[0].mxu0 %v1696
  %v1802 = vpop.f32.mrb[0].mxu0
  %v1803 = vadd.f32 %v1718, %v1802
  %v1804 = vpop.f32.mrb[0].mxu0
  %v1805 = vpop.f32.mrb[0].mxu0
  %v1806 = vadd.f32 %v1718, %v1805
  %v1807 = vpop.f32.mrb[0].mxu0
  %1808 = vdwg.mxu0
  %v1809 = vld [vmem:[%s8] sm:$0xf]
  %v1810 = vld [vmem:[%s8 + $0x4] sm:$0xf]
  %v1811 = vld [vmem:[%s8 + $0x8] sm:$0xf]
  %v1812 = vld [vmem:[%s8 + $0xc] sm:$0xf]
  %v1817 = vunpack.c.l.b16 %v1809
  %v1818 = vunpack.c.l.b16 %v1810
  %v1819 = vunpack.c.l.b16 %v1811
  %v1820 = vunpack.c.l.b16 %v1812
  %v1821 = vpack.c.b16 %v1818, %v1817
  %v1822 = vpack.c.b16 %v1820, %v1819
  %vm1825 = vcmask 261120
  %v1827 = vsel %vm1825, 0, 0
  %1829 = vmatprep.subr.bf16.mxu0 0
  %1830 = vmatpush1.bf16.msra.mxu0 %v1821
  %1831 = vmatprep.subr.bf16.mxu0 0
  %1832 = vmatpush1.bf16.msra.mxu0 %v1822
  %1833 = vmatprep.subr.bf16.mxu0 0
  %1834 = vmatpush1.bf16.msra.mxu0 0
  %1835 = vmatprep.subr.bf16.mxu0 0
  %1836 = vmatpush1.bf16.msra.mxu0 0
  %1837 = vmatprep.subr.bf16.mxu0 0
  %1838 = vmatpush1.bf16.msra.mxu0 0
  %1839 = vmatprep.subr.bf16.mxu0 0
  %1840 = vmatpush1.bf16.msra.mxu0 0
  %1841 = vmatprep.subr.bf16.mxu0 0
  %1842 = vmatpush1.bf16.msra.mxu0 0
  %1843 = vmatprep.subr.bf16.mxu0 0
  %1844 = vmatpush1.bf16.msra.mxu0 0
  %1845 = vmatprep.subr.bf16.mxu0 0
  %1846 = vmatpush1.bf16.msra.mxu0 0
  %1847 = vmatprep.subr.bf16.mxu0 0
  %1848 = vmatpush1.bf16.msra.mxu0 0
  %1849 = vmatprep.subr.bf16.mxu0 0
  %1850 = vmatpush1.bf16.msra.mxu0 0
  %1851 = vmatprep.subr.bf16.mxu0 0
  %1852 = vmatpush1.bf16.msra.mxu0 0
  %1853 = vmatprep.subr.bf16.mxu0 0
  %1854 = vmatpush1.bf16.msra.mxu0 0
  %1855 = vmatprep.subr.bf16.mxu0 0
  %1856 = vmatpush1.bf16.msra.mxu0 0
  %1857 = vmatprep.subr.bf16.mxu0 0
  %1858 = vmatpush1.bf16.msra.mxu0 0
  %1859 = vmatprep.subr.bf16.mxu0 0
  %1860 = vmatpush1.bf16.msra.mxu0 0
  %1861 = vmatprep.mubr.bf16.mxu0 0
  %1862 = vmatmul.mubr.bf16.gmra.mrb[0].mxu0 %v1827
  %v1863 = vpop.f32.mrb[0].mxu0
  %v1864 = vadd.f32 0.0, %v1863
  %v1865 = vpop.f32.mrb[0].mxu0
  %v1866 = vpop.f32.mrb[0].mxu0
  %v1867 = vpop.f32.mrb[0].mxu0
  %1868 = vdwg.mxu0
  %v1869 = vadd.f32 %v1803, %v1864
  %v1870 = vxor.u32 %v1869, 2147483648
  %v1871 = vmul.f32 %v1870, 1.442695
  %v1872 = vpow.pop %v1871
  %v1873 = vadd.f32 %v1872, 1.0
  %v1874 = vrcp.pop %v1873
  %v1875 = vmul.f32 1.0, %v1874
  %v1876 = vtanh.pop %v1869
  %v1877 = vmul.f32 %v1875, 0.0
  %1879 = vrot.lane.b32.xlu0 %v1876, 64
  %v1880 = vpop.permute.xlu0 %1879
  %v1882 = vmul.f32 %v1875, %v1880
  %1884 = vrot.lane.b32.xlu0 %v1882, 32
  %v1885 = vpop.permute.xlu0 %1884
  %v1887 = vadd.f32 %v1877, %v1885
  %v1888 = vtanh.pop %v1887
  %1890 = vrot.lane.b32.xlu0 %v1888, 64
  %v1891 = vpop.permute.xlu0 %1890
  %v1893 = vmul.f32 %v1875, %v1891
  %1895 = vrot.lane.b32.xlu0 %v1893, 32
  %v1896 = vpop.permute.xlu0 %1895
  %vm1898 = vcmask 253952
  %1899 = vst.msk [vmem:[#allocation2] sm:$0x1] %vm1898, %v1896
  %v1900 = vpack.c.bf16 %v1893, %v1893
  %v1901 = vld [vmem:[%s8] sm:$0xf]
  %v1902 = vld [vmem:[%s8 + $0x4] sm:$0xf]
  %v1903 = vld [vmem:[%s8 + $0x8] sm:$0xf]
  %v1904 = vld [vmem:[%s8 + $0xc] sm:$0xf]
  %1906 = vrot.lane.b32.xlu0 %v1900, 32
  %v1907 = vpop.permute.xlu0 %1906
  %v1912 = vunpack.c.l.b16 %v1901
  %v1913 = vunpack.c.l.b16 %v1902
  %v1914 = vunpack.c.l.b16 %v1903
  %v1915 = vunpack.c.l.b16 %v1904
  %v1916 = vpack.c.b16 %v1913, %v1912
  %v1917 = vpack.c.b16 %v1915, %v1914
  %v1921 = vsel %vm1825, %v1907, 0
  %1923 = vmatprep.subr.bf16.mxu0 0
  %1924 = vmatpush1.bf16.msra.mxu0 %v1916
  %1925 = vmatprep.subr.bf16.mxu0 0
  %1926 = vmatpush1.bf16.msra.mxu0 %v1917
  %1927 = vmatprep.subr.bf16.mxu0 0
  %1928 = vmatpush1.bf16.msra.mxu0 0
  %1929 = vmatprep.subr.bf16.mxu0 0
  %1930 = vmatpush1.bf16.msra.mxu0 0
  %1931 = vmatprep.subr.bf16.mxu0 0
  %1932 = vmatpush1.bf16.msra.mxu0 0
  %1933 = vmatprep.subr.bf16.mxu0 0
  %1934 = vmatpush1.bf16.msra.mxu0 0
  %1935 = vmatprep.subr.bf16.mxu0 0
  %1936 = vmatpush1.bf16.msra.mxu0 0
  %1937 = vmatprep.subr.bf16.mxu0 0
  %1938 = vmatpush1.bf16.msra.mxu0 0
  %1939 = vmatprep.subr.bf16.mxu0 0
  %1940 = vmatpush1.bf16.msra.mxu0 0
  %1941 = vmatprep.subr.bf16.mxu0 0
  %1942 = vmatpush1.bf16.msra.mxu0 0
  %1943 = vmatprep.subr.bf16.mxu0 0
  %1944 = vmatpush1.bf16.msra.mxu0 0
  %1945 = vmatprep.subr.bf16.mxu0 0
  %1946 = vmatpush1.bf16.msra.mxu0 0
  %1947 = vmatprep.subr.bf16.mxu0 0
  %1948 = vmatpush1.bf16.msra.mxu0 0
  %1949 = vmatprep.subr.bf16.mxu0 0
  %1950 = vmatpush1.bf16.msra.mxu0 0
  %1951 = vmatprep.subr.bf16.mxu0 0
  %1952 = vmatpush1.bf16.msra.mxu0 0
  %1953 = vmatprep.subr.bf16.mxu0 0
  %1954 = vmatpush1.bf16.msra.mxu0 0
  %1955 = vmatprep.mubr.bf16.mxu0 0
  %1956 = vmatmul.mubr.bf16.gmra.mrb[0].mxu0 %v1921
  %v1957 = vpop.f32.mrb[0].mxu0
  %v1958 = vadd.f32 0.0, %v1957
  %v1959 = vpop.f32.mrb[0].mxu0
  %v1960 = vpop.f32.mrb[0].mxu0
  %v1961 = vpop.f32.mrb[0].mxu0
  %1962 = vdwg.mxu0
  %v1964 = vrot.slane %v1958, 7
  %v1966 = vadd.f32 %v1803, %v1964
  %v1967 = vxor.u32 %v1966, 2147483648
  %v1968 = vmul.f32 %v1967, 1.442695
  %v1969 = vpow.pop %v1968
  %v1970 = vadd.f32 %v1969, 1.0
  %v1971 = vrcp.pop %v1970
  %v1972 = vmul.f32 1.0, %v1971
  %v1973 = vtanh.pop %v1966
  %v1975 = vrot.slane %v1887, 7
  %v1977 = vmul.f32 %v1972, %v1975
  %1979 = vrot.lane.b32.xlu0 %v1973, 64
  %v1980 = vpop.permute.xlu0 %1979
  %v1982 = vmul.f32 %v1972, %v1980
  %1984 = vrot.lane.b32.xlu0 %v1982, 32
  %v1985 = vpop.permute.xlu0 %1984
  %v1987 = vadd.f32 %v1977, %v1985
  %v1988 = vtanh.pop %v1987
  %1990 = vrot.lane.b32.xlu0 %v1988, 64
  %v1991 = vpop.permute.xlu0 %1990
  %v1993 = vmul.f32 %v1972, %v1991
  %1995 = vrot.lane.b32.xlu0 %v1993, 32
  %v1996 = vpop.permute.xlu0 %1995
  %vm1998 = vcmask 254977
  %1999 = vst.msk [vmem:[#allocation2] sm:$0x2] %vm1998, %v1996
  %v2000 = vpack.c.bf16 %v1993, %v1993
  %v2001 = vld [vmem:[%s8] sm:$0xf]
  %v2002 = vld [vmem:[%s8 + $0x4] sm:$0xf]
  %v2003 = vld [vmem:[%s8 + $0x8] sm:$0xf]
  %v2004 = vld [vmem:[%s8 + $0xc] sm:$0xf]
  %v2006 = vshrl.u32 %v2000, 16
  %2008 = vrot.lane.b32.xlu0 %v2006, 32
  %v2009 = vpop.permute.xlu0 %2008
  %v2014 = vunpack.c.l.b16 %v2001
  %v2015 = vunpack.c.l.b16 %v2002
  %v2016 = vunpack.c.l.b16 %v2003
  %v2017 = vunpack.c.l.b16 %v2004
  %v2018 = vpack.c.b16 %v2015, %v2014
  %v2019 = vpack.c.b16 %v2017, %v2016
  %v2023 = vsel %vm1825, %v2009, 0
  %2025 = vmatprep.subr.bf16.mxu0 0
  %2026 = vmatpush1.bf16.msra.mxu0 %v2018
  %2027 = vmatprep.subr.bf16.mxu0 0
  %2028 = vmatpush1.bf16.msra.mxu0 %v2019
  %2029 = vmatprep.subr.bf16.mxu0 0
  %2030 = vmatpush1.bf16.msra.mxu0 0
  %2031 = vmatprep.subr.bf16.mxu0 0
  %2032 = vmatpush1.bf16.msra.mxu0 0
  %2033 = vmatprep.subr.bf16.mxu0 0
  %2034 = vmatpush1.bf16.msra.mxu0 0
  %2035 = vmatprep.subr.bf16.mxu0 0
  %2036 = vmatpush1.bf16.msra.mxu0 0
  %2037 = vmatprep.subr.bf16.mxu0 0
  %2038 = vmatpush1.bf16.msra.mxu0 0
  %2039 = vmatprep.subr.bf16.mxu0 0
  %2040 = vmatpush1.bf16.msra.mxu0 0
  %2041 = vmatprep.subr.bf16.mxu0 0
  %2042 = vmatpush1.bf16.msra.mxu0 0
  %2043 = vmatprep.subr.bf16.mxu0 0
  %2044 = vmatpush1.bf16.msra.mxu0 0
  %2045 = vmatprep.subr.bf16.mxu0 0
  %2046 = vmatpush1.bf16.msra.mxu0 0
  %2047 = vmatprep.subr.bf16.mxu0 0
  %2048 = vmatpush1.bf16.msra.mxu0 0
  %2049 = vmatprep.subr.bf16.mxu0 0
  %2050 = vmatpush1.bf16.msra.mxu0 0
  %2051 = vmatprep.subr.bf16.mxu0 0
  %2052 = vmatpush1.bf16.msra.mxu0 0
  %2053 = vmatprep.subr.bf16.mxu0 0
  %2054 = vmatpush1.bf16.msra.mxu0 0
  %2055 = vmatprep.subr.bf16.mxu0 0
  %2056 = vmatpush1.bf16.msra.mxu0 0
  %2057 = vmatprep.mubr.bf16.mxu0 0
  %2058 = vmatmul.mubr.bf16.gmra.mrb[0].mxu0 %v2023
  %v2059 = vpop.f32.mrb[0].mxu0
  %v2060 = vadd.f32 0.0, %v2059
  %v2061 = vpop.f32.mrb[0].mxu0
  %v2062 = vpop.f32.mrb[0].mxu0
  %v2063 = vpop.f32.mrb[0].mxu0
  %2064 = vdwg.mxu0
  %v2066 = vrot.slane %v2060, 6
  %v2068 = vadd.f32 %v1803, %v2066
  %v2069 = vxor.u32 %v2068, 2147483648
  %v2070 = vmul.f32 %v2069, 1.442695
  %v2071 = vpow.pop %v2070
  %v2072 = vadd.f32 %v2071, 1.0
  %v2073 = vrcp.pop %v2072
  %v2074 = vmul.f32 1.0, %v2073
  %v2075 = vtanh.pop %v2068
  %v2077 = vrot.slane %v1987, 7
  %v2079 = vmul.f32 %v2074, %v2077
  %2081 = vrot.lane.b32.xlu0 %v2075, 64
  %v2082 = vpop.permute.xlu0 %2081
  %v2084 = vmul.f32 %v2074, %v2082
  %2086 = vrot.lane.b32.xlu0 %v2084, 32
  %v2087 = vpop.permute.xlu0 %2086
  %v2089 = vadd.f32 %v2079, %v2087
  %v2090 = vtanh.pop %v2089
  %2092 = vrot.lane.b32.xlu0 %v2090, 64
  %v2093 = vpop.permute.xlu0 %2092
  %v2095 = vmul.f32 %v2074, %v2093
  %2097 = vrot.lane.b32.xlu0 %v2095, 32
  %v2098 = vpop.permute.xlu0 %2097
  %vm2100 = vcmask 256002
  %2101 = vst.msk [vmem:[#allocation2] sm:$0x4] %vm2100, %v2098
  %v2102 = vpack.c.bf16 %v2095, %v2095
  %v2103 = vld [vmem:[%s8] sm:$0xf]
  %v2104 = vld [vmem:[%s8 + $0x4] sm:$0xf]
  %v2105 = vld [vmem:[%s8 + $0x8] sm:$0xf]
  %v2106 = vld [vmem:[%s8 + $0xc] sm:$0xf]
  %v2108 = vrot.slane %v2102, 1
  %2109 = vrot.lane.b32.xlu0 %v2108, 32
  %v2110 = vpop.permute.xlu0 %2109
  %v2115 = vunpack.c.l.b16 %v2103
  %v2116 = vunpack.c.l.b16 %v2104
  %v2117 = vunpack.c.l.b16 %v2105
  %v2118 = vunpack.c.l.b16 %v2106
  %v2119 = vpack.c.b16 %v2116, %v2115
  %v2120 = vpack.c.b16 %v2118, %v2117
  %v2124 = vsel %vm1825, %v2110, 0
  %2126 = vmatprep.subr.bf16.mxu0 0
  %2127 = vmatpush1.bf16.msra.mxu0 %v2119
  %2128 = vmatprep.subr.bf16.mxu0 0
  %2129 = vmatpush1.bf16.msra.mxu0 %v2120
  %2130 = vmatprep.subr.bf16.mxu0 0
  %2131 = vmatpush1.bf16.msra.mxu0 0
  %2132 = vmatprep.subr.bf16.mxu0 0
  %2133 = vmatpush1.bf16.msra.mxu0 0
  %2134 = vmatprep.subr.bf16.mxu0 0
  %2135 = vmatpush1.bf16.msra.mxu0 0
  %2136 = vmatprep.subr.bf16.mxu0 0
  %2137 = vmatpush1.bf16.msra.mxu0 0
  %2138 = vmatprep.subr.bf16.mxu0 0
  %2139 = vmatpush1.bf16.msra.mxu0 0
  %2140 = vmatprep.subr.bf16.mxu0 0
  %2141 = vmatpush1.bf16.msra.mxu0 0
  %2142 = vmatprep.subr.bf16.mxu0 0
  %2143 = vmatpush1.bf16.msra.mxu0 0
  %2144 = vmatprep.subr.bf16.mxu0 0
  %2145 = vmatpush1.bf16.msra.mxu0 0
  %2146 = vmatprep.subr.bf16.mxu0 0
  %2147 = vmatpush1.bf16.msra.mxu0 0
  %2148 = vmatprep.subr.bf16.mxu0 0
  %2149 = vmatpush1.bf16.msra.mxu0 0
  %2150 = vmatprep.subr.bf16.mxu0 0
  %2151 = vmatpush1.bf16.msra.mxu0 0
  %2152 = vmatprep.subr.bf16.mxu0 0
  %2153 = vmatpush1.bf16.msra.mxu0 0
  %2154 = vmatprep.subr.bf16.mxu0 0
  %2155 = vmatpush1.bf16.msra.mxu0 0
  %2156 = vmatprep.subr.bf16.mxu0 0
  %2157 = vmatpush1.bf16.msra.mxu0 0
  %2158 = vmatprep.mubr.bf16.mxu0 0
  %2159 = vmatmul.mubr.bf16.gmra.mrb[0].mxu0 %v2124
  %v2160 = vpop.f32.mrb[0].mxu0
  %v2161 = vadd.f32 0.0, %v2160
  %v2162 = vpop.f32.mrb[0].mxu0
  %v2163 = vpop.f32.mrb[0].mxu0
  %v2164 = vpop.f32.mrb[0].mxu0
  %2165 = vdwg.mxu0
  %v2167 = vrot.slane %v2161, 5
  %v2169 = vadd.f32 %v1803, %v2167
  %v2170 = vxor.u32 %v2169, 2147483648
  %v2171 = vmul.f32 %v2170, 1.442695
  %v2172 = vpow.pop %v2171
  %v2173 = vadd.f32 %v2172, 1.0
  %v2174 = vrcp.pop %v2173
  %v2175 = vmul.f32 1.0, %v2174
  %v2176 = vtanh.pop %v2169
  %v2178 = vrot.slane %v2089, 7
  %v2180 = vmul.f32 %v2175, %v2178
  %2182 = vrot.lane.b32.xlu0 %v2176, 64
  %v2183 = vpop.permute.xlu0 %2182
  %v2185 = vmul.f32 %v2175, %v2183
  %2187 = vrot.lane.b32.xlu0 %v2185, 32
  %v2188 = vpop.permute.xlu0 %2187
  %v2190 = vadd.f32 %v2180, %v2188
  %v2191 = vtanh.pop %v2190
  %2193 = vrot.lane.b32.xlu0 %v2191, 64
  %v2194 = vpop.permute.xlu0 %2193
  %v2196 = vmul.f32 %v2175, %v2194
  %2198 = vrot.lane.b32.xlu0 %v2196, 32
  %v2199 = vpop.permute.xlu0 %2198
  %vm2201 = vcmask 257027
  %2202 = vst.msk [vmem:[#allocation2] sm:$0x8] %vm2201, %v2199
  %v2203 = vpack.c.bf16 %v2196, %v2196
  %v2204 = vld [vmem:[%s8] sm:$0xf]
  %v2205 = vld [vmem:[%s8 + $0x4] sm:$0xf]
  %v2206 = vld [vmem:[%s8 + $0x8] sm:$0xf]
  %v2207 = vld [vmem:[%s8 + $0xc] sm:$0xf]
  %v2209 = vshrl.u32 %v2203, 16
  %v2211 = vrot.slane %v2209, 1
  %2212 = vrot.lane.b32.xlu0 %v2211, 32
  %v2213 = vpop.permute.xlu0 %2212
  %v2218 = vunpack.c.l.b16 %v2204
  %v2219 = vunpack.c.l.b16 %v2205
  %v2220 = vunpack.c.l.b16 %v2206
  %v2221 = vunpack.c.l.b16 %v2207
  %v2222 = vpack.c.b16 %v2219, %v2218
  %v2223 = vpack.c.b16 %v2221, %v2220
  %v2227 = vsel %vm1825, %v2213, 0
  %2229 = vmatprep.subr.bf16.mxu0 0
  %2230 = vmatpush1.bf16.msra.mxu0 %v2222
  %2231 = vmatprep.subr.bf16.mxu0 0
  %2232 = vmatpush1.bf16.msra.mxu0 %v2223
  %2233 = vmatprep.subr.bf16.mxu0 0
  %2234 = vmatpush1.bf16.msra.mxu0 0
  %2235 = vmatprep.subr.bf16.mxu0 0
  %2236 = vmatpush1.bf16.msra.mxu0 0
  %2237 = vmatprep.subr.bf16.mxu0 0
  %2238 = vmatpush1.bf16.msra.mxu0 0
  %2239 = vmatprep.subr.bf16.mxu0 0
  %2240 = vmatpush1.bf16.msra.mxu0 0
  %2241 = vmatprep.subr.bf16.mxu0 0
  %2242 = vmatpush1.bf16.msra.mxu0 0
  %2243 = vmatprep.subr.bf16.mxu0 0
  %2244 = vmatpush1.bf16.msra.mxu0 0
  %2245 = vmatprep.subr.bf16.mxu0 0
  %2246 = vmatpush1.bf16.msra.mxu0 0
  %2247 = vmatprep.subr.bf16.mxu0 0
  %2248 = vmatpush1.bf16.msra.mxu0 0
  %2249 = vmatprep.subr.bf16.mxu0 0
  %2250 = vmatpush1.bf16.msra.mxu0 0
  %2251 = vmatprep.subr.bf16.mxu0 0
  %2252 = vmatpush1.bf16.msra.mxu0 0
  %2253 = vmatprep.subr.bf16.mxu0 0
  %2254 = vmatpush1.bf16.msra.mxu0 0
  %2255 = vmatprep.subr.bf16.mxu0 0
  %2256 = vmatpush1.bf16.msra.mxu0 0
  %2257 = vmatprep.subr.bf16.mxu0 0
  %2258 = vmatpush1.bf16.msra.mxu0 0
  %2259 = vmatprep.subr.bf16.mxu0 0
  %2260 = vmatpush1.bf16.msra.mxu0 0
  %2261 = vmatprep.mubr.bf16.mxu0 0
  %2262 = vmatmul.mubr.bf16.gmra.mrb[0].mxu0 %v2227
  %v2263 = vpop.f32.mrb[0].mxu0
  %v2264 = vadd.f32 0.0, %v2263
  %v2265 = vpop.f32.mrb[0].mxu0
  %v2266 = vpop.f32.mrb[0].mxu0
  %v2267 = vpop.f32.mrb[0].mxu0
  %2268 = vdwg.mxu0
  %v2270 = vrot.slane %v2264, 4
  %v2272 = vadd.f32 %v1803, %v2270
  %v2273 = vxor.u32 %v2272, 2147483648
  %v2274 = vmul.f32 %v2273, 1.442695
  %v2275 = vpow.pop %v2274
  %v2276 = vadd.f32 %v2275, 1.0
  %v2277 = vrcp.pop %v2276
  %v2278 = vmul.f32 1.0, %v2277
  %v2279 = vtanh.pop %v2272
  %v2281 = vrot.slane %v2190, 7
  %v2283 = vmul.f32 %v2278, %v2281
  %2285 = vrot.lane.b32.xlu0 %v2279, 64
  %v2286 = vpop.permute.xlu0 %2285
  %v2288 = vmul.f32 %v2278, %v2286
  %2290 = vrot.lane.b32.xlu0 %v2288, 32
  %v2291 = vpop.permute.xlu0 %2290
  %v2293 = vadd.f32 %v2283, %v2291
  %v2294 = vtanh.pop %v2293
  %2296 = vrot.lane.b32.xlu0 %v2294, 64
  %v2297 = vpop.permute.xlu0 %2296
  %v2299 = vmul.f32 %v2278, %v2297
  %2301 = vrot.lane.b32.xlu0 %v2299, 32
  %v2302 = vpop.permute.xlu0 %2301
  %vm2304 = vcmask 258052
  %2305 = vst.msk [vmem:[#allocation2] sm:$0x10] %vm2304, %v2302
  %v2306 = vpack.c.bf16 %v2299, %v2299
  %v2307 = vld [vmem:[%s8] sm:$0xf]
  %v2308 = vld [vmem:[%s8 + $0x4] sm:$0xf]
  %v2309 = vld [vmem:[%s8 + $0x8] sm:$0xf]
  %v2310 = vld [vmem:[%s8 + $0xc] sm:$0xf]
  %v2312 = vrot.slane %v2306, 2
  %2313 = vrot.lane.b32.xlu0 %v2312, 32
  %v2314 = vpop.permute.xlu0 %2313
  %v2319 = vunpack.c.l.b16 %v2307
  %v2320 = vunpack.c.l.b16 %v2308
  %v2321 = vunpack.c.l.b16 %v2309
  %v2322 = vunpack.c.l.b16 %v2310
  %v2323 = vpack.c.b16 %v2320, %v2319
  %v2324 = vpack.c.b16 %v2322, %v2321
  %v2328 = vsel %vm1825, %v2314, 0
  %2330 = vmatprep.subr.bf16.mxu0 0
  %2331 = vmatpush1.bf16.msra.mxu0 %v2323
  %2332 = vmatprep.subr.bf16.mxu0 0
  %2333 = vmatpush1.bf16.msra.mxu0 %v2324
  %2334 = vmatprep.subr.bf16.mxu0 0
  %2335 = vmatpush1.bf16.msra.mxu0 0
  %2336 = vmatprep.subr.bf16.mxu0 0
  %2337 = vmatpush1.bf16.msra.mxu0 0
  %2338 = vmatprep.subr.bf16.mxu0 0
  %2339 = vmatpush1.bf16.msra.mxu0 0
  %2340 = vmatprep.subr.bf16.mxu0 0
  %2341 = vmatpush1.bf16.msra.mxu0 0
  %2342 = vmatprep.subr.bf16.mxu0 0
  %2343 = vmatpush1.bf16.msra.mxu0 0
  %2344 = vmatprep.subr.bf16.mxu0 0
  %2345 = vmatpush1.bf16.msra.mxu0 0
  %2346 = vmatprep.subr.bf16.mxu0 0
  %2347 = vmatpush1.bf16.msra.mxu0 0
  %2348 = vmatprep.subr.bf16.mxu0 0
  %2349 = vmatpush1.bf16.msra.mxu0 0
  %2350 = vmatprep.subr.bf16.mxu0 0
  %2351 = vmatpush1.bf16.msra.mxu0 0
  %2352 = vmatprep.subr.bf16.mxu0 0
  %2353 = vmatpush1.bf16.msra.mxu0 0
  %2354 = vmatprep.subr.bf16.mxu0 0
  %2355 = vmatpush1.bf16.msra.mxu0 0
  %2356 = vmatprep.subr.bf16.mxu0 0
  %2357 = vmatpush1.bf16.msra.mxu0 0
  %2358 = vmatprep.subr.bf16.mxu0 0
  %2359 = vmatpush1.bf16.msra.mxu0 0
  %2360 = vmatprep.subr.bf16.mxu0 0
  %2361 = vmatpush1.bf16.msra.mxu0 0
  %2362 = vmatprep.mubr.bf16.mxu0 0
  %2363 = vmatmul.mubr.bf16.gmra.mrb[0].mxu0 %v2328
  %v2364 = vpop.f32.mrb[0].mxu0
  %v2365 = vadd.f32 0.0, %v2364
  %v2366 = vpop.f32.mrb[0].mxu0
  %v2367 = vpop.f32.mrb[0].mxu0
  %v2368 = vpop.f32.mrb[0].mxu0
  %2369 = vdwg.mxu0
  %v2371 = vrot.slane %v2365, 3
  %v2373 = vadd.f32 %v1803, %v2371
  %v2374 = vxor.u32 %v2373, 2147483648
  %v2375 = vmul.f32 %v2374, 1.442695
  %v2376 = vpow.pop %v2375
  %v2377 = vadd.f32 %v2376, 1.0
  %v2378 = vrcp.pop %v2377
  %v2379 = vmul.f32 1.0, %v2378
  %v2380 = vtanh.pop %v2373
  %v2382 = vrot.slane %v2293, 7
  %v2384 = vmul.f32 %v2379, %v2382
  %2386 = vrot.lane.b32.xlu0 %v2380, 64
  %v2387 = vpop.permute.xlu0 %2386
  %v2389 = vmul.f32 %v2379, %v2387
  %2391 = vrot.lane.b32.xlu0 %v2389, 32
  %v2392 = vpop.permute.xlu0 %2391
  %v2394 = vadd.f32 %v2384, %v2392
  %v2395 = vtanh.pop %v2394
  %2397 = vrot.lane.b32.xlu0 %v2395, 64
  %v2398 = vpop.permute.xlu0 %2397
  %v2400 = vmul.f32 %v2379, %v2398
  %2402 = vrot.lane.b32.xlu0 %v2400, 32
  %v2403 = vpop.permute.xlu0 %2402
  %vm2405 = vcmask 259077
  %2406 = vst.msk [vmem:[#allocation2] sm:$0x20] %vm2405, %v2403
  %v2407 = vpack.c.bf16 %v2400, %v2400
  %v2408 = vld [vmem:[%s8] sm:$0xf]
  %v2409 = vld [vmem:[%s8 + $0x4] sm:$0xf]
  %v2410 = vld [vmem:[%s8 + $0x8] sm:$0xf]
  %v2411 = vld [vmem:[%s8 + $0xc] sm:$0xf]
  %v2413 = vshrl.u32 %v2407, 16
  %v2415 = vrot.slane %v2413, 2
  %2416 = vrot.lane.b32.xlu0 %v2415, 32
  %v2417 = vpop.permute.xlu0 %2416
  %v2422 = vunpack.c.l.b16 %v2408
  %v2423 = vunpack.c.l.b16 %v2409
  %v2424 = vunpack.c.l.b16 %v2410
  %v2425 = vunpack.c.l.b16 %v2411
  %v2426 = vpack.c.b16 %v2423, %v2422
  %v2427 = vpack.c.b16 %v2425, %v2424
  %v2431 = vsel %vm1825, %v2417, 0
  %2433 = vmatprep.subr.bf16.mxu0 0
  %2434 = vmatpush1.bf16.msra.mxu0 %v2426
  %2435 = vmatprep.subr.bf16.mxu0 0
  %2436 = vmatpush1.bf16.msra.mxu0 %v2427
  %2437 = vmatprep.subr.bf16.mxu0 0
  %2438 = vmatpush1.bf16.msra.mxu0 0
  %2439 = vmatprep.subr.bf16.mxu0 0
  %2440 = vmatpush1.bf16.msra.mxu0 0
  %2441 = vmatprep.subr.bf16.mxu0 0
  %2442 = vmatpush1.bf16.msra.mxu0 0
  %2443 = vmatprep.subr.bf16.mxu0 0
  %2444 = vmatpush1.bf16.msra.mxu0 0
  %2445 = vmatprep.subr.bf16.mxu0 0
  %2446 = vmatpush1.bf16.msra.mxu0 0
  %2447 = vmatprep.subr.bf16.mxu0 0
  %2448 = vmatpush1.bf16.msra.mxu0 0
  %2449 = vmatprep.subr.bf16.mxu0 0
  %2450 = vmatpush1.bf16.msra.mxu0 0
  %2451 = vmatprep.subr.bf16.mxu0 0
  %2452 = vmatpush1.bf16.msra.mxu0 0
  %2453 = vmatprep.subr.bf16.mxu0 0
  %2454 = vmatpush1.bf16.msra.mxu0 0
  %2455 = vmatprep.subr.bf16.mxu0 0
  %2456 = vmatpush1.bf16.msra.mxu0 0
  %2457 = vmatprep.subr.bf16.mxu0 0
  %2458 = vmatpush1.bf16.msra.mxu0 0
  %2459 = vmatprep.subr.bf16.mxu0 0
  %2460 = vmatpush1.bf16.msra.mxu0 0
  %2461 = vmatprep.subr.bf16.mxu0 0
  %2462 = vmatpush1.bf16.msra.mxu0 0
  %2463 = vmatprep.subr.bf16.mxu0 0
  %2464 = vmatpush1.bf16.msra.mxu0 0
  %2465 = vmatprep.mubr.bf16.mxu0 0
  %2466 = vmatmul.mubr.bf16.gmra.mrb[0].mxu0 %v2431
  %v2467 = vpop.f32.mrb[0].mxu0
  %v2468 = vadd.f32 0.0, %v2467
  %v2469 = vpop.f32.mrb[0].mxu0
  %v2470 = vpop.f32.mrb[0].mxu0
  %v2471 = vpop.f32.mrb[0].mxu0
  %2472 = vdwg.mxu0
  %v2474 = vrot.slane %v2468, 2
  %v2476 = vadd.f32 %v1803, %v2474
  %v2477 = vxor.u32 %v2476, 2147483648
  %v2478 = vmul.f32 %v2477, 1.442695
  %v2479 = vpow.pop %v2478
  %v2480 = vadd.f32 %v2479, 1.0
  %v2481 = vrcp.pop %v2480
  %v2482 = vmul.f32 1.0, %v2481
  %v2483 = vtanh.pop %v2476
  %v2485 = vrot.slane %v2394, 7
  %v2487 = vmul.f32 %v2482, %v2485
  %2489 = vrot.lane.b32.xlu0 %v2483, 64
  %v2490 = vpop.permute.xlu0 %2489
  %v2492 = vmul.f32 %v2482, %v2490
  %2494 = vrot.lane.b32.xlu0 %v2492, 32
  %v2495 = vpop.permute.xlu0 %2494
  %v2497 = vadd.f32 %v2487, %v2495
  %v2498 = vtanh.pop %v2497
  %2500 = vrot.lane.b32.xlu0 %v2498, 64
  %v2501 = vpop.permute.xlu0 %2500
  %v2503 = vmul.f32 %v2482, %v2501
  %2505 = vrot.lane.b32.xlu0 %v2503, 32
  %v2506 = vpop.permute.xlu0 %2505
  %vm2508 = vcmask 260102
  %2509 = vst.msk [vmem:[#allocation2] sm:$0x40] %vm2508, %v2506
  %v2510 = vpack.c.bf16 %v2503, %v2503
  %v2511 = vld [vmem:[%s8] sm:$0xf]
  %v2512 = vld [vmem:[%s8 + $0x4] sm:$0xf]
  %v2513 = vld [vmem:[%s8 + $0x8] sm:$0xf]
  %v2514 = vld [vmem:[%s8 + $0xc] sm:$0xf]
  %v2516 = vrot.slane %v2510, 3
  %2517 = vrot.lane.b32.xlu0 %v2516, 32
  %v2518 = vpop.permute.xlu0 %2517
  %v2523 = vunpack.c.l.b16 %v2511
  %v2524 = vunpack.c.l.b16 %v2512
  %v2525 = vunpack.c.l.b16 %v2513
  %v2526 = vunpack.c.l.b16 %v2514
  %v2527 = vpack.c.b16 %v2524, %v2523
  %v2528 = vpack.c.b16 %v2526, %v2525
  %v2532 = vsel %vm1825, %v2518, 0
  %2534 = vmatprep.subr.bf16.mxu0 0
  %2535 = vmatpush1.bf16.msra.mxu0 %v2527
  %2536 = vmatprep.subr.bf16.mxu0 0
  %2537 = vmatpush1.bf16.msra.mxu0 %v2528
  %2538 = vmatprep.subr.bf16.mxu0 0
  %2539 = vmatpush1.bf16.msra.mxu0 0
  %2540 = vmatprep.subr.bf16.mxu0 0
  %2541 = vmatpush1.bf16.msra.mxu0 0
  %2542 = vmatprep.subr.bf16.mxu0 0
  %2543 = vmatpush1.bf16.msra.mxu0 0
  %2544 = vmatprep.subr.bf16.mxu0 0
  %2545 = vmatpush1.bf16.msra.mxu0 0
  %2546 = vmatprep.subr.bf16.mxu0 0
  %2547 = vmatpush1.bf16.msra.mxu0 0
  %2548 = vmatprep.subr.bf16.mxu0 0
  %2549 = vmatpush1.bf16.msra.mxu0 0
  %2550 = vmatprep.subr.bf16.mxu0 0
  %2551 = vmatpush1.bf16.msra.mxu0 0
  %2552 = vmatprep.subr.bf16.mxu0 0
  %2553 = vmatpush1.bf16.msra.mxu0 0
  %2554 = vmatprep.subr.bf16.mxu0 0
  %2555 = vmatpush1.bf16.msra.mxu0 0
  %2556 = vmatprep.subr.bf16.mxu0 0
  %2557 = vmatpush1.bf16.msra.mxu0 0
  %2558 = vmatprep.subr.bf16.mxu0 0
  %2559 = vmatpush1.bf16.msra.mxu0 0
  %2560 = vmatprep.subr.bf16.mxu0 0
  %2561 = vmatpush1.bf16.msra.mxu0 0
  %2562 = vmatprep.subr.bf16.mxu0 0
  %2563 = vmatpush1.bf16.msra.mxu0 0
  %2564 = vmatprep.subr.bf16.mxu0 0
  %2565 = vmatpush1.bf16.msra.mxu0 0
  %2566 = vmatprep.mubr.bf16.mxu0 0
  %2567 = vmatmul.mubr.bf16.gmra.mrb[0].mxu0 %v2532
  %v2568 = vpop.f32.mrb[0].mxu0
  %v2569 = vadd.f32 0.0, %v2568
  %v2570 = vpop.f32.mrb[0].mxu0
  %v2571 = vpop.f32.mrb[0].mxu0
  %v2572 = vpop.f32.mrb[0].mxu0
  %2573 = vdwg.mxu0
  %v2575 = vrot.slane %v2569, 1
  %v2577 = vadd.f32 %v1803, %v2575
  %v2578 = vxor.u32 %v2577, 2147483648
  %v2579 = vmul.f32 %v2578, 1.442695
  %v2580 = vpow.pop %v2579
  %v2581 = vadd.f32 %v2580, 1.0
  %v2582 = vrcp.pop %v2581
  %v2583 = vmul.f32 1.0, %v2582
  %v2584 = vtanh.pop %v2577
  %v2586 = vrot.slane %v2497, 7
  %v2588 = vmul.f32 %v2583, %v2586
  %2590 = vrot.lane.b32.xlu0 %v2584, 64
  %v2591 = vpop.permute.xlu0 %2590
  %v2593 = vmul.f32 %v2583, %v2591
  %2595 = vrot.lane.b32.xlu0 %v2593, 32
  %v2596 = vpop.permute.xlu0 %2595
  %v2598 = vadd.f32 %v2588, %v2596
  %v2599 = vtanh.pop %v2598
  %2601 = vrot.lane.b32.xlu0 %v2599, 64
  %v2602 = vpop.permute.xlu0 %2601
  %v2604 = vmul.f32 %v2583, %v2602
  %2606 = vrot.lane.b32.xlu0 %v2604, 32
  %v2607 = vpop.permute.xlu0 %2606
  %vm2609 = vcmask 261127
  %2610 = vst.msk [vmem:[#allocation2] sm:$0x80] %vm2609, %v2607
  %v2611 = vpack.c.bf16 %v2604, %v2604
  %v2612 = vld [vmem:[%s8] sm:$0xf]
  %v2613 = vld [vmem:[%s8 + $0x4] sm:$0xf]
  %v2614 = vld [vmem:[%s8 + $0x8] sm:$0xf]
  %v2615 = vld [vmem:[%s8 + $0xc] sm:$0xf]
  %v2617 = vshrl.u32 %v2611, 16
  %v2619 = vrot.slane %v2617, 3
  %2620 = vrot.lane.b32.xlu0 %v2619, 32
  %v2621 = vpop.permute.xlu0 %2620
  %v2626 = vunpack.c.l.b16 %v2612
  %v2627 = vunpack.c.l.b16 %v2613
  %v2628 = vunpack.c.l.b16 %v2614
  %v2629 = vunpack.c.l.b16 %v2615
  %v2630 = vpack.c.b16 %v2627, %v2626
  %v2631 = vpack.c.b16 %v2629, %v2628
  %v2635 = vsel %vm1825, %v2621, 0
  %2637 = vmatprep.subr.bf16.mxu0 0
  %2638 = vmatpush1.bf16.msra.mxu0 %v2630
  %2639 = vmatprep.subr.bf16.mxu0 0
  %2640 = vmatpush1.bf16.msra.mxu0 %v2631
  %2641 = vmatprep.subr.bf16.mxu0 0
  %2642 = vmatpush1.bf16.msra.mxu0 0
  %2643 = vmatprep.subr.bf16.mxu0 0
  %2644 = vmatpush1.bf16.msra.mxu0 0
  %2645 = vmatprep.subr.bf16.mxu0 0
  %2646 = vmatpush1.bf16.msra.mxu0 0
  %2647 = vmatprep.subr.bf16.mxu0 0
  %2648 = vmatpush1.bf16.msra.mxu0 0
  %2649 = vmatprep.subr.bf16.mxu0 0
  %2650 = vmatpush1.bf16.msra.mxu0 0
  %2651 = vmatprep.subr.bf16.mxu0 0
  %2652 = vmatpush1.bf16.msra.mxu0 0
  %2653 = vmatprep.subr.bf16.mxu0 0
  %2654 = vmatpush1.bf16.msra.mxu0 0
  %2655 = vmatprep.subr.bf16.mxu0 0
  %2656 = vmatpush1.bf16.msra.mxu0 0
  %2657 = vmatprep.subr.bf16.mxu0 0
  %2658 = vmatpush1.bf16.msra.mxu0 0
  %2659 = vmatprep.subr.bf16.mxu0 0
  %2660 = vmatpush1.bf16.msra.mxu0 0
  %2661 = vmatprep.subr.bf16.mxu0 0
  %2662 = vmatpush1.bf16.msra.mxu0 0
  %2663 = vmatprep.subr.bf16.mxu0 0
  %2664 = vmatpush1.bf16.msra.mxu0 0
  %2665 = vmatprep.subr.bf16.mxu0 0
  %2666 = vmatpush1.bf16.msra.mxu0 0
  %2667 = vmatprep.subr.bf16.mxu0 0
  %2668 = vmatpush1.bf16.msra.mxu0 0
  %2669 = vmatprep.mubr.bf16.mxu0 0
  %2670 = vmatmul.mubr.bf16.gmra.mrb[0].mxu0 %v2635
  %v2671 = vpop.f32.mrb[0].mxu0
  %v2672 = vadd.f32 0.0, %v2671
  %v2673 = vpop.f32.mrb[0].mxu0
  %v2674 = vpop.f32.mrb[0].mxu0
  %v2675 = vpop.f32.mrb[0].mxu0
  %2676 = vdwg.mxu0
  %v2677 = vadd.f32 %v1806, %v2672
  %v2678 = vxor.u32 %v2677, 2147483648
  %v2679 = vmul.f32 %v2678, 1.442695
  %v2680 = vpow.pop %v2679
  %v2681 = vadd.f32 %v2680, 1.0
  %v2682 = vrcp.pop %v2681
  %v2683 = vmul.f32 1.0, %v2682
  %v2684 = vtanh.pop %v2677
  %v2686 = vrot.slane %v2598, 7
  %v2688 = vmul.f32 %v2683, %v2686
  %2690 = vrot.lane.b32.xlu0 %v2684, 64
  %v2691 = vpop.permute.xlu0 %2690
  %v2693 = vmul.f32 %v2683, %v2691
  %2695 = vrot.lane.b32.xlu0 %v2693, 32
  %v2696 = vpop.permute.xlu0 %2695
  %v2698 = vadd.f32 %v2688, %v2696
  %v2699 = vtanh.pop %v2698
  %2701 = vrot.lane.b32.xlu0 %v2699, 64
  %v2702 = vpop.permute.xlu0 %2701
  %v2704 = vmul.f32 %v2683, %v2702
  %2706 = vrot.lane.b32.xlu0 %v2704, 32
  %v2707 = vpop.permute.xlu0 %2706
  %2709 = vst.msk [vmem:[#allocation2 + $0x8] sm:$0x1] %vm1898, %v2707
  %v2710 = vld [vmem:[#allocation2] sm:$0xff]
  %v2711 = vld [vmem:[#allocation2 + $0x8] sm:$0x1]
  %v2712 = vpack.c.bf16 %v2711, %v2710
  %v2713 = vld [vmem:[%s10] sm:$0xf]
  %v2714 = vld [vmem:[%s10 + $0x4] sm:$0xf]
  %v2715 = vld [vmem:[%s10 + $0x8] sm:$0xf]
  %v2716 = vld [vmem:[%s10 + $0xc] sm:$0xf]
  %v2717 = vld [vmem:[%s12] sm:$0x1]
  %v2719 = vlaneseq
  %v2720 = vshrl.u32 %v2719, 7
  %v2721 = vsub.s32 0, %v2720
  %v2722 = vrot.slane %v2717, %v2721
  %v2728 = vunpack.c.l.b16 %v2713
  %v2729 = vunpack.c.l.b16 %v2714
  %v2730 = vunpack.c.l.b16 %v2715
  %v2731 = vunpack.c.l.b16 %v2716
  %v2732 = vpack.c.b16 %v2729, %v2728
  %v2733 = vpack.c.b16 %v2731, %v2730
  %v2737 = vsel %vm1825, %v2712, 0
  %2739 = vmatprep.subr.bf16.mxu0 0
  %2740 = vmatpush1.bf16.msra.mxu0 %v2732
  %2741 = vmatprep.subr.bf16.mxu0 0
  %2742 = vmatpush1.bf16.msra.mxu0 %v2733
  %2743 = vmatprep.subr.bf16.mxu0 0
  %2744 = vmatpush1.bf16.msra.mxu0 0
  %2745 = vmatprep.subr.bf16.mxu0 0
  %2746 = vmatpush1.bf16.msra.mxu0 0
  %2747 = vmatprep.subr.bf16.mxu0 0
  %2748 = vmatpush1.bf16.msra.mxu0 0
  %2749 = vmatprep.subr.bf16.mxu0 0
  %2750 = vmatpush1.bf16.msra.mxu0 0
  %2751 = vmatprep.subr.bf16.mxu0 0
  %2752 = vmatpush1.bf16.msra.mxu0 0
  %2753 = vmatprep.subr.bf16.mxu0 0
  %2754 = vmatpush1.bf16.msra.mxu0 0
  %2755 = vmatprep.subr.bf16.mxu0 0
  %2756 = vmatpush1.bf16.msra.mxu0 0
  %2757 = vmatprep.subr.bf16.mxu0 0
  %2758 = vmatpush1.bf16.msra.mxu0 0
  %2759 = vmatprep.subr.bf16.mxu0 0
  %2760 = vmatpush1.bf16.msra.mxu0 0
  %2761 = vmatprep.subr.bf16.mxu0 0
  %2762 = vmatpush1.bf16.msra.mxu0 0
  %2763 = vmatprep.subr.bf16.mxu0 0
  %2764 = vmatpush1.bf16.msra.mxu0 0
  %2765 = vmatprep.subr.bf16.mxu0 0
  %2766 = vmatpush1.bf16.msra.mxu0 0
  %2767 = vmatprep.subr.bf16.mxu0 0
  %2768 = vmatpush1.bf16.msra.mxu0 0
  %2769 = vmatprep.subr.bf16.mxu0 0
  %2770 = vmatpush1.bf16.msra.mxu0 0
  %2771 = vmatprep.mubr.bf16.mxu0 0
  %2772 = vmatmul.mubr.bf16.gmra.mrb[0].mxu0 %v2737
  %v2773 = vpop.f32.mrb[0].mxu0
  %v2774 = vadd.f32 %v2722, %v2773
  %v2775 = vpop.f32.mrb[0].mxu0
  %v2776 = vpop.f32.mrb[0].mxu0
  %v2777 = vadd.f32 %v2722, %v2776
  %v2778 = vpop.f32.mrb[0].mxu0
  %2779 = vdwg.mxu0
  %v2780 = vld [vmem:[%s11] sm:$0xf]
  %v2781 = vld [vmem:[%s11 + $0x4] sm:$0xf]
  %v2782 = vld [vmem:[%s11 + $0x8] sm:$0xf]
  %v2783 = vld [vmem:[%s11 + $0xc] sm:$0xf]
  %v2788 = vunpack.c.l.b16 %v2780
  %v2789 = vunpack.c.l.b16 %v2781
  %v2790 = vunpack.c.l.b16 %v2782
  %v2791 = vunpack.c.l.b16 %v2783
  %v2792 = vpack.c.b16 %v2789, %v2788
  %v2793 = vpack.c.b16 %v2791, %v2790
  %2796 = vmatprep.subr.bf16.mxu0 0
  %2797 = vmatpush1.bf16.msra.mxu0 %v2792
  %2798 = vmatprep.subr.bf16.mxu0 0
  %2799 = vmatpush1.bf16.msra.mxu0 %v2793
  %2800 = vmatprep.subr.bf16.mxu0 0
  %2801 = vmatpush1.bf16.msra.mxu0 0
  %2802 = vmatprep.subr.bf16.mxu0 0
  %2803 = vmatpush1.bf16.msra.mxu0 0
  %2804 = vmatprep.subr.bf16.mxu0 0
  %2805 = vmatpush1.bf16.msra.mxu0 0
  %2806 = vmatprep.subr.bf16.mxu0 0
  %2807 = vmatpush1.bf16.msra.mxu0 0
  %2808 = vmatprep.subr.bf16.mxu0 0
  %2809 = vmatpush1.bf16.msra.mxu0 0
  %2810 = vmatprep.subr.bf16.mxu0 0
  %2811 = vmatpush1.bf16.msra.mxu0 0
  %2812 = vmatprep.subr.bf16.mxu0 0
  %2813 = vmatpush1.bf16.msra.mxu0 0
  %2814 = vmatprep.subr.bf16.mxu0 0
  %2815 = vmatpush1.bf16.msra.mxu0 0
  %2816 = vmatprep.subr.bf16.mxu0 0
  %2817 = vmatpush1.bf16.msra.mxu0 0
  %2818 = vmatprep.subr.bf16.mxu0 0
  %2819 = vmatpush1.bf16.msra.mxu0 0
  %2820 = vmatprep.subr.bf16.mxu0 0
  %2821 = vmatpush1.bf16.msra.mxu0 0
  %2822 = vmatprep.subr.bf16.mxu0 0
  %2823 = vmatpush1.bf16.msra.mxu0 0
  %2824 = vmatprep.subr.bf16.mxu0 0
  %2825 = vmatpush1.bf16.msra.mxu0 0
  %2826 = vmatprep.subr.bf16.mxu0 0
  %2827 = vmatpush1.bf16.msra.mxu0 0
  %2828 = vmatprep.mubr.bf16.mxu0 0
  %2829 = vmatmul.mubr.bf16.gmra.mrb[0].mxu0 %v1827
  %v2830 = vpop.f32.mrb[0].mxu0
  %v2831 = vadd.f32 0.0, %v2830
  %v2832 = vpop.f32.mrb[0].mxu0
  %v2833 = vpop.f32.mrb[0].mxu0
  %v2834 = vpop.f32.mrb[0].mxu0
  %2835 = vdwg.mxu0
  %v2836 = vadd.f32 %v2774, %v2831
  %v2837 = vxor.u32 %v2836, 2147483648
  %v2838 = vmul.f32 %v2837, 1.442695
  %v2839 = vpow.pop %v2838
  %v2840 = vadd.f32 %v2839, 1.0
  %v2841 = vrcp.pop %v2840
  %v2842 = vmul.f32 1.0, %v2841
  %v2843 = vtanh.pop %v2836
  %v2844 = vmul.f32 %v2842, 0.0
  %2846 = vrot.lane.b32.xlu0 %v2843, 64
  %v2847 = vpop.permute.xlu0 %2846
  %v2849 = vmul.f32 %v2842, %v2847
  %2851 = vrot.lane.b32.xlu0 %v2849, 32
  %v2852 = vpop.permute.xlu0 %2851
  %v2854 = vadd.f32 %v2844, %v2852
  %v2855 = vtanh.pop %v2854
  %2857 = vrot.lane.b32.xlu0 %v2855, 64
  %v2858 = vpop.permute.xlu0 %2857
  %v2860 = vmul.f32 %v2842, %v2858
  %2862 = vrot.lane.b32.xlu0 %v2860, 32
  %v2863 = vpop.permute.xlu0 %2862
  %2865 = vst.msk [vmem:[#allocation3] sm:$0x1] %vm1898, %v2863
  %v2866 = vpack.c.bf16 %v2860, %v2860
  %v2867 = vld [vmem:[%s11] sm:$0xf]
  %v2868 = vld [vmem:[%s11 + $0x4] sm:$0xf]
  %v2869 = vld [vmem:[%s11 + $0x8] sm:$0xf]
  %v2870 = vld [vmem:[%s11 + $0xc] sm:$0xf]
  %2872 = vrot.lane.b32.xlu0 %v2866, 32
  %v2873 = vpop.permute.xlu0 %2872
  %v2878 = vunpack.c.l.b16 %v2867
  %v2879 = vunpack.c.l.b16 %v2868
  %v2880 = vunpack.c.l.b16 %v2869
  %v2881 = vunpack.c.l.b16 %v2870
  %v2882 = vpack.c.b16 %v2879, %v2878
  %v2883 = vpack.c.b16 %v2881, %v2880
  %v2887 = vsel %vm1825, %v2873, 0
  %2889 = vmatprep.subr.bf16.mxu0 0
  %2890 = vmatpush1.bf16.msra.mxu0 %v2882
  %2891 = vmatprep.subr.bf16.mxu0 0
  %2892 = vmatpush1.bf16.msra.mxu0 %v2883
  %2893 = vmatprep.subr.bf16.mxu0 0
  %2894 = vmatpush1.bf16.msra.mxu0 0
  %2895 = vmatprep.subr.bf16.mxu0 0
  %2896 = vmatpush1.bf16.msra.mxu0 0
  %2897 = vmatprep.subr.bf16.mxu0 0
  %2898 = vmatpush1.bf16.msra.mxu0 0
  %2899 = vmatprep.subr.bf16.mxu0 0
  %2900 = vmatpush1.bf16.msra.mxu0 0
  %2901 = vmatprep.subr.bf16.mxu0 0
  %2902 = vmatpush1.bf16.msra.mxu0 0
  %2903 = vmatprep.subr.bf16.mxu0 0
  %2904 = vmatpush1.bf16.msra.mxu0 0
  %2905 = vmatprep.subr.bf16.mxu0 0
  %2906 = vmatpush1.bf16.msra.mxu0 0
  %2907 = vmatprep.subr.bf16.mxu0 0
  %2908 = vmatpush1.bf16.msra.mxu0 0
  %2909 = vmatprep.subr.bf16.mxu0 0
  %2910 = vmatpush1.bf16.msra.mxu0 0
  %2911 = vmatprep.subr.bf16.mxu0 0
  %2912 = vmatpush1.bf16.msra.mxu0 0
  %2913 = vmatprep.subr.bf16.mxu0 0
  %2914 = vmatpush1.bf16.msra.mxu0 0
  %2915 = vmatprep.subr.bf16.mxu0 0
  %2916 = vmatpush1.bf16.msra.mxu0 0
  %2917 = vmatprep.subr.bf16.mxu0 0
  %2918 = vmatpush1.bf16.msra.mxu0 0
  %2919 = vmatprep.subr.bf16.mxu0 0
  %2920 = vmatpush1.bf16.msra.mxu0 0
  %2921 = vmatprep.mubr.bf16.mxu0 0
  %2922 = vmatmul.mubr.bf16.gmra.mrb[0].mxu0 %v2887
  %v2923 = vpop.f32.mrb[0].mxu0
  %v2924 = vadd.f32 0.0, %v2923
  %v2925 = vpop.f32.mrb[0].mxu0
  %v2926 = vpop.f32.mrb[0].mxu0
  %v2927 = vpop.f32.mrb[0].mxu0
  %2928 = vdwg.mxu0
  %v2930 = vrot.slane %v2924, 7
  %v2932 = vadd.f32 %v2774, %v2930
  %v2933 = vxor.u32 %v2932, 2147483648
  %v2934 = vmul.f32 %v2933, 1.442695
  %v2935 = vpow.pop %v2934
  %v2936 = vadd.f32 %v2935, 1.0
  %v2937 = vrcp.pop %v2936
  %v2938 = vmul.f32 1.0, %v2937
  %v2939 = vtanh.pop %v2932
  %v2941 = vrot.slane %v2854, 7
  %v2943 = vmul.f32 %v2938, %v2941
  %2945 = vrot.lane.b32.xlu0 %v2939, 64
  %v2946 = vpop.permute.xlu0 %2945
  %v2948 = vmul.f32 %v2938, %v2946
  %2950 = vrot.lane.b32.xlu0 %v2948, 32
  %v2951 = vpop.permute.xlu0 %2950
  %v2953 = vadd.f32 %v2943, %v2951
  %v2954 = vtanh.pop %v2953
  %2956 = vrot.lane.b32.xlu0 %v2954, 64
  %v2957 = vpop.permute.xlu0 %2956
  %v2959 = vmul.f32 %v2938, %v2957
  %2961 = vrot.lane.b32.xlu0 %v2959, 32
  %v2962 = vpop.permute.xlu0 %2961
  %2964 = vst.msk [vmem:[#allocation3] sm:$0x2] %vm1998, %v2962
  %v2965 = vpack.c.bf16 %v2959, %v2959
  %v2966 = vld [vmem:[%s11] sm:$0xf]
  %v2967 = vld [vmem:[%s11 + $0x4] sm:$0xf]
  %v2968 = vld [vmem:[%s11 + $0x8] sm:$0xf]
  %v2969 = vld [vmem:[%s11 + $0xc] sm:$0xf]
  %v2971 = vshrl.u32 %v2965, 16
  %2973 = vrot.lane.b32.xlu0 %v2971, 32
  %v2974 = vpop.permute.xlu0 %2973
  %v2979 = vunpack.c.l.b16 %v2966
  %v2980 = vunpack.c.l.b16 %v2967
  %v2981 = vunpack.c.l.b16 %v2968
  %v2982 = vunpack.c.l.b16 %v2969
  %v2983 = vpack.c.b16 %v2980, %v2979
  %v2984 = vpack.c.b16 %v2982, %v2981
  %v2988 = vsel %vm1825, %v2974, 0
  %2990 = vmatprep.subr.bf16.mxu0 0
  %2991 = vmatpush1.bf16.msra.mxu0 %v2983
  %2992 = vmatprep.subr.bf16.mxu0 0
  %2993 = vmatpush1.bf16.msra.mxu0 %v2984
  %2994 = vmatprep.subr.bf16.mxu0 0
  %2995 = vmatpush1.bf16.msra.mxu0 0
  %2996 = vmatprep.subr.bf16.mxu0 0
  %2997 = vmatpush1.bf16.msra.mxu0 0
  %2998 = vmatprep.subr.bf16.mxu0 0
  %2999 = vmatpush1.bf16.msra.mxu0 0
  %3000 = vmatprep.subr.bf16.mxu0 0
  %3001 = vmatpush1.bf16.msra.mxu0 0
  %3002 = vmatprep.subr.bf16.mxu0 0
  %3003 = vmatpush1.bf16.msra.mxu0 0
  %3004 = vmatprep.subr.bf16.mxu0 0
  %3005 = vmatpush1.bf16.msra.mxu0 0
  %3006 = vmatprep.subr.bf16.mxu0 0
  %3007 = vmatpush1.bf16.msra.mxu0 0
  %3008 = vmatprep.subr.bf16.mxu0 0
  %3009 = vmatpush1.bf16.msra.mxu0 0
  %3010 = vmatprep.subr.bf16.mxu0 0
  %3011 = vmatpush1.bf16.msra.mxu0 0
  %3012 = vmatprep.subr.bf16.mxu0 0
  %3013 = vmatpush1.bf16.msra.mxu0 0
  %3014 = vmatprep.subr.bf16.mxu0 0
  %3015 = vmatpush1.bf16.msra.mxu0 0
  %3016 = vmatprep.subr.bf16.mxu0 0
  %3017 = vmatpush1.bf16.msra.mxu0 0
  %3018 = vmatprep.subr.bf16.mxu0 0
  %3019 = vmatpush1.bf16.msra.mxu0 0
  %3020 = vmatprep.subr.bf16.mxu0 0
  %3021 = vmatpush1.bf16.msra.mxu0 0
  %3022 = vmatprep.mubr.bf16.mxu0 0
  %3023 = vmatmul.mubr.bf16.gmra.mrb[0].mxu0 %v2988
  %v3024 = vpop.f32.mrb[0].mxu0
  %v3025 = vadd.f32 0.0, %v3024
  %v3026 = vpop.f32.mrb[0].mxu0
  %v3027 = vpop.f32.mrb[0].mxu0
  %v3028 = vpop.f32.mrb[0].mxu0
  %3029 = vdwg.mxu0
  %v3031 = vrot.slane %v3025, 6
  %v3033 = vadd.f32 %v2774, %v3031
  %v3034 = vxor.u32 %v3033, 2147483648
  %v3035 = vmul.f32 %v3034, 1.442695
  %v3036 = vpow.pop %v3035
  %v3037 = vadd.f32 %v3036, 1.0
  %v3038 = vrcp.pop %v3037
  %v3039 = vmul.f32 1.0, %v3038
  %v3040 = vtanh.pop %v3033
  %v3042 = vrot.slane %v2953, 7
  %v3044 = vmul.f32 %v3039, %v3042
  %3046 = vrot.lane.b32.xlu0 %v3040, 64
  %v3047 = vpop.permute.xlu0 %3046
  %v3049 = vmul.f32 %v3039, %v3047
  %3051 = vrot.lane.b32.xlu0 %v3049, 32
  %v3052 = vpop.permute.xlu0 %3051
  %v3054 = vadd.f32 %v3044, %v3052
  %v3055 = vtanh.pop %v3054
  %3057 = vrot.lane.b32.xlu0 %v3055, 64
  %v3058 = vpop.permute.xlu0 %3057
  %v3060 = vmul.f32 %v3039, %v3058
  %3062 = vrot.lane.b32.xlu0 %v3060, 32
  %v3063 = vpop.permute.xlu0 %3062
  %3065 = vst.msk [vmem:[#allocation3] sm:$0x4] %vm2100, %v3063
  %v3066 = vpack.c.bf16 %v3060, %v3060
  %v3067 = vld [vmem:[%s11] sm:$0xf]
  %v3068 = vld [vmem:[%s11 + $0x4] sm:$0xf]
  %v3069 = vld [vmem:[%s11 + $0x8] sm:$0xf]
  %v3070 = vld [vmem:[%s11 + $0xc] sm:$0xf]
  %v3072 = vrot.slane %v3066, 1
  %3073 = vrot.lane.b32.xlu0 %v3072, 32
  %v3074 = vpop.permute.xlu0 %3073
  %v3079 = vunpack.c.l.b16 %v3067
  %v3080 = vunpack.c.l.b16 %v3068
  %v3081 = vunpack.c.l.b16 %v3069
  %v3082 = vunpack.c.l.b16 %v3070
  %v3083 = vpack.c.b16 %v3080, %v3079
  %v3084 = vpack.c.b16 %v3082, %v3081
  %v3088 = vsel %vm1825, %v3074, 0
  %3090 = vmatprep.subr.bf16.mxu0 0
  %3091 = vmatpush1.bf16.msra.mxu0 %v3083
  %3092 = vmatprep.subr.bf16.mxu0 0
  %3093 = vmatpush1.bf16.msra.mxu0 %v3084
  %3094 = vmatprep.subr.bf16.mxu0 0
  %3095 = vmatpush1.bf16.msra.mxu0 0
  %3096 = vmatprep.subr.bf16.mxu0 0
  %3097 = vmatpush1.bf16.msra.mxu0 0
  %3098 = vmatprep.subr.bf16.mxu0 0
  %3099 = vmatpush1.bf16.msra.mxu0 0
  %3100 = vmatprep.subr.bf16.mxu0 0
  %3101 = vmatpush1.bf16.msra.mxu0 0
  %3102 = vmatprep.subr.bf16.mxu0 0
  %3103 = vmatpush1.bf16.msra.mxu0 0
  %3104 = vmatprep.subr.bf16.mxu0 0
  %3105 = vmatpush1.bf16.msra.mxu0 0
  %3106 = vmatprep.subr.bf16.mxu0 0
  %3107 = vmatpush1.bf16.msra.mxu0 0
  %3108 = vmatprep.subr.bf16.mxu0 0
  %3109 = vmatpush1.bf16.msra.mxu0 0
  %3110 = vmatprep.subr.bf16.mxu0 0
  %3111 = vmatpush1.bf16.msra.mxu0 0
  %3112 = vmatprep.subr.bf16.mxu0 0
  %3113 = vmatpush1.bf16.msra.mxu0 0
  %3114 = vmatprep.subr.bf16.mxu0 0
  %3115 = vmatpush1.bf16.msra.mxu0 0
  %3116 = vmatprep.subr.bf16.mxu0 0
  %3117 = vmatpush1.bf16.msra.mxu0 0
  %3118 = vmatprep.subr.bf16.mxu0 0
  %3119 = vmatpush1.bf16.msra.mxu0 0
  %3120 = vmatprep.subr.bf16.mxu0 0
  %3121 = vmatpush1.bf16.msra.mxu0 0
  %3122 = vmatprep.mubr.bf16.mxu0 0
  %3123 = vmatmul.mubr.bf16.gmra.mrb[0].mxu0 %v3088
  %v3124 = vpop.f32.mrb[0].mxu0
  %v3125 = vadd.f32 0.0, %v3124
  %v3126 = vpop.f32.mrb[0].mxu0
  %v3127 = vpop.f32.mrb[0].mxu0
  %v3128 = vpop.f32.mrb[0].mxu0
  %3129 = vdwg.mxu0
  %v3131 = vrot.slane %v3125, 5
  %v3133 = vadd.f32 %v2774, %v3131
  %v3134 = vxor.u32 %v3133, 2147483648
  %v3135 = vmul.f32 %v3134, 1.442695
  %v3136 = vpow.pop %v3135
  %v3137 = vadd.f32 %v3136, 1.0
  %v3138 = vrcp.pop %v3137
  %v3139 = vmul.f32 1.0, %v3138
  %v3140 = vtanh.pop %v3133
  %v3142 = vrot.slane %v3054, 7
  %v3144 = vmul.f32 %v3139, %v3142
  %3146 = vrot.lane.b32.xlu0 %v3140, 64
  %v3147 = vpop.permute.xlu0 %3146
  %v3149 = vmul.f32 %v3139, %v3147
  %3151 = vrot.lane.b32.xlu0 %v3149, 32
  %v3152 = vpop.permute.xlu0 %3151
  %v3154 = vadd.f32 %v3144, %v3152
  %v3155 = vtanh.pop %v3154
  %3157 = vrot.lane.b32.xlu0 %v3155, 64
  %v3158 = vpop.permute.xlu0 %3157
  %v3160 = vmul.f32 %v3139, %v3158
  %3162 = vrot.lane.b32.xlu0 %v3160, 32
  %v3163 = vpop.permute.xlu0 %3162
  %3165 = vst.msk [vmem:[#allocation3] sm:$0x8] %vm2201, %v3163
  %v3166 = vpack.c.bf16 %v3160, %v3160
  %v3167 = vld [vmem:[%s11] sm:$0xf]
  %v3168 = vld [vmem:[%s11 + $0x4] sm:$0xf]
  %v3169 = vld [vmem:[%s11 + $0x8] sm:$0xf]
  %v3170 = vld [vmem:[%s11 + $0xc] sm:$0xf]
  %v3172 = vshrl.u32 %v3166, 16
  %v3174 = vrot.slane %v3172, 1
  %3175 = vrot.lane.b32.xlu0 %v3174, 32
  %v3176 = vpop.permute.xlu0 %3175
  %v3181 = vunpack.c.l.b16 %v3167
  %v3182 = vunpack.c.l.b16 %v3168
  %v3183 = vunpack.c.l.b16 %v3169
  %v3184 = vunpack.c.l.b16 %v3170
  %v3185 = vpack.c.b16 %v3182, %v3181
  %v3186 = vpack.c.b16 %v3184, %v3183
  %v3190 = vsel %vm1825, %v3176, 0
  %3192 = vmatprep.subr.bf16.mxu0 0
  %3193 = vmatpush1.bf16.msra.mxu0 %v3185
  %3194 = vmatprep.subr.bf16.mxu0 0
  %3195 = vmatpush1.bf16.msra.mxu0 %v3186
  %3196 = vmatprep.subr.bf16.mxu0 0
  %3197 = vmatpush1.bf16.msra.mxu0 0
  %3198 = vmatprep.subr.bf16.mxu0 0
  %3199 = vmatpush1.bf16.msra.mxu0 0
  %3200 = vmatprep.subr.bf16.mxu0 0
  %3201 = vmatpush1.bf16.msra.mxu0 0
  %3202 = vmatprep.subr.bf16.mxu0 0
  %3203 = vmatpush1.bf16.msra.mxu0 0
  %3204 = vmatprep.subr.bf16.mxu0 0
  %3205 = vmatpush1.bf16.msra.mxu0 0
  %3206 = vmatprep.subr.bf16.mxu0 0
  %3207 = vmatpush1.bf16.msra.mxu0 0
  %3208 = vmatprep.subr.bf16.mxu0 0
  %3209 = vmatpush1.bf16.msra.mxu0 0
  %3210 = vmatprep.subr.bf16.mxu0 0
  %3211 = vmatpush1.bf16.msra.mxu0 0
  %3212 = vmatprep.subr.bf16.mxu0 0
  %3213 = vmatpush1.bf16.msra.mxu0 0
  %3214 = vmatprep.subr.bf16.mxu0 0
  %3215 = vmatpush1.bf16.msra.mxu0 0
  %3216 = vmatprep.subr.bf16.mxu0 0
  %3217 = vmatpush1.bf16.msra.mxu0 0
  %3218 = vmatprep.subr.bf16.mxu0 0
  %3219 = vmatpush1.bf16.msra.mxu0 0
  %3220 = vmatprep.subr.bf16.mxu0 0
  %3221 = vmatpush1.bf16.msra.mxu0 0
  %3222 = vmatprep.subr.bf16.mxu0 0
  %3223 = vmatpush1.bf16.msra.mxu0 0
  %3224 = vmatprep.mubr.bf16.mxu0 0
  %3225 = vmatmul.mubr.bf16.gmra.mrb[0].mxu0 %v3190
  %v3226 = vpop.f32.mrb[0].mxu0
  %v3227 = vadd.f32 0.0, %v3226
  %v3228 = vpop.f32.mrb[0].mxu0
  %v3229 = vpop.f32.mrb[0].mxu0
  %v3230 = vpop.f32.mrb[0].mxu0
  %3231 = vdwg.mxu0
  %v3233 = vrot.slane %v3227, 4
  %v3235 = vadd.f32 %v2774, %v3233
  %v3236 = vxor.u32 %v3235, 2147483648
  %v3237 = vmul.f32 %v3236, 1.442695
  %v3238 = vpow.pop %v3237
  %v3239 = vadd.f32 %v3238, 1.0
  %v3240 = vrcp.pop %v3239
  %v3241 = vmul.f32 1.0, %v3240
  %v3242 = vtanh.pop %v3235
  %v3244 = vrot.slane %v3154, 7
  %v3246 = vmul.f32 %v3241, %v3244
  %3248 = vrot.lane.b32.xlu0 %v3242, 64
  %v3249 = vpop.permute.xlu0 %3248
  %v3251 = vmul.f32 %v3241, %v3249
  %3253 = vrot.lane.b32.xlu0 %v3251, 32
  %v3254 = vpop.permute.xlu0 %3253
  %v3256 = vadd.f32 %v3246, %v3254
  %v3257 = vtanh.pop %v3256
  %3259 = vrot.lane.b32.xlu0 %v3257, 64
  %v3260 = vpop.permute.xlu0 %3259
  %v3262 = vmul.f32 %v3241, %v3260
  %3264 = vrot.lane.b32.xlu0 %v3262, 32
  %v3265 = vpop.permute.xlu0 %3264
  %3267 = vst.msk [vmem:[#allocation3] sm:$0x10] %vm2304, %v3265
  %v3268 = vpack.c.bf16 %v3262, %v3262
  %v3269 = vld [vmem:[%s11] sm:$0xf]
  %v3270 = vld [vmem:[%s11 + $0x4] sm:$0xf]
  %v3271 = vld [vmem:[%s11 + $0x8] sm:$0xf]
  %v3272 = vld [vmem:[%s11 + $0xc] sm:$0xf]
  %v3274 = vrot.slane %v3268, 2
  %3275 = vrot.lane.b32.xlu0 %v3274, 32
  %v3276 = vpop.permute.xlu0 %3275
  %v3281 = vunpack.c.l.b16 %v3269
  %v3282 = vunpack.c.l.b16 %v3270
  %v3283 = vunpack.c.l.b16 %v3271
  %v3284 = vunpack.c.l.b16 %v3272
  %v3285 = vpack.c.b16 %v3282, %v3281
  %v3286 = vpack.c.b16 %v3284, %v3283
  %v3290 = vsel %vm1825, %v3276, 0
  %3292 = vmatprep.subr.bf16.mxu0 0
  %3293 = vmatpush1.bf16.msra.mxu0 %v3285
  %3294 = vmatprep.subr.bf16.mxu0 0
  %3295 = vmatpush1.bf16.msra.mxu0 %v3286
  %3296 = vmatprep.subr.bf16.mxu0 0
  %3297 = vmatpush1.bf16.msra.mxu0 0
  %3298 = vmatprep.subr.bf16.mxu0 0
  %3299 = vmatpush1.bf16.msra.mxu0 0
  %3300 = vmatprep.subr.bf16.mxu0 0
  %3301 = vmatpush1.bf16.msra.mxu0 0
  %3302 = vmatprep.subr.bf16.mxu0 0
  %3303 = vmatpush1.bf16.msra.mxu0 0
  %3304 = vmatprep.subr.bf16.mxu0 0
  %3305 = vmatpush1.bf16.msra.mxu0 0
  %3306 = vmatprep.subr.bf16.mxu0 0
  %3307 = vmatpush1.bf16.msra.mxu0 0
  %3308 = vmatprep.subr.bf16.mxu0 0
  %3309 = vmatpush1.bf16.msra.mxu0 0
  %3310 = vmatprep.subr.bf16.mxu0 0
  %3311 = vmatpush1.bf16.msra.mxu0 0
  %3312 = vmatprep.subr.bf16.mxu0 0
  %3313 = vmatpush1.bf16.msra.mxu0 0
  %3314 = vmatprep.subr.bf16.mxu0 0
  %3315 = vmatpush1.bf16.msra.mxu0 0
  %3316 = vmatprep.subr.bf16.mxu0 0
  %3317 = vmatpush1.bf16.msra.mxu0 0
  %3318 = vmatprep.subr.bf16.mxu0 0
  %3319 = vmatpush1.bf16.msra.mxu0 0
  %3320 = vmatprep.subr.bf16.mxu0 0
  %3321 = vmatpush1.bf16.msra.mxu0 0
  %3322 = vmatprep.subr.bf16.mxu0 0
  %3323 = vmatpush1.bf16.msra.mxu0 0
  %3324 = vmatprep.mubr.bf16.mxu0 0
  %3325 = vmatmul.mubr.bf16.gmra.mrb[0].mxu0 %v3290
  %v3326 = vpop.f32.mrb[0].mxu0
  %v3327 = vadd.f32 0.0, %v3326
  %v3328 = vpop.f32.mrb[0].mxu0
  %v3329 = vpop.f32.mrb[0].mxu0
  %v3330 = vpop.f32.mrb[0].mxu0
  %3331 = vdwg.mxu0
  %v3333 = vrot.slane %v3327, 3
  %v3335 = vadd.f32 %v2774, %v3333
  %v3336 = vxor.u32 %v3335, 2147483648
  %v3337 = vmul.f32 %v3336, 1.442695
  %v3338 = vpow.pop %v3337
  %v3339 = vadd.f32 %v3338, 1.0
  %v3340 = vrcp.pop %v3339
  %v3341 = vmul.f32 1.0, %v3340
  %v3342 = vtanh.pop %v3335
  %v3344 = vrot.slane %v3256, 7
  %v3346 = vmul.f32 %v3341, %v3344
  %3348 = vrot.lane.b32.xlu0 %v3342, 64
  %v3349 = vpop.permute.xlu0 %3348
  %v3351 = vmul.f32 %v3341, %v3349
  %3353 = vrot.lane.b32.xlu0 %v3351, 32
  %v3354 = vpop.permute.xlu0 %3353
  %v3356 = vadd.f32 %v3346, %v3354
  %v3357 = vtanh.pop %v3356
  %3359 = vrot.lane.b32.xlu0 %v3357, 64
  %v3360 = vpop.permute.xlu0 %3359
  %v3362 = vmul.f32 %v3341, %v3360
  %3364 = vrot.lane.b32.xlu0 %v3362, 32
  %v3365 = vpop.permute.xlu0 %3364
  %3367 = vst.msk [vmem:[#allocation3] sm:$0x20] %vm2405, %v3365
  %v3368 = vpack.c.bf16 %v3362, %v3362
  %v3369 = vld [vmem:[%s11] sm:$0xf]
  %v3370 = vld [vmem:[%s11 + $0x4] sm:$0xf]
  %v3371 = vld [vmem:[%s11 + $0x8] sm:$0xf]
  %v3372 = vld [vmem:[%s11 + $0xc] sm:$0xf]
  %v3374 = vshrl.u32 %v3368, 16
  %v3376 = vrot.slane %v3374, 2
  %3377 = vrot.lane.b32.xlu0 %v3376, 32
  %v3378 = vpop.permute.xlu0 %3377
  %v3383 = vunpack.c.l.b16 %v3369
  %v3384 = vunpack.c.l.b16 %v3370
  %v3385 = vunpack.c.l.b16 %v3371
  %v3386 = vunpack.c.l.b16 %v3372
  %v3387 = vpack.c.b16 %v3384, %v3383
  %v3388 = vpack.c.b16 %v3386, %v3385
  %v3392 = vsel %vm1825, %v3378, 0
  %3394 = vmatprep.subr.bf16.mxu0 0
  %3395 = vmatpush1.bf16.msra.mxu0 %v3387
  %3396 = vmatprep.subr.bf16.mxu0 0
  %3397 = vmatpush1.bf16.msra.mxu0 %v3388
  %3398 = vmatprep.subr.bf16.mxu0 0
  %3399 = vmatpush1.bf16.msra.mxu0 0
  %3400 = vmatprep.subr.bf16.mxu0 0
  %3401 = vmatpush1.bf16.msra.mxu0 0
  %3402 = vmatprep.subr.bf16.mxu0 0
  %3403 = vmatpush1.bf16.msra.mxu0 0
  %3404 = vmatprep.subr.bf16.mxu0 0
  %3405 = vmatpush1.bf16.msra.mxu0 0
  %3406 = vmatprep.subr.bf16.mxu0 0
  %3407 = vmatpush1.bf16.msra.mxu0 0
  %3408 = vmatprep.subr.bf16.mxu0 0
  %3409 = vmatpush1.bf16.msra.mxu0 0
  %3410 = vmatprep.subr.bf16.mxu0 0
  %3411 = vmatpush1.bf16.msra.mxu0 0
  %3412 = vmatprep.subr.bf16.mxu0 0
  %3413 = vmatpush1.bf16.msra.mxu0 0
  %3414 = vmatprep.subr.bf16.mxu0 0
  %3415 = vmatpush1.bf16.msra.mxu0 0
  %3416 = vmatprep.subr.bf16.mxu0 0
  %3417 = vmatpush1.bf16.msra.mxu0 0
  %3418 = vmatprep.subr.bf16.mxu0 0
  %3419 = vmatpush1.bf16.msra.mxu0 0
  %3420 = vmatprep.subr.bf16.mxu0 0
  %3421 = vmatpush1.bf16.msra.mxu0 0
  %3422 = vmatprep.subr.bf16.mxu0 0
  %3423 = vmatpush1.bf16.msra.mxu0 0
  %3424 = vmatprep.subr.bf16.mxu0 0
  %3425 = vmatpush1.bf16.msra.mxu0 0
  %3426 = vmatprep.mubr.bf16.mxu0 0
  %3427 = vmatmul.mubr.bf16.gmra.mrb[0].mxu0 %v3392
  %v3428 = vpop.f32.mrb[0].mxu0
  %v3429 = vadd.f32 0.0, %v3428
  %v3430 = vpop.f32.mrb[0].mxu0
  %v3431 = vpop.f32.mrb[0].mxu0
  %v3432 = vpop.f32.mrb[0].mxu0
  %3433 = vdwg.mxu0
  %v3435 = vrot.slane %v3429, 2
  %v3437 = vadd.f32 %v2774, %v3435
  %v3438 = vxor.u32 %v3437, 2147483648
  %v3439 = vmul.f32 %v3438, 1.442695
  %v3440 = vpow.pop %v3439
  %v3441 = vadd.f32 %v3440, 1.0
  %v3442 = vrcp.pop %v3441
  %v3443 = vmul.f32 1.0, %v3442
  %v3444 = vtanh.pop %v3437
  %v3446 = vrot.slane %v3356, 7
  %v3448 = vmul.f32 %v3443, %v3446
  %3450 = vrot.lane.b32.xlu0 %v3444, 64
  %v3451 = vpop.permute.xlu0 %3450
  %v3453 = vmul.f32 %v3443, %v3451
  %3455 = vrot.lane.b32.xlu0 %v3453, 32
  %v3456 = vpop.permute.xlu0 %3455
  %v3458 = vadd.f32 %v3448, %v3456
  %v3459 = vtanh.pop %v3458
  %3461 = vrot.lane.b32.xlu0 %v3459, 64
  %v3462 = vpop.permute.xlu0 %3461
  %v3464 = vmul.f32 %v3443, %v3462
  %3466 = vrot.lane.b32.xlu0 %v3464, 32
  %v3467 = vpop.permute.xlu0 %3466
  %3469 = vst.msk [vmem:[#allocation3] sm:$0x40] %vm2508, %v3467
  %v3470 = vpack.c.bf16 %v3464, %v3464
  %v3471 = vld [vmem:[%s11] sm:$0xf]
  %v3472 = vld [vmem:[%s11 + $0x4] sm:$0xf]
  %v3473 = vld [vmem:[%s11 + $0x8] sm:$0xf]
  %v3474 = vld [vmem:[%s11 + $0xc] sm:$0xf]
  %v3476 = vrot.slane %v3470, 3
  %3477 = vrot.lane.b32.xlu0 %v3476, 32
  %v3478 = vpop.permute.xlu0 %3477
  %v3483 = vunpack.c.l.b16 %v3471
  %v3484 = vunpack.c.l.b16 %v3472
  %v3485 = vunpack.c.l.b16 %v3473
  %v3486 = vunpack.c.l.b16 %v3474
  %v3487 = vpack.c.b16 %v3484, %v3483
  %v3488 = vpack.c.b16 %v3486, %v3485
  %v3492 = vsel %vm1825, %v3478, 0
  %3494 = vmatprep.subr.bf16.mxu0 0
  %3495 = vmatpush1.bf16.msra.mxu0 %v3487
  %3496 = vmatprep.subr.bf16.mxu0 0
  %3497 = vmatpush1.bf16.msra.mxu0 %v3488
  %3498 = vmatprep.subr.bf16.mxu0 0
  %3499 = vmatpush1.bf16.msra.mxu0 0
  %3500 = vmatprep.subr.bf16.mxu0 0
  %3501 = vmatpush1.bf16.msra.mxu0 0
  %3502 = vmatprep.subr.bf16.mxu0 0
  %3503 = vmatpush1.bf16.msra.mxu0 0
  %3504 = vmatprep.subr.bf16.mxu0 0
  %3505 = vmatpush1.bf16.msra.mxu0 0
  %3506 = vmatprep.subr.bf16.mxu0 0
  %3507 = vmatpush1.bf16.msra.mxu0 0
  %3508 = vmatprep.subr.bf16.mxu0 0
  %3509 = vmatpush1.bf16.msra.mxu0 0
  %3510 = vmatprep.subr.bf16.mxu0 0
  %3511 = vmatpush1.bf16.msra.mxu0 0
  %3512 = vmatprep.subr.bf16.mxu0 0
  %3513 = vmatpush1.bf16.msra.mxu0 0
  %3514 = vmatprep.subr.bf16.mxu0 0
  %3515 = vmatpush1.bf16.msra.mxu0 0
  %3516 = vmatprep.subr.bf16.mxu0 0
  %3517 = vmatpush1.bf16.msra.mxu0 0
  %3518 = vmatprep.subr.bf16.mxu0 0
  %3519 = vmatpush1.bf16.msra.mxu0 0
  %3520 = vmatprep.subr.bf16.mxu0 0
  %3521 = vmatpush1.bf16.msra.mxu0 0
  %3522 = vmatprep.subr.bf16.mxu0 0
  %3523 = vmatpush1.bf16.msra.mxu0 0
  %3524 = vmatprep.subr.bf16.mxu0 0
  %3525 = vmatpush1.bf16.msra.mxu0 0
  %3526 = vmatprep.mubr.bf16.mxu0 0
  %3527 = vmatmul.mubr.bf16.gmra.mrb[0].mxu0 %v3492
  %v3528 = vpop.f32.mrb[0].mxu0
  %v3529 = vadd.f32 0.0, %v3528
  %v3530 = vpop.f32.mrb[0].mxu0
  %v3531 = vpop.f32.mrb[0].mxu0
  %v3532 = vpop.f32.mrb[0].mxu0
  %3533 = vdwg.mxu0
  %v3535 = vrot.slane %v3529, 1
  %v3537 = vadd.f32 %v2774, %v3535
  %v3538 = vxor.u32 %v3537, 2147483648
  %v3539 = vmul.f32 %v3538, 1.442695
  %v3540 = vpow.pop %v3539
  %v3541 = vadd.f32 %v3540, 1.0
  %v3542 = vrcp.pop %v3541
  %v3543 = vmul.f32 1.0, %v3542
  %v3544 = vtanh.pop %v3537
  %v3546 = vrot.slane %v3458, 7
  %v3548 = vmul.f32 %v3543, %v3546
  %3550 = vrot.lane.b32.xlu0 %v3544, 64
  %v3551 = vpop.permute.xlu0 %3550
  %v3553 = vmul.f32 %v3543, %v3551
  %3555 = vrot.lane.b32.xlu0 %v3553, 32
  %v3556 = vpop.permute.xlu0 %3555
  %v3558 = vadd.f32 %v3548, %v3556
  %v3559 = vtanh.pop %v3558
  %3561 = vrot.lane.b32.xlu0 %v3559, 64
  %v3562 = vpop.permute.xlu0 %3561
  %v3564 = vmul.f32 %v3543, %v3562
  %3566 = vrot.lane.b32.xlu0 %v3564, 32
  %v3567 = vpop.permute.xlu0 %3566
  %3569 = vst.msk [vmem:[#allocation3] sm:$0x80] %vm2609, %v3567
  %v3570 = vpack.c.bf16 %v3564, %v3564
  %v3571 = vld [vmem:[%s11] sm:$0xf]
  %v3572 = vld [vmem:[%s11 + $0x4] sm:$0xf]
  %v3573 = vld [vmem:[%s11 + $0x8] sm:$0xf]
  %v3574 = vld [vmem:[%s11 + $0xc] sm:$0xf]
  %v3576 = vshrl.u32 %v3570, 16
  %v3578 = vrot.slane %v3576, 3
  %3579 = vrot.lane.b32.xlu0 %v3578, 32
  %v3580 = vpop.permute.xlu0 %3579
  %v3585 = vunpack.c.l.b16 %v3571
  %v3586 = vunpack.c.l.b16 %v3572
  %v3587 = vunpack.c.l.b16 %v3573
  %v3588 = vunpack.c.l.b16 %v3574
  %v3589 = vpack.c.b16 %v3586, %v3585
  %v3590 = vpack.c.b16 %v3588, %v3587
  %v3594 = vsel %vm1825, %v3580, 0
  %3596 = vmatprep.subr.bf16.mxu0 0
  %3597 = vmatpush1.bf16.msra.mxu0 %v3589
  %3598 = vmatprep.subr.bf16.mxu0 0
  %3599 = vmatpush1.bf16.msra.mxu0 %v3590
  %3600 = vmatprep.subr.bf16.mxu0 0
  %3601 = vmatpush1.bf16.msra.mxu0 0
  %3602 = vmatprep.subr.bf16.mxu0 0
  %3603 = vmatpush1.bf16.msra.mxu0 0
  %3604 = vmatprep.subr.bf16.mxu0 0
  %3605 = vmatpush1.bf16.msra.mxu0 0
  %3606 = vmatprep.subr.bf16.mxu0 0
  %3607 = vmatpush1.bf16.msra.mxu0 0
  %3608 = vmatprep.subr.bf16.mxu0 0
  %3609 = vmatpush1.bf16.msra.mxu0 0
  %3610 = vmatprep.subr.bf16.mxu0 0
  %3611 = vmatpush1.bf16.msra.mxu0 0
  %3612 = vmatprep.subr.bf16.mxu0 0
  %3613 = vmatpush1.bf16.msra.mxu0 0
  %3614 = vmatprep.subr.bf16.mxu0 0
  %3615 = vmatpush1.bf16.msra.mxu0 0
  %3616 = vmatprep.subr.bf16.mxu0 0
  %3617 = vmatpush1.bf16.msra.mxu0 0
  %3618 = vmatprep.subr.bf16.mxu0 0
  %3619 = vmatpush1.bf16.msra.mxu0 0
  %3620 = vmatprep.subr.bf16.mxu0 0
  %3621 = vmatpush1.bf16.msra.mxu0 0
  %3622 = vmatprep.subr.bf16.mxu0 0
  %3623 = vmatpush1.bf16.msra.mxu0 0
  %3624 = vmatprep.subr.bf16.mxu0 0
  %3625 = vmatpush1.bf16.msra.mxu0 0
  %3626 = vmatprep.subr.bf16.mxu0 0
  %3627 = vmatpush1.bf16.msra.mxu0 0
  %3628 = vmatprep.mubr.bf16.mxu0 0
  %3629 = vmatmul.mubr.bf16.gmra.mrb[0].mxu0 %v3594
  %v3630 = vpop.f32.mrb[0].mxu0
  %v3631 = vadd.f32 0.0, %v3630
  %v3632 = vpop.f32.mrb[0].mxu0
  %v3633 = vpop.f32.mrb[0].mxu0
  %v3634 = vpop.f32.mrb[0].mxu0
  %3635 = vdwg.mxu0
  %v3636 = vadd.f32 %v2777, %v3631
  %v3637 = vxor.u32 %v3636, 2147483648
  %v3638 = vmul.f32 %v3637, 1.442695
  %v3639 = vpow.pop %v3638
  %v3640 = vadd.f32 %v3639, 1.0
  %v3641 = vrcp.pop %v3640
  %v3642 = vmul.f32 1.0, %v3641
  %v3643 = vtanh.pop %v3636
  %v3645 = vrot.slane %v3558, 7
  %v3647 = vmul.f32 %v3642, %v3645
  %3649 = vrot.lane.b32.xlu0 %v3643, 64
  %v3650 = vpop.permute.xlu0 %3649
  %v3652 = vmul.f32 %v3642, %v3650
  %3654 = vrot.lane.b32.xlu0 %v3652, 32
  %v3655 = vpop.permute.xlu0 %3654
  %v3657 = vadd.f32 %v3647, %v3655
  %v3658 = vtanh.pop %v3657
  %3660 = vrot.lane.b32.xlu0 %v3658, 64
  %v3661 = vpop.permute.xlu0 %3660
  %v3663 = vmul.f32 %v3642, %v3661
  %3665 = vrot.lane.b32.xlu0 %v3663, 32
  %v3666 = vpop.permute.xlu0 %3665
  %3668 = vst.msk [vmem:[#allocation3 + $0x8] sm:$0x1] %vm1898, %v3666
  %v3669 = vld [vmem:[#allocation3] sm:$0xff]
  %v3670 = vld [vmem:[#allocation3 + $0x8] sm:$0x1]
  %v3671 = vpack.c.bf16 %v3670, %v3669
  %v3672 = vld [vmem:[%s13] sm:$0xf]
  %v3673 = vld [vmem:[%s13 + $0x4] sm:$0xf]
  %v3674 = vld [vmem:[%s13 + $0x8] sm:$0xf]
  %v3675 = vld [vmem:[%s13 + $0xc] sm:$0xf]
  %v3676 = vld [vmem:[%s14] sm:$0x1]
  %v3678 = vlaneseq
  %v3679 = vshrl.u32 %v3678, 7
  %v3680 = vsub.s32 0, %v3679
  %v3681 = vrot.slane %v3676, %v3680
  %v3687 = vunpack.c.l.b16 %v3672
  %v3688 = vunpack.c.l.b16 %v3673
  %v3689 = vunpack.c.l.b16 %v3674
  %v3690 = vunpack.c.l.b16 %v3675
  %v3691 = vpack.c.b16 %v3688, %v3687
  %v3692 = vpack.c.b16 %v3690, %v3689
  %v3696 = vsel %vm1825, %v3671, 0
  %3698 = vmatprep.subr.bf16.mxu0 0
  %3699 = vmatpush1.bf16.msra.mxu0 %v3691
  %3700 = vmatprep.subr.bf16.mxu0 0
  %3701 = vmatpush1.bf16.msra.mxu0 %v3692
  %3702 = vmatprep.subr.bf16.mxu0 0
  %3703 = vmatpush1.bf16.msra.mxu0 0
  %3704 = vmatprep.subr.bf16.mxu0 0
  %3705 = vmatpush1.bf16.msra.mxu0 0
  %3706 = vmatprep.subr.bf16.mxu0 0
  %3707 = vmatpush1.bf16.msra.mxu0 0
  %3708 = vmatprep.subr.bf16.mxu0 0
  %3709 = vmatpush1.bf16.msra.mxu0 0
  %3710 = vmatprep.subr.bf16.mxu0 0
  %3711 = vmatpush1.bf16.msra.mxu0 0
  %3712 = vmatprep.subr.bf16.mxu0 0
  %3713 = vmatpush1.bf16.msra.mxu0 0
  %3714 = vmatprep.subr.bf16.mxu0 0
  %3715 = vmatpush1.bf16.msra.mxu0 0
  %3716 = vmatprep.subr.bf16.mxu0 0
  %3717 = vmatpush1.bf16.msra.mxu0 0
  %3718 = vmatprep.subr.bf16.mxu0 0
  %3719 = vmatpush1.bf16.msra.mxu0 0
  %3720 = vmatprep.subr.bf16.mxu0 0
  %3721 = vmatpush1.bf16.msra.mxu0 0
  %3722 = vmatprep.subr.bf16.mxu0 0
  %3723 = vmatpush1.bf16.msra.mxu0 0
  %3724 = vmatprep.subr.bf16.mxu0 0
  %3725 = vmatpush1.bf16.msra.mxu0 0
  %3726 = vmatprep.subr.bf16.mxu0 0
  %3727 = vmatpush1.bf16.msra.mxu0 0
  %3728 = vmatprep.subr.bf16.mxu0 0
  %3729 = vmatpush1.bf16.msra.mxu0 0
  %3730 = vmatprep.mubr.bf16.mxu0 0
  %3731 = vmatmul.mubr.bf16.gmra.mrb[0].mxu0 %v3696
  %v3732 = vpop.f32.mrb[0].mxu0
  %v3733 = vadd.f32 %v3681, %v3732
  %v3734 = vpop.f32.mrb[0].mxu0
  %v3735 = vpop.f32.mrb[0].mxu0
  %v3736 = vadd.f32 %v3681, %v3735
  %v3737 = vpop.f32.mrb[0].mxu0
  %3738 = vdwg.mxu0
  %v3740 = vsel %vm106, %v102, 0
  %v3743 = vsel %vm106, %v103, 0
  %v3746 = vsel %vm113, %v3736, 0
  %3748 = vmatprep.subr.mxu0 0.0
  %3749 = vmatpush1.msra.mxu0 %v3733
  %3750 = vmatprep.subr.mxu0 0.0
  %3751 = vmatpush1.msra.mxu0 %v3746
  %3752 = vmatprep.subr.mxu0 0.0
  %3753 = vmatpush1.msra.mxu0 0.0
  %3754 = vmatprep.subr.mxu0 0.0
  %3755 = vmatpush1.msra.mxu0 0.0
  %3756 = vmatprep.subr.mxu0 0.0
  %3757 = vmatpush1.msra.mxu0 0.0
  %3758 = vmatprep.subr.mxu0 0.0
  %3759 = vmatpush1.msra.mxu0 0.0
  %3760 = vmatprep.subr.mxu0 0.0
  %3761 = vmatpush1.msra.mxu0 0.0
  %3762 = vmatprep.subr.mxu0 0.0
  %3763 = vmatpush1.msra.mxu0 0.0
  %3764 = vmatprep.subr.mxu0 0.0
  %3765 = vmatpush1.msra.mxu0 0.0
  %3766 = vmatprep.subr.mxu0 0.0
  %3767 = vmatpush1.msra.mxu0 0.0
  %3768 = vmatprep.subr.mxu0 0.0
  %3769 = vmatpush1.msra.mxu0 0.0
  %3770 = vmatprep.subr.mxu0 0.0
  %3771 = vmatpush1.msra.mxu0 0.0
  %3772 = vmatprep.subr.mxu0 0.0
  %3773 = vmatpush1.msra.mxu0 0.0
  %3774 = vmatprep.subr.mxu0 0.0
  %3775 = vmatpush1.msra.mxu0 0.0
  %3776 = vmatprep.subr.mxu0 0.0
  %3777 = vmatpush1.msra.mxu0 0.0
  %3778 = vmatprep.subr.mxu0 0.0
  %3779 = vmatpush1.msra.mxu0 0.0
  %3780 = vmatprep.subr.mxu0 0.0
  %3781 = vmatpush1.msra.mxu0 0.0
  %3782 = vmatprep.subr.mxu0 0.0
  %3783 = vmatpush1.msra.mxu0 0.0
  %3784 = vmatprep.subr.mxu0 0.0
  %3785 = vmatpush1.msra.mxu0 0.0
  %3786 = vmatprep.subr.mxu0 0.0
  %3787 = vmatpush1.msra.mxu0 0.0
  %3788 = vmatprep.subr.mxu0 0.0
  %3789 = vmatpush1.msra.mxu0 0.0
  %3790 = vmatprep.subr.mxu0 0.0
  %3791 = vmatpush1.msra.mxu0 0.0
  %3792 = vmatprep.subr.mxu0 0.0
  %3793 = vmatpush1.msra.mxu0 0.0
  %3794 = vmatprep.subr.mxu0 0.0
  %3795 = vmatpush1.msra.mxu0 0.0
  %3796 = vmatprep.subr.mxu0 0.0
  %3797 = vmatpush1.msra.mxu0 0.0
  %3798 = vmatprep.subr.mxu0 0.0
  %3799 = vmatpush1.msra.mxu0 0.0
  %3800 = vmatprep.subr.mxu0 0.0
  %3801 = vmatpush1.msra.mxu0 0.0
  %3802 = vmatprep.subr.mxu0 0.0
  %3803 = vmatpush1.msra.mxu0 0.0
  %3804 = vmatprep.subr.mxu0 0.0
  %3805 = vmatpush1.msra.mxu0 0.0
  %3806 = vmatprep.subr.mxu0 0.0
  %3807 = vmatpush1.msra.mxu0 0.0
  %3808 = vmatprep.subr.mxu0 0.0
  %3809 = vmatpush1.msra.mxu0 0.0
  %3810 = vmatprep.subr.mxu0 0.0
  %3811 = vmatpush1.msra.mxu0 0.0
  %3812 = vmatprep.mubr.f32.mxu0 0.0
  %3813 = vmatmul.mubr.f32.gmra.mrb[0].mxu0 %v3740
  %v3814 = vpop.f32.mrb[0].mxu0
  %v3815 = vadd.f32 0.0, %v3814
  %v3816 = vpop.f32.mrb[0].mxu0
  %3817 = vmatprep.mubr.f32.mxu0 0.0
  %3818 = vmatmul.mubr.f32.gmra.mrb[0].mxu0 %v3743
  %v3819 = vpop.f32.mrb[0].mxu0
  %v3820 = vadd.f32 0.0, %v3819
  %v3821 = vpop.f32.mrb[0].mxu0
  %3822 = vdwg.mxu0
  %v3824 = vsel %vm113, %v1695, 0
  %3826 = vmatprep.subr.mxu0 0.0
  %3827 = vmatpush1.msra.mxu0 %v1694
  %3828 = vmatprep.subr.mxu0 0.0
  %3829 = vmatpush1.msra.mxu0 %v3824
  %3830 = vmatprep.subr.mxu0 0.0
  %3831 = vmatpush1.msra.mxu0 0.0
  %3832 = vmatprep.subr.mxu0 0.0
  %3833 = vmatpush1.msra.mxu0 0.0
  %3834 = vmatprep.subr.mxu0 0.0
  %3835 = vmatpush1.msra.mxu0 0.0
  %3836 = vmatprep.subr.mxu0 0.0
  %3837 = vmatpush1.msra.mxu0 0.0
  %3838 = vmatprep.subr.mxu0 0.0
  %3839 = vmatpush1.msra.mxu0 0.0
  %3840 = vmatprep.subr.mxu0 0.0
  %3841 = vmatpush1.msra.mxu0 0.0
  %3842 = vmatprep.subr.mxu0 0.0
  %3843 = vmatpush1.msra.mxu0 0.0
  %3844 = vmatprep.subr.mxu0 0.0
  %3845 = vmatpush1.msra.mxu0 0.0
  %3846 = vmatprep.subr.mxu0 0.0
  %3847 = vmatpush1.msra.mxu0 0.0
  %3848 = vmatprep.subr.mxu0 0.0
  %3849 = vmatpush1.msra.mxu0 0.0
  %3850 = vmatprep.subr.mxu0 0.0
  %3851 = vmatpush1.msra.mxu0 0.0
  %3852 = vmatprep.subr.mxu0 0.0
  %3853 = vmatpush1.msra.mxu0 0.0
  %3854 = vmatprep.subr.mxu0 0.0
  %3855 = vmatpush1.msra.mxu0 0.0
  %3856 = vmatprep.subr.mxu0 0.0
  %3857 = vmatpush1.msra.mxu0 0.0
  %3858 = vmatprep.subr.mxu0 0.0
  %3859 = vmatpush1.msra.mxu0 0.0
  %3860 = vmatprep.subr.mxu0 0.0
  %3861 = vmatpush1.msra.mxu0 0.0
  %3862 = vmatprep.subr.mxu0 0.0
  %3863 = vmatpush1.msra.mxu0 0.0
  %3864 = vmatprep.subr.mxu0 0.0
  %3865 = vmatpush1.msra.mxu0 0.0
  %3866 = vmatprep.subr.mxu0 0.0
  %3867 = vmatpush1.msra.mxu0 0.0
  %3868 = vmatprep.subr.mxu0 0.0
  %3869 = vmatpush1.msra.mxu0 0.0
  %3870 = vmatprep.subr.mxu0 0.0
  %3871 = vmatpush1.msra.mxu0 0.0
  %3872 = vmatprep.subr.mxu0 0.0
  %3873 = vmatpush1.msra.mxu0 0.0
  %3874 = vmatprep.subr.mxu0 0.0
  %3875 = vmatpush1.msra.mxu0 0.0
  %3876 = vmatprep.subr.mxu0 0.0
  %3877 = vmatpush1.msra.mxu0 0.0
  %3878 = vmatprep.subr.mxu0 0.0
  %3879 = vmatpush1.msra.mxu0 0.0
  %3880 = vmatprep.subr.mxu0 0.0
  %3881 = vmatpush1.msra.mxu0 0.0
  %3882 = vmatprep.subr.mxu0 0.0
  %3883 = vmatpush1.msra.mxu0 0.0
  %3884 = vmatprep.subr.mxu0 0.0
  %3885 = vmatpush1.msra.mxu0 0.0
  %3886 = vmatprep.subr.mxu0 0.0
  %3887 = vmatpush1.msra.mxu0 0.0
  %3888 = vmatprep.subr.mxu0 0.0
  %3889 = vmatpush1.msra.mxu0 0.0
  %3890 = vmatprep.mubr.f32.mxu0 0.0
  %3891 = vmatmul.mubr.f32.gmra.mrb[0].mxu0 %v3740
  %v3892 = vpop.f32.mrb[0].mxu0
  %v3893 = vadd.f32 0.0, %v3892
  %v3894 = vpop.f32.mrb[0].mxu0
  %3895 = vmatprep.mubr.f32.mxu0 0.0
  %3896 = vmatmul.mubr.f32.gmra.mrb[0].mxu0 %v3743
  %v3897 = vpop.f32.mrb[0].mxu0
  %v3898 = vadd.f32 0.0, %v3897
  %v3899 = vpop.f32.mrb[0].mxu0
  %3900 = vdwg.mxu0
  %v3901 = vpack.c.bf16 %v3820, %v3815
  %v3902 = vld [vmem:[%s15] sm:$0xf]
  %v3903 = vld [vmem:[%s15 + $0x4] sm:$0xf]
  %v3904 = vld [vmem:[%s15 + $0x8] sm:$0xf]
  %v3905 = vld [vmem:[%s15 + $0xc] sm:$0xf]
  %v3906 = vld [vmem:[%s15 + $0x10] sm:$0xf]
  %v3907 = vld [vmem:[%s15 + $0x14] sm:$0xf]
  %v3908 = vld [vmem:[%s15 + $0x18] sm:$0xf]
  %v3909 = vld [vmem:[%s15 + $0x1c] sm:$0xf]
  %v3910 = vld [vmem:[%s15 + $0x20] sm:$0xf]
  %v3911 = vld [vmem:[%s15 + $0x24] sm:$0xf]
  %v3912 = vld [vmem:[%s15 + $0x28] sm:$0xf]
  %v3913 = vld [vmem:[%s15 + $0x2c] sm:$0xf]
  %v3914 = vld [vmem:[%s15 + $0x30] sm:$0xf]
  %v3915 = vld [vmem:[%s15 + $0x34] sm:$0xf]
  %v3916 = vld [vmem:[%s15 + $0x38] sm:$0xf]
  %v3917 = vld [vmem:[%s15 + $0x3c] sm:$0xf]
  %v3918 = vpack.c.bf16 %v3736, %v3733
  %v3919 = vld [vmem:[%s16] sm:$0xf]
  %v3920 = vld [vmem:[%s16 + $0x4] sm:$0xf]
  %v3921 = vld [vmem:[%s16 + $0x8] sm:$0xf]
  %v3922 = vld [vmem:[%s16 + $0xc] sm:$0xf]
  %v3923 = vld [vmem:[%s16 + $0x10] sm:$0xf]
  %v3924 = vld [vmem:[%s16 + $0x14] sm:$0xf]
  %v3925 = vld [vmem:[%s16 + $0x18] sm:$0xf]
  %v3926 = vld [vmem:[%s16 + $0x1c] sm:$0xf]
  %v3927 = vld [vmem:[%s16 + $0x20] sm:$0xf]
  %v3928 = vld [vmem:[%s16 + $0x24] sm:$0xf]
  %v3929 = vld [vmem:[%s16 + $0x28] sm:$0xf]
  %v3930 = vld [vmem:[%s16 + $0x2c] sm:$0xf]
  %v3931 = vld [vmem:[%s16 + $0x30] sm:$0xf]
  %v3932 = vld [vmem:[%s16 + $0x34] sm:$0xf]
  %v3933 = vld [vmem:[%s16 + $0x38] sm:$0xf]
  %v3934 = vld [vmem:[%s16 + $0x3c] sm:$0xf]
  %v3951 = vunpack.c.l.b16 %v3919
  %v3952 = vunpack.c.l.b16 %v3920
  %v3953 = vunpack.c.l.b16 %v3921
  %v3954 = vunpack.c.l.b16 %v3922
  %v3955 = vunpack.c.l.b16 %v3923
  %v3956 = vunpack.c.l.b16 %v3924
  %v3957 = vunpack.c.l.b16 %v3925
  %v3958 = vunpack.c.l.b16 %v3926
  %v3959 = vunpack.c.l.b16 %v3927
  %v3960 = vunpack.c.l.b16 %v3928
  %v3961 = vunpack.c.l.b16 %v3929
  %v3962 = vunpack.c.l.b16 %v3930
  %v3963 = vunpack.c.l.b16 %v3931
  %v3964 = vunpack.c.l.b16 %v3932
  %v3965 = vunpack.c.l.b16 %v3933
  %v3966 = vunpack.c.l.b16 %v3934
  %v3967 = vpack.c.b16 %v3952, %v3951
  %v3968 = vpack.c.b16 %v3954, %v3953
  %v3969 = vpack.c.b16 %v3956, %v3955
  %v3970 = vpack.c.b16 %v3958, %v3957
  %v3971 = vpack.c.b16 %v3960, %v3959
  %v3972 = vpack.c.b16 %v3962, %v3961
  %v3973 = vpack.c.b16 %v3964, %v3963
  %v3974 = vpack.c.b16 %v3966, %v3965
  %3983 = vmatprep.subr.bf16.mxu0 0
  %3984 = vmatpush1.bf16.msra.mxu0 %v3967
  %3985 = vmatprep.subr.bf16.mxu0 0
  %3986 = vmatpush1.bf16.msra.mxu0 %v3968
  %3987 = vmatprep.subr.bf16.mxu0 0
  %3988 = vmatpush1.bf16.msra.mxu0 %v3969
  %3989 = vmatprep.subr.bf16.mxu0 0
  %3990 = vmatpush1.bf16.msra.mxu0 %v3970
  %3991 = vmatprep.subr.bf16.mxu0 0
  %3992 = vmatpush1.bf16.msra.mxu0 %v3971
  %3993 = vmatprep.subr.bf16.mxu0 0
  %3994 = vmatpush1.bf16.msra.mxu0 %v3972
  %3995 = vmatprep.subr.bf16.mxu0 0
  %3996 = vmatpush1.bf16.msra.mxu0 %v3973
  %3997 = vmatprep.subr.bf16.mxu0 0
  %3998 = vmatpush1.bf16.msra.mxu0 %v3974
  %3999 = vmatprep.subr.bf16.mxu0 0
  %4000 = vmatpush1.bf16.msra.mxu0 0
  %4001 = vmatprep.subr.bf16.mxu0 0
  %4002 = vmatpush1.bf16.msra.mxu0 0
  %4003 = vmatprep.subr.bf16.mxu0 0
  %4004 = vmatpush1.bf16.msra.mxu0 0
  %4005 = vmatprep.subr.bf16.mxu0 0
  %4006 = vmatpush1.bf16.msra.mxu0 0
  %4007 = vmatprep.subr.bf16.mxu0 0
  %4008 = vmatpush1.bf16.msra.mxu0 0
  %4009 = vmatprep.subr.bf16.mxu0 0
  %4010 = vmatpush1.bf16.msra.mxu0 0
  %4011 = vmatprep.subr.bf16.mxu0 0
  %4012 = vmatpush1.bf16.msra.mxu0 0
  %4013 = vmatprep.subr.bf16.mxu0 0
  %4014 = vmatpush1.bf16.msra.mxu0 0
  %4015 = vmatprep.mubr.bf16.mxu0 0
  %4016 = vmatmul.mubr.bf16.gmra.mrb[0].mxu0 %v3918
  %v4017 = vpop.f32.mrb[0].mxu0
  %v4018 = vadd.f32 0.0, %v4017
  %v4019 = vpop.f32.mrb[0].mxu0
  %v4020 = vpop.f32.mrb[0].mxu0
  %v4021 = vadd.f32 0.0, %v4020
  %v4022 = vpop.f32.mrb[0].mxu0
  %4023 = vdwg.mxu0
  %v4040 = vunpack.c.l.b16 %v3902
  %v4041 = vunpack.c.l.b16 %v3903
  %v4042 = vunpack.c.l.b16 %v3904
  %v4043 = vunpack.c.l.b16 %v3905
  %v4044 = vunpack.c.l.b16 %v3906
  %v4045 = vunpack.c.l.b16 %v3907
  %v4046 = vunpack.c.l.b16 %v3908
  %v4047 = vunpack.c.l.b16 %v3909
  %v4048 = vunpack.c.l.b16 %v3910
  %v4049 = vunpack.c.l.b16 %v3911
  %v4050 = vunpack.c.l.b16 %v3912
  %v4051 = vunpack.c.l.b16 %v3913
  %v4052 = vunpack.c.l.b16 %v3914
  %v4053 = vunpack.c.l.b16 %v3915
  %v4054 = vunpack.c.l.b16 %v3916
  %v4055 = vunpack.c.l.b16 %v3917
  %v4056 = vpack.c.b16 %v4041, %v4040
  %v4057 = vpack.c.b16 %v4043, %v4042
  %v4058 = vpack.c.b16 %v4045, %v4044
  %v4059 = vpack.c.b16 %v4047, %v4046
  %v4060 = vpack.c.b16 %v4049, %v4048
  %v4061 = vpack.c.b16 %v4051, %v4050
  %v4062 = vpack.c.b16 %v4053, %v4052
  %v4063 = vpack.c.b16 %v4055, %v4054
  %4072 = vmatprep.subr.bf16.mxu0 0
  %4073 = vmatpush1.bf16.msra.mxu0 %v4056
  %4074 = vmatprep.subr.bf16.mxu0 0
  %4075 = vmatpush1.bf16.msra.mxu0 %v4057
  %4076 = vmatprep.subr.bf16.mxu0 0
  %4077 = vmatpush1.bf16.msra.mxu0 %v4058
  %4078 = vmatprep.subr.bf16.mxu0 0
  %4079 = vmatpush1.bf16.msra.mxu0 %v4059
  %4080 = vmatprep.subr.bf16.mxu0 0
  %4081 = vmatpush1.bf16.msra.mxu0 %v4060
  %4082 = vmatprep.subr.bf16.mxu0 0
  %4083 = vmatpush1.bf16.msra.mxu0 %v4061
  %4084 = vmatprep.subr.bf16.mxu0 0
  %4085 = vmatpush1.bf16.msra.mxu0 %v4062
  %4086 = vmatprep.subr.bf16.mxu0 0
  %4087 = vmatpush1.bf16.msra.mxu0 %v4063
  %4088 = vmatprep.subr.bf16.mxu0 0
  %4089 = vmatpush1.bf16.msra.mxu0 0
  %4090 = vmatprep.subr.bf16.mxu0 0
  %4091 = vmatpush1.bf16.msra.mxu0 0
  %4092 = vmatprep.subr.bf16.mxu0 0
  %4093 = vmatpush1.bf16.msra.mxu0 0
  %4094 = vmatprep.subr.bf16.mxu0 0
  %4095 = vmatpush1.bf16.msra.mxu0 0
  %4096 = vmatprep.subr.bf16.mxu0 0
  %4097 = vmatpush1.bf16.msra.mxu0 0
  %4098 = vmatprep.subr.bf16.mxu0 0
  %4099 = vmatpush1.bf16.msra.mxu0 0
  %4100 = vmatprep.subr.bf16.mxu0 0
  %4101 = vmatpush1.bf16.msra.mxu0 0
  %4102 = vmatprep.subr.bf16.mxu0 0
  %4103 = vmatpush1.bf16.msra.mxu0 0
  %4104 = vmatprep.mubr.bf16.mxu0 0
  %4105 = vmatmul.mubr.bf16.gmra.mrb[0].mxu0 %v3901
  %v4106 = vpop.f32.mrb[0].mxu0
  %v4107 = vadd.f32 %v4018, %v4106
  %v4108 = vpop.f32.mrb[0].mxu0
  %v4109 = vpop.f32.mrb[0].mxu0
  %v4110 = vadd.f32 %v4021, %v4109
  %v4111 = vpop.f32.mrb[0].mxu0
  %4112 = vdwg.mxu0
  %v4113 = vpack.c.bf16 %v3898, %v3893
  %v4114 = vld [vmem:[%s17] sm:$0xf]
  %v4115 = vld [vmem:[%s17 + $0x4] sm:$0xf]
  %v4116 = vld [vmem:[%s17 + $0x8] sm:$0xf]
  %v4117 = vld [vmem:[%s17 + $0xc] sm:$0xf]
  %v4118 = vld [vmem:[%s17 + $0x10] sm:$0xf]
  %v4119 = vld [vmem:[%s17 + $0x14] sm:$0xf]
  %v4120 = vld [vmem:[%s17 + $0x18] sm:$0xf]
  %v4121 = vld [vmem:[%s17 + $0x1c] sm:$0xf]
  %v4122 = vld [vmem:[%s17 + $0x20] sm:$0xf]
  %v4123 = vld [vmem:[%s17 + $0x24] sm:$0xf]
  %v4124 = vld [vmem:[%s17 + $0x28] sm:$0xf]
  %v4125 = vld [vmem:[%s17 + $0x2c] sm:$0xf]
  %v4126 = vld [vmem:[%s17 + $0x30] sm:$0xf]
  %v4127 = vld [vmem:[%s17 + $0x34] sm:$0xf]
  %v4128 = vld [vmem:[%s17 + $0x38] sm:$0xf]
  %v4129 = vld [vmem:[%s17 + $0x3c] sm:$0xf]
  %v4146 = vunpack.c.l.b16 %v4114
  %v4147 = vunpack.c.l.b16 %v4115
  %v4148 = vunpack.c.l.b16 %v4116
  %v4149 = vunpack.c.l.b16 %v4117
  %v4150 = vunpack.c.l.b16 %v4118
  %v4151 = vunpack.c.l.b16 %v4119
  %v4152 = vunpack.c.l.b16 %v4120
  %v4153 = vunpack.c.l.b16 %v4121
  %v4154 = vunpack.c.l.b16 %v4122
  %v4155 = vunpack.c.l.b16 %v4123
  %v4156 = vunpack.c.l.b16 %v4124
  %v4157 = vunpack.c.l.b16 %v4125
  %v4158 = vunpack.c.l.b16 %v4126
  %v4159 = vunpack.c.l.b16 %v4127
  %v4160 = vunpack.c.l.b16 %v4128
  %v4161 = vunpack.c.l.b16 %v4129
  %v4162 = vpack.c.b16 %v4147, %v4146
  %v4163 = vpack.c.b16 %v4149, %v4148
  %v4164 = vpack.c.b16 %v4151, %v4150
  %v4165 = vpack.c.b16 %v4153, %v4152
  %v4166 = vpack.c.b16 %v4155, %v4154
  %v4167 = vpack.c.b16 %v4157, %v4156
  %v4168 = vpack.c.b16 %v4159, %v4158
  %v4169 = vpack.c.b16 %v4161, %v4160
  %4178 = vmatprep.subr.bf16.mxu0 0
  %4179 = vmatpush1.bf16.msra.mxu0 %v4162
  %4180 = vmatprep.subr.bf16.mxu0 0
  %4181 = vmatpush1.bf16.msra.mxu0 %v4163
  %4182 = vmatprep.subr.bf16.mxu0 0
  %4183 = vmatpush1.bf16.msra.mxu0 %v4164
  %4184 = vmatprep.subr.bf16.mxu0 0
  %4185 = vmatpush1.bf16.msra.mxu0 %v4165
  %4186 = vmatprep.subr.bf16.mxu0 0
  %4187 = vmatpush1.bf16.msra.mxu0 %v4166
  %4188 = vmatprep.subr.bf16.mxu0 0
  %4189 = vmatpush1.bf16.msra.mxu0 %v4167
  %4190 = vmatprep.subr.bf16.mxu0 0
  %4191 = vmatpush1.bf16.msra.mxu0 %v4168
  %4192 = vmatprep.subr.bf16.mxu0 0
  %4193 = vmatpush1.bf16.msra.mxu0 %v4169
  %4194 = vmatprep.subr.bf16.mxu0 0
  %4195 = vmatpush1.bf16.msra.mxu0 0
  %4196 = vmatprep.subr.bf16.mxu0 0
  %4197 = vmatpush1.bf16.msra.mxu0 0
  %4198 = vmatprep.subr.bf16.mxu0 0
  %4199 = vmatpush1.bf16.msra.mxu0 0
  %4200 = vmatprep.subr.bf16.mxu0 0
  %4201 = vmatpush1.bf16.msra.mxu0 0
  %4202 = vmatprep.subr.bf16.mxu0 0
  %4203 = vmatpush1.bf16.msra.mxu0 0
  %4204 = vmatprep.subr.bf16.mxu0 0
  %4205 = vmatpush1.bf16.msra.mxu0 0
  %4206 = vmatprep.subr.bf16.mxu0 0
  %4207 = vmatpush1.bf16.msra.mxu0 0
  %4208 = vmatprep.subr.bf16.mxu0 0
  %4209 = vmatpush1.bf16.msra.mxu0 0
  %4210 = vmatprep.mubr.bf16.mxu0 0
  %4211 = vmatmul.mubr.bf16.gmra.mrb[0].mxu0 %v4113
  %v4212 = vpop.f32.mrb[0].mxu0
  %v4213 = vadd.f32 0.0, %v4212
  %v4214 = vpop.f32.mrb[0].mxu0
  %v4215 = vpop.f32.mrb[0].mxu0
  %v4216 = vadd.f32 0.0, %v4215
  %v4217 = vpop.f32.mrb[0].mxu0
  %4218 = vdwg.mxu0
  %v4219 = vadd.f32 %v4107, %v4213
  %v4220 = vadd.f32 %v4110, %v4216
  %v4221 = vld [vmem:[%s18] sm:$0xf]
  %v4222 = vld [vmem:[%s18 + $0x4] sm:$0xf]
  %v4223 = vld [vmem:[%s18 + $0x8] sm:$0xf]
  %v4224 = vld [vmem:[%s18 + $0xc] sm:$0xf]
  %v4225 = vld [vmem:[%s18 + $0x10] sm:$0xf]
  %v4226 = vld [vmem:[%s18 + $0x14] sm:$0xf]
  %v4227 = vld [vmem:[%s18 + $0x18] sm:$0xf]
  %v4228 = vld [vmem:[%s18 + $0x1c] sm:$0xf]
  %v4229 = vld [vmem:[%s18 + $0x20] sm:$0xf]
  %v4230 = vld [vmem:[%s18 + $0x24] sm:$0xf]
  %v4231 = vld [vmem:[%s18 + $0x28] sm:$0xf]
  %v4232 = vld [vmem:[%s18 + $0x2c] sm:$0xf]
  %v4233 = vld [vmem:[%s18 + $0x30] sm:$0xf]
  %v4234 = vld [vmem:[%s18 + $0x34] sm:$0xf]
  %v4235 = vld [vmem:[%s18 + $0x38] sm:$0xf]
  %v4236 = vld [vmem:[%s18 + $0x3c] sm:$0xf]
  %v4253 = vunpack.c.l.b16 %v4221
  %v4254 = vunpack.c.l.b16 %v4222
  %v4255 = vunpack.c.l.b16 %v4223
  %v4256 = vunpack.c.l.b16 %v4224
  %v4257 = vunpack.c.l.b16 %v4225
  %v4258 = vunpack.c.l.b16 %v4226
  %v4259 = vunpack.c.l.b16 %v4227
  %v4260 = vunpack.c.l.b16 %v4228
  %v4261 = vunpack.c.l.b16 %v4229
  %v4262 = vunpack.c.l.b16 %v4230
  %v4263 = vunpack.c.l.b16 %v4231
  %v4264 = vunpack.c.l.b16 %v4232
  %v4265 = vunpack.c.l.b16 %v4233
  %v4266 = vunpack.c.l.b16 %v4234
  %v4267 = vunpack.c.l.b16 %v4235
  %v4268 = vunpack.c.l.b16 %v4236
  %v4269 = vpack.c.b16 %v4254, %v4253
  %v4270 = vpack.c.b16 %v4256, %v4255
  %v4271 = vpack.c.b16 %v4258, %v4257
  %v4272 = vpack.c.b16 %v4260, %v4259
  %v4273 = vpack.c.b16 %v4262, %v4261
  %v4274 = vpack.c.b16 %v4264, %v4263
  %v4275 = vpack.c.b16 %v4266, %v4265
  %v4276 = vpack.c.b16 %v4268, %v4267
  %4285 = vmatprep.subr.bf16.mxu0 0
  %4286 = vmatpush1.bf16.msra.mxu0 %v4269
  %4287 = vmatprep.subr.bf16.mxu0 0
  %4288 = vmatpush1.bf16.msra.mxu0 %v4270
  %4289 = vmatprep.subr.bf16.mxu0 0
  %4290 = vmatpush1.bf16.msra.mxu0 %v4271
  %4291 = vmatprep.subr.bf16.mxu0 0
  %4292 = vmatpush1.bf16.msra.mxu0 %v4272
  %4293 = vmatprep.subr.bf16.mxu0 0
  %4294 = vmatpush1.bf16.msra.mxu0 %v4273
  %4295 = vmatprep.subr.bf16.mxu0 0
  %4296 = vmatpush1.bf16.msra.mxu0 %v4274
  %4297 = vmatprep.subr.bf16.mxu0 0
  %4298 = vmatpush1.bf16.msra.mxu0 %v4275
  %4299 = vmatprep.subr.bf16.mxu0 0
  %4300 = vmatpush1.bf16.msra.mxu0 %v4276
  %4301 = vmatprep.subr.bf16.mxu0 0
  %4302 = vmatpush1.bf16.msra.mxu0 0
  %4303 = vmatprep.subr.bf16.mxu0 0
  %4304 = vmatpush1.bf16.msra.mxu0 0
  %4305 = vmatprep.subr.bf16.mxu0 0
  %4306 = vmatpush1.bf16.msra.mxu0 0
  %4307 = vmatprep.subr.bf16.mxu0 0
  %4308 = vmatpush1.bf16.msra.mxu0 0
  %4309 = vmatprep.subr.bf16.mxu0 0
  %4310 = vmatpush1.bf16.msra.mxu0 0
  %4311 = vmatprep.subr.bf16.mxu0 0
  %4312 = vmatpush1.bf16.msra.mxu0 0
  %4313 = vmatprep.subr.bf16.mxu0 0
  %4314 = vmatpush1.bf16.msra.mxu0 0
  %4315 = vmatprep.subr.bf16.mxu0 0
  %4316 = vmatpush1.bf16.msra.mxu0 0
  %4317 = vmatprep.mubr.bf16.mxu0 0
  %4318 = vmatmul.mubr.bf16.gmra.mrb[0].mxu0 %v1696
  %v4319 = vpop.f32.mrb[0].mxu0
  %v4320 = vadd.f32 0.0, %v4319
  %v4321 = vpop.f32.mrb[0].mxu0
  %v4322 = vpop.f32.mrb[0].mxu0
  %v4323 = vadd.f32 0.0, %v4322
  %v4324 = vpop.f32.mrb[0].mxu0
  %4325 = vdwg.mxu0
  %v4326 = vadd.f32 %v4219, %v4320
  %v4327 = vadd.f32 %v4220, %v4323
  %v4328 = vsel %vm113, %v4327, 0.0
  %v4329 = vadd.f32 %v4326, %v4328
  %v4330 = vrot.slane %v4329, 4
  %v4331 = vadd.f32 %v4329, %v4330
  %v4332 = vrot.slane %v4331, 2
  %v4333 = vadd.f32 %v4331, %v4332
  %v4334 = vrot.slane %v4333, 1
  %v4335 = vadd.f32 %v4333, %v4334
  %v4336 = vmul.f32 %v4326, %v4326
  %v4337 = vmul.f32 %v4327, %v4327
  %v4338 = vsel %vm113, %v4337, 0.0
  %v4339 = vadd.f32 %v4336, %v4338
  %v4340 = vrot.slane %v4339, 4
  %v4341 = vadd.f32 %v4339, %v4340
  %v4342 = vrot.slane %v4341, 2
  %v4343 = vadd.f32 %v4341, %v4342
  %v4344 = vrot.slane %v4343, 1
  %v4345 = vadd.f32 %v4343, %v4344
  %4346 = vmatprep.subr.mxu0 0.0
  %4347 = vmatpush1.msra.mxu0 %v964
  %4348 = vmatprep.subr.mxu0 0.0
  %4349 = vmatpush1.msra.mxu0 %v965
  %4350 = vmatprep.subr.mxu0 0.0
  %4351 = vmatpush1.msra.mxu0 %v966
  %4352 = vmatprep.subr.mxu0 0.0
  %4353 = vmatpush1.msra.mxu0 %v967
  %4354 = vmatprep.subr.mxu0 0.0
  %4355 = vmatpush1.msra.mxu0 %v968
  %4356 = vmatprep.subr.mxu0 0.0
  %4357 = vmatpush1.msra.mxu0 %v969
  %4358 = vmatprep.subr.mxu0 0.0
  %4359 = vmatpush1.msra.mxu0 %v970
  %4360 = vmatprep.subr.mxu0 0.0
  %4361 = vmatpush1.msra.mxu0 %v971
  %4362 = vmatprep.subr.mxu0 0.0
  %4363 = vmatpush1.msra.mxu0 %v972
  %4364 = vmatprep.subr.mxu0 0.0
  %4365 = vmatpush1.msra.mxu0 %v973
  %4366 = vmatprep.subr.mxu0 0.0
  %4367 = vmatpush1.msra.mxu0 %v974
  %4368 = vmatprep.subr.mxu0 0.0
  %4369 = vmatpush1.msra.mxu0 %v975
  %4370 = vmatprep.subr.mxu0 0.0
  %4371 = vmatpush1.msra.mxu0 %v976
  %4372 = vmatprep.subr.mxu0 0.0
  %4373 = vmatpush1.msra.mxu0 %v977
  %4374 = vmatprep.subr.mxu0 0.0
  %4375 = vmatpush1.msra.mxu0 %v978
  %4376 = vmatprep.subr.mxu0 0.0
  %4377 = vmatpush1.msra.mxu0 %v979
  %4378 = vmatprep.subr.mxu0 0.0
  %4379 = vmatpush1.msra.mxu0 0.0
  %4380 = vmatprep.subr.mxu0 0.0
  %4381 = vmatpush1.msra.mxu0 0.0
  %4382 = vmatprep.subr.mxu0 0.0
  %4383 = vmatpush1.msra.mxu0 0.0
  %4384 = vmatprep.subr.mxu0 0.0
  %4385 = vmatpush1.msra.mxu0 0.0
  %4386 = vmatprep.subr.mxu0 0.0
  %4387 = vmatpush1.msra.mxu0 0.0
  %4388 = vmatprep.subr.mxu0 0.0
  %4389 = vmatpush1.msra.mxu0 0.0
  %4390 = vmatprep.subr.mxu0 0.0
  %4391 = vmatpush1.msra.mxu0 0.0
  %4392 = vmatprep.subr.mxu0 0.0
  %4393 = vmatpush1.msra.mxu0 0.0
  %4394 = vmatprep.subr.mxu0 0.0
  %4395 = vmatpush1.msra.mxu0 0.0
  %4396 = vmatprep.subr.mxu0 0.0
  %4397 = vmatpush1.msra.mxu0 0.0
  %4398 = vmatprep.subr.mxu0 0.0
  %4399 = vmatpush1.msra.mxu0 0.0
  %4400 = vmatprep.subr.mxu0 0.0
  %4401 = vmatpush1.msra.mxu0 0.0
  %4402 = vmatprep.subr.mxu0 0.0
  %4403 = vmatpush1.msra.mxu0 0.0
  %4404 = vmatprep.subr.mxu0 0.0
  %4405 = vmatpush1.msra.mxu0 0.0
  %4406 = vmatprep.subr.mxu0 0.0
  %4407 = vmatpush1.msra.mxu0 0.0
  %4408 = vmatprep.subr.mxu0 0.0
  %4409 = vmatpush1.msra.mxu0 0.0
  %4410 = vmatprep.mubr.f32.mxu0 0.0
  %4411 = vmatmul.mubr.f32.gmra.mrb[0].mxu0 %v4335
  %v4412 = vpop.f32.mrb[0].mxu0
  %v4413 = vadd.f32 0.0, %v4412
  %v4414 = vpop.f32.mrb[0].mxu0
  %4415 = vdwg.mxu0
  %4416 = vmatprep.subr.mxu0 0.0
  %4417 = vmatpush1.msra.mxu0 %v964
  %4418 = vmatprep.subr.mxu0 0.0
  %4419 = vmatpush1.msra.mxu0 %v965
  %4420 = vmatprep.subr.mxu0 0.0
  %4421 = vmatpush1.msra.mxu0 %v966
  %4422 = vmatprep.subr.mxu0 0.0
  %4423 = vmatpush1.msra.mxu0 %v967
  %4424 = vmatprep.subr.mxu0 0.0
  %4425 = vmatpush1.msra.mxu0 %v968
  %4426 = vmatprep.subr.mxu0 0.0
  %4427 = vmatpush1.msra.mxu0 %v969
  %4428 = vmatprep.subr.mxu0 0.0
  %4429 = vmatpush1.msra.mxu0 %v970
  %4430 = vmatprep.subr.mxu0 0.0
  %4431 = vmatpush1.msra.mxu0 %v971
  %4432 = vmatprep.subr.mxu0 0.0
  %4433 = vmatpush1.msra.mxu0 %v972
  %4434 = vmatprep.subr.mxu0 0.0
  %4435 = vmatpush1.msra.mxu0 %v973
  %4436 = vmatprep.subr.mxu0 0.0
  %4437 = vmatpush1.msra.mxu0 %v974
  %4438 = vmatprep.subr.mxu0 0.0
  %4439 = vmatpush1.msra.mxu0 %v975
  %4440 = vmatprep.subr.mxu0 0.0
  %4441 = vmatpush1.msra.mxu0 %v976
  %4442 = vmatprep.subr.mxu0 0.0
  %4443 = vmatpush1.msra.mxu0 %v977
  %4444 = vmatprep.subr.mxu0 0.0
  %4445 = vmatpush1.msra.mxu0 %v978
  %4446 = vmatprep.subr.mxu0 0.0
  %4447 = vmatpush1.msra.mxu0 %v979
  %4448 = vmatprep.subr.mxu0 0.0
  %4449 = vmatpush1.msra.mxu0 0.0
  %4450 = vmatprep.subr.mxu0 0.0
  %4451 = vmatpush1.msra.mxu0 0.0
  %4452 = vmatprep.subr.mxu0 0.0
  %4453 = vmatpush1.msra.mxu0 0.0
  %4454 = vmatprep.subr.mxu0 0.0
  %4455 = vmatpush1.msra.mxu0 0.0
  %4456 = vmatprep.subr.mxu0 0.0
  %4457 = vmatpush1.msra.mxu0 0.0
  %4458 = vmatprep.subr.mxu0 0.0
  %4459 = vmatpush1.msra.mxu0 0.0
  %4460 = vmatprep.subr.mxu0 0.0
  %4461 = vmatpush1.msra.mxu0 0.0
  %4462 = vmatprep.subr.mxu0 0.0
  %4463 = vmatpush1.msra.mxu0 0.0
  %4464 = vmatprep.subr.mxu0 0.0
  %4465 = vmatpush1.msra.mxu0 0.0
  %4466 = vmatprep.subr.mxu0 0.0
  %4467 = vmatpush1.msra.mxu0 0.0
  %4468 = vmatprep.subr.mxu0 0.0
  %4469 = vmatpush1.msra.mxu0 0.0
  %4470 = vmatprep.subr.mxu0 0.0
  %4471 = vmatpush1.msra.mxu0 0.0
  %4472 = vmatprep.subr.mxu0 0.0
  %4473 = vmatpush1.msra.mxu0 0.0
  %4474 = vmatprep.subr.mxu0 0.0
  %4475 = vmatpush1.msra.mxu0 0.0
  %4476 = vmatprep.subr.mxu0 0.0
  %4477 = vmatpush1.msra.mxu0 0.0
  %4478 = vmatprep.subr.mxu0 0.0
  %4479 = vmatpush1.msra.mxu0 0.0
  %4480 = vmatprep.mubr.f32.mxu0 0.0
  %4481 = vmatmul.mubr.f32.gmra.mrb[0].mxu0 %v4345
  %v4482 = vpop.f32.mrb[0].mxu0
  %v4483 = vadd.f32 0.0, %v4482
  %v4484 = vpop.f32.mrb[0].mxu0
  %4485 = vdwg.mxu0
  %v4486 = vmul.f32 %v4413, %v4413
  %v4487 = vsub.f32 %v4483, %v4486
  %v4488 = vlaneseq
  %v4489 = vshrl.u32 %v4488, 7
  %v4490 = vsub.s32 0, %v4489
  %v4491 = vrot.slane %v4413, %v4490
  %v4492 = vsub.f32 %v4326, %v4491
  %v4493 = vsub.f32 %v4327, %v4491
  %v4494 = vadd.f32 %v4487, 1e-05
  %v4495 = vrsqrt.pop %v4494
  %v4496 = vlaneseq
  %v4497 = vshrl.u32 %v4496, 7
  %v4498 = vsub.s32 0, %v4497
  %v4499 = vrot.slane %v4495, %v4498
  %v4500 = vmul.f32 %v4492, %v4499
  %v4501 = vmul.f32 %v4493, %v4499
  %vm4502 = vcmp.gt.f32.partialorder %v4500, 0.0
  %vm4503 = vcmp.gt.f32.partialorder %v4501, 0.0
  %v4504 = vmul.f32 %v4500, 0.25
  %v4505 = vmul.f32 %v4501, 0.25
  %v4506 = vsel %vm4502, %v4500, %v4504
  %v4507 = vsel %vm4503, %v4501, %v4505
  %v4509 = vsel %vm113, %v4507, 0
  %4511 = vmatprep.subr.mxu0 0.0
  %4512 = vmatpush1.msra.mxu0 %v4506
  %4513 = vmatprep.subr.mxu0 0.0
  %4514 = vmatpush1.msra.mxu0 %v4509
  %4515 = vmatprep.subr.mxu0 0.0
  %4516 = vmatpush1.msra.mxu0 0.0
  %4517 = vmatprep.subr.mxu0 0.0
  %4518 = vmatpush1.msra.mxu0 0.0
  %4519 = vmatprep.subr.mxu0 0.0
  %4520 = vmatpush1.msra.mxu0 0.0
  %4521 = vmatprep.subr.mxu0 0.0
  %4522 = vmatpush1.msra.mxu0 0.0
  %4523 = vmatprep.subr.mxu0 0.0
  %4524 = vmatpush1.msra.mxu0 0.0
  %4525 = vmatprep.subr.mxu0 0.0
  %4526 = vmatpush1.msra.mxu0 0.0
  %4527 = vmatprep.subr.mxu0 0.0
  %4528 = vmatpush1.msra.mxu0 0.0
  %4529 = vmatprep.subr.mxu0 0.0
  %4530 = vmatpush1.msra.mxu0 0.0
  %4531 = vmatprep.subr.mxu0 0.0
  %4532 = vmatpush1.msra.mxu0 0.0
  %4533 = vmatprep.subr.mxu0 0.0
  %4534 = vmatpush1.msra.mxu0 0.0
  %4535 = vmatprep.subr.mxu0 0.0
  %4536 = vmatpush1.msra.mxu0 0.0
  %4537 = vmatprep.subr.mxu0 0.0
  %4538 = vmatpush1.msra.mxu0 0.0
  %4539 = vmatprep.subr.mxu0 0.0
  %4540 = vmatpush1.msra.mxu0 0.0
  %4541 = vmatprep.subr.mxu0 0.0
  %4542 = vmatpush1.msra.mxu0 0.0
  %4543 = vmatprep.subr.mxu0 0.0
  %4544 = vmatpush1.msra.mxu0 0.0
  %4545 = vmatprep.subr.mxu0 0.0
  %4546 = vmatpush1.msra.mxu0 0.0
  %4547 = vmatprep.subr.mxu0 0.0
  %4548 = vmatpush1.msra.mxu0 0.0
  %4549 = vmatprep.subr.mxu0 0.0
  %4550 = vmatpush1.msra.mxu0 0.0
  %4551 = vmatprep.subr.mxu0 0.0
  %4552 = vmatpush1.msra.mxu0 0.0
  %4553 = vmatprep.subr.mxu0 0.0
  %4554 = vmatpush1.msra.mxu0 0.0
  %4555 = vmatprep.subr.mxu0 0.0
  %4556 = vmatpush1.msra.mxu0 0.0
  %4557 = vmatprep.subr.mxu0 0.0
  %4558 = vmatpush1.msra.mxu0 0.0
  %4559 = vmatprep.subr.mxu0 0.0
  %4560 = vmatpush1.msra.mxu0 0.0
  %4561 = vmatprep.subr.mxu0 0.0
  %4562 = vmatpush1.msra.mxu0 0.0
  %4563 = vmatprep.subr.mxu0 0.0
  %4564 = vmatpush1.msra.mxu0 0.0
  %4565 = vmatprep.subr.mxu0 0.0
  %4566 = vmatpush1.msra.mxu0 0.0
  %4567 = vmatprep.subr.mxu0 0.0
  %4568 = vmatpush1.msra.mxu0 0.0
  %4569 = vmatprep.subr.mxu0 0.0
  %4570 = vmatpush1.msra.mxu0 0.0
  %4571 = vmatprep.subr.mxu0 0.0
  %4572 = vmatpush1.msra.mxu0 0.0
  %4573 = vmatprep.subr.mxu0 0.0
  %4574 = vmatpush1.msra.mxu0 0.0
  %4575 = vmatprep.mubr.f32.mxu0 0.0
  %4576 = vmatmul.mubr.f32.gmra.mrb[0].mxu0 %v3740
  %v4577 = vpop.f32.mrb[0].mxu0
  %v4578 = vadd.f32 0.0, %v4577
  %v4579 = vpop.f32.mrb[0].mxu0
  %4580 = vmatprep.mubr.f32.mxu0 0.0
  %4581 = vmatmul.mubr.f32.gmra.mrb[0].mxu0 %v3743
  %v4582 = vpop.f32.mrb[0].mxu0
  %v4583 = vadd.f32 0.0, %v4582
  %v4584 = vpop.f32.mrb[0].mxu0
  %4585 = vdwg.mxu0
  %4586 = vmatprep.subr.mxu0 0.0
  %4587 = vmatpush1.msra.mxu0 %v1158
  %4588 = vmatprep.subr.mxu0 0.0
  %4589 = vmatpush1.msra.mxu0 %v1161
  %4590 = vmatprep.subr.mxu0 0.0
  %4591 = vmatpush1.msra.mxu0 0.0
  %4592 = vmatprep.subr.mxu0 0.0
  %4593 = vmatpush1.msra.mxu0 0.0
  %4594 = vmatprep.subr.mxu0 0.0
  %4595 = vmatpush1.msra.mxu0 0.0
  %4596 = vmatprep.subr.mxu0 0.0
  %4597 = vmatpush1.msra.mxu0 0.0
  %4598 = vmatprep.subr.mxu0 0.0
  %4599 = vmatpush1.msra.mxu0 0.0
  %4600 = vmatprep.subr.mxu0 0.0
  %4601 = vmatpush1.msra.mxu0 0.0
  %4602 = vmatprep.subr.mxu0 0.0
  %4603 = vmatpush1.msra.mxu0 0.0
  %4604 = vmatprep.subr.mxu0 0.0
  %4605 = vmatpush1.msra.mxu0 0.0
  %4606 = vmatprep.subr.mxu0 0.0
  %4607 = vmatpush1.msra.mxu0 0.0
  %4608 = vmatprep.subr.mxu0 0.0
  %4609 = vmatpush1.msra.mxu0 0.0
  %4610 = vmatprep.subr.mxu0 0.0
  %4611 = vmatpush1.msra.mxu0 0.0
  %4612 = vmatprep.subr.mxu0 0.0
  %4613 = vmatpush1.msra.mxu0 0.0
  %4614 = vmatprep.subr.mxu0 0.0
  %4615 = vmatpush1.msra.mxu0 0.0
  %4616 = vmatprep.subr.mxu0 0.0
  %4617 = vmatpush1.msra.mxu0 0.0
  %4618 = vmatprep.subr.mxu0 0.0
  %4619 = vmatpush1.msra.mxu0 0.0
  %4620 = vmatprep.subr.mxu0 0.0
  %4621 = vmatpush1.msra.mxu0 0.0
  %4622 = vmatprep.subr.mxu0 0.0
  %4623 = vmatpush1.msra.mxu0 0.0
  %4624 = vmatprep.subr.mxu0 0.0
  %4625 = vmatpush1.msra.mxu0 0.0
  %4626 = vmatprep.subr.mxu0 0.0
  %4627 = vmatpush1.msra.mxu0 0.0
  %4628 = vmatprep.subr.mxu0 0.0
  %4629 = vmatpush1.msra.mxu0 0.0
  %4630 = vmatprep.subr.mxu0 0.0
  %4631 = vmatpush1.msra.mxu0 0.0
  %4632 = vmatprep.subr.mxu0 0.0
  %4633 = vmatpush1.msra.mxu0 0.0
  %4634 = vmatprep.subr.mxu0 0.0
  %4635 = vmatpush1.msra.mxu0 0.0
  %4636 = vmatprep.subr.mxu0 0.0
  %4637 = vmatpush1.msra.mxu0 0.0
  %4638 = vmatprep.subr.mxu0 0.0
  %4639 = vmatpush1.msra.mxu0 0.0
  %4640 = vmatprep.subr.mxu0 0.0
  %4641 = vmatpush1.msra.mxu0 0.0
  %4642 = vmatprep.subr.mxu0 0.0
  %4643 = vmatpush1.msra.mxu0 0.0
  %4644 = vmatprep.subr.mxu0 0.0
  %4645 = vmatpush1.msra.mxu0 0.0
  %4646 = vmatprep.subr.mxu0 0.0
  %4647 = vmatpush1.msra.mxu0 0.0
  %4648 = vmatprep.subr.mxu0 0.0
  %4649 = vmatpush1.msra.mxu0 0.0
  %4650 = vmatprep.mubr.f32.mxu0 0.0
  %4651 = vmatmul.mubr.f32.gmra.mrb[0].mxu0 %v3740
  %v4652 = vpop.f32.mrb[0].mxu0
  %v4653 = vadd.f32 0.0, %v4652
  %v4654 = vpop.f32.mrb[0].mxu0
  %4655 = vmatprep.mubr.f32.mxu0 0.0
  %4656 = vmatmul.mubr.f32.gmra.mrb[0].mxu0 %v3743
  %v4657 = vpop.f32.mrb[0].mxu0
  %v4658 = vadd.f32 0.0, %v4657
  %v4659 = vpop.f32.mrb[0].mxu0
  %4660 = vdwg.mxu0
  %v4661 = vpack.c.bf16 %v4583, %v4578
  %v4662 = vld [vmem:[%s19] sm:$0xf]
  %v4663 = vld [vmem:[%s19 + $0x4] sm:$0xf]
  %v4664 = vld [vmem:[%s19 + $0x8] sm:$0xf]
  %v4665 = vld [vmem:[%s19 + $0xc] sm:$0xf]
  %v4666 = vld [vmem:[%s19 + $0x10] sm:$0xf]
  %v4667 = vld [vmem:[%s19 + $0x14] sm:$0xf]
  %v4668 = vld [vmem:[%s19 + $0x18] sm:$0xf]
  %v4669 = vld [vmem:[%s19 + $0x1c] sm:$0xf]
  %v4670 = vld [vmem:[%s19 + $0x20] sm:$0xf]
  %v4671 = vld [vmem:[%s19 + $0x24] sm:$0xf]
  %v4672 = vld [vmem:[%s19 + $0x28] sm:$0xf]
  %v4673 = vld [vmem:[%s19 + $0x2c] sm:$0xf]
  %v4674 = vld [vmem:[%s19 + $0x30] sm:$0xf]
  %v4675 = vld [vmem:[%s19 + $0x34] sm:$0xf]
  %v4676 = vld [vmem:[%s19 + $0x38] sm:$0xf]
  %v4677 = vld [vmem:[%s19 + $0x3c] sm:$0xf]
  %v4678 = vpack.c.bf16 %v4507, %v4506
  %v4679 = vld [vmem:[%s20] sm:$0xf]
  %v4680 = vld [vmem:[%s20 + $0x4] sm:$0xf]
  %v4681 = vld [vmem:[%s20 + $0x8] sm:$0xf]
  %v4682 = vld [vmem:[%s20 + $0xc] sm:$0xf]
  %v4683 = vld [vmem:[%s20 + $0x10] sm:$0xf]
  %v4684 = vld [vmem:[%s20 + $0x14] sm:$0xf]
  %v4685 = vld [vmem:[%s20 + $0x18] sm:$0xf]
  %v4686 = vld [vmem:[%s20 + $0x1c] sm:$0xf]
  %v4687 = vld [vmem:[%s20 + $0x20] sm:$0xf]
  %v4688 = vld [vmem:[%s20 + $0x24] sm:$0xf]
  %v4689 = vld [vmem:[%s20 + $0x28] sm:$0xf]
  %v4690 = vld [vmem:[%s20 + $0x2c] sm:$0xf]
  %v4691 = vld [vmem:[%s20 + $0x30] sm:$0xf]
  %v4692 = vld [vmem:[%s20 + $0x34] sm:$0xf]
  %v4693 = vld [vmem:[%s20 + $0x38] sm:$0xf]
  %v4694 = vld [vmem:[%s20 + $0x3c] sm:$0xf]
  %v4711 = vunpack.c.l.b16 %v4679
  %v4712 = vunpack.c.l.b16 %v4680
  %v4713 = vunpack.c.l.b16 %v4681
  %v4714 = vunpack.c.l.b16 %v4682
  %v4715 = vunpack.c.l.b16 %v4683
  %v4716 = vunpack.c.l.b16 %v4684
  %v4717 = vunpack.c.l.b16 %v4685
  %v4718 = vunpack.c.l.b16 %v4686
  %v4719 = vunpack.c.l.b16 %v4687
  %v4720 = vunpack.c.l.b16 %v4688
  %v4721 = vunpack.c.l.b16 %v4689
  %v4722 = vunpack.c.l.b16 %v4690
  %v4723 = vunpack.c.l.b16 %v4691
  %v4724 = vunpack.c.l.b16 %v4692
  %v4725 = vunpack.c.l.b16 %v4693
  %v4726 = vunpack.c.l.b16 %v4694
  %v4727 = vpack.c.b16 %v4712, %v4711
  %v4728 = vpack.c.b16 %v4714, %v4713
  %v4729 = vpack.c.b16 %v4716, %v4715
  %v4730 = vpack.c.b16 %v4718, %v4717
  %v4731 = vpack.c.b16 %v4720, %v4719
  %v4732 = vpack.c.b16 %v4722, %v4721
  %v4733 = vpack.c.b16 %v4724, %v4723
  %v4734 = vpack.c.b16 %v4726, %v4725
  %4743 = vmatprep.subr.bf16.mxu0 0
  %4744 = vmatpush1.bf16.msra.mxu0 %v4727
  %4745 = vmatprep.subr.bf16.mxu0 0
  %4746 = vmatpush1.bf16.msra.mxu0 %v4728
  %4747 = vmatprep.subr.bf16.mxu0 0
  %4748 = vmatpush1.bf16.msra.mxu0 %v4729
  %4749 = vmatprep.subr.bf16.mxu0 0
  %4750 = vmatpush1.bf16.msra.mxu0 %v4730
  %4751 = vmatprep.subr.bf16.mxu0 0
  %4752 = vmatpush1.bf16.msra.mxu0 %v4731
  %4753 = vmatprep.subr.bf16.mxu0 0
  %4754 = vmatpush1.bf16.msra.mxu0 %v4732
  %4755 = vmatprep.subr.bf16.mxu0 0
  %4756 = vmatpush1.bf16.msra.mxu0 %v4733
  %4757 = vmatprep.subr.bf16.mxu0 0
  %4758 = vmatpush1.bf16.msra.mxu0 %v4734
  %4759 = vmatprep.subr.bf16.mxu0 0
  %4760 = vmatpush1.bf16.msra.mxu0 0
  %4761 = vmatprep.subr.bf16.mxu0 0
  %4762 = vmatpush1.bf16.msra.mxu0 0
  %4763 = vmatprep.subr.bf16.mxu0 0
  %4764 = vmatpush1.bf16.msra.mxu0 0
  %4765 = vmatprep.subr.bf16.mxu0 0
  %4766 = vmatpush1.bf16.msra.mxu0 0
  %4767 = vmatprep.subr.bf16.mxu0 0
  %4768 = vmatpush1.bf16.msra.mxu0 0
  %4769 = vmatprep.subr.bf16.mxu0 0
  %4770 = vmatpush1.bf16.msra.mxu0 0
  %4771 = vmatprep.subr.bf16.mxu0 0
  %4772 = vmatpush1.bf16.msra.mxu0 0
  %4773 = vmatprep.subr.bf16.mxu0 0
  %4774 = vmatpush1.bf16.msra.mxu0 0
  %4775 = vmatprep.mubr.bf16.mxu0 0
  %4776 = vmatmul.mubr.bf16.gmra.mrb[0].mxu0 %v4678
  %v4777 = vpop.f32.mrb[0].mxu0
  %v4778 = vadd.f32 0.0, %v4777
  %v4779 = vpop.f32.mrb[0].mxu0
  %v4780 = vpop.f32.mrb[0].mxu0
  %v4781 = vadd.f32 0.0, %v4780
  %v4782 = vpop.f32.mrb[0].mxu0
  %4783 = vdwg.mxu0
  %v4800 = vunpack.c.l.b16 %v4662
  %v4801 = vunpack.c.l.b16 %v4663
  %v4802 = vunpack.c.l.b16 %v4664
  %v4803 = vunpack.c.l.b16 %v4665
  %v4804 = vunpack.c.l.b16 %v4666
  %v4805 = vunpack.c.l.b16 %v4667
  %v4806 = vunpack.c.l.b16 %v4668
  %v4807 = vunpack.c.l.b16 %v4669
  %v4808 = vunpack.c.l.b16 %v4670
  %v4809 = vunpack.c.l.b16 %v4671
  %v4810 = vunpack.c.l.b16 %v4672
  %v4811 = vunpack.c.l.b16 %v4673
  %v4812 = vunpack.c.l.b16 %v4674
  %v4813 = vunpack.c.l.b16 %v4675
  %v4814 = vunpack.c.l.b16 %v4676
  %v4815 = vunpack.c.l.b16 %v4677
  %v4816 = vpack.c.b16 %v4801, %v4800
  %v4817 = vpack.c.b16 %v4803, %v4802
  %v4818 = vpack.c.b16 %v4805, %v4804
  %v4819 = vpack.c.b16 %v4807, %v4806
  %v4820 = vpack.c.b16 %v4809, %v4808
  %v4821 = vpack.c.b16 %v4811, %v4810
  %v4822 = vpack.c.b16 %v4813, %v4812
  %v4823 = vpack.c.b16 %v4815, %v4814
  %4832 = vmatprep.subr.bf16.mxu0 0
  %4833 = vmatpush1.bf16.msra.mxu0 %v4816
  %4834 = vmatprep.subr.bf16.mxu0 0
  %4835 = vmatpush1.bf16.msra.mxu0 %v4817
  %4836 = vmatprep.subr.bf16.mxu0 0
  %4837 = vmatpush1.bf16.msra.mxu0 %v4818
  %4838 = vmatprep.subr.bf16.mxu0 0
  %4839 = vmatpush1.bf16.msra.mxu0 %v4819
  %4840 = vmatprep.subr.bf16.mxu0 0
  %4841 = vmatpush1.bf16.msra.mxu0 %v4820
  %4842 = vmatprep.subr.bf16.mxu0 0
  %4843 = vmatpush1.bf16.msra.mxu0 %v4821
  %4844 = vmatprep.subr.bf16.mxu0 0
  %4845 = vmatpush1.bf16.msra.mxu0 %v4822
  %4846 = vmatprep.subr.bf16.mxu0 0
  %4847 = vmatpush1.bf16.msra.mxu0 %v4823
  %4848 = vmatprep.subr.bf16.mxu0 0
  %4849 = vmatpush1.bf16.msra.mxu0 0
  %4850 = vmatprep.subr.bf16.mxu0 0
  %4851 = vmatpush1.bf16.msra.mxu0 0
  %4852 = vmatprep.subr.bf16.mxu0 0
  %4853 = vmatpush1.bf16.msra.mxu0 0
  %4854 = vmatprep.subr.bf16.mxu0 0
  %4855 = vmatpush1.bf16.msra.mxu0 0
  %4856 = vmatprep.subr.bf16.mxu0 0
  %4857 = vmatpush1.bf16.msra.mxu0 0
  %4858 = vmatprep.subr.bf16.mxu0 0
  %4859 = vmatpush1.bf16.msra.mxu0 0
  %4860 = vmatprep.subr.bf16.mxu0 0
  %4861 = vmatpush1.bf16.msra.mxu0 0
  %4862 = vmatprep.subr.bf16.mxu0 0
  %4863 = vmatpush1.bf16.msra.mxu0 0
  %4864 = vmatprep.mubr.bf16.mxu0 0
  %4865 = vmatmul.mubr.bf16.gmra.mrb[0].mxu0 %v4661
  %v4866 = vpop.f32.mrb[0].mxu0
  %v4867 = vadd.f32 %v4778, %v4866
  %v4868 = vpop.f32.mrb[0].mxu0
  %v4869 = vpop.f32.mrb[0].mxu0
  %v4870 = vadd.f32 %v4781, %v4869
  %v4871 = vpop.f32.mrb[0].mxu0
  %4872 = vdwg.mxu0
  %v4873 = vpack.c.bf16 %v4658, %v4653
  %v4874 = vld [vmem:[%s21] sm:$0xf]
  %v4875 = vld [vmem:[%s21 + $0x4] sm:$0xf]
  %v4876 = vld [vmem:[%s21 + $0x8] sm:$0xf]
  %v4877 = vld [vmem:[%s21 + $0xc] sm:$0xf]
  %v4878 = vld [vmem:[%s21 + $0x10] sm:$0xf]
  %v4879 = vld [vmem:[%s21 + $0x14] sm:$0xf]
  %v4880 = vld [vmem:[%s21 + $0x18] sm:$0xf]
  %v4881 = vld [vmem:[%s21 + $0x1c] sm:$0xf]
  %v4882 = vld [vmem:[%s21 + $0x20] sm:$0xf]
  %v4883 = vld [vmem:[%s21 + $0x24] sm:$0xf]
  %v4884 = vld [vmem:[%s21 + $0x28] sm:$0xf]
  %v4885 = vld [vmem:[%s21 + $0x2c] sm:$0xf]
  %v4886 = vld [vmem:[%s21 + $0x30] sm:$0xf]
  %v4887 = vld [vmem:[%s21 + $0x34] sm:$0xf]
  %v4888 = vld [vmem:[%s21 + $0x38] sm:$0xf]
  %v4889 = vld [vmem:[%s21 + $0x3c] sm:$0xf]
  %v4906 = vunpack.c.l.b16 %v4874
  %v4907 = vunpack.c.l.b16 %v4875
  %v4908 = vunpack.c.l.b16 %v4876
  %v4909 = vunpack.c.l.b16 %v4877
  %v4910 = vunpack.c.l.b16 %v4878
  %v4911 = vunpack.c.l.b16 %v4879
  %v4912 = vunpack.c.l.b16 %v4880
  %v4913 = vunpack.c.l.b16 %v4881
  %v4914 = vunpack.c.l.b16 %v4882
  %v4915 = vunpack.c.l.b16 %v4883
  %v4916 = vunpack.c.l.b16 %v4884
  %v4917 = vunpack.c.l.b16 %v4885
  %v4918 = vunpack.c.l.b16 %v4886
  %v4919 = vunpack.c.l.b16 %v4887
  %v4920 = vunpack.c.l.b16 %v4888
  %v4921 = vunpack.c.l.b16 %v4889
  %v4922 = vpack.c.b16 %v4907, %v4906
  %v4923 = vpack.c.b16 %v4909, %v4908
  %v4924 = vpack.c.b16 %v4911, %v4910
  %v4925 = vpack.c.b16 %v4913, %v4912
  %v4926 = vpack.c.b16 %v4915, %v4914
  %v4927 = vpack.c.b16 %v4917, %v4916
  %v4928 = vpack.c.b16 %v4919, %v4918
  %v4929 = vpack.c.b16 %v4921, %v4920
  %4938 = vmatprep.subr.bf16.mxu0 0
  %4939 = vmatpush1.bf16.msra.mxu0 %v4922
  %4940 = vmatprep.subr.bf16.mxu0 0
  %4941 = vmatpush1.bf16.msra.mxu0 %v4923
  %4942 = vmatprep.subr.bf16.mxu0 0
  %4943 = vmatpush1.bf16.msra.mxu0 %v4924
  %4944 = vmatprep.subr.bf16.mxu0 0
  %4945 = vmatpush1.bf16.msra.mxu0 %v4925
  %4946 = vmatprep.subr.bf16.mxu0 0
  %4947 = vmatpush1.bf16.msra.mxu0 %v4926
  %4948 = vmatprep.subr.bf16.mxu0 0
  %4949 = vmatpush1.bf16.msra.mxu0 %v4927
  %4950 = vmatprep.subr.bf16.mxu0 0
  %4951 = vmatpush1.bf16.msra.mxu0 %v4928
  %4952 = vmatprep.subr.bf16.mxu0 0
  %4953 = vmatpush1.bf16.msra.mxu0 %v4929
  %4954 = vmatprep.subr.bf16.mxu0 0
  %4955 = vmatpush1.bf16.msra.mxu0 0
  %4956 = vmatprep.subr.bf16.mxu0 0
  %4957 = vmatpush1.bf16.msra.mxu0 0
  %4958 = vmatprep.subr.bf16.mxu0 0
  %4959 = vmatpush1.bf16.msra.mxu0 0
  %4960 = vmatprep.subr.bf16.mxu0 0
  %4961 = vmatpush1.bf16.msra.mxu0 0
  %4962 = vmatprep.subr.bf16.mxu0 0
  %4963 = vmatpush1.bf16.msra.mxu0 0
  %4964 = vmatprep.subr.bf16.mxu0 0
  %4965 = vmatpush1.bf16.msra.mxu0 0
  %4966 = vmatprep.subr.bf16.mxu0 0
  %4967 = vmatpush1.bf16.msra.mxu0 0
  %4968 = vmatprep.subr.bf16.mxu0 0
  %4969 = vmatpush1.bf16.msra.mxu0 0
  %4970 = vmatprep.mubr.bf16.mxu0 0
  %4971 = vmatmul.mubr.bf16.gmra.mrb[0].mxu0 %v4873
  %v4972 = vpop.f32.mrb[0].mxu0
  %v4973 = vadd.f32 0.0, %v4972
  %v4974 = vpop.f32.mrb[0].mxu0
  %v4975 = vpop.f32.mrb[0].mxu0
  %v4976 = vadd.f32 0.0, %v4975
  %v4977 = vpop.f32.mrb[0].mxu0
  %4978 = vdwg.mxu0
  %v4979 = vadd.f32 %v4867, %v4973
  %v4980 = vadd.f32 %v4870, %v4976
  %v4981 = vld [vmem:[%s22] sm:$0xf]
  %v4982 = vld [vmem:[%s22 + $0x4] sm:$0xf]
  %v4983 = vld [vmem:[%s22 + $0x8] sm:$0xf]
  %v4984 = vld [vmem:[%s22 + $0xc] sm:$0xf]
  %v4985 = vld [vmem:[%s22 + $0x10] sm:$0xf]
  %v4986 = vld [vmem:[%s22 + $0x14] sm:$0xf]
  %v4987 = vld [vmem:[%s22 + $0x18] sm:$0xf]
  %v4988 = vld [vmem:[%s22 + $0x1c] sm:$0xf]
  %v4989 = vld [vmem:[%s22 + $0x20] sm:$0xf]
  %v4990 = vld [vmem:[%s22 + $0x24] sm:$0xf]
  %v4991 = vld [vmem:[%s22 + $0x28] sm:$0xf]
  %v4992 = vld [vmem:[%s22 + $0x2c] sm:$0xf]
  %v4993 = vld [vmem:[%s22 + $0x30] sm:$0xf]
  %v4994 = vld [vmem:[%s22 + $0x34] sm:$0xf]
  %v4995 = vld [vmem:[%s22 + $0x38] sm:$0xf]
  %v4996 = vld [vmem:[%s22 + $0x3c] sm:$0xf]
  %v5013 = vunpack.c.l.b16 %v4981
  %v5014 = vunpack.c.l.b16 %v4982
  %v5015 = vunpack.c.l.b16 %v4983
  %v5016 = vunpack.c.l.b16 %v4984
  %v5017 = vunpack.c.l.b16 %v4985
  %v5018 = vunpack.c.l.b16 %v4986
  %v5019 = vunpack.c.l.b16 %v4987
  %v5020 = vunpack.c.l.b16 %v4988
  %v5021 = vunpack.c.l.b16 %v4989
  %v5022 = vunpack.c.l.b16 %v4990
  %v5023 = vunpack.c.l.b16 %v4991
  %v5024 = vunpack.c.l.b16 %v4992
  %v5025 = vunpack.c.l.b16 %v4993
  %v5026 = vunpack.c.l.b16 %v4994
  %v5027 = vunpack.c.l.b16 %v4995
  %v5028 = vunpack.c.l.b16 %v4996
  %v5029 = vpack.c.b16 %v5014, %v5013
  %v5030 = vpack.c.b16 %v5016, %v5015
  %v5031 = vpack.c.b16 %v5018, %v5017
  %v5032 = vpack.c.b16 %v5020, %v5019
  %v5033 = vpack.c.b16 %v5022, %v5021
  %v5034 = vpack.c.b16 %v5024, %v5023
  %v5035 = vpack.c.b16 %v5026, %v5025
  %v5036 = vpack.c.b16 %v5028, %v5027
  %5045 = vmatprep.subr.bf16.mxu0 0
  %5046 = vmatpush1.bf16.msra.mxu0 %v5029
  %5047 = vmatprep.subr.bf16.mxu0 0
  %5048 = vmatpush1.bf16.msra.mxu0 %v5030
  %5049 = vmatprep.subr.bf16.mxu0 0
  %5050 = vmatpush1.bf16.msra.mxu0 %v5031
  %5051 = vmatprep.subr.bf16.mxu0 0
  %5052 = vmatpush1.bf16.msra.mxu0 %v5032
  %5053 = vmatprep.subr.bf16.mxu0 0
  %5054 = vmatpush1.bf16.msra.mxu0 %v5033
  %5055 = vmatprep.subr.bf16.mxu0 0
  %5056 = vmatpush1.bf16.msra.mxu0 %v5034
  %5057 = vmatprep.subr.bf16.mxu0 0
  %5058 = vmatpush1.bf16.msra.mxu0 %v5035
  %5059 = vmatprep.subr.bf16.mxu0 0
  %5060 = vmatpush1.bf16.msra.mxu0 %v5036
  %5061 = vmatprep.subr.bf16.mxu0 0
  %5062 = vmatpush1.bf16.msra.mxu0 0
  %5063 = vmatprep.subr.bf16.mxu0 0
  %5064 = vmatpush1.bf16.msra.mxu0 0
  %5065 = vmatprep.subr.bf16.mxu0 0
  %5066 = vmatpush1.bf16.msra.mxu0 0
  %5067 = vmatprep.subr.bf16.mxu0 0
  %5068 = vmatpush1.bf16.msra.mxu0 0
  %5069 = vmatprep.subr.bf16.mxu0 0
  %5070 = vmatpush1.bf16.msra.mxu0 0
  %5071 = vmatprep.subr.bf16.mxu0 0
  %5072 = vmatpush1.bf16.msra.mxu0 0
  %5073 = vmatprep.subr.bf16.mxu0 0
  %5074 = vmatpush1.bf16.msra.mxu0 0
  %5075 = vmatprep.subr.bf16.mxu0 0
  %5076 = vmatpush1.bf16.msra.mxu0 0
  %5077 = vmatprep.mubr.bf16.mxu0 0
  %5078 = vmatmul.mubr.bf16.gmra.mrb[0].mxu0 %v1255
  %v5079 = vpop.f32.mrb[0].mxu0
  %v5080 = vadd.f32 0.0, %v5079
  %v5081 = vpop.f32.mrb[0].mxu0
  %v5082 = vpop.f32.mrb[0].mxu0
  %v5083 = vadd.f32 0.0, %v5082
  %v5084 = vpop.f32.mrb[0].mxu0
  %5085 = vdwg.mxu0
  %v5086 = vadd.f32 %v4979, %v5080
  %v5087 = vadd.f32 %v4980, %v5083
  %v5088 = vsel %vm113, %v5087, 0.0
  %v5089 = vadd.f32 %v5086, %v5088
  %v5090 = vrot.slane %v5089, 4
  %v5091 = vadd.f32 %v5089, %v5090
  %v5092 = vrot.slane %v5091, 2
  %v5093 = vadd.f32 %v5091, %v5092
  %v5094 = vrot.slane %v5093, 1
  %v5095 = vadd.f32 %v5093, %v5094
  %v5096 = vmul.f32 %v5086, %v5086
  %v5097 = vmul.f32 %v5087, %v5087
  %v5098 = vsel %vm113, %v5097, 0.0
  %v5099 = vadd.f32 %v5096, %v5098
  %v5100 = vrot.slane %v5099, 4
  %v5101 = vadd.f32 %v5099, %v5100
  %v5102 = vrot.slane %v5101, 2
  %v5103 = vadd.f32 %v5101, %v5102
  %v5104 = vrot.slane %v5103, 1
  %v5105 = vadd.f32 %v5103, %v5104
  %5106 = vmatprep.subr.mxu0 0.0
  %5107 = vmatpush1.msra.mxu0 %v428
  %5108 = vmatprep.subr.mxu0 0.0
  %5109 = vmatpush1.msra.mxu0 %v429
  %5110 = vmatprep.subr.mxu0 0.0
  %5111 = vmatpush1.msra.mxu0 %v430
  %5112 = vmatprep.subr.mxu0 0.0
  %5113 = vmatpush1.msra.mxu0 %v431
  %5114 = vmatprep.subr.mxu0 0.0
  %5115 = vmatpush1.msra.mxu0 %v432
  %5116 = vmatprep.subr.mxu0 0.0
  %5117 = vmatpush1.msra.mxu0 %v433
  %5118 = vmatprep.subr.mxu0 0.0
  %5119 = vmatpush1.msra.mxu0 %v434
  %5120 = vmatprep.subr.mxu0 0.0
  %5121 = vmatpush1.msra.mxu0 %v435
  %5122 = vmatprep.subr.mxu0 0.0
  %5123 = vmatpush1.msra.mxu0 %v436
  %5124 = vmatprep.subr.mxu0 0.0
  %5125 = vmatpush1.msra.mxu0 %v437
  %5126 = vmatprep.subr.mxu0 0.0
  %5127 = vmatpush1.msra.mxu0 %v438
  %5128 = vmatprep.subr.mxu0 0.0
  %5129 = vmatpush1.msra.mxu0 %v439
  %5130 = vmatprep.subr.mxu0 0.0
  %5131 = vmatpush1.msra.mxu0 %v440
  %5132 = vmatprep.subr.mxu0 0.0
  %5133 = vmatpush1.msra.mxu0 %v441
  %5134 = vmatprep.subr.mxu0 0.0
  %5135 = vmatpush1.msra.mxu0 %v442
  %5136 = vmatprep.subr.mxu0 0.0
  %5137 = vmatpush1.msra.mxu0 %v443
  %5138 = vmatprep.subr.mxu0 0.0
  %5139 = vmatpush1.msra.mxu0 0.0
  %5140 = vmatprep.subr.mxu0 0.0
  %5141 = vmatpush1.msra.mxu0 0.0
  %5142 = vmatprep.subr.mxu0 0.0
  %5143 = vmatpush1.msra.mxu0 0.0
  %5144 = vmatprep.subr.mxu0 0.0
  %5145 = vmatpush1.msra.mxu0 0.0
  %5146 = vmatprep.subr.mxu0 0.0
  %5147 = vmatpush1.msra.mxu0 0.0
  %5148 = vmatprep.subr.mxu0 0.0
  %5149 = vmatpush1.msra.mxu0 0.0
  %5150 = vmatprep.subr.mxu0 0.0
  %5151 = vmatpush1.msra.mxu0 0.0
  %5152 = vmatprep.subr.mxu0 0.0
  %5153 = vmatpush1.msra.mxu0 0.0
  %5154 = vmatprep.subr.mxu0 0.0
  %5155 = vmatpush1.msra.mxu0 0.0
  %5156 = vmatprep.subr.mxu0 0.0
  %5157 = vmatpush1.msra.mxu0 0.0
  %5158 = vmatprep.subr.mxu0 0.0
  %5159 = vmatpush1.msra.mxu0 0.0
  %5160 = vmatprep.subr.mxu0 0.0
  %5161 = vmatpush1.msra.mxu0 0.0
  %5162 = vmatprep.subr.mxu0 0.0
  %5163 = vmatpush1.msra.mxu0 0.0
  %5164 = vmatprep.subr.mxu0 0.0
  %5165 = vmatpush1.msra.mxu0 0.0
  %5166 = vmatprep.subr.mxu0 0.0
  %5167 = vmatpush1.msra.mxu0 0.0
  %5168 = vmatprep.subr.mxu0 0.0
  %5169 = vmatpush1.msra.mxu0 0.0
  %5170 = vmatprep.mubr.f32.mxu0 0.0
  %5171 = vmatmul.mubr.f32.gmra.mrb[0].mxu0 %v5095
  %v5172 = vpop.f32.mrb[0].mxu0
  %v5173 = vadd.f32 0.0, %v5172
  %v5174 = vpop.f32.mrb[0].mxu0
  %5175 = vdwg.mxu0
  %5176 = vmatprep.subr.mxu0 0.0
  %5177 = vmatpush1.msra.mxu0 %v428
  %5178 = vmatprep.subr.mxu0 0.0
  %5179 = vmatpush1.msra.mxu0 %v429
  %5180 = vmatprep.subr.mxu0 0.0
  %5181 = vmatpush1.msra.mxu0 %v430
  %5182 = vmatprep.subr.mxu0 0.0
  %5183 = vmatpush1.msra.mxu0 %v431
  %5184 = vmatprep.subr.mxu0 0.0
  %5185 = vmatpush1.msra.mxu0 %v432
  %5186 = vmatprep.subr.mxu0 0.0
  %5187 = vmatpush1.msra.mxu0 %v433
  %5188 = vmatprep.subr.mxu0 0.0
  %5189 = vmatpush1.msra.mxu0 %v434
  %5190 = vmatprep.subr.mxu0 0.0
  %5191 = vmatpush1.msra.mxu0 %v435
  %5192 = vmatprep.subr.mxu0 0.0
  %5193 = vmatpush1.msra.mxu0 %v436
  %5194 = vmatprep.subr.mxu0 0.0
  %5195 = vmatpush1.msra.mxu0 %v437
  %5196 = vmatprep.subr.mxu0 0.0
  %5197 = vmatpush1.msra.mxu0 %v438
  %5198 = vmatprep.subr.mxu0 0.0
  %5199 = vmatpush1.msra.mxu0 %v439
  %5200 = vmatprep.subr.mxu0 0.0
  %5201 = vmatpush1.msra.mxu0 %v440
  %5202 = vmatprep.subr.mxu0 0.0
  %5203 = vmatpush1.msra.mxu0 %v441
  %5204 = vmatprep.subr.mxu0 0.0
  %5205 = vmatpush1.msra.mxu0 %v442
  %5206 = vmatprep.subr.mxu0 0.0
  %5207 = vmatpush1.msra.mxu0 %v443
  %5208 = vmatprep.subr.mxu0 0.0
  %5209 = vmatpush1.msra.mxu0 0.0
  %5210 = vmatprep.subr.mxu0 0.0
  %5211 = vmatpush1.msra.mxu0 0.0
  %5212 = vmatprep.subr.mxu0 0.0
  %5213 = vmatpush1.msra.mxu0 0.0
  %5214 = vmatprep.subr.mxu0 0.0
  %5215 = vmatpush1.msra.mxu0 0.0
  %5216 = vmatprep.subr.mxu0 0.0
  %5217 = vmatpush1.msra.mxu0 0.0
  %5218 = vmatprep.subr.mxu0 0.0
  %5219 = vmatpush1.msra.mxu0 0.0
  %5220 = vmatprep.subr.mxu0 0.0
  %5221 = vmatpush1.msra.mxu0 0.0
  %5222 = vmatprep.subr.mxu0 0.0
  %5223 = vmatpush1.msra.mxu0 0.0
  %5224 = vmatprep.subr.mxu0 0.0
  %5225 = vmatpush1.msra.mxu0 0.0
  %5226 = vmatprep.subr.mxu0 0.0
  %5227 = vmatpush1.msra.mxu0 0.0
  %5228 = vmatprep.subr.mxu0 0.0
  %5229 = vmatpush1.msra.mxu0 0.0
  %5230 = vmatprep.subr.mxu0 0.0
  %5231 = vmatpush1.msra.mxu0 0.0
  %5232 = vmatprep.subr.mxu0 0.0
  %5233 = vmatpush1.msra.mxu0 0.0
  %5234 = vmatprep.subr.mxu0 0.0
  %5235 = vmatpush1.msra.mxu0 0.0
  %5236 = vmatprep.subr.mxu0 0.0
  %5237 = vmatpush1.msra.mxu0 0.0
  %5238 = vmatprep.subr.mxu0 0.0
  %5239 = vmatpush1.msra.mxu0 0.0
  %5240 = vmatprep.mubr.f32.mxu0 0.0
  %5241 = vmatmul.mubr.f32.gmra.mrb[0].mxu0 %v5105
  %v5242 = vpop.f32.mrb[0].mxu0
  %v5243 = vadd.f32 0.0, %v5242
  %v5244 = vpop.f32.mrb[0].mxu0
  %5245 = vdwg.mxu0
  %v5246 = vmul.f32 %v5173, %v5173
  %v5247 = vsub.f32 %v5243, %v5246
  %v5248 = vlaneseq
  %v5249 = vshrl.u32 %v5248, 7
  %v5250 = vsub.s32 0, %v5249
  %v5251 = vrot.slane %v5173, %v5250
  %v5252 = vsub.f32 %v5086, %v5251
  %v5253 = vsub.f32 %v5087, %v5251
  %v5254 = vadd.f32 %v5247, 1e-05
  %v5255 = vrsqrt.pop %v5254
  %v5256 = vlaneseq
  %v5257 = vshrl.u32 %v5256, 7
  %v5258 = vsub.s32 0, %v5257
  %v5259 = vrot.slane %v5255, %v5258
  %v5260 = vmul.f32 %v5252, %v5259
  %v5261 = vmul.f32 %v5253, %v5259
  %vm5262 = vcmp.gt.f32.partialorder %v5260, 0.0
  %vm5263 = vcmp.gt.f32.partialorder %v5261, 0.0
  %v5264 = vmul.f32 %v5260, 0.25
  %v5265 = vmul.f32 %v5261, 0.25
  %v5266 = vsel %vm5262, %v5260, %v5264
  %v5267 = vsel %vm5263, %v5261, %v5265
  %v5269 = vsel %vm113, %v5267, 0
  %5271 = vmatprep.subr.mxu0 0.0
  %5272 = vmatpush1.msra.mxu0 %v5266
  %5273 = vmatprep.subr.mxu0 0.0
  %5274 = vmatpush1.msra.mxu0 %v5269
  %5275 = vmatprep.subr.mxu0 0.0
  %5276 = vmatpush1.msra.mxu0 0.0
  %5277 = vmatprep.subr.mxu0 0.0
  %5278 = vmatpush1.msra.mxu0 0.0
  %5279 = vmatprep.subr.mxu0 0.0
  %5280 = vmatpush1.msra.mxu0 0.0
  %5281 = vmatprep.subr.mxu0 0.0
  %5282 = vmatpush1.msra.mxu0 0.0
  %5283 = vmatprep.subr.mxu0 0.0
  %5284 = vmatpush1.msra.mxu0 0.0
  %5285 = vmatprep.subr.mxu0 0.0
  %5286 = vmatpush1.msra.mxu0 0.0
  %5287 = vmatprep.subr.mxu0 0.0
  %5288 = vmatpush1.msra.mxu0 0.0
  %5289 = vmatprep.subr.mxu0 0.0
  %5290 = vmatpush1.msra.mxu0 0.0
  %5291 = vmatprep.subr.mxu0 0.0
  %5292 = vmatpush1.msra.mxu0 0.0
  %5293 = vmatprep.subr.mxu0 0.0
  %5294 = vmatpush1.msra.mxu0 0.0
  %5295 = vmatprep.subr.mxu0 0.0
  %5296 = vmatpush1.msra.mxu0 0.0
  %5297 = vmatprep.subr.mxu0 0.0
  %5298 = vmatpush1.msra.mxu0 0.0
  %5299 = vmatprep.subr.mxu0 0.0
  %5300 = vmatpush1.msra.mxu0 0.0
  %5301 = vmatprep.subr.mxu0 0.0
  %5302 = vmatpush1.msra.mxu0 0.0
  %5303 = vmatprep.subr.mxu0 0.0
  %5304 = vmatpush1.msra.mxu0 0.0
  %5305 = vmatprep.subr.mxu0 0.0
  %5306 = vmatpush1.msra.mxu0 0.0
  %5307 = vmatprep.subr.mxu0 0.0
  %5308 = vmatpush1.msra.mxu0 0.0
  %5309 = vmatprep.subr.mxu0 0.0
  %5310 = vmatpush1.msra.mxu0 0.0
  %5311 = vmatprep.subr.mxu0 0.0
  %5312 = vmatpush1.msra.mxu0 0.0
  %5313 = vmatprep.subr.mxu0 0.0
  %5314 = vmatpush1.msra.mxu0 0.0
  %5315 = vmatprep.subr.mxu0 0.0
  %5316 = vmatpush1.msra.mxu0 0.0
  %5317 = vmatprep.subr.mxu0 0.0
  %5318 = vmatpush1.msra.mxu0 0.0
  %5319 = vmatprep.subr.mxu0 0.0
  %5320 = vmatpush1.msra.mxu0 0.0
  %5321 = vmatprep.subr.mxu0 0.0
  %5322 = vmatpush1.msra.mxu0 0.0
  %5323 = vmatprep.subr.mxu0 0.0
  %5324 = vmatpush1.msra.mxu0 0.0
  %5325 = vmatprep.subr.mxu0 0.0
  %5326 = vmatpush1.msra.mxu0 0.0
  %5327 = vmatprep.subr.mxu0 0.0
  %5328 = vmatpush1.msra.mxu0 0.0
  %5329 = vmatprep.subr.mxu0 0.0
  %5330 = vmatpush1.msra.mxu0 0.0
  %5331 = vmatprep.subr.mxu0 0.0
  %5332 = vmatpush1.msra.mxu0 0.0
  %5333 = vmatprep.subr.mxu0 0.0
  %5334 = vmatpush1.msra.mxu0 0.0
  %5335 = vmatprep.mubr.f32.mxu0 0.0
  %5336 = vmatmul.mubr.f32.gmra.mrb[0].mxu0 %v3740
  %v5337 = vpop.f32.mrb[0].mxu0
  %v5338 = vadd.f32 0.0, %v5337
  %v5339 = vpop.f32.mrb[0].mxu0
  %5340 = vmatprep.mubr.f32.mxu0 0.0
  %5341 = vmatmul.mubr.f32.gmra.mrb[0].mxu0 %v3743
  %v5342 = vpop.f32.mrb[0].mxu0
  %v5343 = vadd.f32 0.0, %v5342
  %v5344 = vpop.f32.mrb[0].mxu0
  %5345 = vdwg.mxu0
  %5346 = vmatprep.subr.mxu0 0.0
  %5347 = vmatpush1.msra.mxu0 %v622
  %5348 = vmatprep.subr.mxu0 0.0
  %5349 = vmatpush1.msra.mxu0 %v625
  %5350 = vmatprep.subr.mxu0 0.0
  %5351 = vmatpush1.msra.mxu0 0.0
  %5352 = vmatprep.subr.mxu0 0.0
  %5353 = vmatpush1.msra.mxu0 0.0
  %5354 = vmatprep.subr.mxu0 0.0
  %5355 = vmatpush1.msra.mxu0 0.0
  %5356 = vmatprep.subr.mxu0 0.0
  %5357 = vmatpush1.msra.mxu0 0.0
  %5358 = vmatprep.subr.mxu0 0.0
  %5359 = vmatpush1.msra.mxu0 0.0
  %5360 = vmatprep.subr.mxu0 0.0
  %5361 = vmatpush1.msra.mxu0 0.0
  %5362 = vmatprep.subr.mxu0 0.0
  %5363 = vmatpush1.msra.mxu0 0.0
  %5364 = vmatprep.subr.mxu0 0.0
  %5365 = vmatpush1.msra.mxu0 0.0
  %5366 = vmatprep.subr.mxu0 0.0
  %5367 = vmatpush1.msra.mxu0 0.0
  %5368 = vmatprep.subr.mxu0 0.0
  %5369 = vmatpush1.msra.mxu0 0.0
  %5370 = vmatprep.subr.mxu0 0.0
  %5371 = vmatpush1.msra.mxu0 0.0
  %5372 = vmatprep.subr.mxu0 0.0
  %5373 = vmatpush1.msra.mxu0 0.0
  %5374 = vmatprep.subr.mxu0 0.0
  %5375 = vmatpush1.msra.mxu0 0.0
  %5376 = vmatprep.subr.mxu0 0.0
  %5377 = vmatpush1.msra.mxu0 0.0
  %5378 = vmatprep.subr.mxu0 0.0
  %5379 = vmatpush1.msra.mxu0 0.0
  %5380 = vmatprep.subr.mxu0 0.0
  %5381 = vmatpush1.msra.mxu0 0.0
  %5382 = vmatprep.subr.mxu0 0.0
  %5383 = vmatpush1.msra.mxu0 0.0
  %5384 = vmatprep.subr.mxu0 0.0
  %5385 = vmatpush1.msra.mxu0 0.0
  %5386 = vmatprep.subr.mxu0 0.0
  %5387 = vmatpush1.msra.mxu0 0.0
  %5388 = vmatprep.subr.mxu0 0.0
  %5389 = vmatpush1.msra.mxu0 0.0
  %5390 = vmatprep.subr.mxu0 0.0
  %5391 = vmatpush1.msra.mxu0 0.0
  %5392 = vmatprep.subr.mxu0 0.0
  %5393 = vmatpush1.msra.mxu0 0.0
  %5394 = vmatprep.subr.mxu0 0.0
  %5395 = vmatpush1.msra.mxu0 0.0
  %5396 = vmatprep.subr.mxu0 0.0
  %5397 = vmatpush1.msra.mxu0 0.0
  %5398 = vmatprep.subr.mxu0 0.0
  %5399 = vmatpush1.msra.mxu0 0.0
  %5400 = vmatprep.subr.mxu0 0.0
  %5401 = vmatpush1.msra.mxu0 0.0
  %5402 = vmatprep.subr.mxu0 0.0
  %5403 = vmatpush1.msra.mxu0 0.0
  %5404 = vmatprep.subr.mxu0 0.0
  %5405 = vmatpush1.msra.mxu0 0.0
  %5406 = vmatprep.subr.mxu0 0.0
  %5407 = vmatpush1.msra.mxu0 0.0
  %5408 = vmatprep.subr.mxu0 0.0
  %5409 = vmatpush1.msra.mxu0 0.0
  %5410 = vmatprep.mubr.f32.mxu0 0.0
  %5411 = vmatmul.mubr.f32.gmra.mrb[0].mxu0 %v3740
  %v5412 = vpop.f32.mrb[0].mxu0
  %v5413 = vadd.f32 0.0, %v5412
  %v5414 = vpop.f32.mrb[0].mxu0
  %5415 = vmatprep.mubr.f32.mxu0 0.0
  %5416 = vmatmul.mubr.f32.gmra.mrb[0].mxu0 %v3743
  %v5417 = vpop.f32.mrb[0].mxu0
  %v5418 = vadd.f32 0.0, %v5417
  %v5419 = vpop.f32.mrb[0].mxu0
  %5420 = vdwg.mxu0
  %v5421 = vpack.c.bf16 %v5343, %v5338
  %v5422 = vld [vmem:[%s23] sm:$0xf]
  %v5423 = vld [vmem:[%s23 + $0x4] sm:$0xf]
  %v5424 = vld [vmem:[%s23 + $0x8] sm:$0xf]
  %v5425 = vld [vmem:[%s23 + $0xc] sm:$0xf]
  %v5426 = vld [vmem:[%s23 + $0x10] sm:$0xf]
  %v5427 = vld [vmem:[%s23 + $0x14] sm:$0xf]
  %v5428 = vld [vmem:[%s23 + $0x18] sm:$0xf]
  %v5429 = vld [vmem:[%s23 + $0x1c] sm:$0xf]
  %v5430 = vld [vmem:[%s23 + $0x20] sm:$0xf]
  %v5431 = vld [vmem:[%s23 + $0x24] sm:$0xf]
  %v5432 = vld [vmem:[%s23 + $0x28] sm:$0xf]
  %v5433 = vld [vmem:[%s23 + $0x2c] sm:$0xf]
  %v5434 = vld [vmem:[%s23 + $0x30] sm:$0xf]
  %v5435 = vld [vmem:[%s23 + $0x34] sm:$0xf]
  %v5436 = vld [vmem:[%s23 + $0x38] sm:$0xf]
  %v5437 = vld [vmem:[%s23 + $0x3c] sm:$0xf]
  %v5438 = vpack.c.bf16 %v5267, %v5266
  %v5439 = vld [vmem:[%s24] sm:$0xf]
  %v5440 = vld [vmem:[%s24 + $0x4] sm:$0xf]
  %v5441 = vld [vmem:[%s24 + $0x8] sm:$0xf]
  %v5442 = vld [vmem:[%s24 + $0xc] sm:$0xf]
  %v5443 = vld [vmem:[%s24 + $0x10] sm:$0xf]
  %v5444 = vld [vmem:[%s24 + $0x14] sm:$0xf]
  %v5445 = vld [vmem:[%s24 + $0x18] sm:$0xf]
  %v5446 = vld [vmem:[%s24 + $0x1c] sm:$0xf]
  %v5447 = vld [vmem:[%s24 + $0x20] sm:$0xf]
  %v5448 = vld [vmem:[%s24 + $0x24] sm:$0xf]
  %v5449 = vld [vmem:[%s24 + $0x28] sm:$0xf]
  %v5450 = vld [vmem:[%s24 + $0x2c] sm:$0xf]
  %v5451 = vld [vmem:[%s24 + $0x30] sm:$0xf]
  %v5452 = vld [vmem:[%s24 + $0x34] sm:$0xf]
  %v5453 = vld [vmem:[%s24 + $0x38] sm:$0xf]
  %v5454 = vld [vmem:[%s24 + $0x3c] sm:$0xf]
  %v5471 = vunpack.c.l.b16 %v5439
  %v5472 = vunpack.c.l.b16 %v5440
  %v5473 = vunpack.c.l.b16 %v5441
  %v5474 = vunpack.c.l.b16 %v5442
  %v5475 = vunpack.c.l.b16 %v5443
  %v5476 = vunpack.c.l.b16 %v5444
  %v5477 = vunpack.c.l.b16 %v5445
  %v5478 = vunpack.c.l.b16 %v5446
  %v5479 = vunpack.c.l.b16 %v5447
  %v5480 = vunpack.c.l.b16 %v5448
  %v5481 = vunpack.c.l.b16 %v5449
  %v5482 = vunpack.c.l.b16 %v5450
  %v5483 = vunpack.c.l.b16 %v5451
  %v5484 = vunpack.c.l.b16 %v5452
  %v5485 = vunpack.c.l.b16 %v5453
  %v5486 = vunpack.c.l.b16 %v5454
  %v5487 = vpack.c.b16 %v5472, %v5471
  %v5488 = vpack.c.b16 %v5474, %v5473
  %v5489 = vpack.c.b16 %v5476, %v5475
  %v5490 = vpack.c.b16 %v5478, %v5477
  %v5491 = vpack.c.b16 %v5480, %v5479
  %v5492 = vpack.c.b16 %v5482, %v5481
  %v5493 = vpack.c.b16 %v5484, %v5483
  %v5494 = vpack.c.b16 %v5486, %v5485
  %5503 = vmatprep.subr.bf16.mxu0 0
  %5504 = vmatpush1.bf16.msra.mxu0 %v5487
  %5505 = vmatprep.subr.bf16.mxu0 0
  %5506 = vmatpush1.bf16.msra.mxu0 %v5488
  %5507 = vmatprep.subr.bf16.mxu0 0
  %5508 = vmatpush1.bf16.msra.mxu0 %v5489
  %5509 = vmatprep.subr.bf16.mxu0 0
  %5510 = vmatpush1.bf16.msra.mxu0 %v5490
  %5511 = vmatprep.subr.bf16.mxu0 0
  %5512 = vmatpush1.bf16.msra.mxu0 %v5491
  %5513 = vmatprep.subr.bf16.mxu0 0
  %5514 = vmatpush1.bf16.msra.mxu0 %v5492
  %5515 = vmatprep.subr.bf16.mxu0 0
  %5516 = vmatpush1.bf16.msra.mxu0 %v5493
  %5517 = vmatprep.subr.bf16.mxu0 0
  %5518 = vmatpush1.bf16.msra.mxu0 %v5494
  %5519 = vmatprep.subr.bf16.mxu0 0
  %5520 = vmatpush1.bf16.msra.mxu0 0
  %5521 = vmatprep.subr.bf16.mxu0 0
  %5522 = vmatpush1.bf16.msra.mxu0 0
  %5523 = vmatprep.subr.bf16.mxu0 0
  %5524 = vmatpush1.bf16.msra.mxu0 0
  %5525 = vmatprep.subr.bf16.mxu0 0
  %5526 = vmatpush1.bf16.msra.mxu0 0
  %5527 = vmatprep.subr.bf16.mxu0 0
  %5528 = vmatpush1.bf16.msra.mxu0 0
  %5529 = vmatprep.subr.bf16.mxu0 0
  %5530 = vmatpush1.bf16.msra.mxu0 0
  %5531 = vmatprep.subr.bf16.mxu0 0
  %5532 = vmatpush1.bf16.msra.mxu0 0
  %5533 = vmatprep.subr.bf16.mxu0 0
  %5534 = vmatpush1.bf16.msra.mxu0 0
  %5535 = vmatprep.mubr.bf16.mxu0 0
  %5536 = vmatmul.mubr.bf16.gmra.mrb[0].mxu0 %v5438
  %v5537 = vpop.f32.mrb[0].mxu0
  %v5538 = vadd.f32 0.0, %v5537
  %v5539 = vpop.f32.mrb[0].mxu0
  %v5540 = vpop.f32.mrb[0].mxu0
  %v5541 = vadd.f32 0.0, %v5540
  %v5542 = vpop.f32.mrb[0].mxu0
  %5543 = vdwg.mxu0
  %v5560 = vunpack.c.l.b16 %v5422
  %v5561 = vunpack.c.l.b16 %v5423
  %v5562 = vunpack.c.l.b16 %v5424
  %v5563 = vunpack.c.l.b16 %v5425
  %v5564 = vunpack.c.l.b16 %v5426
  %v5565 = vunpack.c.l.b16 %v5427
  %v5566 = vunpack.c.l.b16 %v5428
  %v5567 = vunpack.c.l.b16 %v5429
  %v5568 = vunpack.c.l.b16 %v5430
  %v5569 = vunpack.c.l.b16 %v5431
  %v5570 = vunpack.c.l.b16 %v5432
  %v5571 = vunpack.c.l.b16 %v5433
  %v5572 = vunpack.c.l.b16 %v5434
  %v5573 = vunpack.c.l.b16 %v5435
  %v5574 = vunpack.c.l.b16 %v5436
  %v5575 = vunpack.c.l.b16 %v5437
  %v5576 = vpack.c.b16 %v5561, %v5560
  %v5577 = vpack.c.b16 %v5563, %v5562
  %v5578 = vpack.c.b16 %v5565, %v5564
  %v5579 = vpack.c.b16 %v5567, %v5566
  %v5580 = vpack.c.b16 %v5569, %v5568
  %v5581 = vpack.c.b16 %v5571, %v5570
  %v5582 = vpack.c.b16 %v5573, %v5572
  %v5583 = vpack.c.b16 %v5575, %v5574
  %5592 = vmatprep.subr.bf16.mxu0 0
  %5593 = vmatpush1.bf16.msra.mxu0 %v5576
  %5594 = vmatprep.subr.bf16.mxu0 0
  %5595 = vmatpush1.bf16.msra.mxu0 %v5577
  %5596 = vmatprep.subr.bf16.mxu0 0
  %5597 = vmatpush1.bf16.msra.mxu0 %v5578
  %5598 = vmatprep.subr.bf16.mxu0 0
  %5599 = vmatpush1.bf16.msra.mxu0 %v5579
  %5600 = vmatprep.subr.bf16.mxu0 0
  %5601 = vmatpush1.bf16.msra.mxu0 %v5580
  %5602 = vmatprep.subr.bf16.mxu0 0
  %5603 = vmatpush1.bf16.msra.mxu0 %v5581
  %5604 = vmatprep.subr.bf16.mxu0 0
  %5605 = vmatpush1.bf16.msra.mxu0 %v5582
  %5606 = vmatprep.subr.bf16.mxu0 0
  %5607 = vmatpush1.bf16.msra.mxu0 %v5583
  %5608 = vmatprep.subr.bf16.mxu0 0
  %5609 = vmatpush1.bf16.msra.mxu0 0
  %5610 = vmatprep.subr.bf16.mxu0 0
  %5611 = vmatpush1.bf16.msra.mxu0 0
  %5612 = vmatprep.subr.bf16.mxu0 0
  %5613 = vmatpush1.bf16.msra.mxu0 0
  %5614 = vmatprep.subr.bf16.mxu0 0
  %5615 = vmatpush1.bf16.msra.mxu0 0
  %5616 = vmatprep.subr.bf16.mxu0 0
  %5617 = vmatpush1.bf16.msra.mxu0 0
  %5618 = vmatprep.subr.bf16.mxu0 0
  %5619 = vmatpush1.bf16.msra.mxu0 0
  %5620 = vmatprep.subr.bf16.mxu0 0
  %5621 = vmatpush1.bf16.msra.mxu0 0
  %5622 = vmatprep.subr.bf16.mxu0 0
  %5623 = vmatpush1.bf16.msra.mxu0 0
  %5624 = vmatprep.mubr.bf16.mxu0 0
  %5625 = vmatmul.mubr.bf16.gmra.mrb[0].mxu0 %v5421
  %v5626 = vpop.f32.mrb[0].mxu0
  %v5627 = vadd.f32 %v5538, %v5626
  %v5628 = vpop.f32.mrb[0].mxu0
  %v5629 = vpop.f32.mrb[0].mxu0
  %v5630 = vadd.f32 %v5541, %v5629
  %v5631 = vpop.f32.mrb[0].mxu0
  %5632 = vdwg.mxu0
  %v5633 = vpack.c.bf16 %v5418, %v5413
  %v5634 = vld [vmem:[%s25] sm:$0xf]
  %v5635 = vld [vmem:[%s25 + $0x4] sm:$0xf]
  %v5636 = vld [vmem:[%s25 + $0x8] sm:$0xf]
  %v5637 = vld [vmem:[%s25 + $0xc] sm:$0xf]
  %v5638 = vld [vmem:[%s25 + $0x10] sm:$0xf]
  %v5639 = vld [vmem:[%s25 + $0x14] sm:$0xf]
  %v5640 = vld [vmem:[%s25 + $0x18] sm:$0xf]
  %v5641 = vld [vmem:[%s25 + $0x1c] sm:$0xf]
  %v5642 = vld [vmem:[%s25 + $0x20] sm:$0xf]
  %v5643 = vld [vmem:[%s25 + $0x24] sm:$0xf]
  %v5644 = vld [vmem:[%s25 + $0x28] sm:$0xf]
  %v5645 = vld [vmem:[%s25 + $0x2c] sm:$0xf]
  %v5646 = vld [vmem:[%s25 + $0x30] sm:$0xf]
  %v5647 = vld [vmem:[%s25 + $0x34] sm:$0xf]
  %v5648 = vld [vmem:[%s25 + $0x38] sm:$0xf]
  %v5649 = vld [vmem:[%s25 + $0x3c] sm:$0xf]
  %v5666 = vunpack.c.l.b16 %v5634
  %v5667 = vunpack.c.l.b16 %v5635
  %v5668 = vunpack.c.l.b16 %v5636
  %v5669 = vunpack.c.l.b16 %v5637
  %v5670 = vunpack.c.l.b16 %v5638
  %v5671 = vunpack.c.l.b16 %v5639
  %v5672 = vunpack.c.l.b16 %v5640
  %v5673 = vunpack.c.l.b16 %v5641
  %v5674 = vunpack.c.l.b16 %v5642
  %v5675 = vunpack.c.l.b16 %v5643
  %v5676 = vunpack.c.l.b16 %v5644
  %v5677 = vunpack.c.l.b16 %v5645
  %v5678 = vunpack.c.l.b16 %v5646
  %v5679 = vunpack.c.l.b16 %v5647
  %v5680 = vunpack.c.l.b16 %v5648
  %v5681 = vunpack.c.l.b16 %v5649
  %v5682 = vpack.c.b16 %v5667, %v5666
  %v5683 = vpack.c.b16 %v5669, %v5668
  %v5684 = vpack.c.b16 %v5671, %v5670
  %v5685 = vpack.c.b16 %v5673, %v5672
  %v5686 = vpack.c.b16 %v5675, %v5674
  %v5687 = vpack.c.b16 %v5677, %v5676
  %v5688 = vpack.c.b16 %v5679, %v5678
  %v5689 = vpack.c.b16 %v5681, %v5680
  %5698 = vmatprep.subr.bf16.mxu0 0
  %5699 = vmatpush1.bf16.msra.mxu0 %v5682
  %5700 = vmatprep.subr.bf16.mxu0 0
  %5701 = vmatpush1.bf16.msra.mxu0 %v5683
  %5702 = vmatprep.subr.bf16.mxu0 0
  %5703 = vmatpush1.bf16.msra.mxu0 %v5684
  %5704 = vmatprep.subr.bf16.mxu0 0
  %5705 = vmatpush1.bf16.msra.mxu0 %v5685
  %5706 = vmatprep.subr.bf16.mxu0 0
  %5707 = vmatpush1.bf16.msra.mxu0 %v5686
  %5708 = vmatprep.subr.bf16.mxu0 0
  %5709 = vmatpush1.bf16.msra.mxu0 %v5687
  %5710 = vmatprep.subr.bf16.mxu0 0
  %5711 = vmatpush1.bf16.msra.mxu0 %v5688
  %5712 = vmatprep.subr.bf16.mxu0 0
  %5713 = vmatpush1.bf16.msra.mxu0 %v5689
  %5714 = vmatprep.subr.bf16.mxu0 0
  %5715 = vmatpush1.bf16.msra.mxu0 0
  %5716 = vmatprep.subr.bf16.mxu0 0
  %5717 = vmatpush1.bf16.msra.mxu0 0
  %5718 = vmatprep.subr.bf16.mxu0 0
  %5719 = vmatpush1.bf16.msra.mxu0 0
  %5720 = vmatprep.subr.bf16.mxu0 0
  %5721 = vmatpush1.bf16.msra.mxu0 0
  %5722 = vmatprep.subr.bf16.mxu0 0
  %5723 = vmatpush1.bf16.msra.mxu0 0
  %5724 = vmatprep.subr.bf16.mxu0 0
  %5725 = vmatpush1.bf16.msra.mxu0 0
  %5726 = vmatprep.subr.bf16.mxu0 0
  %5727 = vmatpush1.bf16.msra.mxu0 0
  %5728 = vmatprep.subr.bf16.mxu0 0
  %5729 = vmatpush1.bf16.msra.mxu0 0
  %5730 = vmatprep.mubr.bf16.mxu0 0
  %5731 = vmatmul.mubr.bf16.gmra.mrb[0].mxu0 %v5633
  %v5732 = vpop.f32.mrb[0].mxu0
  %v5733 = vadd.f32 0.0, %v5732
  %v5734 = vpop.f32.mrb[0].mxu0
  %v5735 = vpop.f32.mrb[0].mxu0
  %v5736 = vadd.f32 0.0, %v5735
  %v5737 = vpop.f32.mrb[0].mxu0
  %5738 = vdwg.mxu0
  %v5739 = vadd.f32 %v5627, %v5733
  %v5740 = vadd.f32 %v5630, %v5736
  %v5741 = vld [vmem:[%s26] sm:$0xf]
  %v5742 = vld [vmem:[%s26 + $0x4] sm:$0xf]
  %v5743 = vld [vmem:[%s26 + $0x8] sm:$0xf]
  %v5744 = vld [vmem:[%s26 + $0xc] sm:$0xf]
  %v5745 = vld [vmem:[%s26 + $0x10] sm:$0xf]
  %v5746 = vld [vmem:[%s26 + $0x14] sm:$0xf]
  %v5747 = vld [vmem:[%s26 + $0x18] sm:$0xf]
  %v5748 = vld [vmem:[%s26 + $0x1c] sm:$0xf]
  %v5749 = vld [vmem:[%s26 + $0x20] sm:$0xf]
  %v5750 = vld [vmem:[%s26 + $0x24] sm:$0xf]
  %v5751 = vld [vmem:[%s26 + $0x28] sm:$0xf]
  %v5752 = vld [vmem:[%s26 + $0x2c] sm:$0xf]
  %v5753 = vld [vmem:[%s26 + $0x30] sm:$0xf]
  %v5754 = vld [vmem:[%s26 + $0x34] sm:$0xf]
  %v5755 = vld [vmem:[%s26 + $0x38] sm:$0xf]
  %v5756 = vld [vmem:[%s26 + $0x3c] sm:$0xf]
  %v5773 = vunpack.c.l.b16 %v5741
  %v5774 = vunpack.c.l.b16 %v5742
  %v5775 = vunpack.c.l.b16 %v5743
  %v5776 = vunpack.c.l.b16 %v5744
  %v5777 = vunpack.c.l.b16 %v5745
  %v5778 = vunpack.c.l.b16 %v5746
  %v5779 = vunpack.c.l.b16 %v5747
  %v5780 = vunpack.c.l.b16 %v5748
  %v5781 = vunpack.c.l.b16 %v5749
  %v5782 = vunpack.c.l.b16 %v5750
  %v5783 = vunpack.c.l.b16 %v5751
  %v5784 = vunpack.c.l.b16 %v5752
  %v5785 = vunpack.c.l.b16 %v5753
  %v5786 = vunpack.c.l.b16 %v5754
  %v5787 = vunpack.c.l.b16 %v5755
  %v5788 = vunpack.c.l.b16 %v5756
  %v5789 = vpack.c.b16 %v5774, %v5773
  %v5790 = vpack.c.b16 %v5776, %v5775
  %v5791 = vpack.c.b16 %v5778, %v5777
  %v5792 = vpack.c.b16 %v5780, %v5779
  %v5793 = vpack.c.b16 %v5782, %v5781
  %v5794 = vpack.c.b16 %v5784, %v5783
  %v5795 = vpack.c.b16 %v5786, %v5785
  %v5796 = vpack.c.b16 %v5788, %v5787
  %5805 = vmatprep.subr.bf16.mxu0 0
  %5806 = vmatpush1.bf16.msra.mxu0 %v5789
  %5807 = vmatprep.subr.bf16.mxu0 0
  %5808 = vmatpush1.bf16.msra.mxu0 %v5790
  %5809 = vmatprep.subr.bf16.mxu0 0
  %5810 = vmatpush1.bf16.msra.mxu0 %v5791
  %5811 = vmatprep.subr.bf16.mxu0 0
  %5812 = vmatpush1.bf16.msra.mxu0 %v5792
  %5813 = vmatprep.subr.bf16.mxu0 0
  %5814 = vmatpush1.bf16.msra.mxu0 %v5793
  %5815 = vmatprep.subr.bf16.mxu0 0
  %5816 = vmatpush1.bf16.msra.mxu0 %v5794
  %5817 = vmatprep.subr.bf16.mxu0 0
  %5818 = vmatpush1.bf16.msra.mxu0 %v5795
  %5819 = vmatprep.subr.bf16.mxu0 0
  %5820 = vmatpush1.bf16.msra.mxu0 %v5796
  %5821 = vmatprep.subr.bf16.mxu0 0
  %5822 = vmatpush1.bf16.msra.mxu0 0
  %5823 = vmatprep.subr.bf16.mxu0 0
  %5824 = vmatpush1.bf16.msra.mxu0 0
  %5825 = vmatprep.subr.bf16.mxu0 0
  %5826 = vmatpush1.bf16.msra.mxu0 0
  %5827 = vmatprep.subr.bf16.mxu0 0
  %5828 = vmatpush1.bf16.msra.mxu0 0
  %5829 = vmatprep.subr.bf16.mxu0 0
  %5830 = vmatpush1.bf16.msra.mxu0 0
  %5831 = vmatprep.subr.bf16.mxu0 0
  %5832 = vmatpush1.bf16.msra.mxu0 0
  %5833 = vmatprep.subr.bf16.mxu0 0
  %5834 = vmatpush1.bf16.msra.mxu0 0
  %5835 = vmatprep.subr.bf16.mxu0 0
  %5836 = vmatpush1.bf16.msra.mxu0 0
  %5837 = vmatprep.mubr.bf16.mxu0 0
  %5838 = vmatmul.mubr.bf16.gmra.mrb[0].mxu0 %v719
  %v5839 = vpop.f32.mrb[0].mxu0
  %v5840 = vadd.f32 0.0, %v5839
  %v5841 = vpop.f32.mrb[0].mxu0
  %v5842 = vpop.f32.mrb[0].mxu0
  %v5843 = vadd.f32 0.0, %v5842
  %v5844 = vpop.f32.mrb[0].mxu0
  %5845 = vdwg.mxu0
  %v5846 = vadd.f32 %v5739, %v5840
  %v5847 = vadd.f32 %v5740, %v5843
  %v5848 = vmul.f32 %v361, 0.03125
  %v5849 = vmul.f32 %v362, 0.03125
  %v5850 = vmul.f32 %v363, 0.03125
  %v5851 = vmul.f32 %v364, 0.03125
  %v5852 = vmul.f32 %v365, 0.03125
  %v5853 = vmul.f32 %v366, 0.03125
  %v5854 = vmul.f32 %v367, 0.03125
  %v5855 = vmul.f32 %v368, 0.03125
  %v5856 = vfloor.f32 %v5848
  %v5857 = vfloor.f32 %v5849
  %v5858 = vfloor.f32 %v5850
  %v5859 = vfloor.f32 %v5851
  %v5860 = vfloor.f32 %v5852
  %v5861 = vfloor.f32 %v5853
  %v5862 = vfloor.f32 %v5854
  %v5863 = vfloor.f32 %v5855
  %v5864 = vmul.f32 %v377, 0.03125
  %v5865 = vfloor.f32 %v5864
  %vm5866 = vcmp.eq.f32.partialorder %v5856, %v5865
  %vm5867 = vcmp.eq.f32.partialorder %v5857, %v5865
  %vm5868 = vcmp.eq.f32.partialorder %v5858, %v5865
  %vm5869 = vcmp.eq.f32.partialorder %v5859, %v5865
  %vm5870 = vcmp.eq.f32.partialorder %v5860, %v5865
  %vm5871 = vcmp.eq.f32.partialorder %v5861, %v5865
  %vm5872 = vcmp.eq.f32.partialorder %v5862, %v5865
  %vm5873 = vcmp.eq.f32.partialorder %v5863, %v5865
  %v5874 = vsel %vm5866, 0.0034722222, 0.0
  %v5875 = vsel %vm5867, 0.0034722222, 0.0
  %v5876 = vsel %vm5868, 0.0034722222, 0.0
  %v5877 = vsel %vm5869, 0.0034722222, 0.0
  %v5878 = vsel %vm5870, 0.0034722222, 0.0
  %v5879 = vsel %vm5871, 0.0034722222, 0.0
  %v5880 = vsel %vm5872, 0.0034722222, 0.0
  %v5881 = vsel %vm5873, 0.0034722222, 0.0
  %v5882 = vsel %vm234, %v5846, 0.0
  %vm5883 = vcmask 516096
  %v5884 = vsel %vm5883, %v5847, 0.0
  %v5885 = vadd.f32 %v5882, %v5884
  %v5886 = vrot.slane %v5885, 4
  %v5887 = vadd.f32 %v5885, %v5886
  %v5888 = vrot.slane %v5887, 2
  %v5889 = vadd.f32 %v5887, %v5888
  %v5890 = vrot.slane %v5889, 1
  %v5891 = vadd.f32 %v5889, %v5890
  %v5892 = vmul.f32 %v5846, %v5846
  %v5893 = vmul.f32 %v5847, %v5847
  %v5894 = vsel %vm234, %v5892, 0.0
  %v5895 = vsel %vm5883, %v5893, 0.0
  %v5896 = vadd.f32 %v5894, %v5895
  %v5897 = vrot.slane %v5896, 4
  %v5898 = vadd.f32 %v5896, %v5897
  %v5899 = vrot.slane %v5898, 2
  %v5900 = vadd.f32 %v5898, %v5899
  %v5901 = vrot.slane %v5900, 1
  %v5902 = vadd.f32 %v5900, %v5901
  %v5904 = vsel %vm234, %v5891, 0
  %5906 = vmatprep.subr.mxu0 0.0
  %5907 = vmatpush1.msra.mxu0 %v5874
  %5908 = vmatprep.subr.mxu0 0.0
  %5909 = vmatpush1.msra.mxu0 %v5875
  %5910 = vmatprep.subr.mxu0 0.0
  %5911 = vmatpush1.msra.mxu0 %v5876
  %5912 = vmatprep.subr.mxu0 0.0
  %5913 = vmatpush1.msra.mxu0 %v5877
  %5914 = vmatprep.subr.mxu0 0.0
  %5915 = vmatpush1.msra.mxu0 %v5878
  %5916 = vmatprep.subr.mxu0 0.0
  %5917 = vmatpush1.msra.mxu0 %v5879
  %5918 = vmatprep.subr.mxu0 0.0
  %5919 = vmatpush1.msra.mxu0 %v5880
  %5920 = vmatprep.subr.mxu0 0.0
  %5921 = vmatpush1.msra.mxu0 %v5881
  %5922 = vmatprep.subr.mxu0 0.0
  %5923 = vmatpush1.msra.mxu0 0.0
  %5924 = vmatprep.subr.mxu0 0.0
  %5925 = vmatpush1.msra.mxu0 0.0
  %5926 = vmatprep.subr.mxu0 0.0
  %5927 = vmatpush1.msra.mxu0 0.0
  %5928 = vmatprep.subr.mxu0 0.0
  %5929 = vmatpush1.msra.mxu0 0.0
  %5930 = vmatprep.subr.mxu0 0.0
  %5931 = vmatpush1.msra.mxu0 0.0
  %5932 = vmatprep.subr.mxu0 0.0
  %5933 = vmatpush1.msra.mxu0 0.0
  %5934 = vmatprep.subr.mxu0 0.0
  %5935 = vmatpush1.msra.mxu0 0.0
  %5936 = vmatprep.subr.mxu0 0.0
  %5937 = vmatpush1.msra.mxu0 0.0
  %5938 = vmatprep.subr.mxu0 0.0
  %5939 = vmatpush1.msra.mxu0 0.0
  %5940 = vmatprep.subr.mxu0 0.0
  %5941 = vmatpush1.msra.mxu0 0.0
  %5942 = vmatprep.subr.mxu0 0.0
  %5943 = vmatpush1.msra.mxu0 0.0
  %5944 = vmatprep.subr.mxu0 0.0
  %5945 = vmatpush1.msra.mxu0 0.0
  %5946 = vmatprep.subr.mxu0 0.0
  %5947 = vmatpush1.msra.mxu0 0.0
  %5948 = vmatprep.subr.mxu0 0.0
  %5949 = vmatpush1.msra.mxu0 0.0
  %5950 = vmatprep.subr.mxu0 0.0
  %5951 = vmatpush1.msra.mxu0 0.0
  %5952 = vmatprep.subr.mxu0 0.0
  %5953 = vmatpush1.msra.mxu0 0.0
  %5954 = vmatprep.subr.mxu0 0.0
  %5955 = vmatpush1.msra.mxu0 0.0
  %5956 = vmatprep.subr.mxu0 0.0
  %5957 = vmatpush1.msra.mxu0 0.0
  %5958 = vmatprep.subr.mxu0 0.0
  %5959 = vmatpush1.msra.mxu0 0.0
  %5960 = vmatprep.subr.mxu0 0.0
  %5961 = vmatpush1.msra.mxu0 0.0
  %5962 = vmatprep.subr.mxu0 0.0
  %5963 = vmatpush1.msra.mxu0 0.0
  %5964 = vmatprep.subr.mxu0 0.0
  %5965 = vmatpush1.msra.mxu0 0.0
  %5966 = vmatprep.subr.mxu0 0.0
  %5967 = vmatpush1.msra.mxu0 0.0
  %5968 = vmatprep.subr.mxu0 0.0
  %5969 = vmatpush1.msra.mxu0 0.0
  %5970 = vmatprep.mubr.f32.mxu0 0.0
  %5971 = vmatmul.mubr.f32.gmra.mrb[0].mxu0 %v5904
  %v5972 = vpop.f32.mrb[0].mxu0
  %v5973 = vadd.f32 0.0, %v5972
  %v5974 = vpop.f32.mrb[0].mxu0
  %5975 = vdwg.mxu0
  %v5977 = vsel %vm234, %v5902, 0
  %5979 = vmatprep.subr.mxu0 0.0
  %5980 = vmatpush1.msra.mxu0 %v5874
  %5981 = vmatprep.subr.mxu0 0.0
  %5982 = vmatpush1.msra.mxu0 %v5875
  %5983 = vmatprep.subr.mxu0 0.0
  %5984 = vmatpush1.msra.mxu0 %v5876
  %5985 = vmatprep.subr.mxu0 0.0
  %5986 = vmatpush1.msra.mxu0 %v5877
  %5987 = vmatprep.subr.mxu0 0.0
  %5988 = vmatpush1.msra.mxu0 %v5878
  %5989 = vmatprep.subr.mxu0 0.0
  %5990 = vmatpush1.msra.mxu0 %v5879
  %5991 = vmatprep.subr.mxu0 0.0
  %5992 = vmatpush1.msra.mxu0 %v5880
  %5993 = vmatprep.subr.mxu0 0.0
  %5994 = vmatpush1.msra.mxu0 %v5881
  %5995 = vmatprep.subr.mxu0 0.0
  %5996 = vmatpush1.msra.mxu0 0.0
  %5997 = vmatprep.subr.mxu0 0.0
  %5998 = vmatpush1.msra.mxu0 0.0
  %5999 = vmatprep.subr.mxu0 0.0
  %6000 = vmatpush1.msra.mxu0 0.0
  %6001 = vmatprep.subr.mxu0 0.0
  %6002 = vmatpush1.msra.mxu0 0.0
  %6003 = vmatprep.subr.mxu0 0.0
  %6004 = vmatpush1.msra.mxu0 0.0
  %6005 = vmatprep.subr.mxu0 0.0
  %6006 = vmatpush1.msra.mxu0 0.0
  %6007 = vmatprep.subr.mxu0 0.0
  %6008 = vmatpush1.msra.mxu0 0.0
  %6009 = vmatprep.subr.mxu0 0.0
  %6010 = vmatpush1.msra.mxu0 0.0
  %6011 = vmatprep.subr.mxu0 0.0
  %6012 = vmatpush1.msra.mxu0 0.0
  %6013 = vmatprep.subr.mxu0 0.0
  %6014 = vmatpush1.msra.mxu0 0.0
  %6015 = vmatprep.subr.mxu0 0.0
  %6016 = vmatpush1.msra.mxu0 0.0
  %6017 = vmatprep.subr.mxu0 0.0
  %6018 = vmatpush1.msra.mxu0 0.0
  %6019 = vmatprep.subr.mxu0 0.0
  %6020 = vmatpush1.msra.mxu0 0.0
  %6021 = vmatprep.subr.mxu0 0.0
  %6022 = vmatpush1.msra.mxu0 0.0
  %6023 = vmatprep.subr.mxu0 0.0
  %6024 = vmatpush1.msra.mxu0 0.0
  %6025 = vmatprep.subr.mxu0 0.0
  %6026 = vmatpush1.msra.mxu0 0.0
  %6027 = vmatprep.subr.mxu0 0.0
  %6028 = vmatpush1.msra.mxu0 0.0
  %6029 = vmatprep.subr.mxu0 0.0
  %6030 = vmatpush1.msra.mxu0 0.0
  %6031 = vmatprep.subr.mxu0 0.0
  %6032 = vmatpush1.msra.mxu0 0.0
  %6033 = vmatprep.subr.mxu0 0.0
  %6034 = vmatpush1.msra.mxu0 0.0
  %6035 = vmatprep.subr.mxu0 0.0
  %6036 = vmatpush1.msra.mxu0 0.0
  %6037 = vmatprep.subr.mxu0 0.0
  %6038 = vmatpush1.msra.mxu0 0.0
  %6039 = vmatprep.subr.mxu0 0.0
  %6040 = vmatpush1.msra.mxu0 0.0
  %6041 = vmatprep.subr.mxu0 0.0
  %6042 = vmatpush1.msra.mxu0 0.0
  %6043 = vmatprep.mubr.f32.mxu0 0.0
  %6044 = vmatmul.mubr.f32.gmra.mrb[0].mxu0 %v5977
  %v6045 = vpop.f32.mrb[0].mxu0
  %v6046 = vadd.f32 0.0, %v6045
  %v6047 = vpop.f32.mrb[0].mxu0
  %6048 = vdwg.mxu0
  %v6049 = vmul.f32 %v5973, %v5973
  %v6050 = vsub.f32 %v6046, %v6049
  %v6051 = vlaneseq
  %v6052 = vshrl.u32 %v6051, 7
  %v6053 = vsub.s32 0, %v6052
  %v6054 = vrot.slane %v5973, %v6053
  %v6055 = vsub.f32 %v5846, %v6054
  %v6056 = vsub.f32 %v5847, %v6054
  %v6057 = vadd.f32 %v6050, 1e-05
  %v6058 = vrsqrt.pop %v6057
  %v6059 = vlaneseq
  %v6060 = vshrl.u32 %v6059, 7
  %v6061 = vsub.s32 0, %v6060
  %v6062 = vrot.slane %v6058, %v6061
  %v6063 = vmul.f32 %v6055, %v6062
  %v6064 = vmul.f32 %v6056, %v6062
  %vm6065 = vcmp.gt.f32.partialorder %v6063, 0.0
  %vm6066 = vcmp.gt.f32.partialorder %v6064, 0.0
  %v6067 = vmul.f32 %v6063, 0.25
  %v6068 = vmul.f32 %v6064, 0.25
  %v6069 = vsel %vm6065, %v6063, %v6067
  %v6070 = vsel %vm6066, %v6064, %v6068
  %6071 = vst.msk [vmem:[%s27] sm:$0xff] %vm234, %v6069
  %6072 = vst.msk [vmem:[%s27 + $0x8] sm:$0x1] %vm5883, %v6070
  // Predicated region
  $region110: #{dccrn_forward.1} parent=0 // pred_check
    _
  $region111: #{dccrn_forward.1} parent=0 // pred_check_branch
    %6074 = sbr.rel (0) target = $region113
  $region112: #{dccrn_forward.1} parent=0 // pred_region
    _
  $region113: #{dccrn_forward.1} parent=0 // pred_fallthru
    _
  // Predicated region
  $region114: #{dccrn_forward.1} parent=0 // pred_check
    _
  $region115: #{dccrn_forward.1} parent=0 // pred_check_branch
    %6076 = sbr.rel (0) target = $region117
  $region116: #{dccrn_forward.1} parent=0 // pred_region
    _
  $region117: #{dccrn_forward.1} parent=0 // pred_fallthru
    _

</llo_original>
